<compile_context>
chip_gen: v7x
topology: tpu7x:2x2x1
jax: 0.10.0
libtpu: 0.0.40
codegen_flags: <defaults>
</compile_context>

<pallas_src>
import functools
import math

import jax
import jax.numpy as jnp
from jax.experimental import pallas as pl
from jax.experimental.pallas import tpu as pltpu

F32 = jnp.float32
BF16 = jnp.bfloat16
_BN_EPS = 1e-5


# ------------------------------------------------------------------ kernels -
def _apply_relu_cols(y, relu_cols):
    """ReLU on the first `relu_cols` columns only (static Python int)."""
    n = y.shape[-1]
    if relu_cols >= n:                       # full ReLU
        return jnp.maximum(y, 0.0)
    if relu_cols <= 0:                       # no activation
        return y
    col = jax.lax.broadcasted_iota(jnp.int32, y.shape, 1)
    return jnp.where(col < relu_cols, jnp.maximum(y, 0.0), y)


def _gemm_kernel(x_ref, w_ref, b_ref, o_ref, *, relu_cols):
    """(TM,K)bf16 @ (K,N)bf16 -> f32 acc, + bias, (partial) ReLU, cast-store."""
    y = jnp.dot(x_ref[...].astype(BF16), w_ref[...],
                preferred_element_type=jnp.float32)
    y = y + b_ref[...]
    o_ref[...] = _apply_relu_cols(y, relu_cols).astype(o_ref.dtype)


def _gemm_res_kernel(x_ref, w_ref, b_ref, r_ref, o_ref, *, relu_cols):
    """Same, plus a fused residual add (in f32) before the activation."""
    y = jnp.dot(x_ref[...].astype(BF16), w_ref[...],
                preferred_element_type=jnp.float32)
    y = y + b_ref[...] + r_ref[...].astype(jnp.float32)
    o_ref[...] = _apply_relu_cols(y, relu_cols).astype(o_ref.dtype)


# ----------------------------------------------------------------- wrappers -
def _ceil_to(x, m):
    return (x + m - 1) // m * m


def _const_spec(block_shape):
    """Grid-invariant operand (weight / bias): request a single pipeline buffer."""
    index_map = lambda i: (0,) * len(block_shape)
    try:
        return pl.BlockSpec(block_shape, index_map, pipeline_mode=pl.Buffered(1))
    except Exception:            # fall back cleanly if pipeline_mode unsupported
        return pl.BlockSpec(block_shape, index_map)


def _pick_tm(M, K, tm_max):
    """Row tile: >= 2 grid blocks (v7x 2nd TC), 8-aligned, VMEM-bounded."""
    tm = min(tm_max, _ceil_to(max(1, pl.cdiv(M, 2)), 8))
    # keep the double-buffered bf16 (TM, K) activation block under ~4 MiB
    tm_vmem = max(8, ((4 << 20) // (2 * 2 * max(K, 1))) // 8 * 8)
    return max(8, min(tm, tm_vmem))


def _fused_gemm(x2d, w2d, bias, *, residual=None, relu_cols=0,
                out_dtype=BF16, tm_max=1024):
    """Row-tiled GEMM with fused bias / residual / activation epilogue.

    x2d: (M, K) bf16 activations, w2d: (K, N) folded weights, bias: (N,).
    f32 MXU accumulation; bias / residual add in f32; output cast to out_dtype.
    Ragged last M block is handled by Pallas (masked partial block) -- no pads.
    """
    M, K = x2d.shape
    N = w2d.shape[1]
    TM = _pick_tm(M, K, tm_max)

    wk = w2d.astype(BF16)
    bk = bias.reshape(1, N).astype(F32)

    in_specs = [pl.BlockSpec((TM, K), lambda i: (i, 0)),
                _const_spec((K, N)),
                _const_spec((1, N))]
    args = [x2d, wk, bk]
    if residual is not None:
        in_specs.append(pl.BlockSpec((TM, N), lambda i: (i, 0)))
        args.append(residual)
        kernel = functools.partial(_gemm_res_kernel, relu_cols=relu_cols)
    else:
        kernel = functools.partial(_gemm_kernel, relu_cols=relu_cols)

    return pl.pallas_call(
        kernel,
        out_shape=jax.ShapeDtypeStruct((M, N), out_dtype),
        grid=(pl.cdiv(M, TM),),
        in_specs=in_specs,
        out_specs=pl.BlockSpec((TM, N), lambda i: (i, 0)),
        compiler_params=pltpu.CompilerParams(
            dimension_semantics=("parallel",)),
    )(*args)


def _fold_bn(w, bn, eps=_BN_EPS):
    """Fold inference BatchNorm into a torch-layout conv weight; return bias."""
    s = bn["gamma"] * jax.lax.rsqrt(bn["var"] + eps)
    shift = bn["beta"] - bn["mean"] * s
    return w * s.reshape(-1, 1, 1, 1, 1), shift


def _im2col_k(x, ksize, stride, padding):
    """x: (B, D, H, W, C) -> patches (M, T*C), tap-major / channel-minor K."""
    B, D, H, W, C = x.shape
    kd, kh, kw = ksize
    sd, sh, sw = stride
    pd, ph, pw = padding
    xp = jnp.pad(x, ((0, 0), (pd, pd), (ph, ph), (pw, pw), (0, 0)))
    Dp, Hp, Wp = D + 2 * pd, H + 2 * ph, W + 2 * pw
    Do = (Dp - kd) // sd + 1
    Ho = (Hp - kh) // sh + 1
    Wo = (Wp - kw) // sw + 1
    M = B * Do * Ho * Wo
    cols = []
    for i in range(kd):
        for j in range(kh):
            for k in range(kw):
                sl = xp[:,
                        i: i + sd * (Do - 1) + 1: sd,
                        j: j + sh * (Ho - 1) + 1: sh,
                        k: k + sw * (Wo - 1) + 1: sw, :]
                cols.append(sl.reshape(M, C))
    return jnp.concatenate(cols, axis=-1), (Do, Ho, Wo)


def _blockdiag_weight(w, groups):
    """Grouped conv weight (Cout, Cin_g, kd, kh, kw) -> dense (T*Cin, Cout)."""
    Cout, Cin_g, kd, kh, kw = w.shape
    T = kd * kh * kw
    Cout_g = Cout // groups
    Cin = Cin_g * groups
    wt = w.reshape(groups, Cout_g, Cin_g, T)          # (G, Co_g, Ci_g, T)
    wt = jnp.transpose(wt, (3, 0, 2, 1))              # (T, G, Ci_g, Co_g)
    eye = jnp.eye(groups, dtype=w.dtype)
    dense = jnp.einsum("tgic,gh->tgihc", wt, eye)     # (T, G, Ci_g, G, Co_g)
    return dense.reshape(T * Cin, Cout)


def conv1x1_bn_act(x5, w, bn, *, relu, stride=1, out_dtype=BF16):
    """1x1x1 conv (no bias) + folded BN + optional ReLU, one GEMM."""
    if stride != 1:
        x5 = x5[:, ::stride, ::stride, ::stride, :]
    B, D, H, W, Cin = x5.shape
    Cout = w.shape[0]
    w_f, shift = _fold_bn(w, bn)
    y = _fused_gemm(x5.reshape(-1, Cin), w_f.reshape(Cout, Cin).T, shift,
                    relu_cols=(Cout if relu else 0), out_dtype=out_dtype)
    return y.reshape(B, D, H, W, Cout)


def conv1_downsample_fused(x5, w1, bn1, wd, bnd):
    """stride-1 block with downsample: conv1(+ReLU) and 1x1 downsample as ONE
    GEMM (weights concatenated along N, ReLU masked to the conv1 columns)."""
    B, D, H, W, Cin = x5.shape
    mid, cdown = w1.shape[0], wd.shape[0]
    w1f, b1 = _fold_bn(w1, bn1)
    wdf, bd = _fold_bn(wd, bnd)
    w2d = jnp.concatenate([w1f.reshape(mid, Cin).T,
                           wdf.reshape(cdown, Cin).T], axis=1)
    bias = jnp.concatenate([b1, bd])
    y = _fused_gemm(x5.reshape(-1, Cin), w2d, bias,
                    relu_cols=mid, out_dtype=BF16)
    y = y.reshape(B, D, H, W, mid + cdown)
    return y[..., :mid], y[..., mid:]


def grouped_conv3_bn_relu(x5, w, bn, *, stride, groups):
    """3x3x3 grouped conv (pad 1, no bias) + folded BN + ReLU as one
    block-diagonal GEMM (K = 27*Cin, groups packed into the lane dim).

    TODO(synk): replace the JAX-side (bf16) im2col with in-kernel patch
    assembly / halo DMA to drop the remaining 27x HBM materialization."""
    B = x5.shape[0]
    Cout = w.shape[0]
    w_f, shift = _fold_bn(w, bn)
    wk = _blockdiag_weight(w_f, groups)
    patches, (Do, Ho, Wo) = _im2col_k(x5.astype(BF16), (3, 3, 3),
                                      (stride,) * 3, (1, 1, 1))
    y = _fused_gemm(patches, wk, shift, relu_cols=Cout,
                    out_dtype=BF16, tm_max=512)
    return y.reshape(B, Do, Ho, Wo, Cout)


# -------------------------------------------------------------- bottleneck --
def resnext_bottleneck_forward(p, x5, *, out_dtype=BF16):
    """conv1/bn1/relu -> grouped conv2/bn2/relu -> conv3/bn3 (+residual) -> relu."""
    stride = p["stride"]
    has_down = "down_w" in p

    if has_down and stride == 1:
        out, residual = conv1_downsample_fused(
            x5, p["conv1_w"], p["bn1"], p["down_w"], p["down_bn"])
    else:
        out = conv1x1_bn_act(x5, p["conv1_w"], p["bn1"], relu=True)
        if has_down:
            residual = conv1x1_bn_act(x5, p["down_w"], p["down_bn"],
                                      relu=False, stride=stride)
        else:
            residual = x5

    out = grouped_conv3_bn_relu(out, p["conv2_w"], p["bn2"],
                                stride=stride, groups=p["cardinality"])

    B, Do, Ho, Wo, Cmid = out.shape
    Cout = p["conv3_w"].shape[0]
    w_f, shift = _fold_bn(p["conv3_w"], p["bn3"])
    y = _fused_gemm(out.reshape(-1, Cmid), w_f.reshape(Cout, Cmid).T, shift,
                    residual=residual.reshape(-1, Cout),
                    relu_cols=Cout, out_dtype=out_dtype)
    return y.reshape(B, Do, Ho, Wo, Cout)


def resnext_bottleneck_stack(blocks, x_ncdhw):
    """Public wrapper: NCDHW f32 in / f32 out.  Internals run channels-last
    (NDHWC) in bf16; only the final stack output is stored in f32."""
    x = jnp.transpose(x_ncdhw, (0, 2, 3, 4, 1)).astype(BF16)   # -> NDHWC bf16
    for i, blk in enumerate(blocks):
        last = (i == len(blocks) - 1)
        x = resnext_bottleneck_forward(blk, x, out_dtype=F32 if last else BF16)
    return jnp.transpose(x, (0, 4, 1, 2, 3))                   # -> NCDHW f32


# ---------------------------------------------------------------- reference -
def _ref_bn(x, bn, eps=_BN_EPS):
    return (x - bn["mean"]) * jax.lax.rsqrt(bn["var"] + eps) * bn["gamma"] + bn["beta"]


def _ref_conv3d(x, w, *, stride, padding, groups=1):
    wj = jnp.transpose(w, (2, 3, 4, 1, 0))   # (kd, kh, kw, Cin_g, Cout)
    return jax.lax.conv_general_dilated(
        x, wj, window_strides=(stride,) * 3,
        padding=[(padding, padding)] * 3,
        dimension_numbers=("NDHWC", "DHWIO", "NDHWC"),
        feature_group_count=groups)


def _ref_bottleneck(p, x):
    out = jnp.maximum(
        _ref_bn(_ref_conv3d(x, p["conv1_w"], stride=1, padding=0), p["bn1"]), 0.0)
    out = jnp.maximum(
        _ref_bn(_ref_conv3d(out, p["conv2_w"], stride=p["stride"], padding=1,
                            groups=p["cardinality"]), p["bn2"]), 0.0)
    out = _ref_bn(_ref_conv3d(out, p["conv3_w"], stride=1, padding=0), p["bn3"])
    if "down_w" in p:
        res = _ref_bn(_ref_conv3d(x, p["down_w"], stride=p["stride"], padding=0),
                      p["down_bn"])
    else:
        res = x
    return jnp.maximum(out + res, 0.0)


# ------------------------------------------------------------------ params --
def make_block_params(key, inplanes, planes, cardinality, stride, expansion=2):
    mid = cardinality * (planes // 32)
    out_planes = planes * expansion
    ks = jax.random.split(key, 8)

    def conv_w(k, cout, cin_g, ksz):
        fan = cout * ksz ** 3
        return jax.random.normal(k, (cout, cin_g, ksz, ksz, ksz), F32) * math.sqrt(2.0 / fan)

    def bn(k, c):
        k1, k2, k3, k4 = jax.random.split(k, 4)
        return {"gamma": jax.random.uniform(k1, (c,), F32, 0.5, 1.5),
                "beta": jax.random.normal(k2, (c,), F32) * 0.1,
                "mean": jax.random.normal(k3, (c,), F32) * 0.1,
                "var": jax.random.uniform(k4, (c,), F32, 0.5, 1.5)}

    p = {"stride": stride, "cardinality": cardinality,
         "conv1_w": conv_w(ks[0], mid, inplanes, 1), "bn1": bn(ks[1], mid),
         "conv2_w": conv_w(ks[2], mid, mid // cardinality, 3), "bn2": bn(ks[3], mid),
         "conv3_w": conv_w(ks[4], out_planes, mid, 1), "bn3": bn(ks[5], out_planes)}
    if stride != 1 or inplanes != out_planes:
        p["down_w"] = conv_w(ks[6], out_planes, inplanes, 1)
        p["down_bn"] = bn(ks[7], out_planes)
    return p


if __name__ == "__main__":
    key = jax.random.PRNGKey(0)
    k_x, k_b1, k_b2, k_b3 = jax.random.split(key, 4)

    cardinality = 32
    x = jax.random.normal(k_x, (2, 64, 4, 8, 8), F32)   # NCDHW

    blocks = [
        # stride-2 block with a 1x1-conv+BN downsample shortcut
        make_block_params(k_b1, 64, 64, cardinality, stride=2),
        # identity-shortcut block (inplanes == planes * expansion)
        make_block_params(k_b2, 128, 64, cardinality, stride=1),
        # stride-1 block with a downsample -> exercises the fused conv1+down GEMM
        make_block_params(k_b3, 128, 128, cardinality, stride=1),
    ]

    fwd = jax.jit(lambda inp: resnext_bottleneck_stack(blocks, inp))
    y = jax.block_until_ready(fwd(x))
    assert y.shape == (2, 256, 2, 4, 4), y.shape
    assert bool(jnp.all(jnp.isfinite(y)))

    # Pure-JAX f32 reference (kernels use bf16 activations/operands -> loose tol)
    xr = jnp.transpose(x, (0, 2, 3, 4, 1))
    for blk in blocks:
        xr = _ref_bottleneck(blk, xr)
    ref = jnp.transpose(xr, (0, 4, 1, 2, 3))
    err = float(jnp.max(jnp.abs(y - ref)))
    scale = float(jnp.max(jnp.abs(ref))) + 1e-6
    assert err <= 0.06 * scale, (err, scale)

    print("KERNEL_OK")
</pallas_src>

<mosaic_0001>
module attributes {stable_mosaic.version = 11 : i64} {
  func.func @_gemm_kernel(%arg0: i32, %arg1: memref<256x64xbf16, #tpu.memory_space<vmem>>, %arg2: memref<64x64xbf16, #tpu.memory_space<vmem>>, %arg3: memref<1x64xf32, #tpu.memory_space<vmem>>, %arg4: memref<256x64xbf16, #tpu.memory_space<vmem>>) attributes {dimension_semantics = [#tpu.dimension_semantics<parallel>], iteration_bounds = array<i64: 2>, scalar_prefetch = 0 : i64, scratch_operands = 0 : i64, tpu.core_type = #tpu.core_type<tc>, window_params = [{transform_indices = @transform_0, window_bounds = array<i64: 256, 64>}, {pipeline_mode = #tpu.pipeline_mode<synchronous>, transform_indices = @transform_1, window_bounds = array<i64: 64, 64>}, {pipeline_mode = #tpu.pipeline_mode<synchronous>, transform_indices = @transform_2, window_bounds = array<i64: 1, 64>}, {transform_indices = @transform_3, window_bounds = array<i64: 256, 64>}]} {
    %c0 = arith.constant 0 : index
    %c0_0 = arith.constant 0 : index
    %0 = vector.load %arg1[%c0, %c0_0] : memref<256x64xbf16, #tpu.memory_space<vmem>>, vector<256x64xbf16>
    %c0_1 = arith.constant 0 : index
    %c0_2 = arith.constant 0 : index
    %1 = vector.load %arg2[%c0_1, %c0_2] : memref<64x64xbf16, #tpu.memory_space<vmem>>, vector<64x64xbf16>
    %cst = arith.constant dense<0.000000e+00> : vector<256x64xf32>
    %2 = tpu.matmul %0, %1, %cst {dimension_numbers = #tpu.dot_dimension_numbers<[1], [0], [0], [1], [0, 0, 1, 1], [], []>} : vector<256x64xbf16>, vector<64x64xbf16>, vector<256x64xf32> -> vector<256x64xf32>
    %c0_3 = arith.constant 0 : index
    %c0_4 = arith.constant 0 : index
    %3 = vector.load %arg3[%c0_3, %c0_4] : memref<1x64xf32, #tpu.memory_space<vmem>>, vector<1x64xf32>
    %4 = vector.broadcast %3 : vector<1x64xf32> to vector<256x64xf32>
    %5 = arith.addf %2, %4 : vector<256x64xf32>
    %cst_5 = arith.constant 0.000000e+00 : f32
    %6 = vector.broadcast %cst_5 : f32 to vector<256x64xf32>
    %7 = arith.maximumf %5, %6 : vector<256x64xf32>
    %8 = arith.truncf %7 : vector<256x64xf32> to vector<256x64xbf16>
    %c0_6 = arith.constant 0 : index
    %c0_7 = arith.constant 0 : index
    %9 = vector.load %arg4[%c0_6, %c0_7] : memref<256x64xbf16, #tpu.memory_space<vmem>>, vector<256x64xbf16>
    tpu.vector_store %arg4[%c0_6, %c0_7], %8 {strides = array<i32>} : memref<256x64xbf16, #tpu.memory_space<vmem>>, vector<256x64xbf16>,
    return
  }
  func.func @transform_0(%arg0: i32) -> (i32, i32) {
    %c0_i32 = arith.constant 0 : i32
    %c0_i32_0 = arith.constant 0 : i32
    return %arg0, %c0_i32 : i32, i32
  }
  func.func @transform_1(%arg0: i32) -> (i32, i32) {
    %c0_i32 = arith.constant 0 : i32
    %c0_i32_0 = arith.constant 0 : i32
    %c0_i32_1 = arith.constant 0 : i32
    return %c0_i32, %c0_i32_0 : i32, i32
  }
  func.func @transform_2(%arg0: i32) -> (i32, i32) {
    %c0_i32 = arith.constant 0 : i32
    %c0_i32_0 = arith.constant 0 : i32
    %c0_i32_1 = arith.constant 0 : i32
    return %c0_i32, %c0_i32_0 : i32, i32
  }
  func.func @transform_3(%arg0: i32) -> (i32, i32) {
    %c0_i32 = arith.constant 0 : i32
    %c0_i32_0 = arith.constant 0 : i32
    return %arg0, %c0_i32 : i32, i32
  }
}

module attributes {stable_mosaic.version = 11 : i64} {
  func.func @_gemm_kernel(%arg0: i32, %arg1: memref<32x1728xbf16, #tpu.memory_space<vmem>>, %arg2: memref<1728x64xbf16, #tpu.memory_space<vmem>>, %arg3: memref<1x64xf32, #tpu.memory_space<vmem>>, %arg4: memref<32x64xbf16, #tpu.memory_space<vmem>>) attributes {dimension_semantics = [#tpu.dimension_semantics<parallel>], iteration_bounds = array<i64: 2>, scalar_prefetch = 0 : i64, scratch_operands = 0 : i64, tpu.core_type = #tpu.core_type<tc>, window_params = [{transform_indices = @transform_0, window_bounds = array<i64: 32, 1728>}, {pipeline_mode = #tpu.pipeline_mode<synchronous>, transform_indices = @transform_1, window_bounds = array<i64: 1728, 64>}, {pipeline_mode = #tpu.pipeline_mode<synchronous>, transform_indices = @transform_2, window_bounds = array<i64: 1, 64>}, {transform_indices = @transform_3, window_bounds = array<i64: 32, 64>}]} {
    %c0 = arith.constant 0 : index
    %c0_0 = arith.constant 0 : index
    %0 = vector.load %arg1[%c0, %c0_0] : memref<32x1728xbf16, #tpu.memory_space<vmem>>, vector<32x1728xbf16>
    %c0_1 = arith.constant 0 : index
    %c0_2 = arith.constant 0 : index
    %1 = vector.load %arg2[%c0_1, %c0_2] : memref<1728x64xbf16, #tpu.memory_space<vmem>>, vector<1728x64xbf16>
    %cst = arith.constant dense<0.000000e+00> : vector<32x64xf32>
    %2 = tpu.matmul %0, %1, %cst {dimension_numbers = #tpu.dot_dimension_numbers<[1], [0], [0], [1], [0, 0, 1, 1], [], []>} : vector<32x1728xbf16>, vector<1728x64xbf16>, vector<32x64xf32> -> vector<32x64xf32>
    %c0_3 = arith.constant 0 : index
    %c0_4 = arith.constant 0 : index
    %3 = vector.load %arg3[%c0_3, %c0_4] : memref<1x64xf32, #tpu.memory_space<vmem>>, vector<1x64xf32>
    %4 = vector.broadcast %3 : vector<1x64xf32> to vector<32x64xf32>
    %5 = arith.addf %2, %4 : vector<32x64xf32>
    %cst_5 = arith.constant 0.000000e+00 : f32
    %6 = vector.broadcast %cst_5 : f32 to vector<32x64xf32>
    %7 = arith.maximumf %5, %6 : vector<32x64xf32>
    %8 = arith.truncf %7 : vector<32x64xf32> to vector<32x64xbf16>
    %c0_6 = arith.constant 0 : index
    %c0_7 = arith.constant 0 : index
    %9 = vector.load %arg4[%c0_6, %c0_7] : memref<32x64xbf16, #tpu.memory_space<vmem>>, vector<32x64xbf16>
    tpu.vector_store %arg4[%c0_6, %c0_7], %8 {strides = array<i32>} : memref<32x64xbf16, #tpu.memory_space<vmem>>, vector<32x64xbf16>,
    return
  }
  func.func @transform_0(%arg0: i32) -> (i32, i32) {
    %c0_i32 = arith.constant 0 : i32
    %c0_i32_0 = arith.constant 0 : i32
    return %arg0, %c0_i32 : i32, i32
  }
  func.func @transform_1(%arg0: i32) -> (i32, i32) {
    %c0_i32 = arith.constant 0 : i32
    %c0_i32_0 = arith.constant 0 : i32
    %c0_i32_1 = arith.constant 0 : i32
    return %c0_i32, %c0_i32_0 : i32, i32
  }
  func.func @transform_2(%arg0: i32) -> (i32, i32) {
    %c0_i32 = arith.constant 0 : i32
    %c0_i32_0 = arith.constant 0 : i32
    %c0_i32_1 = arith.constant 0 : i32
    return %c0_i32, %c0_i32_0 : i32, i32
  }
  func.func @transform_3(%arg0: i32) -> (i32, i32) {
    %c0_i32 = arith.constant 0 : i32
    %c0_i32_0 = arith.constant 0 : i32
    return %arg0, %c0_i32 : i32, i32
  }
}

module attributes {stable_mosaic.version = 11 : i64} {
  func.func @_gemm_kernel(%arg0: i32, %arg1: memref<32x64xbf16, #tpu.memory_space<vmem>>, %arg2: memref<64x128xbf16, #tpu.memory_space<vmem>>, %arg3: memref<1x128xf32, #tpu.memory_space<vmem>>, %arg4: memref<32x128xbf16, #tpu.memory_space<vmem>>) attributes {dimension_semantics = [#tpu.dimension_semantics<parallel>], iteration_bounds = array<i64: 2>, scalar_prefetch = 0 : i64, scratch_operands = 0 : i64, tpu.core_type = #tpu.core_type<tc>, window_params = [{transform_indices = @transform_0, window_bounds = array<i64: 32, 64>}, {pipeline_mode = #tpu.pipeline_mode<synchronous>, transform_indices = @transform_1, window_bounds = array<i64: 64, 128>}, {pipeline_mode = #tpu.pipeline_mode<synchronous>, transform_indices = @transform_2, window_bounds = array<i64: 1, 128>}, {transform_indices = @transform_3, window_bounds = array<i64: 32, 128>}]} {
    %c0 = arith.constant 0 : index
    %c0_0 = arith.constant 0 : index
    %0 = vector.load %arg1[%c0, %c0_0] : memref<32x64xbf16, #tpu.memory_space<vmem>>, vector<32x64xbf16>
    %c0_1 = arith.constant 0 : index
    %c0_2 = arith.constant 0 : index
    %1 = vector.load %arg2[%c0_1, %c0_2] : memref<64x128xbf16, #tpu.memory_space<vmem>>, vector<64x128xbf16>
    %cst = arith.constant dense<0.000000e+00> : vector<32x128xf32>
    %2 = tpu.matmul %0, %1, %cst {dimension_numbers = #tpu.dot_dimension_numbers<[1], [0], [0], [1], [0, 0, 1, 1], [], []>} : vector<32x64xbf16>, vector<64x128xbf16>, vector<32x128xf32> -> vector<32x128xf32>
    %c0_3 = arith.constant 0 : index
    %c0_4 = arith.constant 0 : index
    %3 = vector.load %arg3[%c0_3, %c0_4] : memref<1x128xf32, #tpu.memory_space<vmem>>, vector<1x128xf32>
    %4 = vector.broadcast %3 : vector<1x128xf32> to vector<32x128xf32>
    %5 = arith.addf %2, %4 : vector<32x128xf32>
    %6 = arith.truncf %5 : vector<32x128xf32> to vector<32x128xbf16>
    %c0_5 = arith.constant 0 : index
    %c0_6 = arith.constant 0 : index
    %7 = vector.load %arg4[%c0_5, %c0_6] : memref<32x128xbf16, #tpu.memory_space<vmem>>, vector<32x128xbf16>
    tpu.vector_store %arg4[%c0_5, %c0_6], %6 {strides = array<i32>} : memref<32x128xbf16, #tpu.memory_space<vmem>>, vector<32x128xbf16>,
    return
  }
  func.func @transform_0(%arg0: i32) -> (i32, i32) {
    %c0_i32 = arith.constant 0 : i32
    %c0_i32_0 = arith.constant 0 : i32
    return %arg0, %c0_i32 : i32, i32
  }
  func.func @transform_1(%arg0: i32) -> (i32, i32) {
    %c0_i32 = arith.constant 0 : i32
    %c0_i32_0 = arith.constant 0 : i32
    %c0_i32_1 = arith.constant 0 : i32
    return %c0_i32, %c0_i32_0 : i32, i32
  }
  func.func @transform_2(%arg0: i32) -> (i32, i32) {
    %c0_i32 = arith.constant 0 : i32
    %c0_i32_0 = arith.constant 0 : i32
    %c0_i32_1 = arith.constant 0 : i32
    return %c0_i32, %c0_i32_0 : i32, i32
  }
  func.func @transform_3(%arg0: i32) -> (i32, i32) {
    %c0_i32 = arith.constant 0 : i32
    %c0_i32_0 = arith.constant 0 : i32
    return %arg0, %c0_i32 : i32, i32
  }
}

module attributes {stable_mosaic.version = 11 : i64} {
  func.func @_gemm_res_kernel(%arg0: i32, %arg1: memref<32x64xbf16, #tpu.memory_space<vmem>>, %arg2: memref<64x128xbf16, #tpu.memory_space<vmem>>, %arg3: memref<1x128xf32, #tpu.memory_space<vmem>>, %arg4: memref<32x128xbf16, #tpu.memory_space<vmem>>, %arg5: memref<32x128xbf16, #tpu.memory_space<vmem>>) attributes {dimension_semantics = [#tpu.dimension_semantics<parallel>], iteration_bounds = array<i64: 2>, scalar_prefetch = 0 : i64, scratch_operands = 0 : i64, tpu.core_type = #tpu.core_type<tc>, window_params = [{transform_indices = @transform_0, window_bounds = array<i64: 32, 64>}, {pipeline_mode = #tpu.pipeline_mode<synchronous>, transform_indices = @transform_1, window_bounds = array<i64: 64, 128>}, {pipeline_mode = #tpu.pipeline_mode<synchronous>, transform_indices = @transform_2, window_bounds = array<i64: 1, 128>}, {transform_indices = @transform_3, window_bounds = array<i64: 32, 128>}, {transform_indices = @transform_4, window_bounds = array<i64: 32, 128>}]} {
    %c0 = arith.constant 0 : index
    %c0_0 = arith.constant 0 : index
    %0 = vector.load %arg1[%c0, %c0_0] : memref<32x64xbf16, #tpu.memory_space<vmem>>, vector<32x64xbf16>
    %c0_1 = arith.constant 0 : index
    %c0_2 = arith.constant 0 : index
    %1 = vector.load %arg2[%c0_1, %c0_2] : memref<64x128xbf16, #tpu.memory_space<vmem>>, vector<64x128xbf16>
    %cst = arith.constant dense<0.000000e+00> : vector<32x128xf32>
    %2 = tpu.matmul %0, %1, %cst {dimension_numbers = #tpu.dot_dimension_numbers<[1], [0], [0], [1], [0, 0, 1, 1], [], []>} : vector<32x64xbf16>, vector<64x128xbf16>, vector<32x128xf32> -> vector<32x128xf32>
    %c0_3 = arith.constant 0 : index
    %c0_4 = arith.constant 0 : index
    %3 = vector.load %arg3[%c0_3, %c0_4] : memref<1x128xf32, #tpu.memory_space<vmem>>, vector<1x128xf32>
    %4 = vector.broadcast %3 : vector<1x128xf32> to vector<32x128xf32>
    %5 = arith.addf %2, %4 : vector<32x128xf32>
    %c0_5 = arith.constant 0 : index
    %c0_6 = arith.constant 0 : index
    %6 = vector.load %arg4[%c0_5, %c0_6] : memref<32x128xbf16, #tpu.memory_space<vmem>>, vector<32x128xbf16>
    %7 = arith.extf %6 : vector<32x128xbf16> to vector<32x128xf32>
    %8 = arith.addf %5, %7 : vector<32x128xf32>
    %cst_7 = arith.constant 0.000000e+00 : f32
    %9 = vector.broadcast %cst_7 : f32 to vector<32x128xf32>
    %10 = arith.maximumf %8, %9 : vector<32x128xf32>
    %11 = arith.truncf %10 : vector<32x128xf32> to vector<32x128xbf16>
    %c0_8 = arith.constant 0 : index
    %c0_9 = arith.constant 0 : index
    %12 = vector.load %arg5[%c0_8, %c0_9] : memref<32x128xbf16, #tpu.memory_space<vmem>>, vector<32x128xbf16>
    tpu.vector_store %arg5[%c0_8, %c0_9], %11 {strides = array<i32>} : memref<32x128xbf16, #tpu.memory_space<vmem>>, vector<32x128xbf16>,
    return
  }
  func.func @transform_0(%arg0: i32) -> (i32, i32) {
    %c0_i32 = arith.constant 0 : i32
    %c0_i32_0 = arith.constant 0 : i32
    return %arg0, %c0_i32 : i32, i32
  }
  func.func @transform_1(%arg0: i32) -> (i32, i32) {
    %c0_i32 = arith.constant 0 : i32
    %c0_i32_0 = arith.constant 0 : i32
    %c0_i32_1 = arith.constant 0 : i32
    return %c0_i32, %c0_i32_0 : i32, i32
  }
  func.func @transform_2(%arg0: i32) -> (i32, i32) {
    %c0_i32 = arith.constant 0 : i32
    %c0_i32_0 = arith.constant 0 : i32
    %c0_i32_1 = arith.constant 0 : i32
    return %c0_i32, %c0_i32_0 : i32, i32
  }
  func.func @transform_3(%arg0: i32) -> (i32, i32) {
    %c0_i32 = arith.constant 0 : i32
    %c0_i32_0 = arith.constant 0 : i32
    return %arg0, %c0_i32 : i32, i32
  }
  func.func @transform_4(%arg0: i32) -> (i32, i32) {
    %c0_i32 = arith.constant 0 : i32
    %c0_i32_0 = arith.constant 0 : i32
    return %arg0, %c0_i32 : i32, i32
  }
}

module attributes {stable_mosaic.version = 11 : i64} {
  func.func @_gemm_kernel(%arg0: i32, %arg1: memref<32x128xbf16, #tpu.memory_space<vmem>>, %arg2: memref<128x64xbf16, #tpu.memory_space<vmem>>, %arg3: memref<1x64xf32, #tpu.memory_space<vmem>>, %arg4: memref<32x64xbf16, #tpu.memory_space<vmem>>) attributes {dimension_semantics = [#tpu.dimension_semantics<parallel>], iteration_bounds = array<i64: 2>, scalar_prefetch = 0 : i64, scratch_operands = 0 : i64, tpu.core_type = #tpu.core_type<tc>, window_params = [{transform_indices = @transform_0, window_bounds = array<i64: 32, 128>}, {pipeline_mode = #tpu.pipeline_mode<synchronous>, transform_indices = @transform_1, window_bounds = array<i64: 128, 64>}, {pipeline_mode = #tpu.pipeline_mode<synchronous>, transform_indices = @transform_2, window_bounds = array<i64: 1, 64>}, {transform_indices = @transform_3, window_bounds = array<i64: 32, 64>}]} {
    %c0 = arith.constant 0 : index
    %c0_0 = arith.constant 0 : index
    %0 = vector.load %arg1[%c0, %c0_0] : memref<32x128xbf16, #tpu.memory_space<vmem>>, vector<32x128xbf16>
    %c0_1 = arith.constant 0 : index
    %c0_2 = arith.constant 0 : index
    %1 = vector.load %arg2[%c0_1, %c0_2] : memref<128x64xbf16, #tpu.memory_space<vmem>>, vector<128x64xbf16>
    %cst = arith.constant dense<0.000000e+00> : vector<32x64xf32>
    %2 = tpu.matmul %0, %1, %cst {dimension_numbers = #tpu.dot_dimension_numbers<[1], [0], [0], [1], [0, 0, 1, 1], [], []>} : vector<32x128xbf16>, vector<128x64xbf16>, vector<32x64xf32> -> vector<32x64xf32>
    %c0_3 = arith.constant 0 : index
    %c0_4 = arith.constant 0 : index
    %3 = vector.load %arg3[%c0_3, %c0_4] : memref<1x64xf32, #tpu.memory_space<vmem>>, vector<1x64xf32>
    %4 = vector.broadcast %3 : vector<1x64xf32> to vector<32x64xf32>
    %5 = arith.addf %2, %4 : vector<32x64xf32>
    %cst_5 = arith.constant 0.000000e+00 : f32
    %6 = vector.broadcast %cst_5 : f32 to vector<32x64xf32>
    %7 = arith.maximumf %5, %6 : vector<32x64xf32>
    %8 = arith.truncf %7 : vector<32x64xf32> to vector<32x64xbf16>
    %c0_6 = arith.constant 0 : index
    %c0_7 = arith.constant 0 : index
    %9 = vector.load %arg4[%c0_6, %c0_7] : memref<32x64xbf16, #tpu.memory_space<vmem>>, vector<32x64xbf16>
    tpu.vector_store %arg4[%c0_6, %c0_7], %8 {strides = array<i32>} : memref<32x64xbf16, #tpu.memory_space<vmem>>, vector<32x64xbf16>,
    return
  }
  func.func @transform_0(%arg0: i32) -> (i32, i32) {
    %c0_i32 = arith.constant 0 : i32
    %c0_i32_0 = arith.constant 0 : i32
    return %arg0, %c0_i32 : i32, i32
  }
  func.func @transform_1(%arg0: i32) -> (i32, i32) {
    %c0_i32 = arith.constant 0 : i32
    %c0_i32_0 = arith.constant 0 : i32
    %c0_i32_1 = arith.constant 0 : i32
    return %c0_i32, %c0_i32_0 : i32, i32
  }
  func.func @transform_2(%arg0: i32) -> (i32, i32) {
    %c0_i32 = arith.constant 0 : i32
    %c0_i32_0 = arith.constant 0 : i32
    %c0_i32_1 = arith.constant 0 : i32
    return %c0_i32, %c0_i32_0 : i32, i32
  }
  func.func @transform_3(%arg0: i32) -> (i32, i32) {
    %c0_i32 = arith.constant 0 : i32
    %c0_i32_0 = arith.constant 0 : i32
    return %arg0, %c0_i32 : i32, i32
  }
}

module attributes {stable_mosaic.version = 11 : i64} {
  func.func @_gemm_kernel(%arg0: i32, %arg1: memref<32x128xbf16, #tpu.memory_space<vmem>>, %arg2: memref<128x384xbf16, #tpu.memory_space<vmem>>, %arg3: memref<1x384xf32, #tpu.memory_space<vmem>>, %arg4: memref<32x384xbf16, #tpu.memory_space<vmem>>) attributes {dimension_semantics = [#tpu.dimension_semantics<parallel>], iteration_bounds = array<i64: 2>, scalar_prefetch = 0 : i64, scratch_operands = 0 : i64, tpu.core_type = #tpu.core_type<tc>, window_params = [{transform_indices = @transform_0, window_bounds = array<i64: 32, 128>}, {pipeline_mode = #tpu.pipeline_mode<synchronous>, transform_indices = @transform_1, window_bounds = array<i64: 128, 384>}, {pipeline_mode = #tpu.pipeline_mode<synchronous>, transform_indices = @transform_2, window_bounds = array<i64: 1, 384>}, {transform_indices = @transform_3, window_bounds = array<i64: 32, 384>}]} {
    %c0 = arith.constant 0 : index
    %c0_0 = arith.constant 0 : index
    %0 = vector.load %arg1[%c0, %c0_0] : memref<32x128xbf16, #tpu.memory_space<vmem>>, vector<32x128xbf16>
    %c0_1 = arith.constant 0 : index
    %c0_2 = arith.constant 0 : index
    %1 = vector.load %arg2[%c0_1, %c0_2] : memref<128x384xbf16, #tpu.memory_space<vmem>>, vector<128x384xbf16>
    %cst = arith.constant dense<0.000000e+00> : vector<32x384xf32>
    %2 = tpu.matmul %0, %1, %cst {dimension_numbers = #tpu.dot_dimension_numbers<[1], [0], [0], [1], [0, 0, 1, 1], [], []>} : vector<32x128xbf16>, vector<128x384xbf16>, vector<32x384xf32> -> vector<32x384xf32>
    %c0_3 = arith.constant 0 : index
    %c0_4 = arith.constant 0 : index
    %3 = vector.load %arg3[%c0_3, %c0_4] : memref<1x384xf32, #tpu.memory_space<vmem>>, vector<1x384xf32>
    %4 = vector.broadcast %3 : vector<1x384xf32> to vector<32x384xf32>
    %5 = arith.addf %2, %4 : vector<32x384xf32>
    %6 = tpu.iota {dimensions = array<i32: 1>} : vector<32x384xi32>
    %c128_i32 = arith.constant 128 : i32
    %7 = vector.broadcast %c128_i32 : i32 to vector<32x384xi32>
    %8 = arith.cmpi slt, %6, %7 : vector<32x384xi32>
    %cst_5 = arith.constant 0.000000e+00 : f32
    %9 = vector.broadcast %cst_5 : f32 to vector<32x384xf32>
    %10 = arith.maximumf %5, %9 : vector<32x384xf32>
    %11 = arith.select %8, %10, %5 : vector<32x384xi1>, vector<32x384xf32>
    %12 = arith.truncf %11 : vector<32x384xf32> to vector<32x384xbf16>
    %c0_6 = arith.constant 0 : index
    %c0_7 = arith.constant 0 : index
    %13 = vector.load %arg4[%c0_6, %c0_7] : memref<32x384xbf16, #tpu.memory_space<vmem>>, vector<32x384xbf16>
    tpu.vector_store %arg4[%c0_6, %c0_7], %12 {strides = array<i32>} : memref<32x384xbf16, #tpu.memory_space<vmem>>, vector<32x384xbf16>,
    return
  }
  func.func @transform_0(%arg0: i32) -> (i32, i32) {
    %c0_i32 = arith.constant 0 : i32
    %c0_i32_0 = arith.constant 0 : i32
    return %arg0, %c0_i32 : i32, i32
  }
  func.func @transform_1(%arg0: i32) -> (i32, i32) {
    %c0_i32 = arith.constant 0 : i32
    %c0_i32_0 = arith.constant 0 : i32
    %c0_i32_1 = arith.constant 0 : i32
    return %c0_i32, %c0_i32_0 : i32, i32
  }
  func.func @transform_2(%arg0: i32) -> (i32, i32) {
    %c0_i32 = arith.constant 0 : i32
    %c0_i32_0 = arith.constant 0 : i32
    %c0_i32_1 = arith.constant 0 : i32
    return %c0_i32, %c0_i32_0 : i32, i32
  }
  func.func @transform_3(%arg0: i32) -> (i32, i32) {
    %c0_i32 = arith.constant 0 : i32
    %c0_i32_0 = arith.constant 0 : i32
    return %arg0, %c0_i32 : i32, i32
  }
}

module attributes {stable_mosaic.version = 11 : i64} {
  func.func @_gemm_kernel(%arg0: i32, %arg1: memref<32x3456xbf16, #tpu.memory_space<vmem>>, %arg2: memref<3456x128xbf16, #tpu.memory_space<vmem>>, %arg3: memref<1x128xf32, #tpu.memory_space<vmem>>, %arg4: memref<32x128xbf16, #tpu.memory_space<vmem>>) attributes {dimension_semantics = [#tpu.dimension_semantics<parallel>], iteration_bounds = array<i64: 2>, scalar_prefetch = 0 : i64, scratch_operands = 0 : i64, tpu.core_type = #tpu.core_type<tc>, window_params = [{transform_indices = @transform_0, window_bounds = array<i64: 32, 3456>}, {pipeline_mode = #tpu.pipeline_mode<synchronous>, transform_indices = @transform_1, window_bounds = array<i64: 3456, 128>}, {pipeline_mode = #tpu.pipeline_mode<synchronous>, transform_indices = @transform_2, window_bounds = array<i64: 1, 128>}, {transform_indices = @transform_3, window_bounds = array<i64: 32, 128>}]} {
    %c0 = arith.constant 0 : index
    %c0_0 = arith.constant 0 : index
    %0 = vector.load %arg1[%c0, %c0_0] : memref<32x3456xbf16, #tpu.memory_space<vmem>>, vector<32x3456xbf16>
    %c0_1 = arith.constant 0 : index
    %c0_2 = arith.constant 0 : index
    %1 = vector.load %arg2[%c0_1, %c0_2] : memref<3456x128xbf16, #tpu.memory_space<vmem>>, vector<3456x128xbf16>
    %cst = arith.constant dense<0.000000e+00> : vector<32x128xf32>
    %2 = tpu.matmul %0, %1, %cst {dimension_numbers = #tpu.dot_dimension_numbers<[1], [0], [0], [1], [0, 0, 1, 1], [], []>} : vector<32x3456xbf16>, vector<3456x128xbf16>, vector<32x128xf32> -> vector<32x128xf32>
    %c0_3 = arith.constant 0 : index
    %c0_4 = arith.constant 0 : index
    %3 = vector.load %arg3[%c0_3, %c0_4] : memref<1x128xf32, #tpu.memory_space<vmem>>, vector<1x128xf32>
    %4 = vector.broadcast %3 : vector<1x128xf32> to vector<32x128xf32>
    %5 = arith.addf %2, %4 : vector<32x128xf32>
    %cst_5 = arith.constant 0.000000e+00 : f32
    %6 = vector.broadcast %cst_5 : f32 to vector<32x128xf32>
    %7 = arith.maximumf %5, %6 : vector<32x128xf32>
    %8 = arith.truncf %7 : vector<32x128xf32> to vector<32x128xbf16>
    %c0_6 = arith.constant 0 : index
    %c0_7 = arith.constant 0 : index
    %9 = vector.load %arg4[%c0_6, %c0_7] : memref<32x128xbf16, #tpu.memory_space<vmem>>, vector<32x128xbf16>
    tpu.vector_store %arg4[%c0_6, %c0_7], %8 {strides = array<i32>} : memref<32x128xbf16, #tpu.memory_space<vmem>>, vector<32x128xbf16>,
    return
  }
  func.func @transform_0(%arg0: i32) -> (i32, i32) {
    %c0_i32 = arith.constant 0 : i32
    %c0_i32_0 = arith.constant 0 : i32
    return %arg0, %c0_i32 : i32, i32
  }
  func.func @transform_1(%arg0: i32) -> (i32, i32) {
    %c0_i32 = arith.constant 0 : i32
    %c0_i32_0 = arith.constant 0 : i32
    %c0_i32_1 = arith.constant 0 : i32
    return %c0_i32, %c0_i32_0 : i32, i32
  }
  func.func @transform_2(%arg0: i32) -> (i32, i32) {
    %c0_i32 = arith.constant 0 : i32
    %c0_i32_0 = arith.constant 0 : i32
    %c0_i32_1 = arith.constant 0 : i32
    return %c0_i32, %c0_i32_0 : i32, i32
  }
  func.func @transform_3(%arg0: i32) -> (i32, i32) {
    %c0_i32 = arith.constant 0 : i32
    %c0_i32_0 = arith.constant 0 : i32
    return %arg0, %c0_i32 : i32, i32
  }
}

module attributes {stable_mosaic.version = 11 : i64} {
  func.func @_gemm_res_kernel(%arg0: i32, %arg1: memref<32x128xbf16, #tpu.memory_space<vmem>>, %arg2: memref<128x256xbf16, #tpu.memory_space<vmem>>, %arg3: memref<1x256xf32, #tpu.memory_space<vmem>>, %arg4: memref<32x256xbf16, #tpu.memory_space<vmem>>, %arg5: memref<32x256xf32, #tpu.memory_space<vmem>>) attributes {dimension_semantics = [#tpu.dimension_semantics<parallel>], iteration_bounds = array<i64: 2>, scalar_prefetch = 0 : i64, scratch_operands = 0 : i64, tpu.core_type = #tpu.core_type<tc>, window_params = [{transform_indices = @transform_0, window_bounds = array<i64: 32, 128>}, {pipeline_mode = #tpu.pipeline_mode<synchronous>, transform_indices = @transform_1, window_bounds = array<i64: 128, 256>}, {pipeline_mode = #tpu.pipeline_mode<synchronous>, transform_indices = @transform_2, window_bounds = array<i64: 1, 256>}, {transform_indices = @transform_3, window_bounds = array<i64: 32, 256>}, {transform_indices = @transform_4, window_bounds = array<i64: 32, 256>}]} {
    %c0 = arith.constant 0 : index
    %c0_0 = arith.constant 0 : index
    %0 = vector.load %arg1[%c0, %c0_0] : memref<32x128xbf16, #tpu.memory_space<vmem>>, vector<32x128xbf16>
    %c0_1 = arith.constant 0 : index
    %c0_2 = arith.constant 0 : index
    %1 = vector.load %arg2[%c0_1, %c0_2] : memref<128x256xbf16, #tpu.memory_space<vmem>>, vector<128x256xbf16>
    %cst = arith.constant dense<0.000000e+00> : vector<32x256xf32>
    %2 = tpu.matmul %0, %1, %cst {dimension_numbers = #tpu.dot_dimension_numbers<[1], [0], [0], [1], [0, 0, 1, 1], [], []>} : vector<32x128xbf16>, vector<128x256xbf16>, vector<32x256xf32> -> vector<32x256xf32>
    %c0_3 = arith.constant 0 : index
    %c0_4 = arith.constant 0 : index
    %3 = vector.load %arg3[%c0_3, %c0_4] : memref<1x256xf32, #tpu.memory_space<vmem>>, vector<1x256xf32>
    %4 = vector.broadcast %3 : vector<1x256xf32> to vector<32x256xf32>
    %5 = arith.addf %2, %4 : vector<32x256xf32>
    %c0_5 = arith.constant 0 : index
    %c0_6 = arith.constant 0 : index
    %6 = vector.load %arg4[%c0_5, %c0_6] : memref<32x256xbf16, #tpu.memory_space<vmem>>, vector<32x256xbf16>
    %7 = arith.extf %6 : vector<32x256xbf16> to vector<32x256xf32>
    %8 = arith.addf %5, %7 : vector<32x256xf32>
    %cst_7 = arith.constant 0.000000e+00 : f32
    %9 = vector.broadcast %cst_7 : f32 to vector<32x256xf32>
    %10 = arith.maximumf %8, %9 : vector<32x256xf32>
    %c0_8 = arith.constant 0 : index
    %c0_9 = arith.constant 0 : index
    %11 = vector.load %arg5[%c0_8, %c0_9] : memref<32x256xf32, #tpu.memory_space<vmem>>, vector<32x256xf32>
    tpu.vector_store %arg5[%c0_8, %c0_9], %10 {strides = array<i32>} : memref<32x256xf32, #tpu.memory_space<vmem>>, vector<32x256xf32>,
    return
  }
  func.func @transform_0(%arg0: i32) -> (i32, i32) {
    %c0_i32 = arith.constant 0 : i32
    %c0_i32_0 = arith.constant 0 : i32
    return %arg0, %c0_i32 : i32, i32
  }
  func.func @transform_1(%arg0: i32) -> (i32, i32) {
    %c0_i32 = arith.constant 0 : i32
    %c0_i32_0 = arith.constant 0 : i32
    %c0_i32_1 = arith.constant 0 : i32
    return %c0_i32, %c0_i32_0 : i32, i32
  }
  func.func @transform_2(%arg0: i32) -> (i32, i32) {
    %c0_i32 = arith.constant 0 : i32
    %c0_i32_0 = arith.constant 0 : i32
    %c0_i32_1 = arith.constant 0 : i32
    return %c0_i32, %c0_i32_0 : i32, i32
  }
  func.func @transform_3(%arg0: i32) -> (i32, i32) {
    %c0_i32 = arith.constant 0 : i32
    %c0_i32_0 = arith.constant 0 : i32
    return %arg0, %c0_i32 : i32, i32
  }
  func.func @transform_4(%arg0: i32) -> (i32, i32) {
    %c0_i32 = arith.constant 0 : i32
    %c0_i32_0 = arith.constant 0 : i32
    return %arg0, %c0_i32 : i32, i32
  }
}

</mosaic_0001>

<llo_original>
// kernel: _lambda_.10
$region0: #{_lambda_.10}
  #allocation0 [shape = 'u32[]', space=smem, size = 0x4, offset = 0x4, fixed_abs, tag = 'smem constant byte address 0x4 - core index']
  #allocation1 [shape = 'u32[144,128]{1,0:T(1,128)}', space=vmem, size = 0x12000, scoped, tag = 'internal scratch']
  %s0 = inlined_call_operand.vmem [shape: bf16[512,64], index: 0, kind: input, shape index: {}]
  %s1 = inlined_call_operand.hbm [shape: bf16[64,64], index: 1, kind: input, shape index: {}]
  %s2 = inlined_call_operand.hbm [shape: f32[1,64], index: 2, kind: input, shape index: {}]
  %s3 = inlined_call_operand.vmem [shape: bf16[512,64], index: 3, kind: output, shape index: {}]
  %s4 = sld [smem:[#allocation0]]
  $region53: #{_lambda_.10} parent=0
    _
  %s6 = ssub.s32 1, %s4
  %s7 = scalar_select 0, %s6, %s4
  $region1: #{_lambda_.10} parent=0
    #allocation2 [shape = 'u8[16384]{0}', space=vmem, size = 0x4000, scoped, tag = 'input window, operand 1, single buffered']
    #allocation3 [shape = 's32[2]{0}', space=sflag, size = 0x8, scoped, tag = 'scoped memory for _lambda_.10']
    #allocation4 [shape = 'u8[512]{0}', space=vmem, size = 0x400, scoped, tag = 'input window, operand 2, single buffered']
    #allocation5 [shape = 's32[1]{0}', space=sflag, size = 0x4, scoped, tag = 'scoped memory for _lambda_.10']
    %8 = vsyncpa [#allocation3], 0
    %9 = vsyncpa [#allocation5], 0
    loop: start=0, step=1, limit=4
    $region2: #{_lambda_.10} parent=1 // loop_pre_header
      _
    $region3: #{_lambda_.10} parent=1 // loop_header
      %s11 = sphi 0, %s15
      %p12 = scmp.ge.s32.totalorder %s11, 4
      %s21 = sphi 0, %s23
      %s24 = sphi 0, %s21
      %s25 = sphi 0, %s24
      %s41 = sphi 0, %s25
      %s45 = sphi 0, %s45
      %s47 = sphi 0, %s45
      %s48 = sphi 0, %s47
      %s62 = sphi 0, %s48
      %s66 = sphi 0, %s66
      %s68 = sphi 0, %s66
      %s69 = sphi 0, %s68
      %s83 = sphi 0, %s69
      %s89 = sphi 0, %s91
      %s92 = sphi 0, %s89
      %s93 = sphi 0, %s92
      %s109 = sphi 0, %s93
    $region4: #{_lambda_.10} parent=1 // loop_header_branch
      %14 = sbr.rel (%p12) target = $region8
    $region5: #{_lambda_.10} parent=1 // loop_body
      %s16 = ssub.s32 %s11, 1
      %s17 = ssub.s32 %s11, 2
      %s18 = sadd.s32 %s11, 1
      %s19 = ssub.s32 %s11, %s18
      %p20 = scmp.eq.s32.totalorder %s19, 0
      %s22 = sadd.s32 %s21, 1
      %s23 = scalar_select %p20, %s21, %s22
      %p26 = pneg %p20
      %p27 = scmp.eq.s32.totalorder %s11, 1
      %p28 = por %p26, %p27
      %p29 = scmp.ne.s32.totalorder %s21, %s24
      %p30 = scmp.eq.s32.totalorder %s11, 0
      %p31 = por %p29, %p30
      %p32 = scmp.ne.s32.totalorder %s21, %s24
      %p33 = scmp.eq.s32.totalorder %s16, 1
      %p34 = por %p32, %p33
      %p35 = scmp.ne.s32.totalorder %s24, %s25
      %p36 = scmp.eq.s32.totalorder %s16, 0
      %p37 = por %p35, %p36
      %p38 = scmp.ne.s32.totalorder %s24, %s25
      %p39 = scmp.eq.s32.totalorder %s17, 1
      %p40 = por %p38, %p39
      %p42 = scmp.ne.s32.totalorder %s25, %s41
      %p43 = scmp.eq.s32.totalorder %s17, 0
      %p44 = por %p42, %p43
      %s46 = sadd.s32 %s45, 1
      %p49 = scmp.eq.s32.totalorder %s11, 1
      %p50 = scmp.ne.s32.totalorder %s45, %s47
      %p51 = scmp.eq.s32.totalorder %s11, 0
      %p52 = por %p50, %p51
      %p53 = scmp.ne.s32.totalorder %s45, %s47
      %p54 = scmp.eq.s32.totalorder %s16, 1
      %p55 = por %p53, %p54
      %p56 = scmp.ne.s32.totalorder %s47, %s48
      %p57 = scmp.eq.s32.totalorder %s16, 0
      %p58 = por %p56, %p57
      %p59 = scmp.ne.s32.totalorder %s47, %s48
      %p60 = scmp.eq.s32.totalorder %s17, 1
      %p61 = por %p59, %p60
      %p63 = scmp.ne.s32.totalorder %s48, %s62
      %p64 = scmp.eq.s32.totalorder %s17, 0
      %p65 = por %p63, %p64
      %s67 = sadd.s32 %s66, 1
      %p70 = scmp.eq.s32.totalorder %s11, 1
      %p71 = scmp.ne.s32.totalorder %s66, %s68
      %p72 = scmp.eq.s32.totalorder %s11, 0
      %p73 = por %p71, %p72
      %p74 = scmp.ne.s32.totalorder %s66, %s68
      %p75 = scmp.eq.s32.totalorder %s16, 1
      %p76 = por %p74, %p75
      %p77 = scmp.ne.s32.totalorder %s68, %s69
      %p78 = scmp.eq.s32.totalorder %s16, 0
      %p79 = por %p77, %p78
      %p80 = scmp.ne.s32.totalorder %s68, %s69
      %p81 = scmp.eq.s32.totalorder %s17, 1
      %p82 = por %p80, %p81
      %p84 = scmp.ne.s32.totalorder %s69, %s83
      %p85 = scmp.eq.s32.totalorder %s17, 0
      %p86 = por %p84, %p85
      %s87 = ssub.s32 %s11, %s18
      %p88 = scmp.eq.s32.totalorder %s87, 0
      %s90 = sadd.s32 %s89, 1
      %s91 = scalar_select %p88, %s89, %s90
      %p94 = pneg %p88
      %p95 = scmp.eq.s32.totalorder %s11, 1
      %p96 = por %p94, %p95
      %p97 = scmp.ne.s32.totalorder %s89, %s92
      %p98 = scmp.eq.s32.totalorder %s11, 0
      %p99 = por %p97, %p98
      %p100 = scmp.ne.s32.totalorder %s89, %s92
      %p101 = scmp.eq.s32.totalorder %s16, 1
      %p102 = por %p100, %p101
      %p103 = scmp.ne.s32.totalorder %s92, %s93
      %p104 = scmp.eq.s32.totalorder %s16, 0
      %p105 = por %p103, %p104
      %p106 = scmp.ne.s32.totalorder %s92, %s93
      %p107 = scmp.eq.s32.totalorder %s17, 1
      %p108 = por %p106, %p107
      %p110 = scmp.ne.s32.totalorder %s93, %s109
      %p111 = scmp.eq.s32.totalorder %s17, 0
      %p112 = por %p110, %p111
      %p113 = scmp.le.s32.totalorder 1, %s11
      %p114 = scmp.lt.s32.totalorder %s11, 3
      %p115 = pnand %p113, %p114
      %p116 = pneg %p115
      // Predicated region
      $region9: #{_lambda_.10} parent=5 // pred_check
        _
      $region10: #{_lambda_.10} parent=5 // pred_check_branch
        %118 = sbr.rel (%p115) target = $region12
      $region11: #{_lambda_.10} parent=5 // pred_region
        %s119 = ssub.s32 %s11, 1
        // Predicated region
        $region13: #{_lambda_.10} parent=11 // pred_check
          %p120 = pneg %p58
        $region14: #{_lambda_.10} parent=11 // pred_check_branch
          %122 = sbr.rel (%p120) target = $region16
        $region15: #{_lambda_.10} parent=11 // pred_region
          %s124 = ssub.s32 512, 512
          %125 = vsyncadd [#allocation3], %s124
          %s126 = sshll.u32 [#allocation2], 4
          %s127 = int_to_ptr.vmem [resolvable:$true] %s126
          %132 = dma.hbm_to_vmem [thread:$0]  %s1, 512, %s127, [#allocation3], 64, 64, 4
        $region16: #{_lambda_.10} parent=11 // pred_fallthru
          _
        // Predicated region
        $region17: #{_lambda_.10} parent=11 // pred_check
          %p133 = pneg %p79
        $region18: #{_lambda_.10} parent=11 // pred_check_branch
          %135 = sbr.rel (%p133) target = $region20
        $region19: #{_lambda_.10} parent=11 // pred_region
          %s137 = ssub.s32 16, 16
          %138 = vsyncadd [#allocation5], %s137
          %s140 = sshll.u32 [#allocation4], 4
          %s141 = int_to_ptr.vmem [resolvable:$true] %s140
          %143 = dma.hbm_to_vmem [thread:$0]  %s2, 16, %s141, [#allocation5]
        $region20: #{_lambda_.10} parent=11 // pred_fallthru
          _
      $region12: #{_lambda_.10} parent=5 // pred_fallthru
        _
      %p144 = scmp.lt.s32.totalorder %s11, 2
      // Predicated region
      $region21: #{_lambda_.10} parent=5 // pred_check
        %p145 = pneg %p144
      $region22: #{_lambda_.10} parent=5 // pred_check_branch
        %147 = sbr.rel (%p145) target = $region24
      $region23: #{_lambda_.10} parent=5 // pred_region
        // Predicated region
        $region25: #{_lambda_.10} parent=23 // pred_check
          %p148 = pneg %p31
        $region26: #{_lambda_.10} parent=23 // pred_check_branch
          %150 = sbr.rel (%p148) target = $region28
        $region27: #{_lambda_.10} parent=23 // pred_region
          %s151 = smul.u32 32, %s11
          %p152 = scmp.lt.s32.totalorder %s151, 63
          %s153 = scalar_select %p152, %s151, 63
          %s154 = smul.addr %s153, 4
          %s155 = scalar_lea.vmem %s0, %s154
          %s156 = smul.u32 32, %s11
        $region28: #{_lambda_.10} parent=23 // pred_fallthru
          _
      $region24: #{_lambda_.10} parent=5 // pred_fallthru
        _
      %p157 = scmp.le.s32.totalorder 1, %s11
      %p158 = scmp.lt.s32.totalorder %s11, 3
      %p159 = pnand %p157, %p158
      %p160 = pneg %p159
      // Predicated region
      $region29: #{_lambda_.10} parent=5 // pred_check
        _
      $region30: #{_lambda_.10} parent=5 // pred_check_branch
        %162 = sbr.rel (%p159) target = $region32
      $region31: #{_lambda_.10} parent=5 // pred_region
        %s163 = ssub.s32 %s11, 1
        // Predicated region
        $region33: #{_lambda_.10} parent=31 // pred_check
          %p164 = pneg %p58
        $region34: #{_lambda_.10} parent=31 // pred_check_branch
          %166 = sbr.rel (%p164) target = $region36
        $region35: #{_lambda_.10} parent=31 // pred_region
          %167 = dma.done [#allocation3], 512
        $region36: #{_lambda_.10} parent=31 // pred_fallthru
          _
        // Predicated region
        $region37: #{_lambda_.10} parent=31 // pred_check
          %p168 = pneg %p79
        $region38: #{_lambda_.10} parent=31 // pred_check_branch
          %170 = sbr.rel (%p168) target = $region40
        $region39: #{_lambda_.10} parent=31 // pred_region
          %171 = dma.done [#allocation5], 16
        $region40: #{_lambda_.10} parent=31 // pred_fallthru
          _
        %s172 = smul.u32 32, %s16
        %p173 = scmp.lt.s32.totalorder %s172, 63
        %s174 = scalar_select %p173, %s172, 63
        %s175 = smul.addr %s174, 4
        %s176 = scalar_lea.vmem %s0, %s175
        %p177 = pneg %p37
        %p178 = pneg %p34
        %p179 = pneg %p58
        %p180 = pneg %p55
        %p181 = pneg %p79
        %p182 = pneg %p76
        %p183 = pneg %p105
        %p184 = pneg %p102
        %s185 = smul.u32 32, %s16
        %p186 = scmp.lt.s32.totalorder %s185, 63
        %s187 = scalar_select %p186, %s185, 63
        %s188 = smul.addr %s187, 4
        %s189 = scalar_lea.vmem %s3, %s188
        %s190 = smul.u32 32, %s16
        %p191 = scmp.lt.s32.totalorder %s190, 63
        %s192 = scalar_select %p191, %s190, 63
        %s193 = smul.addr %s192, 4
        %s194 = scalar_lea.vmem %s0, %s193
        %s195 = smul.u32 32, %s16
        %s196 = smul.u32 32, %s16
        %p197 = scmp.lt.s32.totalorder %s196, 63
        %s198 = scalar_select %p197, %s196, 63
        %s199 = smul.addr %s198, 4
        %s200 = scalar_lea.vmem %s3, %s199
        %s201 = smul.u32 32, %s16
        %v203 = vld [vmem:[%s194] sm:$0xf]
        %v204 = vld [vmem:[%s194 + $0x4] sm:$0xf]
        %v205 = vld [vmem:[%s194 + $0x8] sm:$0xf]
        %v206 = vld [vmem:[%s194 + $0xc] sm:$0xf]
        %v207 = vld [vmem:[%s194 + $0x10] sm:$0xf]
        %v208 = vld [vmem:[%s194 + $0x14] sm:$0xf]
        %v209 = vld [vmem:[%s194 + $0x18] sm:$0xf]
        %v210 = vld [vmem:[%s194 + $0x1c] sm:$0xf]
        %v211 = vld [vmem:[%s194 + $0x20] sm:$0xf]
        %v212 = vld [vmem:[%s194 + $0x24] sm:$0xf]
        %v213 = vld [vmem:[%s194 + $0x28] sm:$0xf]
        %v214 = vld [vmem:[%s194 + $0x2c] sm:$0xf]
        %v215 = vld [vmem:[%s194 + $0x30] sm:$0xf]
        %v216 = vld [vmem:[%s194 + $0x34] sm:$0xf]
        %v217 = vld [vmem:[%s194 + $0x38] sm:$0xf]
        %v218 = vld [vmem:[%s194 + $0x3c] sm:$0xf]
        %v219 = vld [vmem:[%s194 + $0x40] sm:$0xf]
        %v220 = vld [vmem:[%s194 + $0x44] sm:$0xf]
        %v221 = vld [vmem:[%s194 + $0x48] sm:$0xf]
        %v222 = vld [vmem:[%s194 + $0x4c] sm:$0xf]
        %v223 = vld [vmem:[%s194 + $0x50] sm:$0xf]
        %v224 = vld [vmem:[%s194 + $0x54] sm:$0xf]
        %v225 = vld [vmem:[%s194 + $0x58] sm:$0xf]
        %v226 = vld [vmem:[%s194 + $0x5c] sm:$0xf]
        %v227 = vld [vmem:[%s194 + $0x60] sm:$0xf]
        %v228 = vld [vmem:[%s194 + $0x64] sm:$0xf]
        %v229 = vld [vmem:[%s194 + $0x68] sm:$0xf]
        %v230 = vld [vmem:[%s194 + $0x6c] sm:$0xf]
        %v231 = vld [vmem:[%s194 + $0x70] sm:$0xf]
        %v232 = vld [vmem:[%s194 + $0x74] sm:$0xf]
        %v233 = vld [vmem:[%s194 + $0x78] sm:$0xf]
        %v234 = vld [vmem:[%s194 + $0x7c] sm:$0xf]
        %v235 = vld [vmem:[#allocation2] sm:$0xf]
        %v236 = vld [vmem:[#allocation2 + $0x4] sm:$0xf]
        %v237 = vld [vmem:[#allocation2 + $0x8] sm:$0xf]
        %v238 = vld [vmem:[#allocation2 + $0xc] sm:$0xf]
        %v239 = vld [vmem:[#allocation2 + $0x10] sm:$0xf]
        %v240 = vld [vmem:[#allocation2 + $0x14] sm:$0xf]
        %v241 = vld [vmem:[#allocation2 + $0x18] sm:$0xf]
        %v242 = vld [vmem:[#allocation2 + $0x1c] sm:$0xf]
        %v243 = vld [vmem:[#allocation4] sm:$0x1]
        %v245 = vlaneseq
        %v246 = vshrl.u32 %v245, 7
        %v247 = vsub.s32 0, %v246
        %v248 = vrot.slane %v243, %v247
        %v282 = vunpack.c.l.b16 %v203
        %v283 = vunpack.c.l.b16 %v204
        %v284 = vunpack.c.l.b16 %v205
        %v285 = vunpack.c.l.b16 %v206
        %v286 = vunpack.c.l.b16 %v207
        %v287 = vunpack.c.l.b16 %v208
        %v288 = vunpack.c.l.b16 %v209
        %v289 = vunpack.c.l.b16 %v210
        %v290 = vunpack.c.l.b16 %v211
        %v291 = vunpack.c.l.b16 %v212
        %v292 = vunpack.c.l.b16 %v213
        %v293 = vunpack.c.l.b16 %v214
        %v294 = vunpack.c.l.b16 %v215
        %v295 = vunpack.c.l.b16 %v216
        %v296 = vunpack.c.l.b16 %v217
        %v297 = vunpack.c.l.b16 %v218
        %v298 = vunpack.c.l.b16 %v219
        %v299 = vunpack.c.l.b16 %v220
        %v300 = vunpack.c.l.b16 %v221
        %v301 = vunpack.c.l.b16 %v222
        %v302 = vunpack.c.l.b16 %v223
        %v303 = vunpack.c.l.b16 %v224
        %v304 = vunpack.c.l.b16 %v225
        %v305 = vunpack.c.l.b16 %v226
        %v306 = vunpack.c.l.b16 %v227
        %v307 = vunpack.c.l.b16 %v228
        %v308 = vunpack.c.l.b16 %v229
        %v309 = vunpack.c.l.b16 %v230
        %v310 = vunpack.c.l.b16 %v231
        %v311 = vunpack.c.l.b16 %v232
        %v312 = vunpack.c.l.b16 %v233
        %v313 = vunpack.c.l.b16 %v234
        %v314 = vpack.c.b16 %v283, %v282
        %v315 = vpack.c.b16 %v285, %v284
        %v316 = vpack.c.b16 %v287, %v286
        %v317 = vpack.c.b16 %v289, %v288
        %v318 = vpack.c.b16 %v291, %v290
        %v319 = vpack.c.b16 %v293, %v292
        %v320 = vpack.c.b16 %v295, %v294
        %v321 = vpack.c.b16 %v297, %v296
        %v322 = vpack.c.b16 %v299, %v298
        %v323 = vpack.c.b16 %v301, %v300
        %v324 = vpack.c.b16 %v303, %v302
        %v325 = vpack.c.b16 %v305, %v304
        %v326 = vpack.c.b16 %v307, %v306
        %v327 = vpack.c.b16 %v309, %v308
        %v328 = vpack.c.b16 %v311, %v310
        %v329 = vpack.c.b16 %v313, %v312
        %v338 = vunpack.c.l.b16 %v235
        %v339 = vunpack.c.l.b16 %v236
        %v340 = vunpack.c.l.b16 %v237
        %v341 = vunpack.c.l.b16 %v238
        %v342 = vunpack.c.l.b16 %v239
        %v343 = vunpack.c.l.b16 %v240
        %v344 = vunpack.c.l.b16 %v241
        %v345 = vunpack.c.l.b16 %v242
        %v346 = vpack.c.b16 %v339, %v338
        %v347 = vpack.c.b16 %v341, %v340
        %v348 = vpack.c.b16 %v343, %v342
        %v349 = vpack.c.b16 %v345, %v344
        %vm354 = vcmask 523264
        %v356 = vsel %vm354, %v314, 0
        %v359 = vsel %vm354, %v315, 0
        %v362 = vsel %vm354, %v316, 0
        %v365 = vsel %vm354, %v317, 0
        %v368 = vsel %vm354, %v318, 0
        %v371 = vsel %vm354, %v319, 0
        %v374 = vsel %vm354, %v320, 0
        %v377 = vsel %vm354, %v321, 0
        %v380 = vsel %vm354, %v322, 0
        %v383 = vsel %vm354, %v323, 0
        %v386 = vsel %vm354, %v324, 0
        %v389 = vsel %vm354, %v325, 0
        %v392 = vsel %vm354, %v326, 0
        %v395 = vsel %vm354, %v327, 0
        %v398 = vsel %vm354, %v328, 0
        %v401 = vsel %vm354, %v329, 0
        %403 = vmatprep.subr.bf16.mxu0 0
        %404 = vmatpush1.bf16.msra.mxu0 %v346
        %405 = vmatprep.subr.bf16.mxu0 0
        %406 = vmatpush1.bf16.msra.mxu0 %v347
        %407 = vmatprep.subr.bf16.mxu0 0
        %408 = vmatpush1.bf16.msra.mxu0 %v348
        %409 = vmatprep.subr.bf16.mxu0 0
        %410 = vmatpush1.bf16.msra.mxu0 %v349
        %411 = vmatprep.subr.bf16.mxu0 0
        %412 = vmatpush1.bf16.msra.mxu0 0
        %413 = vmatprep.subr.bf16.mxu0 0
        %414 = vmatpush1.bf16.msra.mxu0 0
        %415 = vmatprep.subr.bf16.mxu0 0
        %416 = vmatpush1.bf16.msra.mxu0 0
        %417 = vmatprep.subr.bf16.mxu0 0
        %418 = vmatpush1.bf16.msra.mxu0 0
        %419 = vmatprep.subr.bf16.mxu0 0
        %420 = vmatpush1.bf16.msra.mxu0 0
        %421 = vmatprep.subr.bf16.mxu0 0
        %422 = vmatpush1.bf16.msra.mxu0 0
        %423 = vmatprep.subr.bf16.mxu0 0
        %424 = vmatpush1.bf16.msra.mxu0 0
        %425 = vmatprep.subr.bf16.mxu0 0
        %426 = vmatpush1.bf16.msra.mxu0 0
        %427 = vmatprep.subr.bf16.mxu0 0
        %428 = vmatpush1.bf16.msra.mxu0 0
        %429 = vmatprep.subr.bf16.mxu0 0
        %430 = vmatpush1.bf16.msra.mxu0 0
        %431 = vmatprep.subr.bf16.mxu0 0
        %432 = vmatpush1.bf16.msra.mxu0 0
        %433 = vmatprep.subr.bf16.mxu0 0
        %434 = vmatpush1.bf16.msra.mxu0 0
        %435 = vmatprep.mubr.bf16.mxu0 0
        %436 = vmatmul.mubr.bf16.gmra.mrb[0].mxu0 %v356
        %v437 = vpop.f32.mrb[0].mxu0
        %v438 = vadd.f32 %v248, %v437
        %v439 = vpop.f32.mrb[0].mxu0
        %v440 = vpop.f32.mrb[0].mxu0
        %v441 = vadd.f32 %v248, %v440
        %v442 = vpop.f32.mrb[0].mxu0
        %443 = vmatprep.mubr.bf16.mxu0 0
        %444 = vmatmul.mubr.bf16.gmra.mrb[0].mxu0 %v359
        %v445 = vpop.f32.mrb[0].mxu0
        %v446 = vadd.f32 %v248, %v445
        %v447 = vpop.f32.mrb[0].mxu0
        %v448 = vpop.f32.mrb[0].mxu0
        %v449 = vadd.f32 %v248, %v448
        %v450 = vpop.f32.mrb[0].mxu0
        %451 = vmatprep.mubr.bf16.mxu0 0
        %452 = vmatmul.mubr.bf16.gmra.mrb[0].mxu0 %v362
        %v453 = vpop.f32.mrb[0].mxu0
        %v454 = vadd.f32 %v248, %v453
        %v455 = vpop.f32.mrb[0].mxu0
        %v456 = vpop.f32.mrb[0].mxu0
        %v457 = vadd.f32 %v248, %v456
        %v458 = vpop.f32.mrb[0].mxu0
        %459 = vmatprep.mubr.bf16.mxu0 0
        %460 = vmatmul.mubr.bf16.gmra.mrb[0].mxu0 %v365
        %v461 = vpop.f32.mrb[0].mxu0
        %v462 = vadd.f32 %v248, %v461
        %v463 = vpop.f32.mrb[0].mxu0
        %v464 = vpop.f32.mrb[0].mxu0
        %v465 = vadd.f32 %v248, %v464
        %v466 = vpop.f32.mrb[0].mxu0
        %467 = vmatprep.mubr.bf16.mxu0 0
        %468 = vmatmul.mubr.bf16.gmra.mrb[0].mxu0 %v368
        %v469 = vpop.f32.mrb[0].mxu0
        %v470 = vadd.f32 %v248, %v469
        %v471 = vpop.f32.mrb[0].mxu0
        %v472 = vpop.f32.mrb[0].mxu0
        %v473 = vadd.f32 %v248, %v472
        %v474 = vpop.f32.mrb[0].mxu0
        %475 = vmatprep.mubr.bf16.mxu0 0
        %476 = vmatmul.mubr.bf16.gmra.mrb[0].mxu0 %v371
        %v477 = vpop.f32.mrb[0].mxu0
        %v478 = vadd.f32 %v248, %v477
        %v479 = vpop.f32.mrb[0].mxu0
        %v480 = vpop.f32.mrb[0].mxu0
        %v481 = vadd.f32 %v248, %v480
        %v482 = vpop.f32.mrb[0].mxu0
        %483 = vmatprep.mubr.bf16.mxu0 0
        %484 = vmatmul.mubr.bf16.gmra.mrb[0].mxu0 %v374
        %v485 = vpop.f32.mrb[0].mxu0
        %v486 = vadd.f32 %v248, %v485
        %v487 = vpop.f32.mrb[0].mxu0
        %v488 = vpop.f32.mrb[0].mxu0
        %v489 = vadd.f32 %v248, %v488
        %v490 = vpop.f32.mrb[0].mxu0
        %491 = vmatprep.mubr.bf16.mxu0 0
        %492 = vmatmul.mubr.bf16.gmra.mrb[0].mxu0 %v377
        %v493 = vpop.f32.mrb[0].mxu0
        %v494 = vadd.f32 %v248, %v493
        %v495 = vpop.f32.mrb[0].mxu0
        %v496 = vpop.f32.mrb[0].mxu0
        %v497 = vadd.f32 %v248, %v496
        %v498 = vpop.f32.mrb[0].mxu0
        %499 = vmatprep.mubr.bf16.mxu0 0
        %500 = vmatmul.mubr.bf16.gmra.mrb[0].mxu0 %v380
        %v501 = vpop.f32.mrb[0].mxu0
        %v502 = vadd.f32 %v248, %v501
        %v503 = vpop.f32.mrb[0].mxu0
        %v504 = vpop.f32.mrb[0].mxu0
        %v505 = vadd.f32 %v248, %v504
        %v506 = vpop.f32.mrb[0].mxu0
        %507 = vmatprep.mubr.bf16.mxu0 0
        %508 = vmatmul.mubr.bf16.gmra.mrb[0].mxu0 %v383
        %v509 = vpop.f32.mrb[0].mxu0
        %v510 = vadd.f32 %v248, %v509
        %v511 = vpop.f32.mrb[0].mxu0
        %v512 = vpop.f32.mrb[0].mxu0
        %v513 = vadd.f32 %v248, %v512
        %v514 = vpop.f32.mrb[0].mxu0
        %515 = vmatprep.mubr.bf16.mxu0 0
        %516 = vmatmul.mubr.bf16.gmra.mrb[0].mxu0 %v386
        %v517 = vpop.f32.mrb[0].mxu0
        %v518 = vadd.f32 %v248, %v517
        %v519 = vpop.f32.mrb[0].mxu0
        %v520 = vpop.f32.mrb[0].mxu0
        %v521 = vadd.f32 %v248, %v520
        %v522 = vpop.f32.mrb[0].mxu0
        %523 = vmatprep.mubr.bf16.mxu0 0
        %524 = vmatmul.mubr.bf16.gmra.mrb[0].mxu0 %v389
        %v525 = vpop.f32.mrb[0].mxu0
        %v526 = vadd.f32 %v248, %v525
        %v527 = vpop.f32.mrb[0].mxu0
        %v528 = vpop.f32.mrb[0].mxu0
        %v529 = vadd.f32 %v248, %v528
        %v530 = vpop.f32.mrb[0].mxu0
        %531 = vmatprep.mubr.bf16.mxu0 0
        %532 = vmatmul.mubr.bf16.gmra.mrb[0].mxu0 %v392
        %v533 = vpop.f32.mrb[0].mxu0
        %v534 = vadd.f32 %v248, %v533
        %v535 = vpop.f32.mrb[0].mxu0
        %v536 = vpop.f32.mrb[0].mxu0
        %v537 = vadd.f32 %v248, %v536
        %v538 = vpop.f32.mrb[0].mxu0
        %539 = vmatprep.mubr.bf16.mxu0 0
        %540 = vmatmul.mubr.bf16.gmra.mrb[0].mxu0 %v395
        %v541 = vpop.f32.mrb[0].mxu0
        %v542 = vadd.f32 %v248, %v541
        %v543 = vpop.f32.mrb[0].mxu0
        %v544 = vpop.f32.mrb[0].mxu0
        %v545 = vadd.f32 %v248, %v544
        %v546 = vpop.f32.mrb[0].mxu0
        %547 = vmatprep.mubr.bf16.mxu0 0
        %548 = vmatmul.mubr.bf16.gmra.mrb[0].mxu0 %v398
        %v549 = vpop.f32.mrb[0].mxu0
        %v550 = vadd.f32 %v248, %v549
        %v551 = vpop.f32.mrb[0].mxu0
        %v552 = vpop.f32.mrb[0].mxu0
        %v553 = vadd.f32 %v248, %v552
        %v554 = vpop.f32.mrb[0].mxu0
        %555 = vmatprep.mubr.bf16.mxu0 0
        %556 = vmatmul.mubr.bf16.gmra.mrb[0].mxu0 %v401
        %v557 = vpop.f32.mrb[0].mxu0
        %v558 = vadd.f32 %v248, %v557
        %v559 = vpop.f32.mrb[0].mxu0
        %v560 = vpop.f32.mrb[0].mxu0
        %v561 = vadd.f32 %v248, %v560
        %v562 = vpop.f32.mrb[0].mxu0
        %563 = vdwg.mxu0
        %v564 = vmax.f32 %v438, 0.0
        %v565 = vmax.f32 %v441, 0.0
        %v566 = vmax.f32 %v446, 0.0
        %v567 = vmax.f32 %v449, 0.0
        %v568 = vmax.f32 %v454, 0.0
        %v569 = vmax.f32 %v457, 0.0
        %v570 = vmax.f32 %v462, 0.0
        %v571 = vmax.f32 %v465, 0.0
        %v572 = vmax.f32 %v470, 0.0
        %v573 = vmax.f32 %v473, 0.0
        %v574 = vmax.f32 %v478, 0.0
        %v575 = vmax.f32 %v481, 0.0
        %v576 = vmax.f32 %v486, 0.0
        %v577 = vmax.f32 %v489, 0.0
        %v578 = vmax.f32 %v494, 0.0
        %v579 = vmax.f32 %v497, 0.0
        %v580 = vmax.f32 %v502, 0.0
        %v581 = vmax.f32 %v505, 0.0
        %v582 = vmax.f32 %v510, 0.0
        %v583 = vmax.f32 %v513, 0.0
        %v584 = vmax.f32 %v518, 0.0
        %v585 = vmax.f32 %v521, 0.0
        %v586 = vmax.f32 %v526, 0.0
        %v587 = vmax.f32 %v529, 0.0
        %v588 = vmax.f32 %v534, 0.0
        %v589 = vmax.f32 %v537, 0.0
        %v590 = vmax.f32 %v542, 0.0
        %v591 = vmax.f32 %v545, 0.0
        %v592 = vmax.f32 %v550, 0.0
        %v593 = vmax.f32 %v553, 0.0
        %v594 = vmax.f32 %v558, 0.0
        %v595 = vmax.f32 %v561, 0.0
        %v596 = vpack.c.bf16 %v565, %v564
        %v597 = vpack.c.bf16 %v567, %v566
        %v598 = vpack.c.bf16 %v569, %v568
        %v599 = vpack.c.bf16 %v571, %v570
        %v600 = vpack.c.bf16 %v573, %v572
        %v601 = vpack.c.bf16 %v575, %v574
        %v602 = vpack.c.bf16 %v577, %v576
        %v603 = vpack.c.bf16 %v579, %v578
        %v604 = vpack.c.bf16 %v581, %v580
        %v605 = vpack.c.bf16 %v583, %v582
        %v606 = vpack.c.bf16 %v585, %v584
        %v607 = vpack.c.bf16 %v587, %v586
        %v608 = vpack.c.bf16 %v589, %v588
        %v609 = vpack.c.bf16 %v591, %v590
        %v610 = vpack.c.bf16 %v593, %v592
        %v611 = vpack.c.bf16 %v595, %v594
        %v628 = vunpack.c.l.b16 %v596
        %v629 = vunpack.c.h.b16 %v596
        %v630 = vunpack.c.l.b16 %v597
        %v631 = vunpack.c.h.b16 %v597
        %v632 = vunpack.c.l.b16 %v598
        %v633 = vunpack.c.h.b16 %v598
        %v634 = vunpack.c.l.b16 %v599
        %v635 = vunpack.c.h.b16 %v599
        %v636 = vunpack.c.l.b16 %v600
        %v637 = vunpack.c.h.b16 %v600
        %v638 = vunpack.c.l.b16 %v601
        %v639 = vunpack.c.h.b16 %v601
        %v640 = vunpack.c.l.b16 %v602
        %v641 = vunpack.c.h.b16 %v602
        %v642 = vunpack.c.l.b16 %v603
        %v643 = vunpack.c.h.b16 %v603
        %v644 = vunpack.c.l.b16 %v604
        %v645 = vunpack.c.h.b16 %v604
        %v646 = vunpack.c.l.b16 %v605
        %v647 = vunpack.c.h.b16 %v605
        %v648 = vunpack.c.l.b16 %v606
        %v649 = vunpack.c.h.b16 %v606
        %v650 = vunpack.c.l.b16 %v607
        %v651 = vunpack.c.h.b16 %v607
        %v652 = vunpack.c.l.b16 %v608
        %v653 = vunpack.c.h.b16 %v608
        %v654 = vunpack.c.l.b16 %v609
        %v655 = vunpack.c.h.b16 %v609
        %v656 = vunpack.c.l.b16 %v610
        %v657 = vunpack.c.h.b16 %v610
        %v658 = vunpack.c.l.b16 %v611
        %v659 = vunpack.c.h.b16 %v611
        %v660 = vpack.c.b16 %v628, %v628
        %v661 = vpack.c.b16 %v629, %v629
        %v662 = vpack.c.b16 %v630, %v630
        %v663 = vpack.c.b16 %v631, %v631
        %v664 = vpack.c.b16 %v632, %v632
        %v665 = vpack.c.b16 %v633, %v633
        %v666 = vpack.c.b16 %v634, %v634
        %v667 = vpack.c.b16 %v635, %v635
        %v668 = vpack.c.b16 %v636, %v636
        %v669 = vpack.c.b16 %v637, %v637
        %v670 = vpack.c.b16 %v638, %v638
        %v671 = vpack.c.b16 %v639, %v639
        %v672 = vpack.c.b16 %v640, %v640
        %v673 = vpack.c.b16 %v641, %v641
        %v674 = vpack.c.b16 %v642, %v642
        %v675 = vpack.c.b16 %v643, %v643
        %v676 = vpack.c.b16 %v644, %v644
        %v677 = vpack.c.b16 %v645, %v645
        %v678 = vpack.c.b16 %v646, %v646
        %v679 = vpack.c.b16 %v647, %v647
        %v680 = vpack.c.b16 %v648, %v648
        %v681 = vpack.c.b16 %v649, %v649
        %v682 = vpack.c.b16 %v650, %v650
        %v683 = vpack.c.b16 %v651, %v651
        %v684 = vpack.c.b16 %v652, %v652
        %v685 = vpack.c.b16 %v653, %v653
        %v686 = vpack.c.b16 %v654, %v654
        %v687 = vpack.c.b16 %v655, %v655
        %v688 = vpack.c.b16 %v656, %v656
        %v689 = vpack.c.b16 %v657, %v657
        %v690 = vpack.c.b16 %v658, %v658
        %v691 = vpack.c.b16 %v659, %v659
        %vm724 = vcmask 519168
        %725 = vst.msk [vmem:[%s200] sm:$0xf] %vm724, %v660
        %726 = vst.msk [vmem:[%s200 + $0x4] sm:$0xf] %vm724, %v661
        %727 = vst.msk [vmem:[%s200 + $0x8] sm:$0xf] %vm724, %v662
        %728 = vst.msk [vmem:[%s200 + $0xc] sm:$0xf] %vm724, %v663
        %729 = vst.msk [vmem:[%s200 + $0x10] sm:$0xf] %vm724, %v664
        %730 = vst.msk [vmem:[%s200 + $0x14] sm:$0xf] %vm724, %v665
        %731 = vst.msk [vmem:[%s200 + $0x18] sm:$0xf] %vm724, %v666
        %732 = vst.msk [vmem:[%s200 + $0x1c] sm:$0xf] %vm724, %v667
        %733 = vst.msk [vmem:[%s200 + $0x20] sm:$0xf] %vm724, %v668
        %734 = vst.msk [vmem:[%s200 + $0x24] sm:$0xf] %vm724, %v669
        %735 = vst.msk [vmem:[%s200 + $0x28] sm:$0xf] %vm724, %v670
        %736 = vst.msk [vmem:[%s200 + $0x2c] sm:$0xf] %vm724, %v671
        %737 = vst.msk [vmem:[%s200 + $0x30] sm:$0xf] %vm724, %v672
        %738 = vst.msk [vmem:[%s200 + $0x34] sm:$0xf] %vm724, %v673
        %739 = vst.msk [vmem:[%s200 + $0x38] sm:$0xf] %vm724, %v674
        %740 = vst.msk [vmem:[%s200 + $0x3c] sm:$0xf] %vm724, %v675
        %741 = vst.msk [vmem:[%s200 + $0x40] sm:$0xf] %vm724, %v676
        %742 = vst.msk [vmem:[%s200 + $0x44] sm:$0xf] %vm724, %v677
        %743 = vst.msk [vmem:[%s200 + $0x48] sm:$0xf] %vm724, %v678
        %744 = vst.msk [vmem:[%s200 + $0x4c] sm:$0xf] %vm724, %v679
        %745 = vst.msk [vmem:[%s200 + $0x50] sm:$0xf] %vm724, %v680
        %746 = vst.msk [vmem:[%s200 + $0x54] sm:$0xf] %vm724, %v681
        %747 = vst.msk [vmem:[%s200 + $0x58] sm:$0xf] %vm724, %v682
        %748 = vst.msk [vmem:[%s200 + $0x5c] sm:$0xf] %vm724, %v683
        %749 = vst.msk [vmem:[%s200 + $0x60] sm:$0xf] %vm724, %v684
        %750 = vst.msk [vmem:[%s200 + $0x64] sm:$0xf] %vm724, %v685
        %751 = vst.msk [vmem:[%s200 + $0x68] sm:$0xf] %vm724, %v686
        %752 = vst.msk [vmem:[%s200 + $0x6c] sm:$0xf] %vm724, %v687
        %753 = vst.msk [vmem:[%s200 + $0x70] sm:$0xf] %vm724, %v688
        %754 = vst.msk [vmem:[%s200 + $0x74] sm:$0xf] %vm724, %v689
        %755 = vst.msk [vmem:[%s200 + $0x78] sm:$0xf] %vm724, %v690
        %756 = vst.msk [vmem:[%s200 + $0x7c] sm:$0xf] %vm724, %v691
        %s757 = smul.u32 32, %s16
        %p758 = scmp.lt.s32.totalorder %s757, 63
        %s759 = scalar_select %p758, %s757, 63
        %s760 = smul.addr %s759, 4
        %s761 = scalar_lea.vmem %s3, %s760
        // Predicated region
        $region41: #{_lambda_.10} parent=31 // pred_check
          %p762 = pneg %p102
        $region42: #{_lambda_.10} parent=31 // pred_check_branch
          %764 = sbr.rel (%p762) target = $region44
        $region43: #{_lambda_.10} parent=31 // pred_region
          %s765 = smul.u32 32, %s16
        $region44: #{_lambda_.10} parent=31 // pred_fallthru
          _
      $region32: #{_lambda_.10} parent=5 // pred_fallthru
        _
      %p766 = scmp.le.s32.totalorder 2, %s11
      // Predicated region
      $region45: #{_lambda_.10} parent=5 // pred_check
        %p767 = pneg %p766
      $region46: #{_lambda_.10} parent=5 // pred_check_branch
        %769 = sbr.rel (%p767) target = $region48
      $region47: #{_lambda_.10} parent=5 // pred_region
        %s770 = ssub.s32 %s11, 2
        // Predicated region
        $region49: #{_lambda_.10} parent=47 // pred_check
          %p771 = pneg %p108
        $region50: #{_lambda_.10} parent=47 // pred_check_branch
          %773 = sbr.rel (%p771) target = $region52
        $region51: #{_lambda_.10} parent=47 // pred_region
          %s774 = smul.u32 32, %s17
          %p775 = scmp.lt.s32.totalorder %s774, 63
          %s776 = scalar_select %p775, %s774, 63
          %s777 = smul.addr %s776, 4
          %s778 = scalar_lea.vmem %s3, %s777
        $region52: #{_lambda_.10} parent=47 // pred_fallthru
          _
      $region48: #{_lambda_.10} parent=5 // pred_fallthru
        _
    $region6: #{_lambda_.10} parent=1 // loop_footer
      %s15 = sadd.s32 1, %s11
    $region7: #{_lambda_.10} parent=1 // loop_footer_branch
      %10 = sbr.rel target = $region3
    $region8: #{_lambda_.10} parent=1 // loop_exit
      _
    %779 = vsyncpa [#allocation3], 1
    %s780 = scalar_lea.sflag [#allocation3], 1
    %781 = vsyncpa %s780, 1
    %782 = vsyncpa [#allocation5], 1

// kernel: _lambda_.11
$region0: #{_lambda_.11}
  #allocation0 [shape = 'u32[]', space=smem, size = 0x4, offset = 0x4, fixed_abs, tag = 'smem constant byte address 0x4 - core index']
  #allocation1 [shape = 'u32[144,128]{1,0:T(1,128)}', space=vmem, size = 0x12000, scoped, tag = 'internal scratch']
  %s0 = inlined_call_operand.vmem [shape: bf16[64,64], index: 0, kind: input, shape index: {}]
  %s1 = inlined_call_operand.vmem [shape: bf16[64,128], index: 1, kind: input, shape index: {}]
  %s2 = inlined_call_operand.vmem [shape: f32[1,128], index: 2, kind: input, shape index: {}]
  %s3 = inlined_call_operand.vmem [shape: bf16[64,128], index: 3, kind: output, shape index: {}]
  %s4 = sld [smem:[#allocation0]]
  $region45: #{_lambda_.11} parent=0
    _
  %s6 = ssub.s32 1, %s4
  %s7 = scalar_select 0, %s6, %s4
  loop: start=0, step=1, limit=4
  $region2: #{_lambda_.11} parent=0 // loop_pre_header
    _
  $region3: #{_lambda_.11} parent=0 // loop_header
    %s9 = sphi 0, %s13
    %p10 = scmp.ge.s32.totalorder %s9, 4
    %s19 = sphi 0, %s21
    %s22 = sphi 0, %s19
    %s23 = sphi 0, %s22
    %s39 = sphi 0, %s23
    %s43 = sphi 0, %s43
    %s45 = sphi 0, %s43
    %s46 = sphi 0, %s45
    %s60 = sphi 0, %s46
    %s64 = sphi 0, %s64
    %s66 = sphi 0, %s64
    %s67 = sphi 0, %s66
    %s81 = sphi 0, %s67
    %s87 = sphi 0, %s89
    %s90 = sphi 0, %s87
    %s91 = sphi 0, %s90
    %s107 = sphi 0, %s91
  $region4: #{_lambda_.11} parent=0 // loop_header_branch
    %12 = sbr.rel (%p10) target = $region8
  $region5: #{_lambda_.11} parent=0 // loop_body
    %s14 = ssub.s32 %s9, 1
    %s15 = ssub.s32 %s9, 2
    %s16 = sadd.s32 %s9, 1
    %s17 = ssub.s32 %s9, %s16
    %p18 = scmp.eq.s32.totalorder %s17, 0
    %s20 = sadd.s32 %s19, 1
    %s21 = scalar_select %p18, %s19, %s20
    %p24 = pneg %p18
    %p25 = scmp.eq.s32.totalorder %s9, 1
    %p26 = por %p24, %p25
    %p27 = scmp.ne.s32.totalorder %s19, %s22
    %p28 = scmp.eq.s32.totalorder %s9, 0
    %p29 = por %p27, %p28
    %p30 = scmp.ne.s32.totalorder %s19, %s22
    %p31 = scmp.eq.s32.totalorder %s14, 1
    %p32 = por %p30, %p31
    %p33 = scmp.ne.s32.totalorder %s22, %s23
    %p34 = scmp.eq.s32.totalorder %s14, 0
    %p35 = por %p33, %p34
    %p36 = scmp.ne.s32.totalorder %s22, %s23
    %p37 = scmp.eq.s32.totalorder %s15, 1
    %p38 = por %p36, %p37
    %p40 = scmp.ne.s32.totalorder %s23, %s39
    %p41 = scmp.eq.s32.totalorder %s15, 0
    %p42 = por %p40, %p41
    %s44 = sadd.s32 %s43, 1
    %p47 = scmp.eq.s32.totalorder %s9, 1
    %p48 = scmp.ne.s32.totalorder %s43, %s45
    %p49 = scmp.eq.s32.totalorder %s9, 0
    %p50 = por %p48, %p49
    %p51 = scmp.ne.s32.totalorder %s43, %s45
    %p52 = scmp.eq.s32.totalorder %s14, 1
    %p53 = por %p51, %p52
    %p54 = scmp.ne.s32.totalorder %s45, %s46
    %p55 = scmp.eq.s32.totalorder %s14, 0
    %p56 = por %p54, %p55
    %p57 = scmp.ne.s32.totalorder %s45, %s46
    %p58 = scmp.eq.s32.totalorder %s15, 1
    %p59 = por %p57, %p58
    %p61 = scmp.ne.s32.totalorder %s46, %s60
    %p62 = scmp.eq.s32.totalorder %s15, 0
    %p63 = por %p61, %p62
    %s65 = sadd.s32 %s64, 1
    %p68 = scmp.eq.s32.totalorder %s9, 1
    %p69 = scmp.ne.s32.totalorder %s64, %s66
    %p70 = scmp.eq.s32.totalorder %s9, 0
    %p71 = por %p69, %p70
    %p72 = scmp.ne.s32.totalorder %s64, %s66
    %p73 = scmp.eq.s32.totalorder %s14, 1
    %p74 = por %p72, %p73
    %p75 = scmp.ne.s32.totalorder %s66, %s67
    %p76 = scmp.eq.s32.totalorder %s14, 0
    %p77 = por %p75, %p76
    %p78 = scmp.ne.s32.totalorder %s66, %s67
    %p79 = scmp.eq.s32.totalorder %s15, 1
    %p80 = por %p78, %p79
    %p82 = scmp.ne.s32.totalorder %s67, %s81
    %p83 = scmp.eq.s32.totalorder %s15, 0
    %p84 = por %p82, %p83
    %s85 = ssub.s32 %s9, %s16
    %p86 = scmp.eq.s32.totalorder %s85, 0
    %s88 = sadd.s32 %s87, 1
    %s89 = scalar_select %p86, %s87, %s88
    %p92 = pneg %p86
    %p93 = scmp.eq.s32.totalorder %s9, 1
    %p94 = por %p92, %p93
    %p95 = scmp.ne.s32.totalorder %s87, %s90
    %p96 = scmp.eq.s32.totalorder %s9, 0
    %p97 = por %p95, %p96
    %p98 = scmp.ne.s32.totalorder %s87, %s90
    %p99 = scmp.eq.s32.totalorder %s14, 1
    %p100 = por %p98, %p99
    %p101 = scmp.ne.s32.totalorder %s90, %s91
    %p102 = scmp.eq.s32.totalorder %s14, 0
    %p103 = por %p101, %p102
    %p104 = scmp.ne.s32.totalorder %s90, %s91
    %p105 = scmp.eq.s32.totalorder %s15, 1
    %p106 = por %p104, %p105
    %p108 = scmp.ne.s32.totalorder %s91, %s107
    %p109 = scmp.eq.s32.totalorder %s15, 0
    %p110 = por %p108, %p109
    %p111 = scmp.le.s32.totalorder 1, %s9
    %p112 = scmp.lt.s32.totalorder %s9, 3
    %p113 = pnand %p111, %p112
    %p114 = pneg %p113
    // Predicated region
    $region9: #{_lambda_.11} parent=5 // pred_check
      _
    $region10: #{_lambda_.11} parent=5 // pred_check_branch
      %116 = sbr.rel (%p113) target = $region12
    $region11: #{_lambda_.11} parent=5 // pred_region
      %s117 = ssub.s32 %s9, 1
      // Predicated region
      $region13: #{_lambda_.11} parent=11 // pred_check
        %p118 = pneg %p56
      $region14: #{_lambda_.11} parent=11 // pred_check_branch
        %120 = sbr.rel (%p118) target = $region16
      $region15: #{_lambda_.11} parent=11 // pred_region
        _
      $region16: #{_lambda_.11} parent=11 // pred_fallthru
        _
      // Predicated region
      $region17: #{_lambda_.11} parent=11 // pred_check
        %p121 = pneg %p77
      $region18: #{_lambda_.11} parent=11 // pred_check_branch
        %123 = sbr.rel (%p121) target = $region20
      $region19: #{_lambda_.11} parent=11 // pred_region
        _
      $region20: #{_lambda_.11} parent=11 // pred_fallthru
        _
    $region12: #{_lambda_.11} parent=5 // pred_fallthru
      _
    %p124 = scmp.lt.s32.totalorder %s9, 2
    // Predicated region
    $region21: #{_lambda_.11} parent=5 // pred_check
      %p125 = pneg %p124
    $region22: #{_lambda_.11} parent=5 // pred_check_branch
      %127 = sbr.rel (%p125) target = $region24
    $region23: #{_lambda_.11} parent=5 // pred_region
      // Predicated region
      $region25: #{_lambda_.11} parent=23 // pred_check
        %p128 = pneg %p29
      $region26: #{_lambda_.11} parent=23 // pred_check_branch
        %130 = sbr.rel (%p128) target = $region28
      $region27: #{_lambda_.11} parent=23 // pred_region
        %s131 = smul.u32 4, %s9
        %p132 = scmp.lt.s32.totalorder %s131, 7
        %s133 = scalar_select %p132, %s131, 7
        %s134 = smul.addr %s133, 4
        %s135 = scalar_lea.vmem %s0, %s134
        %s136 = smul.u32 4, %s9
      $region28: #{_lambda_.11} parent=23 // pred_fallthru
        _
    $region24: #{_lambda_.11} parent=5 // pred_fallthru
      _
    %p137 = scmp.le.s32.totalorder 1, %s9
    %p138 = scmp.lt.s32.totalorder %s9, 3
    %p139 = pnand %p137, %p138
    %p140 = pneg %p139
    // Predicated region
    $region29: #{_lambda_.11} parent=5 // pred_check
      _
    $region30: #{_lambda_.11} parent=5 // pred_check_branch
      %142 = sbr.rel (%p139) target = $region32
    $region31: #{_lambda_.11} parent=5 // pred_region
      %s143 = ssub.s32 %s9, 1
      %s144 = smul.u32 4, %s14
      %p145 = scmp.lt.s32.totalorder %s144, 7
      %s146 = scalar_select %p145, %s144, 7
      %s147 = smul.addr %s146, 4
      %s148 = scalar_lea.vmem %s0, %s147
      %p149 = pneg %p35
      %p150 = pneg %p32
      %p151 = pneg %p56
      %p152 = pneg %p53
      %p153 = pneg %p77
      %p154 = pneg %p74
      %p155 = pneg %p103
      %p156 = pneg %p100
      %s157 = smul.u32 4, %s14
      %p158 = scmp.lt.s32.totalorder %s157, 7
      %s159 = scalar_select %p158, %s157, 7
      %s160 = smul.addr %s159, 4
      %s161 = scalar_lea.vmem %s3, %s160
      %s162 = smul.u32 4, %s14
      %p163 = scmp.lt.s32.totalorder %s162, 7
      %s164 = scalar_select %p163, %s162, 7
      %s165 = smul.addr %s164, 4
      %s166 = scalar_lea.vmem %s0, %s165
      %s167 = smul.u32 4, %s14
      %s168 = smul.u32 4, %s14
      %p169 = scmp.lt.s32.totalorder %s168, 7
      %s170 = scalar_select %p169, %s168, 7
      %s171 = smul.addr %s170, 4
      %s172 = scalar_lea.vmem %s3, %s171
      %s173 = smul.u32 4, %s14
      %v175 = vld [vmem:[%s166] sm:$0xf]
      %v176 = vld [vmem:[%s166 + $0x4] sm:$0xf]
      %v177 = vld [vmem:[%s166 + $0x8] sm:$0xf]
      %v178 = vld [vmem:[%s166 + $0xc] sm:$0xf]
      %v179 = vld [vmem:[%s1] sm:$0xf]
      %v180 = vld [vmem:[%s1 + $0x4] sm:$0xf]
      %v181 = vld [vmem:[%s1 + $0x8] sm:$0xf]
      %v182 = vld [vmem:[%s1 + $0xc] sm:$0xf]
      %v183 = vld [vmem:[%s1 + $0x10] sm:$0xf]
      %v184 = vld [vmem:[%s1 + $0x14] sm:$0xf]
      %v185 = vld [vmem:[%s1 + $0x18] sm:$0xf]
      %v186 = vld [vmem:[%s1 + $0x1c] sm:$0xf]
      %v187 = vld [vmem:[%s2] sm:$0x1]
      %v189 = vlaneseq
      %v190 = vshrl.u32 %v189, 7
      %v191 = vsub.s32 0, %v190
      %v192 = vrot.slane %v187, %v191
      %v198 = vunpack.c.l.b16 %v175
      %v199 = vunpack.c.l.b16 %v176
      %v200 = vunpack.c.l.b16 %v177
      %v201 = vunpack.c.l.b16 %v178
      %v202 = vpack.c.b16 %v199, %v198
      %v203 = vpack.c.b16 %v201, %v200
      %v212 = vunpack.c.l.b16 %v179
      %v213 = vunpack.c.l.b16 %v180
      %v214 = vunpack.c.l.b16 %v181
      %v215 = vunpack.c.l.b16 %v182
      %v216 = vunpack.c.l.b16 %v183
      %v217 = vunpack.c.l.b16 %v184
      %v218 = vunpack.c.l.b16 %v185
      %v219 = vunpack.c.l.b16 %v186
      %v220 = vpack.c.b16 %v213, %v212
      %v221 = vpack.c.b16 %v215, %v214
      %v222 = vpack.c.b16 %v217, %v216
      %v223 = vpack.c.b16 %v219, %v218
      %vm228 = vcmask 523264
      %v230 = vsel %vm228, %v202, 0
      %v233 = vsel %vm228, %v203, 0
      %235 = vmatprep.subr.bf16.mxu0 0
      %236 = vmatpush1.bf16.msra.mxu0 %v220
      %237 = vmatprep.subr.bf16.mxu0 0
      %238 = vmatpush1.bf16.msra.mxu0 %v221
      %239 = vmatprep.subr.bf16.mxu0 0
      %240 = vmatpush1.bf16.msra.mxu0 %v222
      %241 = vmatprep.subr.bf16.mxu0 0
      %242 = vmatpush1.bf16.msra.mxu0 %v223
      %243 = vmatprep.subr.bf16.mxu0 0
      %244 = vmatpush1.bf16.msra.mxu0 0
      %245 = vmatprep.subr.bf16.mxu0 0
      %246 = vmatpush1.bf16.msra.mxu0 0
      %247 = vmatprep.subr.bf16.mxu0 0
      %248 = vmatpush1.bf16.msra.mxu0 0
      %249 = vmatprep.subr.bf16.mxu0 0
      %250 = vmatpush1.bf16.msra.mxu0 0
      %251 = vmatprep.subr.bf16.mxu0 0
      %252 = vmatpush1.bf16.msra.mxu0 0
      %253 = vmatprep.subr.bf16.mxu0 0
      %254 = vmatpush1.bf16.msra.mxu0 0
      %255 = vmatprep.subr.bf16.mxu0 0
      %256 = vmatpush1.bf16.msra.mxu0 0
      %257 = vmatprep.subr.bf16.mxu0 0
      %258 = vmatpush1.bf16.msra.mxu0 0
      %259 = vmatprep.subr.bf16.mxu0 0
      %260 = vmatpush1.bf16.msra.mxu0 0
      %261 = vmatprep.subr.bf16.mxu0 0
      %262 = vmatpush1.bf16.msra.mxu0 0
      %263 = vmatprep.subr.bf16.mxu0 0
      %264 = vmatpush1.bf16.msra.mxu0 0
      %265 = vmatprep.subr.bf16.mxu0 0
      %266 = vmatpush1.bf16.msra.mxu0 0
      %267 = vmatprep.mubr.bf16.mxu0 0
      %268 = vmatmul.mubr.bf16.gmra.mrb[0].mxu0 %v230
      %v269 = vpop.f32.mrb[0].mxu0
      %v270 = vadd.f32 %v192, %v269
      %v271 = vpop.f32.mrb[0].mxu0
      %v272 = vpop.f32.mrb[0].mxu0
      %v273 = vadd.f32 %v192, %v272
      %v274 = vpop.f32.mrb[0].mxu0
      %275 = vmatprep.mubr.bf16.mxu0 0
      %276 = vmatmul.mubr.bf16.gmra.mrb[0].mxu0 %v233
      %v277 = vpop.f32.mrb[0].mxu0
      %v278 = vadd.f32 %v192, %v277
      %v279 = vpop.f32.mrb[0].mxu0
      %v280 = vpop.f32.mrb[0].mxu0
      %v281 = vadd.f32 %v192, %v280
      %v282 = vpop.f32.mrb[0].mxu0
      %283 = vdwg.mxu0
      %v284 = vpack.c.bf16 %v273, %v270
      %v285 = vpack.c.bf16 %v281, %v278
      %v288 = vunpack.c.l.b16 %v284
      %v289 = vunpack.c.h.b16 %v284
      %v290 = vunpack.c.l.b16 %v285
      %v291 = vunpack.c.h.b16 %v285
      %v292 = vpack.c.b16 %v288, %v288
      %v293 = vpack.c.b16 %v289, %v289
      %v294 = vpack.c.b16 %v290, %v290
      %v295 = vpack.c.b16 %v291, %v291
      %300 = vst [vmem:[%s172] sm:$0xf] %v292
      %301 = vst [vmem:[%s172 + $0x4] sm:$0xf] %v293
      %302 = vst [vmem:[%s172 + $0x8] sm:$0xf] %v294
      %303 = vst [vmem:[%s172 + $0xc] sm:$0xf] %v295
      %s304 = smul.u32 4, %s14
      %p305 = scmp.lt.s32.totalorder %s304, 7
      %s306 = scalar_select %p305, %s304, 7
      %s307 = smul.addr %s306, 4
      %s308 = scalar_lea.vmem %s3, %s307
      // Predicated region
      $region33: #{_lambda_.11} parent=31 // pred_check
        %p309 = pneg %p100
      $region34: #{_lambda_.11} parent=31 // pred_check_branch
        %311 = sbr.rel (%p309) target = $region36
      $region35: #{_lambda_.11} parent=31 // pred_region
        %s312 = smul.u32 4, %s14
      $region36: #{_lambda_.11} parent=31 // pred_fallthru
        _
    $region32: #{_lambda_.11} parent=5 // pred_fallthru
      _
    %p313 = scmp.le.s32.totalorder 2, %s9
    // Predicated region
    $region37: #{_lambda_.11} parent=5 // pred_check
      %p314 = pneg %p313
    $region38: #{_lambda_.11} parent=5 // pred_check_branch
      %316 = sbr.rel (%p314) target = $region40
    $region39: #{_lambda_.11} parent=5 // pred_region
      %s317 = ssub.s32 %s9, 2
      // Predicated region
      $region41: #{_lambda_.11} parent=39 // pred_check
        %p318 = pneg %p106
      $region42: #{_lambda_.11} parent=39 // pred_check_branch
        %320 = sbr.rel (%p318) target = $region44
      $region43: #{_lambda_.11} parent=39 // pred_region
        %s321 = smul.u32 4, %s15
        %p322 = scmp.lt.s32.totalorder %s321, 7
        %s323 = scalar_select %p322, %s321, 7
        %s324 = smul.addr %s323, 4
        %s325 = scalar_lea.vmem %s3, %s324
      $region44: #{_lambda_.11} parent=39 // pred_fallthru
        _
    $region40: #{_lambda_.11} parent=5 // pred_fallthru
      _
  $region6: #{_lambda_.11} parent=0 // loop_footer
    %s13 = sadd.s32 1, %s9
  $region7: #{_lambda_.11} parent=0 // loop_footer_branch
    %8 = sbr.rel target = $region3
  $region8: #{_lambda_.11} parent=0 // loop_exit
    _

// kernel: _lambda_.12
$region0: #{_lambda_.12}
  #allocation0 [shape = 'u32[]', space=smem, size = 0x4, offset = 0x4, fixed_abs, tag = 'smem constant byte address 0x4 - core index']
  #allocation1 [shape = 'u32[144,128]{1,0:T(1,128)}', space=vmem, size = 0x12000, scoped, tag = 'internal scratch']
  %s0 = inlined_call_operand.vmem [shape: bf16[64,1728], index: 0, kind: input, shape index: {}]
  %s1 = inlined_call_operand.vmem [shape: bf16[1728,64], index: 1, kind: input, shape index: {}]
  %s2 = inlined_call_operand.vmem [shape: f32[1,64], index: 2, kind: input, shape index: {}]
  %s3 = inlined_call_operand.vmem [shape: bf16[64,64], index: 3, kind: output, shape index: {}]
  %s4 = sld [smem:[#allocation0]]
  $region45: #{_lambda_.12} parent=0
    _
  %s6 = ssub.s32 1, %s4
  %s7 = scalar_select 0, %s6, %s4
  loop: start=0, step=1, limit=4
  $region2: #{_lambda_.12} parent=0 // loop_pre_header
    _
  $region3: #{_lambda_.12} parent=0 // loop_header
    %s9 = sphi 0, %s13
    %p10 = scmp.ge.s32.totalorder %s9, 4
    %s19 = sphi 0, %s21
    %s22 = sphi 0, %s19
    %s23 = sphi 0, %s22
    %s39 = sphi 0, %s23
    %s43 = sphi 0, %s43
    %s45 = sphi 0, %s43
    %s46 = sphi 0, %s45
    %s60 = sphi 0, %s46
    %s64 = sphi 0, %s64
    %s66 = sphi 0, %s64
    %s67 = sphi 0, %s66
    %s81 = sphi 0, %s67
    %s87 = sphi 0, %s89
    %s90 = sphi 0, %s87
    %s91 = sphi 0, %s90
    %s107 = sphi 0, %s91
  $region4: #{_lambda_.12} parent=0 // loop_header_branch
    %12 = sbr.rel (%p10) target = $region8
  $region5: #{_lambda_.12} parent=0 // loop_body
    %s14 = ssub.s32 %s9, 1
    %s15 = ssub.s32 %s9, 2
    %s16 = sadd.s32 %s9, 1
    %s17 = ssub.s32 %s9, %s16
    %p18 = scmp.eq.s32.totalorder %s17, 0
    %s20 = sadd.s32 %s19, 1
    %s21 = scalar_select %p18, %s19, %s20
    %p24 = pneg %p18
    %p25 = scmp.eq.s32.totalorder %s9, 1
    %p26 = por %p24, %p25
    %p27 = scmp.ne.s32.totalorder %s19, %s22
    %p28 = scmp.eq.s32.totalorder %s9, 0
    %p29 = por %p27, %p28
    %p30 = scmp.ne.s32.totalorder %s19, %s22
    %p31 = scmp.eq.s32.totalorder %s14, 1
    %p32 = por %p30, %p31
    %p33 = scmp.ne.s32.totalorder %s22, %s23
    %p34 = scmp.eq.s32.totalorder %s14, 0
    %p35 = por %p33, %p34
    %p36 = scmp.ne.s32.totalorder %s22, %s23
    %p37 = scmp.eq.s32.totalorder %s15, 1
    %p38 = por %p36, %p37
    %p40 = scmp.ne.s32.totalorder %s23, %s39
    %p41 = scmp.eq.s32.totalorder %s15, 0
    %p42 = por %p40, %p41
    %s44 = sadd.s32 %s43, 1
    %p47 = scmp.eq.s32.totalorder %s9, 1
    %p48 = scmp.ne.s32.totalorder %s43, %s45
    %p49 = scmp.eq.s32.totalorder %s9, 0
    %p50 = por %p48, %p49
    %p51 = scmp.ne.s32.totalorder %s43, %s45
    %p52 = scmp.eq.s32.totalorder %s14, 1
    %p53 = por %p51, %p52
    %p54 = scmp.ne.s32.totalorder %s45, %s46
    %p55 = scmp.eq.s32.totalorder %s14, 0
    %p56 = por %p54, %p55
    %p57 = scmp.ne.s32.totalorder %s45, %s46
    %p58 = scmp.eq.s32.totalorder %s15, 1
    %p59 = por %p57, %p58
    %p61 = scmp.ne.s32.totalorder %s46, %s60
    %p62 = scmp.eq.s32.totalorder %s15, 0
    %p63 = por %p61, %p62
    %s65 = sadd.s32 %s64, 1
    %p68 = scmp.eq.s32.totalorder %s9, 1
    %p69 = scmp.ne.s32.totalorder %s64, %s66
    %p70 = scmp.eq.s32.totalorder %s9, 0
    %p71 = por %p69, %p70
    %p72 = scmp.ne.s32.totalorder %s64, %s66
    %p73 = scmp.eq.s32.totalorder %s14, 1
    %p74 = por %p72, %p73
    %p75 = scmp.ne.s32.totalorder %s66, %s67
    %p76 = scmp.eq.s32.totalorder %s14, 0
    %p77 = por %p75, %p76
    %p78 = scmp.ne.s32.totalorder %s66, %s67
    %p79 = scmp.eq.s32.totalorder %s15, 1
    %p80 = por %p78, %p79
    %p82 = scmp.ne.s32.totalorder %s67, %s81
    %p83 = scmp.eq.s32.totalorder %s15, 0
    %p84 = por %p82, %p83
    %s85 = ssub.s32 %s9, %s16
    %p86 = scmp.eq.s32.totalorder %s85, 0
    %s88 = sadd.s32 %s87, 1
    %s89 = scalar_select %p86, %s87, %s88
    %p92 = pneg %p86
    %p93 = scmp.eq.s32.totalorder %s9, 1
    %p94 = por %p92, %p93
    %p95 = scmp.ne.s32.totalorder %s87, %s90
    %p96 = scmp.eq.s32.totalorder %s9, 0
    %p97 = por %p95, %p96
    %p98 = scmp.ne.s32.totalorder %s87, %s90
    %p99 = scmp.eq.s32.totalorder %s14, 1
    %p100 = por %p98, %p99
    %p101 = scmp.ne.s32.totalorder %s90, %s91
    %p102 = scmp.eq.s32.totalorder %s14, 0
    %p103 = por %p101, %p102
    %p104 = scmp.ne.s32.totalorder %s90, %s91
    %p105 = scmp.eq.s32.totalorder %s15, 1
    %p106 = por %p104, %p105
    %p108 = scmp.ne.s32.totalorder %s91, %s107
    %p109 = scmp.eq.s32.totalorder %s15, 0
    %p110 = por %p108, %p109
    %p111 = scmp.le.s32.totalorder 1, %s9
    %p112 = scmp.lt.s32.totalorder %s9, 3
    %p113 = pnand %p111, %p112
    %p114 = pneg %p113
    // Predicated region
    $region9: #{_lambda_.12} parent=5 // pred_check
      _
    $region10: #{_lambda_.12} parent=5 // pred_check_branch
      %116 = sbr.rel (%p113) target = $region12
    $region11: #{_lambda_.12} parent=5 // pred_region
      %s117 = ssub.s32 %s9, 1
      // Predicated region
      $region13: #{_lambda_.12} parent=11 // pred_check
        %p118 = pneg %p56
      $region14: #{_lambda_.12} parent=11 // pred_check_branch
        %120 = sbr.rel (%p118) target = $region16
      $region15: #{_lambda_.12} parent=11 // pred_region
        _
      $region16: #{_lambda_.12} parent=11 // pred_fallthru
        _
      // Predicated region
      $region17: #{_lambda_.12} parent=11 // pred_check
        %p121 = pneg %p77
      $region18: #{_lambda_.12} parent=11 // pred_check_branch
        %123 = sbr.rel (%p121) target = $region20
      $region19: #{_lambda_.12} parent=11 // pred_region
        _
      $region20: #{_lambda_.12} parent=11 // pred_fallthru
        _
    $region12: #{_lambda_.12} parent=5 // pred_fallthru
      _
    %p124 = scmp.lt.s32.totalorder %s9, 2
    // Predicated region
    $region21: #{_lambda_.12} parent=5 // pred_check
      %p125 = pneg %p124
    $region22: #{_lambda_.12} parent=5 // pred_check_branch
      %127 = sbr.rel (%p125) target = $region24
    $region23: #{_lambda_.12} parent=5 // pred_region
      // Predicated region
      $region25: #{_lambda_.12} parent=23 // pred_check
        %p128 = pneg %p29
      $region26: #{_lambda_.12} parent=23 // pred_check_branch
        %130 = sbr.rel (%p128) target = $region28
      $region27: #{_lambda_.12} parent=23 // pred_region
        %s131 = smul.u32 4, %s9
        %p132 = scmp.lt.s32.totalorder %s131, 7
        %s133 = scalar_select %p132, %s131, 7
        %s134 = smul.addr %s133, 14
        %s135 = smul.addr %s134, 4
        %s136 = scalar_lea.vmem %s0, %s135
        %s137 = smul.u32 4, %s9
      $region28: #{_lambda_.12} parent=23 // pred_fallthru
        _
    $region24: #{_lambda_.12} parent=5 // pred_fallthru
      _
    %p138 = scmp.le.s32.totalorder 1, %s9
    %p139 = scmp.lt.s32.totalorder %s9, 3
    %p140 = pnand %p138, %p139
    %p141 = pneg %p140
    // Predicated region
    $region29: #{_lambda_.12} parent=5 // pred_check
      _
    $region30: #{_lambda_.12} parent=5 // pred_check_branch
      %143 = sbr.rel (%p140) target = $region32
    $region31: #{_lambda_.12} parent=5 // pred_region
      %s144 = ssub.s32 %s9, 1
      %s145 = smul.u32 4, %s14
      %p146 = scmp.lt.s32.totalorder %s145, 7
      %s147 = scalar_select %p146, %s145, 7
      %s148 = smul.addr %s147, 14
      %s149 = smul.addr %s148, 4
      %s150 = scalar_lea.vmem %s0, %s149
      %p151 = pneg %p35
      %p152 = pneg %p32
      %p153 = pneg %p56
      %p154 = pneg %p53
      %p155 = pneg %p77
      %p156 = pneg %p74
      %p157 = pneg %p103
      %p158 = pneg %p100
      %s159 = smul.u32 4, %s14
      %p160 = scmp.lt.s32.totalorder %s159, 7
      %s161 = scalar_select %p160, %s159, 7
      %s162 = smul.addr %s161, 4
      %s163 = scalar_lea.vmem %s3, %s162
      %s164 = smul.u32 4, %s14
      %p165 = scmp.lt.s32.totalorder %s164, 7
      %s166 = scalar_select %p165, %s164, 7
      %s167 = smul.addr %s166, 14
      %s168 = smul.addr %s167, 4
      %s169 = scalar_lea.vmem %s0, %s168
      %s170 = smul.u32 4, %s14
      %s171 = smul.u32 4, %s14
      %p172 = scmp.lt.s32.totalorder %s171, 7
      %s173 = scalar_select %p172, %s171, 7
      %s174 = smul.addr %s173, 4
      %s175 = scalar_lea.vmem %s3, %s174
      %s176 = smul.u32 4, %s14
      %v178 = vld [vmem:[%s169] sm:$0xff]
      %v179 = vld [vmem:[%s169 + $0x8] sm:$0xff]
      %v180 = vld [vmem:[%s169 + $0x10] sm:$0xff]
      %v181 = vld [vmem:[%s169 + $0x18] sm:$0xff]
      %v182 = vld [vmem:[%s169 + $0x20] sm:$0xff]
      %v183 = vld [vmem:[%s169 + $0x28] sm:$0xff]
      %v184 = vld [vmem:[%s169 + $0x30] sm:$0xff]
      %v185 = vld [vmem:[%s169 + $0x38] sm:$0xff]
      %v186 = vld [vmem:[%s169 + $0x40] sm:$0xff]
      %v187 = vld [vmem:[%s169 + $0x48] sm:$0xff]
      %v188 = vld [vmem:[%s169 + $0x50] sm:$0xff]
      %v189 = vld [vmem:[%s169 + $0x58] sm:$0xff]
      %v190 = vld [vmem:[%s169 + $0x60] sm:$0xff]
      %v191 = vld [vmem:[%s169 + $0x68] sm:$0xff]
      %v192 = vld [vmem:[%s169 + $0x70] sm:$0xff]
      %v193 = vld [vmem:[%s169 + $0x78] sm:$0xff]
      %v194 = vld [vmem:[%s169 + $0x80] sm:$0xff]
      %v195 = vld [vmem:[%s169 + $0x88] sm:$0xff]
      %v196 = vld [vmem:[%s169 + $0x90] sm:$0xff]
      %v197 = vld [vmem:[%s169 + $0x98] sm:$0xff]
      %v198 = vld [vmem:[%s169 + $0xa0] sm:$0xff]
      %v199 = vld [vmem:[%s169 + $0xa8] sm:$0xff]
      %v200 = vld [vmem:[%s169 + $0xb0] sm:$0xff]
      %v201 = vld [vmem:[%s169 + $0xb8] sm:$0xff]
      %v202 = vld [vmem:[%s169 + $0xc0] sm:$0xff]
      %v203 = vld [vmem:[%s169 + $0xc8] sm:$0xff]
      %v204 = vld [vmem:[%s169 + $0xd0] sm:$0xff]
      %v205 = vld [vmem:[%s169 + $0xd8] sm:$0xff]
      %v206 = vld [vmem:[%s1] sm:$0xf]
      %v207 = vld [vmem:[%s1 + $0x4] sm:$0xf]
      %v208 = vld [vmem:[%s1 + $0x8] sm:$0xf]
      %v209 = vld [vmem:[%s1 + $0xc] sm:$0xf]
      %v210 = vld [vmem:[%s1 + $0x10] sm:$0xf]
      %v211 = vld [vmem:[%s1 + $0x14] sm:$0xf]
      %v212 = vld [vmem:[%s1 + $0x18] sm:$0xf]
      %v213 = vld [vmem:[%s1 + $0x1c] sm:$0xf]
      %v214 = vld [vmem:[%s1 + $0x20] sm:$0xf]
      %v215 = vld [vmem:[%s1 + $0x24] sm:$0xf]
      %v216 = vld [vmem:[%s1 + $0x28] sm:$0xf]
      %v217 = vld [vmem:[%s1 + $0x2c] sm:$0xf]
      %v218 = vld [vmem:[%s1 + $0x30] sm:$0xf]
      %v219 = vld [vmem:[%s1 + $0x34] sm:$0xf]
      %v220 = vld [vmem:[%s1 + $0x38] sm:$0xf]
      %v221 = vld [vmem:[%s1 + $0x3c] sm:$0xf]
      %v222 = vld [vmem:[%s1 + $0x40] sm:$0xf]
      %v223 = vld [vmem:[%s1 + $0x44] sm:$0xf]
      %v224 = vld [vmem:[%s1 + $0x48] sm:$0xf]
      %v225 = vld [vmem:[%s1 + $0x4c] sm:$0xf]
      %v226 = vld [vmem:[%s1 + $0x50] sm:$0xf]
      %v227 = vld [vmem:[%s1 + $0x54] sm:$0xf]
      %v228 = vld [vmem:[%s1 + $0x58] sm:$0xf]
      %v229 = vld [vmem:[%s1 + $0x5c] sm:$0xf]
      %v230 = vld [vmem:[%s1 + $0x60] sm:$0xf]
      %v231 = vld [vmem:[%s1 + $0x64] sm:$0xf]
      %v232 = vld [vmem:[%s1 + $0x68] sm:$0xf]
      %v233 = vld [vmem:[%s1 + $0x6c] sm:$0xf]
      %v234 = vld [vmem:[%s1 + $0x70] sm:$0xf]
      %v235 = vld [vmem:[%s1 + $0x74] sm:$0xf]
      %v236 = vld [vmem:[%s1 + $0x78] sm:$0xf]
      %v237 = vld [vmem:[%s1 + $0x7c] sm:$0xf]
      %v238 = vld [vmem:[%s1 + $0x80] sm:$0xf]
      %v239 = vld [vmem:[%s1 + $0x84] sm:$0xf]
      %v240 = vld [vmem:[%s1 + $0x88] sm:$0xf]
      %v241 = vld [vmem:[%s1 + $0x8c] sm:$0xf]
      %v242 = vld [vmem:[%s1 + $0x90] sm:$0xf]
      %v243 = vld [vmem:[%s1 + $0x94] sm:$0xf]
      %v244 = vld [vmem:[%s1 + $0x98] sm:$0xf]
      %v245 = vld [vmem:[%s1 + $0x9c] sm:$0xf]
      %v246 = vld [vmem:[%s1 + $0xa0] sm:$0xf]
      %v247 = vld [vmem:[%s1 + $0xa4] sm:$0xf]
      %v248 = vld [vmem:[%s1 + $0xa8] sm:$0xf]
      %v249 = vld [vmem:[%s1 + $0xac] sm:$0xf]
      %v250 = vld [vmem:[%s1 + $0xb0] sm:$0xf]
      %v251 = vld [vmem:[%s1 + $0xb4] sm:$0xf]
      %v252 = vld [vmem:[%s1 + $0xb8] sm:$0xf]
      %v253 = vld [vmem:[%s1 + $0xbc] sm:$0xf]
      %v254 = vld [vmem:[%s1 + $0xc0] sm:$0xf]
      %v255 = vld [vmem:[%s1 + $0xc4] sm:$0xf]
      %v256 = vld [vmem:[%s1 + $0xc8] sm:$0xf]
      %v257 = vld [vmem:[%s1 + $0xcc] sm:$0xf]
      %v258 = vld [vmem:[%s1 + $0xd0] sm:$0xf]
      %v259 = vld [vmem:[%s1 + $0xd4] sm:$0xf]
      %v260 = vld [vmem:[%s1 + $0xd8] sm:$0xf]
      %v261 = vld [vmem:[%s1 + $0xdc] sm:$0xf]
      %v262 = vld [vmem:[%s1 + $0xe0] sm:$0xf]
      %v263 = vld [vmem:[%s1 + $0xe4] sm:$0xf]
      %v264 = vld [vmem:[%s1 + $0xe8] sm:$0xf]
      %v265 = vld [vmem:[%s1 + $0xec] sm:$0xf]
      %v266 = vld [vmem:[%s1 + $0xf0] sm:$0xf]
      %v267 = vld [vmem:[%s1 + $0xf4] sm:$0xf]
      %v268 = vld [vmem:[%s1 + $0xf8] sm:$0xf]
      %v269 = vld [vmem:[%s1 + $0xfc] sm:$0xf]
      %v270 = vld [vmem:[%s1 + $0x100] sm:$0xf]
      %v271 = vld [vmem:[%s1 + $0x104] sm:$0xf]
      %v272 = vld [vmem:[%s1 + $0x108] sm:$0xf]
      %v273 = vld [vmem:[%s1 + $0x10c] sm:$0xf]
      %v274 = vld [vmem:[%s1 + $0x110] sm:$0xf]
      %v275 = vld [vmem:[%s1 + $0x114] sm:$0xf]
      %v276 = vld [vmem:[%s1 + $0x118] sm:$0xf]
      %v277 = vld [vmem:[%s1 + $0x11c] sm:$0xf]
      %v278 = vld [vmem:[%s1 + $0x120] sm:$0xf]
      %v279 = vld [vmem:[%s1 + $0x124] sm:$0xf]
      %v280 = vld [vmem:[%s1 + $0x128] sm:$0xf]
      %v281 = vld [vmem:[%s1 + $0x12c] sm:$0xf]
      %v282 = vld [vmem:[%s1 + $0x130] sm:$0xf]
      %v283 = vld [vmem:[%s1 + $0x134] sm:$0xf]
      %v284 = vld [vmem:[%s1 + $0x138] sm:$0xf]
      %v285 = vld [vmem:[%s1 + $0x13c] sm:$0xf]
      %v286 = vld [vmem:[%s1 + $0x140] sm:$0xf]
      %v287 = vld [vmem:[%s1 + $0x144] sm:$0xf]
      %v288 = vld [vmem:[%s1 + $0x148] sm:$0xf]
      %v289 = vld [vmem:[%s1 + $0x14c] sm:$0xf]
      %v290 = vld [vmem:[%s1 + $0x150] sm:$0xf]
      %v291 = vld [vmem:[%s1 + $0x154] sm:$0xf]
      %v292 = vld [vmem:[%s1 + $0x158] sm:$0xf]
      %v293 = vld [vmem:[%s1 + $0x15c] sm:$0xf]
      %v294 = vld [vmem:[%s1 + $0x160] sm:$0xf]
      %v295 = vld [vmem:[%s1 + $0x164] sm:$0xf]
      %v296 = vld [vmem:[%s1 + $0x168] sm:$0xf]
      %v297 = vld [vmem:[%s1 + $0x16c] sm:$0xf]
      %v298 = vld [vmem:[%s1 + $0x170] sm:$0xf]
      %v299 = vld [vmem:[%s1 + $0x174] sm:$0xf]
      %v300 = vld [vmem:[%s1 + $0x178] sm:$0xf]
      %v301 = vld [vmem:[%s1 + $0x17c] sm:$0xf]
      %v302 = vld [vmem:[%s1 + $0x180] sm:$0xf]
      %v303 = vld [vmem:[%s1 + $0x184] sm:$0xf]
      %v304 = vld [vmem:[%s1 + $0x188] sm:$0xf]
      %v305 = vld [vmem:[%s1 + $0x18c] sm:$0xf]
      %v306 = vld [vmem:[%s1 + $0x190] sm:$0xf]
      %v307 = vld [vmem:[%s1 + $0x194] sm:$0xf]
      %v308 = vld [vmem:[%s1 + $0x198] sm:$0xf]
      %v309 = vld [vmem:[%s1 + $0x19c] sm:$0xf]
      %v310 = vld [vmem:[%s1 + $0x1a0] sm:$0xf]
      %v311 = vld [vmem:[%s1 + $0x1a4] sm:$0xf]
      %v312 = vld [vmem:[%s1 + $0x1a8] sm:$0xf]
      %v313 = vld [vmem:[%s1 + $0x1ac] sm:$0xf]
      %v314 = vld [vmem:[%s1 + $0x1b0] sm:$0xf]
      %v315 = vld [vmem:[%s1 + $0x1b4] sm:$0xf]
      %v316 = vld [vmem:[%s1 + $0x1b8] sm:$0xf]
      %v317 = vld [vmem:[%s1 + $0x1bc] sm:$0xf]
      %v318 = vld [vmem:[%s1 + $0x1c0] sm:$0xf]
      %v319 = vld [vmem:[%s1 + $0x1c4] sm:$0xf]
      %v320 = vld [vmem:[%s1 + $0x1c8] sm:$0xf]
      %v321 = vld [vmem:[%s1 + $0x1cc] sm:$0xf]
      %v322 = vld [vmem:[%s1 + $0x1d0] sm:$0xf]
      %v323 = vld [vmem:[%s1 + $0x1d4] sm:$0xf]
      %v324 = vld [vmem:[%s1 + $0x1d8] sm:$0xf]
      %v325 = vld [vmem:[%s1 + $0x1dc] sm:$0xf]
      %v326 = vld [vmem:[%s1 + $0x1e0] sm:$0xf]
      %v327 = vld [vmem:[%s1 + $0x1e4] sm:$0xf]
      %v328 = vld [vmem:[%s1 + $0x1e8] sm:$0xf]
      %v329 = vld [vmem:[%s1 + $0x1ec] sm:$0xf]
      %v330 = vld [vmem:[%s1 + $0x1f0] sm:$0xf]
      %v331 = vld [vmem:[%s1 + $0x1f4] sm:$0xf]
      %v332 = vld [vmem:[%s1 + $0x1f8] sm:$0xf]
      %v333 = vld [vmem:[%s1 + $0x1fc] sm:$0xf]
      %v334 = vld [vmem:[%s1 + $0x200] sm:$0xf]
      %v335 = vld [vmem:[%s1 + $0x204] sm:$0xf]
      %v336 = vld [vmem:[%s1 + $0x208] sm:$0xf]
      %v337 = vld [vmem:[%s1 + $0x20c] sm:$0xf]
      %v338 = vld [vmem:[%s1 + $0x210] sm:$0xf]
      %v339 = vld [vmem:[%s1 + $0x214] sm:$0xf]
      %v340 = vld [vmem:[%s1 + $0x218] sm:$0xf]
      %v341 = vld [vmem:[%s1 + $0x21c] sm:$0xf]
      %v342 = vld [vmem:[%s1 + $0x220] sm:$0xf]
      %v343 = vld [vmem:[%s1 + $0x224] sm:$0xf]
      %v344 = vld [vmem:[%s1 + $0x228] sm:$0xf]
      %v345 = vld [vmem:[%s1 + $0x22c] sm:$0xf]
      %v346 = vld [vmem:[%s1 + $0x230] sm:$0xf]
      %v347 = vld [vmem:[%s1 + $0x234] sm:$0xf]
      %v348 = vld [vmem:[%s1 + $0x238] sm:$0xf]
      %v349 = vld [vmem:[%s1 + $0x23c] sm:$0xf]
      %v350 = vld [vmem:[%s1 + $0x240] sm:$0xf]
      %v351 = vld [vmem:[%s1 + $0x244] sm:$0xf]
      %v352 = vld [vmem:[%s1 + $0x248] sm:$0xf]
      %v353 = vld [vmem:[%s1 + $0x24c] sm:$0xf]
      %v354 = vld [vmem:[%s1 + $0x250] sm:$0xf]
      %v355 = vld [vmem:[%s1 + $0x254] sm:$0xf]
      %v356 = vld [vmem:[%s1 + $0x258] sm:$0xf]
      %v357 = vld [vmem:[%s1 + $0x25c] sm:$0xf]
      %v358 = vld [vmem:[%s1 + $0x260] sm:$0xf]
      %v359 = vld [vmem:[%s1 + $0x264] sm:$0xf]
      %v360 = vld [vmem:[%s1 + $0x268] sm:$0xf]
      %v361 = vld [vmem:[%s1 + $0x26c] sm:$0xf]
      %v362 = vld [vmem:[%s1 + $0x270] sm:$0xf]
      %v363 = vld [vmem:[%s1 + $0x274] sm:$0xf]
      %v364 = vld [vmem:[%s1 + $0x278] sm:$0xf]
      %v365 = vld [vmem:[%s1 + $0x27c] sm:$0xf]
      %v366 = vld [vmem:[%s1 + $0x280] sm:$0xf]
      %v367 = vld [vmem:[%s1 + $0x284] sm:$0xf]
      %v368 = vld [vmem:[%s1 + $0x288] sm:$0xf]
      %v369 = vld [vmem:[%s1 + $0x28c] sm:$0xf]
      %v370 = vld [vmem:[%s1 + $0x290] sm:$0xf]
      %v371 = vld [vmem:[%s1 + $0x294] sm:$0xf]
      %v372 = vld [vmem:[%s1 + $0x298] sm:$0xf]
      %v373 = vld [vmem:[%s1 + $0x29c] sm:$0xf]
      %v374 = vld [vmem:[%s1 + $0x2a0] sm:$0xf]
      %v375 = vld [vmem:[%s1 + $0x2a4] sm:$0xf]
      %v376 = vld [vmem:[%s1 + $0x2a8] sm:$0xf]
      %v377 = vld [vmem:[%s1 + $0x2ac] sm:$0xf]
      %v378 = vld [vmem:[%s1 + $0x2b0] sm:$0xf]
      %v379 = vld [vmem:[%s1 + $0x2b4] sm:$0xf]
      %v380 = vld [vmem:[%s1 + $0x2b8] sm:$0xf]
      %v381 = vld [vmem:[%s1 + $0x2bc] sm:$0xf]
      %v382 = vld [vmem:[%s1 + $0x2c0] sm:$0xf]
      %v383 = vld [vmem:[%s1 + $0x2c4] sm:$0xf]
      %v384 = vld [vmem:[%s1 + $0x2c8] sm:$0xf]
      %v385 = vld [vmem:[%s1 + $0x2cc] sm:$0xf]
      %v386 = vld [vmem:[%s1 + $0x2d0] sm:$0xf]
      %v387 = vld [vmem:[%s1 + $0x2d4] sm:$0xf]
      %v388 = vld [vmem:[%s1 + $0x2d8] sm:$0xf]
      %v389 = vld [vmem:[%s1 + $0x2dc] sm:$0xf]
      %v390 = vld [vmem:[%s1 + $0x2e0] sm:$0xf]
      %v391 = vld [vmem:[%s1 + $0x2e4] sm:$0xf]
      %v392 = vld [vmem:[%s1 + $0x2e8] sm:$0xf]
      %v393 = vld [vmem:[%s1 + $0x2ec] sm:$0xf]
      %v394 = vld [vmem:[%s1 + $0x2f0] sm:$0xf]
      %v395 = vld [vmem:[%s1 + $0x2f4] sm:$0xf]
      %v396 = vld [vmem:[%s1 + $0x2f8] sm:$0xf]
      %v397 = vld [vmem:[%s1 + $0x2fc] sm:$0xf]
      %v398 = vld [vmem:[%s1 + $0x300] sm:$0xf]
      %v399 = vld [vmem:[%s1 + $0x304] sm:$0xf]
      %v400 = vld [vmem:[%s1 + $0x308] sm:$0xf]
      %v401 = vld [vmem:[%s1 + $0x30c] sm:$0xf]
      %v402 = vld [vmem:[%s1 + $0x310] sm:$0xf]
      %v403 = vld [vmem:[%s1 + $0x314] sm:$0xf]
      %v404 = vld [vmem:[%s1 + $0x318] sm:$0xf]
      %v405 = vld [vmem:[%s1 + $0x31c] sm:$0xf]
      %v406 = vld [vmem:[%s1 + $0x320] sm:$0xf]
      %v407 = vld [vmem:[%s1 + $0x324] sm:$0xf]
      %v408 = vld [vmem:[%s1 + $0x328] sm:$0xf]
      %v409 = vld [vmem:[%s1 + $0x32c] sm:$0xf]
      %v410 = vld [vmem:[%s1 + $0x330] sm:$0xf]
      %v411 = vld [vmem:[%s1 + $0x334] sm:$0xf]
      %v412 = vld [vmem:[%s1 + $0x338] sm:$0xf]
      %v413 = vld [vmem:[%s1 + $0x33c] sm:$0xf]
      %v414 = vld [vmem:[%s1 + $0x340] sm:$0xf]
      %v415 = vld [vmem:[%s1 + $0x344] sm:$0xf]
      %v416 = vld [vmem:[%s1 + $0x348] sm:$0xf]
      %v417 = vld [vmem:[%s1 + $0x34c] sm:$0xf]
      %v418 = vld [vmem:[%s1 + $0x350] sm:$0xf]
      %v419 = vld [vmem:[%s1 + $0x354] sm:$0xf]
      %v420 = vld [vmem:[%s1 + $0x358] sm:$0xf]
      %v421 = vld [vmem:[%s1 + $0x35c] sm:$0xf]
      %v422 = vld [vmem:[%s2] sm:$0x1]
      %v424 = vlaneseq
      %v425 = vshrl.u32 %v424, 7
      %v426 = vsub.s32 0, %v425
      %v427 = vrot.slane %v422, %v426
      %v457 = vunpack.c.l.b16 %v178
      %v458 = vunpack.c.h.b16 %v178
      %v459 = vunpack.c.l.b16 %v179
      %v460 = vunpack.c.h.b16 %v179
      %v461 = vunpack.c.l.b16 %v180
      %v462 = vunpack.c.h.b16 %v180
      %v463 = vunpack.c.l.b16 %v181
      %v464 = vunpack.c.h.b16 %v181
      %v465 = vunpack.c.l.b16 %v182
      %v466 = vunpack.c.h.b16 %v182
      %v467 = vunpack.c.l.b16 %v183
      %v468 = vunpack.c.h.b16 %v183
      %v469 = vunpack.c.l.b16 %v184
      %v470 = vunpack.c.h.b16 %v184
      %v471 = vunpack.c.l.b16 %v185
      %v472 = vunpack.c.h.b16 %v185
      %v473 = vunpack.c.l.b16 %v186
      %v474 = vunpack.c.h.b16 %v186
      %v475 = vunpack.c.l.b16 %v187
      %v476 = vunpack.c.h.b16 %v187
      %v477 = vunpack.c.l.b16 %v188
      %v478 = vunpack.c.h.b16 %v188
      %v479 = vunpack.c.l.b16 %v189
      %v480 = vunpack.c.h.b16 %v189
      %v481 = vunpack.c.l.b16 %v190
      %v482 = vunpack.c.h.b16 %v190
      %v483 = vunpack.c.l.b16 %v191
      %v484 = vunpack.c.h.b16 %v191
      %v485 = vunpack.c.l.b16 %v192
      %v486 = vunpack.c.h.b16 %v192
      %v487 = vunpack.c.l.b16 %v193
      %v488 = vunpack.c.h.b16 %v193
      %v489 = vunpack.c.l.b16 %v194
      %v490 = vunpack.c.h.b16 %v194
      %v491 = vunpack.c.l.b16 %v195
      %v492 = vunpack.c.h.b16 %v195
      %v493 = vunpack.c.l.b16 %v196
      %v494 = vunpack.c.h.b16 %v196
      %v495 = vunpack.c.l.b16 %v197
      %v496 = vunpack.c.h.b16 %v197
      %v497 = vunpack.c.l.b16 %v198
      %v498 = vunpack.c.h.b16 %v198
      %v499 = vunpack.c.l.b16 %v199
      %v500 = vunpack.c.h.b16 %v199
      %v501 = vunpack.c.l.b16 %v200
      %v502 = vunpack.c.h.b16 %v200
      %v503 = vunpack.c.l.b16 %v201
      %v504 = vunpack.c.h.b16 %v201
      %v505 = vunpack.c.l.b16 %v202
      %v506 = vunpack.c.h.b16 %v202
      %v507 = vunpack.c.l.b16 %v203
      %v508 = vunpack.c.h.b16 %v203
      %v509 = vunpack.c.l.b16 %v204
      %v510 = vunpack.c.h.b16 %v204
      %v511 = vunpack.c.l.b16 %v205
      %v512 = vunpack.c.h.b16 %v205
      %v513 = vpack.c.b16 %v471, %v457
      %v514 = vpack.c.b16 %v472, %v458
      %v515 = vpack.c.b16 %v473, %v459
      %v516 = vpack.c.b16 %v474, %v460
      %v517 = vpack.c.b16 %v475, %v461
      %v518 = vpack.c.b16 %v476, %v462
      %v519 = vpack.c.b16 %v477, %v463
      %v520 = vpack.c.b16 %v478, %v464
      %v521 = vpack.c.b16 %v479, %v465
      %v522 = vpack.c.b16 %v480, %v466
      %v523 = vpack.c.b16 %v481, %v467
      %v524 = vpack.c.b16 %v482, %v468
      %v525 = vpack.c.b16 %v483, %v469
      %v526 = vpack.c.b16 %v484, %v470
      %v527 = vpack.c.b16 %v499, %v485
      %v528 = vpack.c.b16 %v500, %v486
      %v529 = vpack.c.b16 %v501, %v487
      %v530 = vpack.c.b16 %v502, %v488
      %v531 = vpack.c.b16 %v503, %v489
      %v532 = vpack.c.b16 %v504, %v490
      %v533 = vpack.c.b16 %v505, %v491
      %v534 = vpack.c.b16 %v506, %v492
      %v535 = vpack.c.b16 %v507, %v493
      %v536 = vpack.c.b16 %v508, %v494
      %v537 = vpack.c.b16 %v509, %v495
      %v538 = vpack.c.b16 %v510, %v496
      %v539 = vpack.c.b16 %v511, %v497
      %v540 = vpack.c.b16 %v512, %v498
      %v783 = vunpack.c.l.b16 %v206
      %v784 = vunpack.c.l.b16 %v207
      %v785 = vunpack.c.l.b16 %v208
      %v786 = vunpack.c.l.b16 %v209
      %v787 = vunpack.c.l.b16 %v210
      %v788 = vunpack.c.l.b16 %v211
      %v789 = vunpack.c.l.b16 %v212
      %v790 = vunpack.c.l.b16 %v213
      %v791 = vunpack.c.l.b16 %v214
      %v792 = vunpack.c.l.b16 %v215
      %v793 = vunpack.c.l.b16 %v216
      %v794 = vunpack.c.l.b16 %v217
      %v795 = vunpack.c.l.b16 %v218
      %v796 = vunpack.c.l.b16 %v219
      %v797 = vunpack.c.l.b16 %v220
      %v798 = vunpack.c.l.b16 %v221
      %v799 = vunpack.c.l.b16 %v222
      %v800 = vunpack.c.l.b16 %v223
      %v801 = vunpack.c.l.b16 %v224
      %v802 = vunpack.c.l.b16 %v225
      %v803 = vunpack.c.l.b16 %v226
      %v804 = vunpack.c.l.b16 %v227
      %v805 = vunpack.c.l.b16 %v228
      %v806 = vunpack.c.l.b16 %v229
      %v807 = vunpack.c.l.b16 %v230
      %v808 = vunpack.c.l.b16 %v231
      %v809 = vunpack.c.l.b16 %v232
      %v810 = vunpack.c.l.b16 %v233
      %v811 = vunpack.c.l.b16 %v234
      %v812 = vunpack.c.l.b16 %v235
      %v813 = vunpack.c.l.b16 %v236
      %v814 = vunpack.c.l.b16 %v237
      %v815 = vunpack.c.l.b16 %v238
      %v816 = vunpack.c.l.b16 %v239
      %v817 = vunpack.c.l.b16 %v240
      %v818 = vunpack.c.l.b16 %v241
      %v819 = vunpack.c.l.b16 %v242
      %v820 = vunpack.c.l.b16 %v243
      %v821 = vunpack.c.l.b16 %v244
      %v822 = vunpack.c.l.b16 %v245
      %v823 = vunpack.c.l.b16 %v246
      %v824 = vunpack.c.l.b16 %v247
      %v825 = vunpack.c.l.b16 %v248
      %v826 = vunpack.c.l.b16 %v249
      %v827 = vunpack.c.l.b16 %v250
      %v828 = vunpack.c.l.b16 %v251
      %v829 = vunpack.c.l.b16 %v252
      %v830 = vunpack.c.l.b16 %v253
      %v831 = vunpack.c.l.b16 %v254
      %v832 = vunpack.c.l.b16 %v255
      %v833 = vunpack.c.l.b16 %v256
      %v834 = vunpack.c.l.b16 %v257
      %v835 = vunpack.c.l.b16 %v258
      %v836 = vunpack.c.l.b16 %v259
      %v837 = vunpack.c.l.b16 %v260
      %v838 = vunpack.c.l.b16 %v261
      %v839 = vunpack.c.l.b16 %v262
      %v840 = vunpack.c.l.b16 %v263
      %v841 = vunpack.c.l.b16 %v264
      %v842 = vunpack.c.l.b16 %v265
      %v843 = vunpack.c.l.b16 %v266
      %v844 = vunpack.c.l.b16 %v267
      %v845 = vunpack.c.l.b16 %v268
      %v846 = vunpack.c.l.b16 %v269
      %v847 = vunpack.c.l.b16 %v270
      %v848 = vunpack.c.l.b16 %v271
      %v849 = vunpack.c.l.b16 %v272
      %v850 = vunpack.c.l.b16 %v273
      %v851 = vunpack.c.l.b16 %v274
      %v852 = vunpack.c.l.b16 %v275
      %v853 = vunpack.c.l.b16 %v276
      %v854 = vunpack.c.l.b16 %v277
      %v855 = vunpack.c.l.b16 %v278
      %v856 = vunpack.c.l.b16 %v279
      %v857 = vunpack.c.l.b16 %v280
      %v858 = vunpack.c.l.b16 %v281
      %v859 = vunpack.c.l.b16 %v282
      %v860 = vunpack.c.l.b16 %v283
      %v861 = vunpack.c.l.b16 %v284
      %v862 = vunpack.c.l.b16 %v285
      %v863 = vunpack.c.l.b16 %v286
      %v864 = vunpack.c.l.b16 %v287
      %v865 = vunpack.c.l.b16 %v288
      %v866 = vunpack.c.l.b16 %v289
      %v867 = vunpack.c.l.b16 %v290
      %v868 = vunpack.c.l.b16 %v291
      %v869 = vunpack.c.l.b16 %v292
      %v870 = vunpack.c.l.b16 %v293
      %v871 = vunpack.c.l.b16 %v294
      %v872 = vunpack.c.l.b16 %v295
      %v873 = vunpack.c.l.b16 %v296
      %v874 = vunpack.c.l.b16 %v297
      %v875 = vunpack.c.l.b16 %v298
      %v876 = vunpack.c.l.b16 %v299
      %v877 = vunpack.c.l.b16 %v300
      %v878 = vunpack.c.l.b16 %v301
      %v879 = vunpack.c.l.b16 %v302
      %v880 = vunpack.c.l.b16 %v303
      %v881 = vunpack.c.l.b16 %v304
      %v882 = vunpack.c.l.b16 %v305
      %v883 = vunpack.c.l.b16 %v306
      %v884 = vunpack.c.l.b16 %v307
      %v885 = vunpack.c.l.b16 %v308
      %v886 = vunpack.c.l.b16 %v309
      %v887 = vunpack.c.l.b16 %v310
      %v888 = vunpack.c.l.b16 %v311
      %v889 = vunpack.c.l.b16 %v312
      %v890 = vunpack.c.l.b16 %v313
      %v891 = vunpack.c.l.b16 %v314
      %v892 = vunpack.c.l.b16 %v315
      %v893 = vunpack.c.l.b16 %v316
      %v894 = vunpack.c.l.b16 %v317
      %v895 = vunpack.c.l.b16 %v318
      %v896 = vunpack.c.l.b16 %v319
      %v897 = vunpack.c.l.b16 %v320
      %v898 = vunpack.c.l.b16 %v321
      %v899 = vunpack.c.l.b16 %v322
      %v900 = vunpack.c.l.b16 %v323
      %v901 = vunpack.c.l.b16 %v324
      %v902 = vunpack.c.l.b16 %v325
      %v903 = vunpack.c.l.b16 %v326
      %v904 = vunpack.c.l.b16 %v327
      %v905 = vunpack.c.l.b16 %v328
      %v906 = vunpack.c.l.b16 %v329
      %v907 = vunpack.c.l.b16 %v330
      %v908 = vunpack.c.l.b16 %v331
      %v909 = vunpack.c.l.b16 %v332
      %v910 = vunpack.c.l.b16 %v333
      %v911 = vunpack.c.l.b16 %v334
      %v912 = vunpack.c.l.b16 %v335
      %v913 = vunpack.c.l.b16 %v336
      %v914 = vunpack.c.l.b16 %v337
      %v915 = vunpack.c.l.b16 %v338
      %v916 = vunpack.c.l.b16 %v339
      %v917 = vunpack.c.l.b16 %v340
      %v918 = vunpack.c.l.b16 %v341
      %v919 = vunpack.c.l.b16 %v342
      %v920 = vunpack.c.l.b16 %v343
      %v921 = vunpack.c.l.b16 %v344
      %v922 = vunpack.c.l.b16 %v345
      %v923 = vunpack.c.l.b16 %v346
      %v924 = vunpack.c.l.b16 %v347
      %v925 = vunpack.c.l.b16 %v348
      %v926 = vunpack.c.l.b16 %v349
      %v927 = vunpack.c.l.b16 %v350
      %v928 = vunpack.c.l.b16 %v351
      %v929 = vunpack.c.l.b16 %v352
      %v930 = vunpack.c.l.b16 %v353
      %v931 = vunpack.c.l.b16 %v354
      %v932 = vunpack.c.l.b16 %v355
      %v933 = vunpack.c.l.b16 %v356
      %v934 = vunpack.c.l.b16 %v357
      %v935 = vunpack.c.l.b16 %v358
      %v936 = vunpack.c.l.b16 %v359
      %v937 = vunpack.c.l.b16 %v360
      %v938 = vunpack.c.l.b16 %v361
      %v939 = vunpack.c.l.b16 %v362
      %v940 = vunpack.c.l.b16 %v363
      %v941 = vunpack.c.l.b16 %v364
      %v942 = vunpack.c.l.b16 %v365
      %v943 = vunpack.c.l.b16 %v366
      %v944 = vunpack.c.l.b16 %v367
      %v945 = vunpack.c.l.b16 %v368
      %v946 = vunpack.c.l.b16 %v369
      %v947 = vunpack.c.l.b16 %v370
      %v948 = vunpack.c.l.b16 %v371
      %v949 = vunpack.c.l.b16 %v372
      %v950 = vunpack.c.l.b16 %v373
      %v951 = vunpack.c.l.b16 %v374
      %v952 = vunpack.c.l.b16 %v375
      %v953 = vunpack.c.l.b16 %v376
      %v954 = vunpack.c.l.b16 %v377
      %v955 = vunpack.c.l.b16 %v378
      %v956 = vunpack.c.l.b16 %v379
      %v957 = vunpack.c.l.b16 %v380
      %v958 = vunpack.c.l.b16 %v381
      %v959 = vunpack.c.l.b16 %v382
      %v960 = vunpack.c.l.b16 %v383
      %v961 = vunpack.c.l.b16 %v384
      %v962 = vunpack.c.l.b16 %v385
      %v963 = vunpack.c.l.b16 %v386
      %v964 = vunpack.c.l.b16 %v387
      %v965 = vunpack.c.l.b16 %v388
      %v966 = vunpack.c.l.b16 %v389
      %v967 = vunpack.c.l.b16 %v390
      %v968 = vunpack.c.l.b16 %v391
      %v969 = vunpack.c.l.b16 %v392
      %v970 = vunpack.c.l.b16 %v393
      %v971 = vunpack.c.l.b16 %v394
      %v972 = vunpack.c.l.b16 %v395
      %v973 = vunpack.c.l.b16 %v396
      %v974 = vunpack.c.l.b16 %v397
      %v975 = vunpack.c.l.b16 %v398
      %v976 = vunpack.c.l.b16 %v399
      %v977 = vunpack.c.l.b16 %v400
      %v978 = vunpack.c.l.b16 %v401
      %v979 = vunpack.c.l.b16 %v402
      %v980 = vunpack.c.l.b16 %v403
      %v981 = vunpack.c.l.b16 %v404
      %v982 = vunpack.c.l.b16 %v405
      %v983 = vunpack.c.l.b16 %v406
      %v984 = vunpack.c.l.b16 %v407
      %v985 = vunpack.c.l.b16 %v408
      %v986 = vunpack.c.l.b16 %v409
      %v987 = vunpack.c.l.b16 %v410
      %v988 = vunpack.c.l.b16 %v411
      %v989 = vunpack.c.l.b16 %v412
      %v990 = vunpack.c.l.b16 %v413
      %v991 = vunpack.c.l.b16 %v414
      %v992 = vunpack.c.l.b16 %v415
      %v993 = vunpack.c.l.b16 %v416
      %v994 = vunpack.c.l.b16 %v417
      %v995 = vunpack.c.l.b16 %v418
      %v996 = vunpack.c.l.b16 %v419
      %v997 = vunpack.c.l.b16 %v420
      %v998 = vunpack.c.l.b16 %v421
      %v999 = vpack.c.b16 %v784, %v783
      %v1000 = vpack.c.b16 %v786, %v785
      %v1001 = vpack.c.b16 %v788, %v787
      %v1002 = vpack.c.b16 %v790, %v789
      %v1003 = vpack.c.b16 %v792, %v791
      %v1004 = vpack.c.b16 %v794, %v793
      %v1005 = vpack.c.b16 %v796, %v795
      %v1006 = vpack.c.b16 %v798, %v797
      %v1007 = vpack.c.b16 %v800, %v799
      %v1008 = vpack.c.b16 %v802, %v801
      %v1009 = vpack.c.b16 %v804, %v803
      %v1010 = vpack.c.b16 %v806, %v805
      %v1011 = vpack.c.b16 %v808, %v807
      %v1012 = vpack.c.b16 %v810, %v809
      %v1013 = vpack.c.b16 %v812, %v811
      %v1014 = vpack.c.b16 %v814, %v813
      %v1015 = vpack.c.b16 %v816, %v815
      %v1016 = vpack.c.b16 %v818, %v817
      %v1017 = vpack.c.b16 %v820, %v819
      %v1018 = vpack.c.b16 %v822, %v821
      %v1019 = vpack.c.b16 %v824, %v823
      %v1020 = vpack.c.b16 %v826, %v825
      %v1021 = vpack.c.b16 %v828, %v827
      %v1022 = vpack.c.b16 %v830, %v829
      %v1023 = vpack.c.b16 %v832, %v831
      %v1024 = vpack.c.b16 %v834, %v833
      %v1025 = vpack.c.b16 %v836, %v835
      %v1026 = vpack.c.b16 %v838, %v837
      %v1027 = vpack.c.b16 %v840, %v839
      %v1028 = vpack.c.b16 %v842, %v841
      %v1029 = vpack.c.b16 %v844, %v843
      %v1030 = vpack.c.b16 %v846, %v845
      %v1031 = vpack.c.b16 %v848, %v847
      %v1032 = vpack.c.b16 %v850, %v849
      %v1033 = vpack.c.b16 %v852, %v851
      %v1034 = vpack.c.b16 %v854, %v853
      %v1035 = vpack.c.b16 %v856, %v855
      %v1036 = vpack.c.b16 %v858, %v857
      %v1037 = vpack.c.b16 %v860, %v859
      %v1038 = vpack.c.b16 %v862, %v861
      %v1039 = vpack.c.b16 %v864, %v863
      %v1040 = vpack.c.b16 %v866, %v865
      %v1041 = vpack.c.b16 %v868, %v867
      %v1042 = vpack.c.b16 %v870, %v869
      %v1043 = vpack.c.b16 %v872, %v871
      %v1044 = vpack.c.b16 %v874, %v873
      %v1045 = vpack.c.b16 %v876, %v875
      %v1046 = vpack.c.b16 %v878, %v877
      %v1047 = vpack.c.b16 %v880, %v879
      %v1048 = vpack.c.b16 %v882, %v881
      %v1049 = vpack.c.b16 %v884, %v883
      %v1050 = vpack.c.b16 %v886, %v885
      %v1051 = vpack.c.b16 %v888, %v887
      %v1052 = vpack.c.b16 %v890, %v889
      %v1053 = vpack.c.b16 %v892, %v891
      %v1054 = vpack.c.b16 %v894, %v893
      %v1055 = vpack.c.b16 %v896, %v895
      %v1056 = vpack.c.b16 %v898, %v897
      %v1057 = vpack.c.b16 %v900, %v899
      %v1058 = vpack.c.b16 %v902, %v901
      %v1059 = vpack.c.b16 %v904, %v903
      %v1060 = vpack.c.b16 %v906, %v905
      %v1061 = vpack.c.b16 %v908, %v907
      %v1062 = vpack.c.b16 %v910, %v909
      %v1063 = vpack.c.b16 %v912, %v911
      %v1064 = vpack.c.b16 %v914, %v913
      %v1065 = vpack.c.b16 %v916, %v915
      %v1066 = vpack.c.b16 %v918, %v917
      %v1067 = vpack.c.b16 %v920, %v919
      %v1068 = vpack.c.b16 %v922, %v921
      %v1069 = vpack.c.b16 %v924, %v923
      %v1070 = vpack.c.b16 %v926, %v925
      %v1071 = vpack.c.b16 %v928, %v927
      %v1072 = vpack.c.b16 %v930, %v929
      %v1073 = vpack.c.b16 %v932, %v931
      %v1074 = vpack.c.b16 %v934, %v933
      %v1075 = vpack.c.b16 %v936, %v935
      %v1076 = vpack.c.b16 %v938, %v937
      %v1077 = vpack.c.b16 %v940, %v939
      %v1078 = vpack.c.b16 %v942, %v941
      %v1079 = vpack.c.b16 %v944, %v943
      %v1080 = vpack.c.b16 %v946, %v945
      %v1081 = vpack.c.b16 %v948, %v947
      %v1082 = vpack.c.b16 %v950, %v949
      %v1083 = vpack.c.b16 %v952, %v951
      %v1084 = vpack.c.b16 %v954, %v953
      %v1085 = vpack.c.b16 %v956, %v955
      %v1086 = vpack.c.b16 %v958, %v957
      %v1087 = vpack.c.b16 %v960, %v959
      %v1088 = vpack.c.b16 %v962, %v961
      %v1089 = vpack.c.b16 %v964, %v963
      %v1090 = vpack.c.b16 %v966, %v965
      %v1091 = vpack.c.b16 %v968, %v967
      %v1092 = vpack.c.b16 %v970, %v969
      %v1093 = vpack.c.b16 %v972, %v971
      %v1094 = vpack.c.b16 %v974, %v973
      %v1095 = vpack.c.b16 %v976, %v975
      %v1096 = vpack.c.b16 %v978, %v977
      %v1097 = vpack.c.b16 %v980, %v979
      %v1098 = vpack.c.b16 %v982, %v981
      %v1099 = vpack.c.b16 %v984, %v983
      %v1100 = vpack.c.b16 %v986, %v985
      %v1101 = vpack.c.b16 %v988, %v987
      %v1102 = vpack.c.b16 %v990, %v989
      %v1103 = vpack.c.b16 %v992, %v991
      %v1104 = vpack.c.b16 %v994, %v993
      %v1105 = vpack.c.b16 %v996, %v995
      %v1106 = vpack.c.b16 %v998, %v997
      %vm1215 = vcmask 523264
      %v1217 = vsel %vm1215, %v526, 0
      %v1220 = vsel %vm1215, %v540, 0
      %1222 = vmatprep.subr.bf16.mxu0 0
      %1223 = vmatpush1.bf16.msra.mxu0 %v999
      %1224 = vmatprep.subr.bf16.mxu0 0
      %1225 = vmatpush1.bf16.msra.mxu0 %v1000
      %1226 = vmatprep.subr.bf16.mxu0 0
      %1227 = vmatpush1.bf16.msra.mxu0 %v1001
      %1228 = vmatprep.subr.bf16.mxu0 0
      %1229 = vmatpush1.bf16.msra.mxu0 %v1002
      %1230 = vmatprep.subr.bf16.mxu0 0
      %1231 = vmatpush1.bf16.msra.mxu0 %v1003
      %1232 = vmatprep.subr.bf16.mxu0 0
      %1233 = vmatpush1.bf16.msra.mxu0 %v1004
      %1234 = vmatprep.subr.bf16.mxu0 0
      %1235 = vmatpush1.bf16.msra.mxu0 %v1005
      %1236 = vmatprep.subr.bf16.mxu0 0
      %1237 = vmatpush1.bf16.msra.mxu0 %v1006
      %1238 = vmatprep.subr.bf16.mxu0 0
      %1239 = vmatpush1.bf16.msra.mxu0 %v1007
      %1240 = vmatprep.subr.bf16.mxu0 0
      %1241 = vmatpush1.bf16.msra.mxu0 %v1008
      %1242 = vmatprep.subr.bf16.mxu0 0
      %1243 = vmatpush1.bf16.msra.mxu0 %v1009
      %1244 = vmatprep.subr.bf16.mxu0 0
      %1245 = vmatpush1.bf16.msra.mxu0 %v1010
      %1246 = vmatprep.subr.bf16.mxu0 0
      %1247 = vmatpush1.bf16.msra.mxu0 %v1011
      %1248 = vmatprep.subr.bf16.mxu0 0
      %1249 = vmatpush1.bf16.msra.mxu0 %v1012
      %1250 = vmatprep.subr.bf16.mxu0 0
      %1251 = vmatpush1.bf16.msra.mxu0 %v1013
      %1252 = vmatprep.subr.bf16.mxu0 0
      %1253 = vmatpush1.bf16.msra.mxu0 %v1014
      %1254 = vmatprep.mubr.bf16.mxu0 %v514
      %1255 = vmatmul.mubr.bf16.gmra.mrb[0].mxu0 %v513
      %v1256 = vpop.f32.mrb[0].mxu0
      %v1257 = vadd.f32 %v427, %v1256
      %v1258 = vpop.f32.mrb[0].mxu0
      %v1259 = vpop.f32.mrb[0].mxu0
      %v1260 = vadd.f32 %v427, %v1259
      %v1261 = vpop.f32.mrb[0].mxu0
      %1262 = vmatprep.mubr.bf16.mxu0 %v528
      %1263 = vmatmul.mubr.bf16.gmra.mrb[0].mxu0 %v527
      %v1264 = vpop.f32.mrb[0].mxu0
      %v1265 = vadd.f32 %v427, %v1264
      %v1266 = vpop.f32.mrb[0].mxu0
      %v1267 = vpop.f32.mrb[0].mxu0
      %v1268 = vadd.f32 %v427, %v1267
      %v1269 = vpop.f32.mrb[0].mxu0
      %1270 = vdwg.mxu0
      %1271 = vmatprep.subr.bf16.mxu0 0
      %1272 = vmatpush1.bf16.msra.mxu0 %v1015
      %1273 = vmatprep.subr.bf16.mxu0 0
      %1274 = vmatpush1.bf16.msra.mxu0 %v1016
      %1275 = vmatprep.subr.bf16.mxu0 0
      %1276 = vmatpush1.bf16.msra.mxu0 %v1017
      %1277 = vmatprep.subr.bf16.mxu0 0
      %1278 = vmatpush1.bf16.msra.mxu0 %v1018
      %1279 = vmatprep.subr.bf16.mxu0 0
      %1280 = vmatpush1.bf16.msra.mxu0 %v1019
      %1281 = vmatprep.subr.bf16.mxu0 0
      %1282 = vmatpush1.bf16.msra.mxu0 %v1020
      %1283 = vmatprep.subr.bf16.mxu0 0
      %1284 = vmatpush1.bf16.msra.mxu0 %v1021
      %1285 = vmatprep.subr.bf16.mxu0 0
      %1286 = vmatpush1.bf16.msra.mxu0 %v1022
      %1287 = vmatprep.subr.bf16.mxu0 0
      %1288 = vmatpush1.bf16.msra.mxu0 %v1023
      %1289 = vmatprep.subr.bf16.mxu0 0
      %1290 = vmatpush1.bf16.msra.mxu0 %v1024
      %1291 = vmatprep.subr.bf16.mxu0 0
      %1292 = vmatpush1.bf16.msra.mxu0 %v1025
      %1293 = vmatprep.subr.bf16.mxu0 0
      %1294 = vmatpush1.bf16.msra.mxu0 %v1026
      %1295 = vmatprep.subr.bf16.mxu0 0
      %1296 = vmatpush1.bf16.msra.mxu0 %v1027
      %1297 = vmatprep.subr.bf16.mxu0 0
      %1298 = vmatpush1.bf16.msra.mxu0 %v1028
      %1299 = vmatprep.subr.bf16.mxu0 0
      %1300 = vmatpush1.bf16.msra.mxu0 %v1029
      %1301 = vmatprep.subr.bf16.mxu0 0
      %1302 = vmatpush1.bf16.msra.mxu0 %v1030
      %1303 = vmatprep.mubr.bf16.mxu0 %v516
      %1304 = vmatmul.mubr.bf16.gmra.mrb[0].mxu0 %v515
      %v1305 = vpop.f32.mrb[0].mxu0
      %v1306 = vadd.f32 %v1257, %v1305
      %v1307 = vpop.f32.mrb[0].mxu0
      %v1308 = vpop.f32.mrb[0].mxu0
      %v1309 = vadd.f32 %v1260, %v1308
      %v1310 = vpop.f32.mrb[0].mxu0
      %1311 = vmatprep.mubr.bf16.mxu0 %v530
      %1312 = vmatmul.mubr.bf16.gmra.mrb[0].mxu0 %v529
      %v1313 = vpop.f32.mrb[0].mxu0
      %v1314 = vadd.f32 %v1265, %v1313
      %v1315 = vpop.f32.mrb[0].mxu0
      %v1316 = vpop.f32.mrb[0].mxu0
      %v1317 = vadd.f32 %v1268, %v1316
      %v1318 = vpop.f32.mrb[0].mxu0
      %1319 = vdwg.mxu0
      %1320 = vmatprep.subr.bf16.mxu0 0
      %1321 = vmatpush1.bf16.msra.mxu0 %v1031
      %1322 = vmatprep.subr.bf16.mxu0 0
      %1323 = vmatpush1.bf16.msra.mxu0 %v1032
      %1324 = vmatprep.subr.bf16.mxu0 0
      %1325 = vmatpush1.bf16.msra.mxu0 %v1033
      %1326 = vmatprep.subr.bf16.mxu0 0
      %1327 = vmatpush1.bf16.msra.mxu0 %v1034
      %1328 = vmatprep.subr.bf16.mxu0 0
      %1329 = vmatpush1.bf16.msra.mxu0 %v1035
      %1330 = vmatprep.subr.bf16.mxu0 0
      %1331 = vmatpush1.bf16.msra.mxu0 %v1036
      %1332 = vmatprep.subr.bf16.mxu0 0
      %1333 = vmatpush1.bf16.msra.mxu0 %v1037
      %1334 = vmatprep.subr.bf16.mxu0 0
      %1335 = vmatpush1.bf16.msra.mxu0 %v1038
      %1336 = vmatprep.subr.bf16.mxu0 0
      %1337 = vmatpush1.bf16.msra.mxu0 %v1039
      %1338 = vmatprep.subr.bf16.mxu0 0
      %1339 = vmatpush1.bf16.msra.mxu0 %v1040
      %1340 = vmatprep.subr.bf16.mxu0 0
      %1341 = vmatpush1.bf16.msra.mxu0 %v1041
      %1342 = vmatprep.subr.bf16.mxu0 0
      %1343 = vmatpush1.bf16.msra.mxu0 %v1042
      %1344 = vmatprep.subr.bf16.mxu0 0
      %1345 = vmatpush1.bf16.msra.mxu0 %v1043
      %1346 = vmatprep.subr.bf16.mxu0 0
      %1347 = vmatpush1.bf16.msra.mxu0 %v1044
      %1348 = vmatprep.subr.bf16.mxu0 0
      %1349 = vmatpush1.bf16.msra.mxu0 %v1045
      %1350 = vmatprep.subr.bf16.mxu0 0
      %1351 = vmatpush1.bf16.msra.mxu0 %v1046
      %1352 = vmatprep.mubr.bf16.mxu0 %v518
      %1353 = vmatmul.mubr.bf16.gmra.mrb[0].mxu0 %v517
      %v1354 = vpop.f32.mrb[0].mxu0
      %v1355 = vadd.f32 %v1306, %v1354
      %v1356 = vpop.f32.mrb[0].mxu0
      %v1357 = vpop.f32.mrb[0].mxu0
      %v1358 = vadd.f32 %v1309, %v1357
      %v1359 = vpop.f32.mrb[0].mxu0
      %1360 = vmatprep.mubr.bf16.mxu0 %v532
      %1361 = vmatmul.mubr.bf16.gmra.mrb[0].mxu0 %v531
      %v1362 = vpop.f32.mrb[0].mxu0
      %v1363 = vadd.f32 %v1314, %v1362
      %v1364 = vpop.f32.mrb[0].mxu0
      %v1365 = vpop.f32.mrb[0].mxu0
      %v1366 = vadd.f32 %v1317, %v1365
      %v1367 = vpop.f32.mrb[0].mxu0
      %1368 = vdwg.mxu0
      %1369 = vmatprep.subr.bf16.mxu0 0
      %1370 = vmatpush1.bf16.msra.mxu0 %v1047
      %1371 = vmatprep.subr.bf16.mxu0 0
      %1372 = vmatpush1.bf16.msra.mxu0 %v1048
      %1373 = vmatprep.subr.bf16.mxu0 0
      %1374 = vmatpush1.bf16.msra.mxu0 %v1049
      %1375 = vmatprep.subr.bf16.mxu0 0
      %1376 = vmatpush1.bf16.msra.mxu0 %v1050
      %1377 = vmatprep.subr.bf16.mxu0 0
      %1378 = vmatpush1.bf16.msra.mxu0 %v1051
      %1379 = vmatprep.subr.bf16.mxu0 0
      %1380 = vmatpush1.bf16.msra.mxu0 %v1052
      %1381 = vmatprep.subr.bf16.mxu0 0
      %1382 = vmatpush1.bf16.msra.mxu0 %v1053
      %1383 = vmatprep.subr.bf16.mxu0 0
      %1384 = vmatpush1.bf16.msra.mxu0 %v1054
      %1385 = vmatprep.subr.bf16.mxu0 0
      %1386 = vmatpush1.bf16.msra.mxu0 %v1055
      %1387 = vmatprep.subr.bf16.mxu0 0
      %1388 = vmatpush1.bf16.msra.mxu0 %v1056
      %1389 = vmatprep.subr.bf16.mxu0 0
      %1390 = vmatpush1.bf16.msra.mxu0 %v1057
      %1391 = vmatprep.subr.bf16.mxu0 0
      %1392 = vmatpush1.bf16.msra.mxu0 %v1058
      %1393 = vmatprep.subr.bf16.mxu0 0
      %1394 = vmatpush1.bf16.msra.mxu0 %v1059
      %1395 = vmatprep.subr.bf16.mxu0 0
      %1396 = vmatpush1.bf16.msra.mxu0 %v1060
      %1397 = vmatprep.subr.bf16.mxu0 0
      %1398 = vmatpush1.bf16.msra.mxu0 %v1061
      %1399 = vmatprep.subr.bf16.mxu0 0
      %1400 = vmatpush1.bf16.msra.mxu0 %v1062
      %1401 = vmatprep.mubr.bf16.mxu0 %v520
      %1402 = vmatmul.mubr.bf16.gmra.mrb[0].mxu0 %v519
      %v1403 = vpop.f32.mrb[0].mxu0
      %v1404 = vadd.f32 %v1355, %v1403
      %v1405 = vpop.f32.mrb[0].mxu0
      %v1406 = vpop.f32.mrb[0].mxu0
      %v1407 = vadd.f32 %v1358, %v1406
      %v1408 = vpop.f32.mrb[0].mxu0
      %1409 = vmatprep.mubr.bf16.mxu0 %v534
      %1410 = vmatmul.mubr.bf16.gmra.mrb[0].mxu0 %v533
      %v1411 = vpop.f32.mrb[0].mxu0
      %v1412 = vadd.f32 %v1363, %v1411
      %v1413 = vpop.f32.mrb[0].mxu0
      %v1414 = vpop.f32.mrb[0].mxu0
      %v1415 = vadd.f32 %v1366, %v1414
      %v1416 = vpop.f32.mrb[0].mxu0
      %1417 = vdwg.mxu0
      %1418 = vmatprep.subr.bf16.mxu0 0
      %1419 = vmatpush1.bf16.msra.mxu0 %v1063
      %1420 = vmatprep.subr.bf16.mxu0 0
      %1421 = vmatpush1.bf16.msra.mxu0 %v1064
      %1422 = vmatprep.subr.bf16.mxu0 0
      %1423 = vmatpush1.bf16.msra.mxu0 %v1065
      %1424 = vmatprep.subr.bf16.mxu0 0
      %1425 = vmatpush1.bf16.msra.mxu0 %v1066
      %1426 = vmatprep.subr.bf16.mxu0 0
      %1427 = vmatpush1.bf16.msra.mxu0 %v1067
      %1428 = vmatprep.subr.bf16.mxu0 0
      %1429 = vmatpush1.bf16.msra.mxu0 %v1068
      %1430 = vmatprep.subr.bf16.mxu0 0
      %1431 = vmatpush1.bf16.msra.mxu0 %v1069
      %1432 = vmatprep.subr.bf16.mxu0 0
      %1433 = vmatpush1.bf16.msra.mxu0 %v1070
      %1434 = vmatprep.subr.bf16.mxu0 0
      %1435 = vmatpush1.bf16.msra.mxu0 %v1071
      %1436 = vmatprep.subr.bf16.mxu0 0
      %1437 = vmatpush1.bf16.msra.mxu0 %v1072
      %1438 = vmatprep.subr.bf16.mxu0 0
      %1439 = vmatpush1.bf16.msra.mxu0 %v1073
      %1440 = vmatprep.subr.bf16.mxu0 0
      %1441 = vmatpush1.bf16.msra.mxu0 %v1074
      %1442 = vmatprep.subr.bf16.mxu0 0
      %1443 = vmatpush1.bf16.msra.mxu0 %v1075
      %1444 = vmatprep.subr.bf16.mxu0 0
      %1445 = vmatpush1.bf16.msra.mxu0 %v1076
      %1446 = vmatprep.subr.bf16.mxu0 0
      %1447 = vmatpush1.bf16.msra.mxu0 %v1077
      %1448 = vmatprep.subr.bf16.mxu0 0
      %1449 = vmatpush1.bf16.msra.mxu0 %v1078
      %1450 = vmatprep.mubr.bf16.mxu0 %v522
      %1451 = vmatmul.mubr.bf16.gmra.mrb[0].mxu0 %v521
      %v1452 = vpop.f32.mrb[0].mxu0
      %v1453 = vadd.f32 %v1404, %v1452
      %v1454 = vpop.f32.mrb[0].mxu0
      %v1455 = vpop.f32.mrb[0].mxu0
      %v1456 = vadd.f32 %v1407, %v1455
      %v1457 = vpop.f32.mrb[0].mxu0
      %1458 = vmatprep.mubr.bf16.mxu0 %v536
      %1459 = vmatmul.mubr.bf16.gmra.mrb[0].mxu0 %v535
      %v1460 = vpop.f32.mrb[0].mxu0
      %v1461 = vadd.f32 %v1412, %v1460
      %v1462 = vpop.f32.mrb[0].mxu0
      %v1463 = vpop.f32.mrb[0].mxu0
      %v1464 = vadd.f32 %v1415, %v1463
      %v1465 = vpop.f32.mrb[0].mxu0
      %1466 = vdwg.mxu0
      %1467 = vmatprep.subr.bf16.mxu0 0
      %1468 = vmatpush1.bf16.msra.mxu0 %v1079
      %1469 = vmatprep.subr.bf16.mxu0 0
      %1470 = vmatpush1.bf16.msra.mxu0 %v1080
      %1471 = vmatprep.subr.bf16.mxu0 0
      %1472 = vmatpush1.bf16.msra.mxu0 %v1081
      %1473 = vmatprep.subr.bf16.mxu0 0
      %1474 = vmatpush1.bf16.msra.mxu0 %v1082
      %1475 = vmatprep.subr.bf16.mxu0 0
      %1476 = vmatpush1.bf16.msra.mxu0 %v1083
      %1477 = vmatprep.subr.bf16.mxu0 0
      %1478 = vmatpush1.bf16.msra.mxu0 %v1084
      %1479 = vmatprep.subr.bf16.mxu0 0
      %1480 = vmatpush1.bf16.msra.mxu0 %v1085
      %1481 = vmatprep.subr.bf16.mxu0 0
      %1482 = vmatpush1.bf16.msra.mxu0 %v1086
      %1483 = vmatprep.subr.bf16.mxu0 0
      %1484 = vmatpush1.bf16.msra.mxu0 %v1087
      %1485 = vmatprep.subr.bf16.mxu0 0
      %1486 = vmatpush1.bf16.msra.mxu0 %v1088
      %1487 = vmatprep.subr.bf16.mxu0 0
      %1488 = vmatpush1.bf16.msra.mxu0 %v1089
      %1489 = vmatprep.subr.bf16.mxu0 0
      %1490 = vmatpush1.bf16.msra.mxu0 %v1090
      %1491 = vmatprep.subr.bf16.mxu0 0
      %1492 = vmatpush1.bf16.msra.mxu0 %v1091
      %1493 = vmatprep.subr.bf16.mxu0 0
      %1494 = vmatpush1.bf16.msra.mxu0 %v1092
      %1495 = vmatprep.subr.bf16.mxu0 0
      %1496 = vmatpush1.bf16.msra.mxu0 %v1093
      %1497 = vmatprep.subr.bf16.mxu0 0
      %1498 = vmatpush1.bf16.msra.mxu0 %v1094
      %1499 = vmatprep.mubr.bf16.mxu0 %v524
      %1500 = vmatmul.mubr.bf16.gmra.mrb[0].mxu0 %v523
      %v1501 = vpop.f32.mrb[0].mxu0
      %v1502 = vadd.f32 %v1453, %v1501
      %v1503 = vpop.f32.mrb[0].mxu0
      %v1504 = vpop.f32.mrb[0].mxu0
      %v1505 = vadd.f32 %v1456, %v1504
      %v1506 = vpop.f32.mrb[0].mxu0
      %1507 = vmatprep.mubr.bf16.mxu0 %v538
      %1508 = vmatmul.mubr.bf16.gmra.mrb[0].mxu0 %v537
      %v1509 = vpop.f32.mrb[0].mxu0
      %v1510 = vadd.f32 %v1461, %v1509
      %v1511 = vpop.f32.mrb[0].mxu0
      %v1512 = vpop.f32.mrb[0].mxu0
      %v1513 = vadd.f32 %v1464, %v1512
      %v1514 = vpop.f32.mrb[0].mxu0
      %1515 = vdwg.mxu0
      %1516 = vmatprep.subr.bf16.mxu0 0
      %1517 = vmatpush1.bf16.msra.mxu0 %v1095
      %1518 = vmatprep.subr.bf16.mxu0 0
      %1519 = vmatpush1.bf16.msra.mxu0 %v1096
      %1520 = vmatprep.subr.bf16.mxu0 0
      %1521 = vmatpush1.bf16.msra.mxu0 %v1097
      %1522 = vmatprep.subr.bf16.mxu0 0
      %1523 = vmatpush1.bf16.msra.mxu0 %v1098
      %1524 = vmatprep.subr.bf16.mxu0 0
      %1525 = vmatpush1.bf16.msra.mxu0 %v1099
      %1526 = vmatprep.subr.bf16.mxu0 0
      %1527 = vmatpush1.bf16.msra.mxu0 %v1100
      %1528 = vmatprep.subr.bf16.mxu0 0
      %1529 = vmatpush1.bf16.msra.mxu0 %v1101
      %1530 = vmatprep.subr.bf16.mxu0 0
      %1531 = vmatpush1.bf16.msra.mxu0 %v1102
      %1532 = vmatprep.subr.bf16.mxu0 0
      %1533 = vmatpush1.bf16.msra.mxu0 %v1103
      %1534 = vmatprep.subr.bf16.mxu0 0
      %1535 = vmatpush1.bf16.msra.mxu0 %v1104
      %1536 = vmatprep.subr.bf16.mxu0 0
      %1537 = vmatpush1.bf16.msra.mxu0 %v1105
      %1538 = vmatprep.subr.bf16.mxu0 0
      %1539 = vmatpush1.bf16.msra.mxu0 %v1106
      %1540 = vmatprep.subr.bf16.mxu0 0
      %1541 = vmatpush1.bf16.msra.mxu0 0
      %1542 = vmatprep.subr.bf16.mxu0 0
      %1543 = vmatpush1.bf16.msra.mxu0 0
      %1544 = vmatprep.subr.bf16.mxu0 0
      %1545 = vmatpush1.bf16.msra.mxu0 0
      %1546 = vmatprep.subr.bf16.mxu0 0
      %1547 = vmatpush1.bf16.msra.mxu0 0
      %1548 = vmatprep.mubr.bf16.mxu0 %v1217
      %1549 = vmatmul.mubr.bf16.gmra.mrb[0].mxu0 %v525
      %v1550 = vpop.f32.mrb[0].mxu0
      %v1551 = vadd.f32 %v1502, %v1550
      %v1552 = vpop.f32.mrb[0].mxu0
      %v1553 = vpop.f32.mrb[0].mxu0
      %v1554 = vadd.f32 %v1505, %v1553
      %v1555 = vpop.f32.mrb[0].mxu0
      %1556 = vmatprep.mubr.bf16.mxu0 %v1220
      %1557 = vmatmul.mubr.bf16.gmra.mrb[0].mxu0 %v539
      %v1558 = vpop.f32.mrb[0].mxu0
      %v1559 = vadd.f32 %v1510, %v1558
      %v1560 = vpop.f32.mrb[0].mxu0
      %v1561 = vpop.f32.mrb[0].mxu0
      %v1562 = vadd.f32 %v1513, %v1561
      %v1563 = vpop.f32.mrb[0].mxu0
      %1564 = vdwg.mxu0
      %v1565 = vmax.f32 %v1551, 0.0
      %v1566 = vmax.f32 %v1554, 0.0
      %v1567 = vmax.f32 %v1559, 0.0
      %v1568 = vmax.f32 %v1562, 0.0
      %v1569 = vpack.c.bf16 %v1566, %v1565
      %v1570 = vpack.c.bf16 %v1568, %v1567
      %v1573 = vunpack.c.l.b16 %v1569
      %v1574 = vunpack.c.h.b16 %v1569
      %v1575 = vunpack.c.l.b16 %v1570
      %v1576 = vunpack.c.h.b16 %v1570
      %v1577 = vpack.c.b16 %v1573, %v1573
      %v1578 = vpack.c.b16 %v1574, %v1574
      %v1579 = vpack.c.b16 %v1575, %v1575
      %v1580 = vpack.c.b16 %v1576, %v1576
      %vm1585 = vcmask 519168
      %1586 = vst.msk [vmem:[%s175] sm:$0xf] %vm1585, %v1577
      %1587 = vst.msk [vmem:[%s175 + $0x4] sm:$0xf] %vm1585, %v1578
      %1588 = vst.msk [vmem:[%s175 + $0x8] sm:$0xf] %vm1585, %v1579
      %1589 = vst.msk [vmem:[%s175 + $0xc] sm:$0xf] %vm1585, %v1580
      %s1590 = smul.u32 4, %s14
      %p1591 = scmp.lt.s32.totalorder %s1590, 7
      %s1592 = scalar_select %p1591, %s1590, 7
      %s1593 = smul.addr %s1592, 4
      %s1594 = scalar_lea.vmem %s3, %s1593
      // Predicated region
      $region33: #{_lambda_.12} parent=31 // pred_check
        %p1595 = pneg %p100
      $region34: #{_lambda_.12} parent=31 // pred_check_branch
        %1597 = sbr.rel (%p1595) target = $region36
      $region35: #{_lambda_.12} parent=31 // pred_region
        %s1598 = smul.u32 4, %s14
      $region36: #{_lambda_.12} parent=31 // pred_fallthru
        _
    $region32: #{_lambda_.12} parent=5 // pred_fallthru
      _
    %p1599 = scmp.le.s32.totalorder 2, %s9
    // Predicated region
    $region37: #{_lambda_.12} parent=5 // pred_check
      %p1600 = pneg %p1599
    $region38: #{_lambda_.12} parent=5 // pred_check_branch
      %1602 = sbr.rel (%p1600) target = $region40
    $region39: #{_lambda_.12} parent=5 // pred_region
      %s1603 = ssub.s32 %s9, 2
      // Predicated region
      $region41: #{_lambda_.12} parent=39 // pred_check
        %p1604 = pneg %p106
      $region42: #{_lambda_.12} parent=39 // pred_check_branch
        %1606 = sbr.rel (%p1604) target = $region44
      $region43: #{_lambda_.12} parent=39 // pred_region
        %s1607 = smul.u32 4, %s15
        %p1608 = scmp.lt.s32.totalorder %s1607, 7
        %s1609 = scalar_select %p1608, %s1607, 7
        %s1610 = smul.addr %s1609, 4
        %s1611 = scalar_lea.vmem %s3, %s1610
      $region44: #{_lambda_.12} parent=39 // pred_fallthru
        _
    $region40: #{_lambda_.12} parent=5 // pred_fallthru
      _
  $region6: #{_lambda_.12} parent=0 // loop_footer
    %s13 = sadd.s32 1, %s9
  $region7: #{_lambda_.12} parent=0 // loop_footer_branch
    %8 = sbr.rel target = $region3
  $region8: #{_lambda_.12} parent=0 // loop_exit
    _

// kernel: _lambda_.13
$region0: #{_lambda_.13}
  #allocation0 [shape = 'u32[]', space=smem, size = 0x4, offset = 0x4, fixed_abs, tag = 'smem constant byte address 0x4 - core index']
  #allocation1 [shape = 'u32[144,128]{1,0:T(1,128)}', space=vmem, size = 0x12000, scoped, tag = 'internal scratch']
  %s0 = inlined_call_operand.vmem [shape: bf16[64,64], index: 0, kind: input, shape index: {}]
  %s1 = inlined_call_operand.vmem [shape: bf16[64,128], index: 1, kind: input, shape index: {}]
  %s2 = inlined_call_operand.vmem [shape: f32[1,128], index: 2, kind: input, shape index: {}]
  %s3 = inlined_call_operand.vmem [shape: bf16[64,128], index: 3, kind: input, shape index: {}]
  %s4 = inlined_call_operand.vmem [shape: bf16[64,128], index: 4, kind: output, shape index: {}]
  %s5 = sld [smem:[#allocation0]]
  $region49: #{_lambda_.13} parent=0
    _
  %s7 = ssub.s32 1, %s5
  %s8 = scalar_select 0, %s7, %s5
  loop: start=0, step=1, limit=4
  $region2: #{_lambda_.13} parent=0 // loop_pre_header
    _
  $region3: #{_lambda_.13} parent=0 // loop_header
    %s10 = sphi 0, %s14
    %p11 = scmp.ge.s32.totalorder %s10, 4
    %s20 = sphi 0, %s22
    %s23 = sphi 0, %s20
    %s24 = sphi 0, %s23
    %s40 = sphi 0, %s24
    %s44 = sphi 0, %s44
    %s46 = sphi 0, %s44
    %s47 = sphi 0, %s46
    %s61 = sphi 0, %s47
    %s65 = sphi 0, %s65
    %s67 = sphi 0, %s65
    %s68 = sphi 0, %s67
    %s82 = sphi 0, %s68
    %s88 = sphi 0, %s90
    %s91 = sphi 0, %s88
    %s92 = sphi 0, %s91
    %s108 = sphi 0, %s92
    %s114 = sphi 0, %s116
    %s117 = sphi 0, %s114
    %s118 = sphi 0, %s117
    %s134 = sphi 0, %s118
  $region4: #{_lambda_.13} parent=0 // loop_header_branch
    %13 = sbr.rel (%p11) target = $region8
  $region5: #{_lambda_.13} parent=0 // loop_body
    %s15 = ssub.s32 %s10, 1
    %s16 = ssub.s32 %s10, 2
    %s17 = sadd.s32 %s10, 1
    %s18 = ssub.s32 %s10, %s17
    %p19 = scmp.eq.s32.totalorder %s18, 0
    %s21 = sadd.s32 %s20, 1
    %s22 = scalar_select %p19, %s20, %s21
    %p25 = pneg %p19
    %p26 = scmp.eq.s32.totalorder %s10, 1
    %p27 = por %p25, %p26
    %p28 = scmp.ne.s32.totalorder %s20, %s23
    %p29 = scmp.eq.s32.totalorder %s10, 0
    %p30 = por %p28, %p29
    %p31 = scmp.ne.s32.totalorder %s20, %s23
    %p32 = scmp.eq.s32.totalorder %s15, 1
    %p33 = por %p31, %p32
    %p34 = scmp.ne.s32.totalorder %s23, %s24
    %p35 = scmp.eq.s32.totalorder %s15, 0
    %p36 = por %p34, %p35
    %p37 = scmp.ne.s32.totalorder %s23, %s24
    %p38 = scmp.eq.s32.totalorder %s16, 1
    %p39 = por %p37, %p38
    %p41 = scmp.ne.s32.totalorder %s24, %s40
    %p42 = scmp.eq.s32.totalorder %s16, 0
    %p43 = por %p41, %p42
    %s45 = sadd.s32 %s44, 1
    %p48 = scmp.eq.s32.totalorder %s10, 1
    %p49 = scmp.ne.s32.totalorder %s44, %s46
    %p50 = scmp.eq.s32.totalorder %s10, 0
    %p51 = por %p49, %p50
    %p52 = scmp.ne.s32.totalorder %s44, %s46
    %p53 = scmp.eq.s32.totalorder %s15, 1
    %p54 = por %p52, %p53
    %p55 = scmp.ne.s32.totalorder %s46, %s47
    %p56 = scmp.eq.s32.totalorder %s15, 0
    %p57 = por %p55, %p56
    %p58 = scmp.ne.s32.totalorder %s46, %s47
    %p59 = scmp.eq.s32.totalorder %s16, 1
    %p60 = por %p58, %p59
    %p62 = scmp.ne.s32.totalorder %s47, %s61
    %p63 = scmp.eq.s32.totalorder %s16, 0
    %p64 = por %p62, %p63
    %s66 = sadd.s32 %s65, 1
    %p69 = scmp.eq.s32.totalorder %s10, 1
    %p70 = scmp.ne.s32.totalorder %s65, %s67
    %p71 = scmp.eq.s32.totalorder %s10, 0
    %p72 = por %p70, %p71
    %p73 = scmp.ne.s32.totalorder %s65, %s67
    %p74 = scmp.eq.s32.totalorder %s15, 1
    %p75 = por %p73, %p74
    %p76 = scmp.ne.s32.totalorder %s67, %s68
    %p77 = scmp.eq.s32.totalorder %s15, 0
    %p78 = por %p76, %p77
    %p79 = scmp.ne.s32.totalorder %s67, %s68
    %p80 = scmp.eq.s32.totalorder %s16, 1
    %p81 = por %p79, %p80
    %p83 = scmp.ne.s32.totalorder %s68, %s82
    %p84 = scmp.eq.s32.totalorder %s16, 0
    %p85 = por %p83, %p84
    %s86 = ssub.s32 %s10, %s17
    %p87 = scmp.eq.s32.totalorder %s86, 0
    %s89 = sadd.s32 %s88, 1
    %s90 = scalar_select %p87, %s88, %s89
    %p93 = pneg %p87
    %p94 = scmp.eq.s32.totalorder %s10, 1
    %p95 = por %p93, %p94
    %p96 = scmp.ne.s32.totalorder %s88, %s91
    %p97 = scmp.eq.s32.totalorder %s10, 0
    %p98 = por %p96, %p97
    %p99 = scmp.ne.s32.totalorder %s88, %s91
    %p100 = scmp.eq.s32.totalorder %s15, 1
    %p101 = por %p99, %p100
    %p102 = scmp.ne.s32.totalorder %s91, %s92
    %p103 = scmp.eq.s32.totalorder %s15, 0
    %p104 = por %p102, %p103
    %p105 = scmp.ne.s32.totalorder %s91, %s92
    %p106 = scmp.eq.s32.totalorder %s16, 1
    %p107 = por %p105, %p106
    %p109 = scmp.ne.s32.totalorder %s92, %s108
    %p110 = scmp.eq.s32.totalorder %s16, 0
    %p111 = por %p109, %p110
    %s112 = ssub.s32 %s10, %s17
    %p113 = scmp.eq.s32.totalorder %s112, 0
    %s115 = sadd.s32 %s114, 1
    %s116 = scalar_select %p113, %s114, %s115
    %p119 = pneg %p113
    %p120 = scmp.eq.s32.totalorder %s10, 1
    %p121 = por %p119, %p120
    %p122 = scmp.ne.s32.totalorder %s114, %s117
    %p123 = scmp.eq.s32.totalorder %s10, 0
    %p124 = por %p122, %p123
    %p125 = scmp.ne.s32.totalorder %s114, %s117
    %p126 = scmp.eq.s32.totalorder %s15, 1
    %p127 = por %p125, %p126
    %p128 = scmp.ne.s32.totalorder %s117, %s118
    %p129 = scmp.eq.s32.totalorder %s15, 0
    %p130 = por %p128, %p129
    %p131 = scmp.ne.s32.totalorder %s117, %s118
    %p132 = scmp.eq.s32.totalorder %s16, 1
    %p133 = por %p131, %p132
    %p135 = scmp.ne.s32.totalorder %s118, %s134
    %p136 = scmp.eq.s32.totalorder %s16, 0
    %p137 = por %p135, %p136
    %p138 = scmp.le.s32.totalorder 1, %s10
    %p139 = scmp.lt.s32.totalorder %s10, 3
    %p140 = pnand %p138, %p139
    %p141 = pneg %p140
    // Predicated region
    $region9: #{_lambda_.13} parent=5 // pred_check
      _
    $region10: #{_lambda_.13} parent=5 // pred_check_branch
      %143 = sbr.rel (%p140) target = $region12
    $region11: #{_lambda_.13} parent=5 // pred_region
      %s144 = ssub.s32 %s10, 1
      // Predicated region
      $region13: #{_lambda_.13} parent=11 // pred_check
        %p145 = pneg %p57
      $region14: #{_lambda_.13} parent=11 // pred_check_branch
        %147 = sbr.rel (%p145) target = $region16
      $region15: #{_lambda_.13} parent=11 // pred_region
        _
      $region16: #{_lambda_.13} parent=11 // pred_fallthru
        _
      // Predicated region
      $region17: #{_lambda_.13} parent=11 // pred_check
        %p148 = pneg %p78
      $region18: #{_lambda_.13} parent=11 // pred_check_branch
        %150 = sbr.rel (%p148) target = $region20
      $region19: #{_lambda_.13} parent=11 // pred_region
        _
      $region20: #{_lambda_.13} parent=11 // pred_fallthru
        _
    $region12: #{_lambda_.13} parent=5 // pred_fallthru
      _
    %p151 = scmp.lt.s32.totalorder %s10, 2
    // Predicated region
    $region21: #{_lambda_.13} parent=5 // pred_check
      %p152 = pneg %p151
    $region22: #{_lambda_.13} parent=5 // pred_check_branch
      %154 = sbr.rel (%p152) target = $region24
    $region23: #{_lambda_.13} parent=5 // pred_region
      // Predicated region
      $region25: #{_lambda_.13} parent=23 // pred_check
        %p155 = pneg %p30
      $region26: #{_lambda_.13} parent=23 // pred_check_branch
        %157 = sbr.rel (%p155) target = $region28
      $region27: #{_lambda_.13} parent=23 // pred_region
        %s158 = smul.u32 4, %s10
        %p159 = scmp.lt.s32.totalorder %s158, 7
        %s160 = scalar_select %p159, %s158, 7
        %s161 = smul.addr %s160, 4
        %s162 = scalar_lea.vmem %s0, %s161
        %s163 = smul.u32 4, %s10
      $region28: #{_lambda_.13} parent=23 // pred_fallthru
        _
      // Predicated region
      $region29: #{_lambda_.13} parent=23 // pred_check
        %p164 = pneg %p98
      $region30: #{_lambda_.13} parent=23 // pred_check_branch
        %166 = sbr.rel (%p164) target = $region32
      $region31: #{_lambda_.13} parent=23 // pred_region
        %s167 = smul.u32 4, %s10
        %p168 = scmp.lt.s32.totalorder %s167, 7
        %s169 = scalar_select %p168, %s167, 7
        %s170 = smul.addr %s169, 4
        %s171 = scalar_lea.vmem %s3, %s170
        %s172 = smul.u32 4, %s10
      $region32: #{_lambda_.13} parent=23 // pred_fallthru
        _
    $region24: #{_lambda_.13} parent=5 // pred_fallthru
      _
    %p173 = scmp.le.s32.totalorder 1, %s10
    %p174 = scmp.lt.s32.totalorder %s10, 3
    %p175 = pnand %p173, %p174
    %p176 = pneg %p175
    // Predicated region
    $region33: #{_lambda_.13} parent=5 // pred_check
      _
    $region34: #{_lambda_.13} parent=5 // pred_check_branch
      %178 = sbr.rel (%p175) target = $region36
    $region35: #{_lambda_.13} parent=5 // pred_region
      %s179 = ssub.s32 %s10, 1
      %s180 = smul.u32 4, %s15
      %p181 = scmp.lt.s32.totalorder %s180, 7
      %s182 = scalar_select %p181, %s180, 7
      %s183 = smul.addr %s182, 4
      %s184 = scalar_lea.vmem %s0, %s183
      %p185 = pneg %p36
      %p186 = pneg %p33
      %p187 = pneg %p57
      %p188 = pneg %p54
      %p189 = pneg %p78
      %p190 = pneg %p75
      %s191 = smul.u32 4, %s15
      %p192 = scmp.lt.s32.totalorder %s191, 7
      %s193 = scalar_select %p192, %s191, 7
      %s194 = smul.addr %s193, 4
      %s195 = scalar_lea.vmem %s3, %s194
      %p196 = pneg %p104
      %p197 = pneg %p101
      %p198 = pneg %p130
      %p199 = pneg %p127
      %s200 = smul.u32 4, %s15
      %p201 = scmp.lt.s32.totalorder %s200, 7
      %s202 = scalar_select %p201, %s200, 7
      %s203 = smul.addr %s202, 4
      %s204 = scalar_lea.vmem %s4, %s203
      %s205 = smul.u32 4, %s15
      %p206 = scmp.lt.s32.totalorder %s205, 7
      %s207 = scalar_select %p206, %s205, 7
      %s208 = smul.addr %s207, 4
      %s209 = scalar_lea.vmem %s0, %s208
      %s210 = smul.u32 4, %s15
      %s211 = smul.u32 4, %s15
      %p212 = scmp.lt.s32.totalorder %s211, 7
      %s213 = scalar_select %p212, %s211, 7
      %s214 = smul.addr %s213, 4
      %s215 = scalar_lea.vmem %s3, %s214
      %s216 = smul.u32 4, %s15
      %s217 = smul.u32 4, %s15
      %p218 = scmp.lt.s32.totalorder %s217, 7
      %s219 = scalar_select %p218, %s217, 7
      %s220 = smul.addr %s219, 4
      %s221 = scalar_lea.vmem %s4, %s220
      %s222 = smul.u32 4, %s15
      %v224 = vld [vmem:[%s209] sm:$0xf]
      %v225 = vld [vmem:[%s209 + $0x4] sm:$0xf]
      %v226 = vld [vmem:[%s209 + $0x8] sm:$0xf]
      %v227 = vld [vmem:[%s209 + $0xc] sm:$0xf]
      %v228 = vld [vmem:[%s1] sm:$0xf]
      %v229 = vld [vmem:[%s1 + $0x4] sm:$0xf]
      %v230 = vld [vmem:[%s1 + $0x8] sm:$0xf]
      %v231 = vld [vmem:[%s1 + $0xc] sm:$0xf]
      %v232 = vld [vmem:[%s1 + $0x10] sm:$0xf]
      %v233 = vld [vmem:[%s1 + $0x14] sm:$0xf]
      %v234 = vld [vmem:[%s1 + $0x18] sm:$0xf]
      %v235 = vld [vmem:[%s1 + $0x1c] sm:$0xf]
      %v236 = vld [vmem:[%s2] sm:$0x1]
      %v238 = vlaneseq
      %v239 = vshrl.u32 %v238, 7
      %v240 = vsub.s32 0, %v239
      %v241 = vrot.slane %v236, %v240
      %v247 = vunpack.c.l.b16 %v224
      %v248 = vunpack.c.l.b16 %v225
      %v249 = vunpack.c.l.b16 %v226
      %v250 = vunpack.c.l.b16 %v227
      %v251 = vpack.c.b16 %v248, %v247
      %v252 = vpack.c.b16 %v250, %v249
      %v261 = vunpack.c.l.b16 %v228
      %v262 = vunpack.c.l.b16 %v229
      %v263 = vunpack.c.l.b16 %v230
      %v264 = vunpack.c.l.b16 %v231
      %v265 = vunpack.c.l.b16 %v232
      %v266 = vunpack.c.l.b16 %v233
      %v267 = vunpack.c.l.b16 %v234
      %v268 = vunpack.c.l.b16 %v235
      %v269 = vpack.c.b16 %v262, %v261
      %v270 = vpack.c.b16 %v264, %v263
      %v271 = vpack.c.b16 %v266, %v265
      %v272 = vpack.c.b16 %v268, %v267
      %vm277 = vcmask 523264
      %v279 = vsel %vm277, %v251, 0
      %v282 = vsel %vm277, %v252, 0
      %284 = vmatprep.subr.bf16.mxu0 0
      %285 = vmatpush1.bf16.msra.mxu0 %v269
      %286 = vmatprep.subr.bf16.mxu0 0
      %287 = vmatpush1.bf16.msra.mxu0 %v270
      %288 = vmatprep.subr.bf16.mxu0 0
      %289 = vmatpush1.bf16.msra.mxu0 %v271
      %290 = vmatprep.subr.bf16.mxu0 0
      %291 = vmatpush1.bf16.msra.mxu0 %v272
      %292 = vmatprep.subr.bf16.mxu0 0
      %293 = vmatpush1.bf16.msra.mxu0 0
      %294 = vmatprep.subr.bf16.mxu0 0
      %295 = vmatpush1.bf16.msra.mxu0 0
      %296 = vmatprep.subr.bf16.mxu0 0
      %297 = vmatpush1.bf16.msra.mxu0 0
      %298 = vmatprep.subr.bf16.mxu0 0
      %299 = vmatpush1.bf16.msra.mxu0 0
      %300 = vmatprep.subr.bf16.mxu0 0
      %301 = vmatpush1.bf16.msra.mxu0 0
      %302 = vmatprep.subr.bf16.mxu0 0
      %303 = vmatpush1.bf16.msra.mxu0 0
      %304 = vmatprep.subr.bf16.mxu0 0
      %305 = vmatpush1.bf16.msra.mxu0 0
      %306 = vmatprep.subr.bf16.mxu0 0
      %307 = vmatpush1.bf16.msra.mxu0 0
      %308 = vmatprep.subr.bf16.mxu0 0
      %309 = vmatpush1.bf16.msra.mxu0 0
      %310 = vmatprep.subr.bf16.mxu0 0
      %311 = vmatpush1.bf16.msra.mxu0 0
      %312 = vmatprep.subr.bf16.mxu0 0
      %313 = vmatpush1.bf16.msra.mxu0 0
      %314 = vmatprep.subr.bf16.mxu0 0
      %315 = vmatpush1.bf16.msra.mxu0 0
      %316 = vmatprep.mubr.bf16.mxu0 0
      %317 = vmatmul.mubr.bf16.gmra.mrb[0].mxu0 %v279
      %v318 = vpop.f32.mrb[0].mxu0
      %v319 = vadd.f32 %v241, %v318
      %v320 = vpop.f32.mrb[0].mxu0
      %v321 = vpop.f32.mrb[0].mxu0
      %v322 = vadd.f32 %v241, %v321
      %v323 = vpop.f32.mrb[0].mxu0
      %324 = vmatprep.mubr.bf16.mxu0 0
      %325 = vmatmul.mubr.bf16.gmra.mrb[0].mxu0 %v282
      %v326 = vpop.f32.mrb[0].mxu0
      %v327 = vadd.f32 %v241, %v326
      %v328 = vpop.f32.mrb[0].mxu0
      %v329 = vpop.f32.mrb[0].mxu0
      %v330 = vadd.f32 %v241, %v329
      %v331 = vpop.f32.mrb[0].mxu0
      %332 = vdwg.mxu0
      %v333 = vld [vmem:[%s215] sm:$0xf]
      %v334 = vld [vmem:[%s215 + $0x4] sm:$0xf]
      %v335 = vld [vmem:[%s215 + $0x8] sm:$0xf]
      %v336 = vld [vmem:[%s215 + $0xc] sm:$0xf]
      %v337 = vunpack.c.l.bf16 %v333
      %v338 = vunpack.c.l.bf16 %v334
      %v339 = vunpack.c.l.bf16 %v335
      %v340 = vunpack.c.l.bf16 %v336
      %v341 = vadd.f32 %v319, %v337
      %v342 = vadd.f32 %v322, %v338
      %v343 = vadd.f32 %v327, %v339
      %v344 = vadd.f32 %v330, %v340
      %v345 = vmax.f32 %v341, 0.0
      %v346 = vmax.f32 %v342, 0.0
      %v347 = vmax.f32 %v343, 0.0
      %v348 = vmax.f32 %v344, 0.0
      %v349 = vpack.c.bf16 %v346, %v345
      %v350 = vpack.c.bf16 %v348, %v347
      %v353 = vunpack.c.l.b16 %v349
      %v354 = vunpack.c.h.b16 %v349
      %v355 = vunpack.c.l.b16 %v350
      %v356 = vunpack.c.h.b16 %v350
      %v357 = vpack.c.b16 %v353, %v353
      %v358 = vpack.c.b16 %v354, %v354
      %v359 = vpack.c.b16 %v355, %v355
      %v360 = vpack.c.b16 %v356, %v356
      %365 = vst [vmem:[%s221] sm:$0xf] %v357
      %366 = vst [vmem:[%s221 + $0x4] sm:$0xf] %v358
      %367 = vst [vmem:[%s221 + $0x8] sm:$0xf] %v359
      %368 = vst [vmem:[%s221 + $0xc] sm:$0xf] %v360
      %s369 = smul.u32 4, %s15
      %p370 = scmp.lt.s32.totalorder %s369, 7
      %s371 = scalar_select %p370, %s369, 7
      %s372 = smul.addr %s371, 4
      %s373 = scalar_lea.vmem %s4, %s372
      // Predicated region
      $region37: #{_lambda_.13} parent=35 // pred_check
        %p374 = pneg %p127
      $region38: #{_lambda_.13} parent=35 // pred_check_branch
        %376 = sbr.rel (%p374) target = $region40
      $region39: #{_lambda_.13} parent=35 // pred_region
        %s377 = smul.u32 4, %s15
      $region40: #{_lambda_.13} parent=35 // pred_fallthru
        _
    $region36: #{_lambda_.13} parent=5 // pred_fallthru
      _
    %p378 = scmp.le.s32.totalorder 2, %s10
    // Predicated region
    $region41: #{_lambda_.13} parent=5 // pred_check
      %p379 = pneg %p378
    $region42: #{_lambda_.13} parent=5 // pred_check_branch
      %381 = sbr.rel (%p379) target = $region44
    $region43: #{_lambda_.13} parent=5 // pred_region
      %s382 = ssub.s32 %s10, 2
      // Predicated region
      $region45: #{_lambda_.13} parent=43 // pred_check
        %p383 = pneg %p133
      $region46: #{_lambda_.13} parent=43 // pred_check_branch
        %385 = sbr.rel (%p383) target = $region48
      $region47: #{_lambda_.13} parent=43 // pred_region
        %s386 = smul.u32 4, %s16
        %p387 = scmp.lt.s32.totalorder %s386, 7
        %s388 = scalar_select %p387, %s386, 7
        %s389 = smul.addr %s388, 4
        %s390 = scalar_lea.vmem %s4, %s389
      $region48: #{_lambda_.13} parent=43 // pred_fallthru
        _
    $region44: #{_lambda_.13} parent=5 // pred_fallthru
      _
  $region6: #{_lambda_.13} parent=0 // loop_footer
    %s14 = sadd.s32 1, %s10
  $region7: #{_lambda_.13} parent=0 // loop_footer_branch
    %9 = sbr.rel target = $region3
  $region8: #{_lambda_.13} parent=0 // loop_exit
    _

// kernel: _lambda_.14
$region0: #{_lambda_.14}
  #allocation0 [shape = 'u32[]', space=smem, size = 0x4, offset = 0x4, fixed_abs, tag = 'smem constant byte address 0x4 - core index']
  #allocation1 [shape = 'u32[144,128]{1,0:T(1,128)}', space=vmem, size = 0x12000, scoped, tag = 'internal scratch']
  %s0 = inlined_call_operand.vmem [shape: bf16[64,128], index: 0, kind: input, shape index: {}]
  %s1 = inlined_call_operand.vmem [shape: bf16[128,64], index: 1, kind: input, shape index: {}]
  %s2 = inlined_call_operand.vmem [shape: f32[1,64], index: 2, kind: input, shape index: {}]
  %s3 = inlined_call_operand.vmem [shape: bf16[64,64], index: 3, kind: output, shape index: {}]
  %s4 = sld [smem:[#allocation0]]
  $region45: #{_lambda_.14} parent=0
    _
  %s6 = ssub.s32 1, %s4
  %s7 = scalar_select 0, %s6, %s4
  loop: start=0, step=1, limit=4
  $region2: #{_lambda_.14} parent=0 // loop_pre_header
    _
  $region3: #{_lambda_.14} parent=0 // loop_header
    %s9 = sphi 0, %s13
    %p10 = scmp.ge.s32.totalorder %s9, 4
    %s19 = sphi 0, %s21
    %s22 = sphi 0, %s19
    %s23 = sphi 0, %s22
    %s39 = sphi 0, %s23
    %s43 = sphi 0, %s43
    %s45 = sphi 0, %s43
    %s46 = sphi 0, %s45
    %s60 = sphi 0, %s46
    %s64 = sphi 0, %s64
    %s66 = sphi 0, %s64
    %s67 = sphi 0, %s66
    %s81 = sphi 0, %s67
    %s87 = sphi 0, %s89
    %s90 = sphi 0, %s87
    %s91 = sphi 0, %s90
    %s107 = sphi 0, %s91
  $region4: #{_lambda_.14} parent=0 // loop_header_branch
    %12 = sbr.rel (%p10) target = $region8
  $region5: #{_lambda_.14} parent=0 // loop_body
    %s14 = ssub.s32 %s9, 1
    %s15 = ssub.s32 %s9, 2
    %s16 = sadd.s32 %s9, 1
    %s17 = ssub.s32 %s9, %s16
    %p18 = scmp.eq.s32.totalorder %s17, 0
    %s20 = sadd.s32 %s19, 1
    %s21 = scalar_select %p18, %s19, %s20
    %p24 = pneg %p18
    %p25 = scmp.eq.s32.totalorder %s9, 1
    %p26 = por %p24, %p25
    %p27 = scmp.ne.s32.totalorder %s19, %s22
    %p28 = scmp.eq.s32.totalorder %s9, 0
    %p29 = por %p27, %p28
    %p30 = scmp.ne.s32.totalorder %s19, %s22
    %p31 = scmp.eq.s32.totalorder %s14, 1
    %p32 = por %p30, %p31
    %p33 = scmp.ne.s32.totalorder %s22, %s23
    %p34 = scmp.eq.s32.totalorder %s14, 0
    %p35 = por %p33, %p34
    %p36 = scmp.ne.s32.totalorder %s22, %s23
    %p37 = scmp.eq.s32.totalorder %s15, 1
    %p38 = por %p36, %p37
    %p40 = scmp.ne.s32.totalorder %s23, %s39
    %p41 = scmp.eq.s32.totalorder %s15, 0
    %p42 = por %p40, %p41
    %s44 = sadd.s32 %s43, 1
    %p47 = scmp.eq.s32.totalorder %s9, 1
    %p48 = scmp.ne.s32.totalorder %s43, %s45
    %p49 = scmp.eq.s32.totalorder %s9, 0
    %p50 = por %p48, %p49
    %p51 = scmp.ne.s32.totalorder %s43, %s45
    %p52 = scmp.eq.s32.totalorder %s14, 1
    %p53 = por %p51, %p52
    %p54 = scmp.ne.s32.totalorder %s45, %s46
    %p55 = scmp.eq.s32.totalorder %s14, 0
    %p56 = por %p54, %p55
    %p57 = scmp.ne.s32.totalorder %s45, %s46
    %p58 = scmp.eq.s32.totalorder %s15, 1
    %p59 = por %p57, %p58
    %p61 = scmp.ne.s32.totalorder %s46, %s60
    %p62 = scmp.eq.s32.totalorder %s15, 0
    %p63 = por %p61, %p62
    %s65 = sadd.s32 %s64, 1
    %p68 = scmp.eq.s32.totalorder %s9, 1
    %p69 = scmp.ne.s32.totalorder %s64, %s66
    %p70 = scmp.eq.s32.totalorder %s9, 0
    %p71 = por %p69, %p70
    %p72 = scmp.ne.s32.totalorder %s64, %s66
    %p73 = scmp.eq.s32.totalorder %s14, 1
    %p74 = por %p72, %p73
    %p75 = scmp.ne.s32.totalorder %s66, %s67
    %p76 = scmp.eq.s32.totalorder %s14, 0
    %p77 = por %p75, %p76
    %p78 = scmp.ne.s32.totalorder %s66, %s67
    %p79 = scmp.eq.s32.totalorder %s15, 1
    %p80 = por %p78, %p79
    %p82 = scmp.ne.s32.totalorder %s67, %s81
    %p83 = scmp.eq.s32.totalorder %s15, 0
    %p84 = por %p82, %p83
    %s85 = ssub.s32 %s9, %s16
    %p86 = scmp.eq.s32.totalorder %s85, 0
    %s88 = sadd.s32 %s87, 1
    %s89 = scalar_select %p86, %s87, %s88
    %p92 = pneg %p86
    %p93 = scmp.eq.s32.totalorder %s9, 1
    %p94 = por %p92, %p93
    %p95 = scmp.ne.s32.totalorder %s87, %s90
    %p96 = scmp.eq.s32.totalorder %s9, 0
    %p97 = por %p95, %p96
    %p98 = scmp.ne.s32.totalorder %s87, %s90
    %p99 = scmp.eq.s32.totalorder %s14, 1
    %p100 = por %p98, %p99
    %p101 = scmp.ne.s32.totalorder %s90, %s91
    %p102 = scmp.eq.s32.totalorder %s14, 0
    %p103 = por %p101, %p102
    %p104 = scmp.ne.s32.totalorder %s90, %s91
    %p105 = scmp.eq.s32.totalorder %s15, 1
    %p106 = por %p104, %p105
    %p108 = scmp.ne.s32.totalorder %s91, %s107
    %p109 = scmp.eq.s32.totalorder %s15, 0
    %p110 = por %p108, %p109
    %p111 = scmp.le.s32.totalorder 1, %s9
    %p112 = scmp.lt.s32.totalorder %s9, 3
    %p113 = pnand %p111, %p112
    %p114 = pneg %p113
    // Predicated region
    $region9: #{_lambda_.14} parent=5 // pred_check
      _
    $region10: #{_lambda_.14} parent=5 // pred_check_branch
      %116 = sbr.rel (%p113) target = $region12
    $region11: #{_lambda_.14} parent=5 // pred_region
      %s117 = ssub.s32 %s9, 1
      // Predicated region
      $region13: #{_lambda_.14} parent=11 // pred_check
        %p118 = pneg %p56
      $region14: #{_lambda_.14} parent=11 // pred_check_branch
        %120 = sbr.rel (%p118) target = $region16
      $region15: #{_lambda_.14} parent=11 // pred_region
        _
      $region16: #{_lambda_.14} parent=11 // pred_fallthru
        _
      // Predicated region
      $region17: #{_lambda_.14} parent=11 // pred_check
        %p121 = pneg %p77
      $region18: #{_lambda_.14} parent=11 // pred_check_branch
        %123 = sbr.rel (%p121) target = $region20
      $region19: #{_lambda_.14} parent=11 // pred_region
        _
      $region20: #{_lambda_.14} parent=11 // pred_fallthru
        _
    $region12: #{_lambda_.14} parent=5 // pred_fallthru
      _
    %p124 = scmp.lt.s32.totalorder %s9, 2
    // Predicated region
    $region21: #{_lambda_.14} parent=5 // pred_check
      %p125 = pneg %p124
    $region22: #{_lambda_.14} parent=5 // pred_check_branch
      %127 = sbr.rel (%p125) target = $region24
    $region23: #{_lambda_.14} parent=5 // pred_region
      // Predicated region
      $region25: #{_lambda_.14} parent=23 // pred_check
        %p128 = pneg %p29
      $region26: #{_lambda_.14} parent=23 // pred_check_branch
        %130 = sbr.rel (%p128) target = $region28
      $region27: #{_lambda_.14} parent=23 // pred_region
        %s131 = smul.u32 4, %s9
        %p132 = scmp.lt.s32.totalorder %s131, 7
        %s133 = scalar_select %p132, %s131, 7
        %s134 = smul.addr %s133, 4
        %s135 = scalar_lea.vmem %s0, %s134
        %s136 = smul.u32 4, %s9
      $region28: #{_lambda_.14} parent=23 // pred_fallthru
        _
    $region24: #{_lambda_.14} parent=5 // pred_fallthru
      _
    %p137 = scmp.le.s32.totalorder 1, %s9
    %p138 = scmp.lt.s32.totalorder %s9, 3
    %p139 = pnand %p137, %p138
    %p140 = pneg %p139
    // Predicated region
    $region29: #{_lambda_.14} parent=5 // pred_check
      _
    $region30: #{_lambda_.14} parent=5 // pred_check_branch
      %142 = sbr.rel (%p139) target = $region32
    $region31: #{_lambda_.14} parent=5 // pred_region
      %s143 = ssub.s32 %s9, 1
      %s144 = smul.u32 4, %s14
      %p145 = scmp.lt.s32.totalorder %s144, 7
      %s146 = scalar_select %p145, %s144, 7
      %s147 = smul.addr %s146, 4
      %s148 = scalar_lea.vmem %s0, %s147
      %p149 = pneg %p35
      %p150 = pneg %p32
      %p151 = pneg %p56
      %p152 = pneg %p53
      %p153 = pneg %p77
      %p154 = pneg %p74
      %p155 = pneg %p103
      %p156 = pneg %p100
      %s157 = smul.u32 4, %s14
      %p158 = scmp.lt.s32.totalorder %s157, 7
      %s159 = scalar_select %p158, %s157, 7
      %s160 = smul.addr %s159, 4
      %s161 = scalar_lea.vmem %s3, %s160
      %s162 = smul.u32 4, %s14
      %p163 = scmp.lt.s32.totalorder %s162, 7
      %s164 = scalar_select %p163, %s162, 7
      %s165 = smul.addr %s164, 4
      %s166 = scalar_lea.vmem %s0, %s165
      %s167 = smul.u32 4, %s14
      %s168 = smul.u32 4, %s14
      %p169 = scmp.lt.s32.totalorder %s168, 7
      %s170 = scalar_select %p169, %s168, 7
      %s171 = smul.addr %s170, 4
      %s172 = scalar_lea.vmem %s3, %s171
      %s173 = smul.u32 4, %s14
      %v175 = vld [vmem:[%s166] sm:$0xf]
      %v176 = vld [vmem:[%s166 + $0x4] sm:$0xf]
      %v177 = vld [vmem:[%s166 + $0x8] sm:$0xf]
      %v178 = vld [vmem:[%s166 + $0xc] sm:$0xf]
      %v179 = vld [vmem:[%s1] sm:$0xf]
      %v180 = vld [vmem:[%s1 + $0x4] sm:$0xf]
      %v181 = vld [vmem:[%s1 + $0x8] sm:$0xf]
      %v182 = vld [vmem:[%s1 + $0xc] sm:$0xf]
      %v183 = vld [vmem:[%s1 + $0x10] sm:$0xf]
      %v184 = vld [vmem:[%s1 + $0x14] sm:$0xf]
      %v185 = vld [vmem:[%s1 + $0x18] sm:$0xf]
      %v186 = vld [vmem:[%s1 + $0x1c] sm:$0xf]
      %v187 = vld [vmem:[%s1 + $0x20] sm:$0xf]
      %v188 = vld [vmem:[%s1 + $0x24] sm:$0xf]
      %v189 = vld [vmem:[%s1 + $0x28] sm:$0xf]
      %v190 = vld [vmem:[%s1 + $0x2c] sm:$0xf]
      %v191 = vld [vmem:[%s1 + $0x30] sm:$0xf]
      %v192 = vld [vmem:[%s1 + $0x34] sm:$0xf]
      %v193 = vld [vmem:[%s1 + $0x38] sm:$0xf]
      %v194 = vld [vmem:[%s1 + $0x3c] sm:$0xf]
      %v195 = vld [vmem:[%s2] sm:$0x1]
      %v197 = vlaneseq
      %v198 = vshrl.u32 %v197, 7
      %v199 = vsub.s32 0, %v198
      %v200 = vrot.slane %v195, %v199
      %v206 = vunpack.c.l.b16 %v175
      %v207 = vunpack.c.l.b16 %v176
      %v208 = vunpack.c.l.b16 %v177
      %v209 = vunpack.c.l.b16 %v178
      %v210 = vpack.c.b16 %v207, %v206
      %v211 = vpack.c.b16 %v209, %v208
      %v230 = vunpack.c.l.b16 %v179
      %v231 = vunpack.c.l.b16 %v180
      %v232 = vunpack.c.l.b16 %v181
      %v233 = vunpack.c.l.b16 %v182
      %v234 = vunpack.c.l.b16 %v183
      %v235 = vunpack.c.l.b16 %v184
      %v236 = vunpack.c.l.b16 %v185
      %v237 = vunpack.c.l.b16 %v186
      %v238 = vunpack.c.l.b16 %v187
      %v239 = vunpack.c.l.b16 %v188
      %v240 = vunpack.c.l.b16 %v189
      %v241 = vunpack.c.l.b16 %v190
      %v242 = vunpack.c.l.b16 %v191
      %v243 = vunpack.c.l.b16 %v192
      %v244 = vunpack.c.l.b16 %v193
      %v245 = vunpack.c.l.b16 %v194
      %v246 = vpack.c.b16 %v231, %v230
      %v247 = vpack.c.b16 %v233, %v232
      %v248 = vpack.c.b16 %v235, %v234
      %v249 = vpack.c.b16 %v237, %v236
      %v250 = vpack.c.b16 %v239, %v238
      %v251 = vpack.c.b16 %v241, %v240
      %v252 = vpack.c.b16 %v243, %v242
      %v253 = vpack.c.b16 %v245, %v244
      %262 = vmatprep.subr.bf16.mxu0 0
      %263 = vmatpush1.bf16.msra.mxu0 %v246
      %264 = vmatprep.subr.bf16.mxu0 0
      %265 = vmatpush1.bf16.msra.mxu0 %v247
      %266 = vmatprep.subr.bf16.mxu0 0
      %267 = vmatpush1.bf16.msra.mxu0 %v248
      %268 = vmatprep.subr.bf16.mxu0 0
      %269 = vmatpush1.bf16.msra.mxu0 %v249
      %270 = vmatprep.subr.bf16.mxu0 0
      %271 = vmatpush1.bf16.msra.mxu0 %v250
      %272 = vmatprep.subr.bf16.mxu0 0
      %273 = vmatpush1.bf16.msra.mxu0 %v251
      %274 = vmatprep.subr.bf16.mxu0 0
      %275 = vmatpush1.bf16.msra.mxu0 %v252
      %276 = vmatprep.subr.bf16.mxu0 0
      %277 = vmatpush1.bf16.msra.mxu0 %v253
      %278 = vmatprep.subr.bf16.mxu0 0
      %279 = vmatpush1.bf16.msra.mxu0 0
      %280 = vmatprep.subr.bf16.mxu0 0
      %281 = vmatpush1.bf16.msra.mxu0 0
      %282 = vmatprep.subr.bf16.mxu0 0
      %283 = vmatpush1.bf16.msra.mxu0 0
      %284 = vmatprep.subr.bf16.mxu0 0
      %285 = vmatpush1.bf16.msra.mxu0 0
      %286 = vmatprep.subr.bf16.mxu0 0
      %287 = vmatpush1.bf16.msra.mxu0 0
      %288 = vmatprep.subr.bf16.mxu0 0
      %289 = vmatpush1.bf16.msra.mxu0 0
      %290 = vmatprep.subr.bf16.mxu0 0
      %291 = vmatpush1.bf16.msra.mxu0 0
      %292 = vmatprep.subr.bf16.mxu0 0
      %293 = vmatpush1.bf16.msra.mxu0 0
      %294 = vmatprep.mubr.bf16.mxu0 0
      %295 = vmatmul.mubr.bf16.gmra.mrb[0].mxu0 %v210
      %v296 = vpop.f32.mrb[0].mxu0
      %v297 = vadd.f32 %v200, %v296
      %v298 = vpop.f32.mrb[0].mxu0
      %v299 = vpop.f32.mrb[0].mxu0
      %v300 = vadd.f32 %v200, %v299
      %v301 = vpop.f32.mrb[0].mxu0
      %302 = vmatprep.mubr.bf16.mxu0 0
      %303 = vmatmul.mubr.bf16.gmra.mrb[0].mxu0 %v211
      %v304 = vpop.f32.mrb[0].mxu0
      %v305 = vadd.f32 %v200, %v304
      %v306 = vpop.f32.mrb[0].mxu0
      %v307 = vpop.f32.mrb[0].mxu0
      %v308 = vadd.f32 %v200, %v307
      %v309 = vpop.f32.mrb[0].mxu0
      %310 = vdwg.mxu0
      %v311 = vmax.f32 %v297, 0.0
      %v312 = vmax.f32 %v300, 0.0
      %v313 = vmax.f32 %v305, 0.0
      %v314 = vmax.f32 %v308, 0.0
      %v315 = vpack.c.bf16 %v312, %v311
      %v316 = vpack.c.bf16 %v314, %v313
      %v319 = vunpack.c.l.b16 %v315
      %v320 = vunpack.c.h.b16 %v315
      %v321 = vunpack.c.l.b16 %v316
      %v322 = vunpack.c.h.b16 %v316
      %v323 = vpack.c.b16 %v319, %v319
      %v324 = vpack.c.b16 %v320, %v320
      %v325 = vpack.c.b16 %v321, %v321
      %v326 = vpack.c.b16 %v322, %v322
      %vm331 = vcmask 519168
      %332 = vst.msk [vmem:[%s172] sm:$0xf] %vm331, %v323
      %333 = vst.msk [vmem:[%s172 + $0x4] sm:$0xf] %vm331, %v324
      %334 = vst.msk [vmem:[%s172 + $0x8] sm:$0xf] %vm331, %v325
      %335 = vst.msk [vmem:[%s172 + $0xc] sm:$0xf] %vm331, %v326
      %s336 = smul.u32 4, %s14
      %p337 = scmp.lt.s32.totalorder %s336, 7
      %s338 = scalar_select %p337, %s336, 7
      %s339 = smul.addr %s338, 4
      %s340 = scalar_lea.vmem %s3, %s339
      // Predicated region
      $region33: #{_lambda_.14} parent=31 // pred_check
        %p341 = pneg %p100
      $region34: #{_lambda_.14} parent=31 // pred_check_branch
        %343 = sbr.rel (%p341) target = $region36
      $region35: #{_lambda_.14} parent=31 // pred_region
        %s344 = smul.u32 4, %s14
      $region36: #{_lambda_.14} parent=31 // pred_fallthru
        _
    $region32: #{_lambda_.14} parent=5 // pred_fallthru
      _
    %p345 = scmp.le.s32.totalorder 2, %s9
    // Predicated region
    $region37: #{_lambda_.14} parent=5 // pred_check
      %p346 = pneg %p345
    $region38: #{_lambda_.14} parent=5 // pred_check_branch
      %348 = sbr.rel (%p346) target = $region40
    $region39: #{_lambda_.14} parent=5 // pred_region
      %s349 = ssub.s32 %s9, 2
      // Predicated region
      $region41: #{_lambda_.14} parent=39 // pred_check
        %p350 = pneg %p106
      $region42: #{_lambda_.14} parent=39 // pred_check_branch
        %352 = sbr.rel (%p350) target = $region44
      $region43: #{_lambda_.14} parent=39 // pred_region
        %s353 = smul.u32 4, %s15
        %p354 = scmp.lt.s32.totalorder %s353, 7
        %s355 = scalar_select %p354, %s353, 7
        %s356 = smul.addr %s355, 4
        %s357 = scalar_lea.vmem %s3, %s356
      $region44: #{_lambda_.14} parent=39 // pred_fallthru
        _
    $region40: #{_lambda_.14} parent=5 // pred_fallthru
      _
  $region6: #{_lambda_.14} parent=0 // loop_footer
    %s13 = sadd.s32 1, %s9
  $region7: #{_lambda_.14} parent=0 // loop_footer_branch
    %8 = sbr.rel target = $region3
  $region8: #{_lambda_.14} parent=0 // loop_exit
    _

// kernel: _lambda_.17
$region0: #{_lambda_.17}
  #allocation0 [shape = 'u32[]', space=smem, size = 0x4, offset = 0x4, fixed_abs, tag = 'smem constant byte address 0x4 - core index']
  #allocation1 [shape = 'u32[144,128]{1,0:T(1,128)}', space=vmem, size = 0x12000, scoped, tag = 'internal scratch']
  %s0 = inlined_call_operand.vmem [shape: bf16[64,128], index: 0, kind: input, shape index: {}]
  %s1 = inlined_call_operand.vmem [shape: bf16[128,384], index: 1, kind: input, shape index: {}]
  %s2 = inlined_call_operand.vmem [shape: f32[1,384], index: 2, kind: input, shape index: {}]
  %s3 = inlined_call_operand.vmem [shape: bf16[64,384], index: 3, kind: output, shape index: {}]
  %s4 = sld [smem:[#allocation0]]
  $region45: #{_lambda_.17} parent=0
    _
  %s6 = ssub.s32 1, %s4
  %s7 = scalar_select 0, %s6, %s4
  loop: start=0, step=1, limit=4
  $region2: #{_lambda_.17} parent=0 // loop_pre_header
    _
  $region3: #{_lambda_.17} parent=0 // loop_header
    %s9 = sphi 0, %s13
    %p10 = scmp.ge.s32.totalorder %s9, 4
    %s19 = sphi 0, %s21
    %s22 = sphi 0, %s19
    %s23 = sphi 0, %s22
    %s39 = sphi 0, %s23
    %s43 = sphi 0, %s43
    %s45 = sphi 0, %s43
    %s46 = sphi 0, %s45
    %s60 = sphi 0, %s46
    %s64 = sphi 0, %s64
    %s66 = sphi 0, %s64
    %s67 = sphi 0, %s66
    %s81 = sphi 0, %s67
    %s87 = sphi 0, %s89
    %s90 = sphi 0, %s87
    %s91 = sphi 0, %s90
    %s107 = sphi 0, %s91
  $region4: #{_lambda_.17} parent=0 // loop_header_branch
    %12 = sbr.rel (%p10) target = $region8
  $region5: #{_lambda_.17} parent=0 // loop_body
    %s14 = ssub.s32 %s9, 1
    %s15 = ssub.s32 %s9, 2
    %s16 = sadd.s32 %s9, 1
    %s17 = ssub.s32 %s9, %s16
    %p18 = scmp.eq.s32.totalorder %s17, 0
    %s20 = sadd.s32 %s19, 1
    %s21 = scalar_select %p18, %s19, %s20
    %p24 = pneg %p18
    %p25 = scmp.eq.s32.totalorder %s9, 1
    %p26 = por %p24, %p25
    %p27 = scmp.ne.s32.totalorder %s19, %s22
    %p28 = scmp.eq.s32.totalorder %s9, 0
    %p29 = por %p27, %p28
    %p30 = scmp.ne.s32.totalorder %s19, %s22
    %p31 = scmp.eq.s32.totalorder %s14, 1
    %p32 = por %p30, %p31
    %p33 = scmp.ne.s32.totalorder %s22, %s23
    %p34 = scmp.eq.s32.totalorder %s14, 0
    %p35 = por %p33, %p34
    %p36 = scmp.ne.s32.totalorder %s22, %s23
    %p37 = scmp.eq.s32.totalorder %s15, 1
    %p38 = por %p36, %p37
    %p40 = scmp.ne.s32.totalorder %s23, %s39
    %p41 = scmp.eq.s32.totalorder %s15, 0
    %p42 = por %p40, %p41
    %s44 = sadd.s32 %s43, 1
    %p47 = scmp.eq.s32.totalorder %s9, 1
    %p48 = scmp.ne.s32.totalorder %s43, %s45
    %p49 = scmp.eq.s32.totalorder %s9, 0
    %p50 = por %p48, %p49
    %p51 = scmp.ne.s32.totalorder %s43, %s45
    %p52 = scmp.eq.s32.totalorder %s14, 1
    %p53 = por %p51, %p52
    %p54 = scmp.ne.s32.totalorder %s45, %s46
    %p55 = scmp.eq.s32.totalorder %s14, 0
    %p56 = por %p54, %p55
    %p57 = scmp.ne.s32.totalorder %s45, %s46
    %p58 = scmp.eq.s32.totalorder %s15, 1
    %p59 = por %p57, %p58
    %p61 = scmp.ne.s32.totalorder %s46, %s60
    %p62 = scmp.eq.s32.totalorder %s15, 0
    %p63 = por %p61, %p62
    %s65 = sadd.s32 %s64, 1
    %p68 = scmp.eq.s32.totalorder %s9, 1
    %p69 = scmp.ne.s32.totalorder %s64, %s66
    %p70 = scmp.eq.s32.totalorder %s9, 0
    %p71 = por %p69, %p70
    %p72 = scmp.ne.s32.totalorder %s64, %s66
    %p73 = scmp.eq.s32.totalorder %s14, 1
    %p74 = por %p72, %p73
    %p75 = scmp.ne.s32.totalorder %s66, %s67
    %p76 = scmp.eq.s32.totalorder %s14, 0
    %p77 = por %p75, %p76
    %p78 = scmp.ne.s32.totalorder %s66, %s67
    %p79 = scmp.eq.s32.totalorder %s15, 1
    %p80 = por %p78, %p79
    %p82 = scmp.ne.s32.totalorder %s67, %s81
    %p83 = scmp.eq.s32.totalorder %s15, 0
    %p84 = por %p82, %p83
    %s85 = ssub.s32 %s9, %s16
    %p86 = scmp.eq.s32.totalorder %s85, 0
    %s88 = sadd.s32 %s87, 1
    %s89 = scalar_select %p86, %s87, %s88
    %p92 = pneg %p86
    %p93 = scmp.eq.s32.totalorder %s9, 1
    %p94 = por %p92, %p93
    %p95 = scmp.ne.s32.totalorder %s87, %s90
    %p96 = scmp.eq.s32.totalorder %s9, 0
    %p97 = por %p95, %p96
    %p98 = scmp.ne.s32.totalorder %s87, %s90
    %p99 = scmp.eq.s32.totalorder %s14, 1
    %p100 = por %p98, %p99
    %p101 = scmp.ne.s32.totalorder %s90, %s91
    %p102 = scmp.eq.s32.totalorder %s14, 0
    %p103 = por %p101, %p102
    %p104 = scmp.ne.s32.totalorder %s90, %s91
    %p105 = scmp.eq.s32.totalorder %s15, 1
    %p106 = por %p104, %p105
    %p108 = scmp.ne.s32.totalorder %s91, %s107
    %p109 = scmp.eq.s32.totalorder %s15, 0
    %p110 = por %p108, %p109
    %p111 = scmp.le.s32.totalorder 1, %s9
    %p112 = scmp.lt.s32.totalorder %s9, 3
    %p113 = pnand %p111, %p112
    %p114 = pneg %p113
    // Predicated region
    $region9: #{_lambda_.17} parent=5 // pred_check
      _
    $region10: #{_lambda_.17} parent=5 // pred_check_branch
      %116 = sbr.rel (%p113) target = $region12
    $region11: #{_lambda_.17} parent=5 // pred_region
      %s117 = ssub.s32 %s9, 1
      // Predicated region
      $region13: #{_lambda_.17} parent=11 // pred_check
        %p118 = pneg %p56
      $region14: #{_lambda_.17} parent=11 // pred_check_branch
        %120 = sbr.rel (%p118) target = $region16
      $region15: #{_lambda_.17} parent=11 // pred_region
        _
      $region16: #{_lambda_.17} parent=11 // pred_fallthru
        _
      // Predicated region
      $region17: #{_lambda_.17} parent=11 // pred_check
        %p121 = pneg %p77
      $region18: #{_lambda_.17} parent=11 // pred_check_branch
        %123 = sbr.rel (%p121) target = $region20
      $region19: #{_lambda_.17} parent=11 // pred_region
        _
      $region20: #{_lambda_.17} parent=11 // pred_fallthru
        _
    $region12: #{_lambda_.17} parent=5 // pred_fallthru
      _
    %p124 = scmp.lt.s32.totalorder %s9, 2
    // Predicated region
    $region21: #{_lambda_.17} parent=5 // pred_check
      %p125 = pneg %p124
    $region22: #{_lambda_.17} parent=5 // pred_check_branch
      %127 = sbr.rel (%p125) target = $region24
    $region23: #{_lambda_.17} parent=5 // pred_region
      // Predicated region
      $region25: #{_lambda_.17} parent=23 // pred_check
        %p128 = pneg %p29
      $region26: #{_lambda_.17} parent=23 // pred_check_branch
        %130 = sbr.rel (%p128) target = $region28
      $region27: #{_lambda_.17} parent=23 // pred_region
        %s131 = smul.u32 4, %s9
        %p132 = scmp.lt.s32.totalorder %s131, 7
        %s133 = scalar_select %p132, %s131, 7
        %s134 = smul.addr %s133, 4
        %s135 = scalar_lea.vmem %s0, %s134
        %s136 = smul.u32 4, %s9
      $region28: #{_lambda_.17} parent=23 // pred_fallthru
        _
    $region24: #{_lambda_.17} parent=5 // pred_fallthru
      _
    %p137 = scmp.le.s32.totalorder 1, %s9
    %p138 = scmp.lt.s32.totalorder %s9, 3
    %p139 = pnand %p137, %p138
    %p140 = pneg %p139
    // Predicated region
    $region29: #{_lambda_.17} parent=5 // pred_check
      _
    $region30: #{_lambda_.17} parent=5 // pred_check_branch
      %142 = sbr.rel (%p139) target = $region32
    $region31: #{_lambda_.17} parent=5 // pred_region
      %s143 = ssub.s32 %s9, 1
      %s144 = smul.u32 4, %s14
      %p145 = scmp.lt.s32.totalorder %s144, 7
      %s146 = scalar_select %p145, %s144, 7
      %s147 = smul.addr %s146, 4
      %s148 = scalar_lea.vmem %s0, %s147
      %p149 = pneg %p35
      %p150 = pneg %p32
      %p151 = pneg %p56
      %p152 = pneg %p53
      %p153 = pneg %p77
      %p154 = pneg %p74
      %p155 = pneg %p103
      %p156 = pneg %p100
      %s157 = smul.u32 4, %s14
      %p158 = scmp.lt.s32.totalorder %s157, 7
      %s159 = scalar_select %p158, %s157, 7
      %s160 = smul.addr %s159, 3
      %s161 = smul.addr %s160, 4
      %s162 = scalar_lea.vmem %s3, %s161
      %s163 = smul.u32 4, %s14
      %p164 = scmp.lt.s32.totalorder %s163, 7
      %s165 = scalar_select %p164, %s163, 7
      %s166 = smul.addr %s165, 4
      %s167 = scalar_lea.vmem %s0, %s166
      %s168 = smul.u32 4, %s14
      %s169 = smul.u32 4, %s14
      %p170 = scmp.lt.s32.totalorder %s169, 7
      %s171 = scalar_select %p170, %s169, 7
      %s172 = smul.addr %s171, 3
      %s173 = smul.addr %s172, 4
      %s174 = scalar_lea.vmem %s3, %s173
      %s175 = smul.u32 4, %s14
      %v177 = vld [vmem:[%s167] sm:$0xf]
      %v178 = vld [vmem:[%s167 + $0x4] sm:$0xf]
      %v179 = vld [vmem:[%s167 + $0x8] sm:$0xf]
      %v180 = vld [vmem:[%s167 + $0xc] sm:$0xf]
      %v181 = vld [vmem:[%s1] sm:$0xff]
      %v182 = vld [vmem:[%s1 + $0x8] sm:$0xf]
      %v183 = vld [vmem:[%s1 + $0xc] sm:$0xff]
      %v184 = vld [vmem:[%s1 + $0x14] sm:$0xf]
      %v185 = vld [vmem:[%s1 + $0x18] sm:$0xff]
      %v186 = vld [vmem:[%s1 + $0x20] sm:$0xf]
      %v187 = vld [vmem:[%s1 + $0x24] sm:$0xff]
      %v188 = vld [vmem:[%s1 + $0x2c] sm:$0xf]
      %v189 = vld [vmem:[%s1 + $0x30] sm:$0xff]
      %v190 = vld [vmem:[%s1 + $0x38] sm:$0xf]
      %v191 = vld [vmem:[%s1 + $0x3c] sm:$0xff]
      %v192 = vld [vmem:[%s1 + $0x44] sm:$0xf]
      %v193 = vld [vmem:[%s1 + $0x48] sm:$0xff]
      %v194 = vld [vmem:[%s1 + $0x50] sm:$0xf]
      %v195 = vld [vmem:[%s1 + $0x54] sm:$0xff]
      %v196 = vld [vmem:[%s1 + $0x5c] sm:$0xf]
      %v197 = vld [vmem:[%s1 + $0x60] sm:$0xff]
      %v198 = vld [vmem:[%s1 + $0x68] sm:$0xf]
      %v199 = vld [vmem:[%s1 + $0x6c] sm:$0xff]
      %v200 = vld [vmem:[%s1 + $0x74] sm:$0xf]
      %v201 = vld [vmem:[%s1 + $0x78] sm:$0xff]
      %v202 = vld [vmem:[%s1 + $0x80] sm:$0xf]
      %v203 = vld [vmem:[%s1 + $0x84] sm:$0xff]
      %v204 = vld [vmem:[%s1 + $0x8c] sm:$0xf]
      %v205 = vld [vmem:[%s1 + $0x90] sm:$0xff]
      %v206 = vld [vmem:[%s1 + $0x98] sm:$0xf]
      %v207 = vld [vmem:[%s1 + $0x9c] sm:$0xff]
      %v208 = vld [vmem:[%s1 + $0xa4] sm:$0xf]
      %v209 = vld [vmem:[%s1 + $0xa8] sm:$0xff]
      %v210 = vld [vmem:[%s1 + $0xb0] sm:$0xf]
      %v211 = vld [vmem:[%s1 + $0xb4] sm:$0xff]
      %v212 = vld [vmem:[%s1 + $0xbc] sm:$0xf]
      %v213 = vld [vmem:[%s2] sm:$0x7]
      %v215 = vlaneseq
      %v216 = vshrl.u32 %v215, 7
      %v217 = vsub.s32 0, %v216
      %v218 = vrot.slane %v213, %v217
      %v219 = vlaneseq
      %v220 = vshrl.u32 %v219, 7
      %v221 = vsub.s32 1, %v220
      %v222 = vrot.slane %v213, %v221
      %v223 = vlaneseq
      %v224 = vshrl.u32 %v223, 7
      %v225 = vsub.s32 2, %v224
      %v226 = vrot.slane %v213, %v225
      %v234 = vunpack.c.l.b16 %v177
      %v235 = vunpack.c.l.b16 %v178
      %v236 = vunpack.c.l.b16 %v179
      %v237 = vunpack.c.l.b16 %v180
      %v238 = vpack.c.b16 %v235, %v234
      %v239 = vpack.c.b16 %v237, %v236
      %v274 = vunpack.c.l.b16 %v181
      %v275 = vunpack.c.h.b16 %v181
      %v276 = vunpack.c.l.b16 %v182
      %v277 = vunpack.c.l.b16 %v183
      %v278 = vunpack.c.h.b16 %v183
      %v279 = vunpack.c.l.b16 %v184
      %v280 = vunpack.c.l.b16 %v185
      %v281 = vunpack.c.h.b16 %v185
      %v282 = vunpack.c.l.b16 %v186
      %v283 = vunpack.c.l.b16 %v187
      %v284 = vunpack.c.h.b16 %v187
      %v285 = vunpack.c.l.b16 %v188
      %v286 = vunpack.c.l.b16 %v189
      %v287 = vunpack.c.h.b16 %v189
      %v288 = vunpack.c.l.b16 %v190
      %v289 = vunpack.c.l.b16 %v191
      %v290 = vunpack.c.h.b16 %v191
      %v291 = vunpack.c.l.b16 %v192
      %v292 = vunpack.c.l.b16 %v193
      %v293 = vunpack.c.h.b16 %v193
      %v294 = vunpack.c.l.b16 %v194
      %v295 = vunpack.c.l.b16 %v195
      %v296 = vunpack.c.h.b16 %v195
      %v297 = vunpack.c.l.b16 %v196
      %v298 = vunpack.c.l.b16 %v197
      %v299 = vunpack.c.h.b16 %v197
      %v300 = vunpack.c.l.b16 %v198
      %v301 = vunpack.c.l.b16 %v199
      %v302 = vunpack.c.h.b16 %v199
      %v303 = vunpack.c.l.b16 %v200
      %v304 = vunpack.c.l.b16 %v201
      %v305 = vunpack.c.h.b16 %v201
      %v306 = vunpack.c.l.b16 %v202
      %v307 = vunpack.c.l.b16 %v203
      %v308 = vunpack.c.h.b16 %v203
      %v309 = vunpack.c.l.b16 %v204
      %v310 = vunpack.c.l.b16 %v205
      %v311 = vunpack.c.h.b16 %v205
      %v312 = vunpack.c.l.b16 %v206
      %v313 = vunpack.c.l.b16 %v207
      %v314 = vunpack.c.h.b16 %v207
      %v315 = vunpack.c.l.b16 %v208
      %v316 = vunpack.c.l.b16 %v209
      %v317 = vunpack.c.h.b16 %v209
      %v318 = vunpack.c.l.b16 %v210
      %v319 = vunpack.c.l.b16 %v211
      %v320 = vunpack.c.h.b16 %v211
      %v321 = vunpack.c.l.b16 %v212
      %v322 = vpack.c.b16 %v277, %v274
      %v323 = vpack.c.b16 %v278, %v275
      %v324 = vpack.c.b16 %v279, %v276
      %v325 = vpack.c.b16 %v283, %v280
      %v326 = vpack.c.b16 %v284, %v281
      %v327 = vpack.c.b16 %v285, %v282
      %v328 = vpack.c.b16 %v289, %v286
      %v329 = vpack.c.b16 %v290, %v287
      %v330 = vpack.c.b16 %v291, %v288
      %v331 = vpack.c.b16 %v295, %v292
      %v332 = vpack.c.b16 %v296, %v293
      %v333 = vpack.c.b16 %v297, %v294
      %v334 = vpack.c.b16 %v301, %v298
      %v335 = vpack.c.b16 %v302, %v299
      %v336 = vpack.c.b16 %v303, %v300
      %v337 = vpack.c.b16 %v307, %v304
      %v338 = vpack.c.b16 %v308, %v305
      %v339 = vpack.c.b16 %v309, %v306
      %v340 = vpack.c.b16 %v313, %v310
      %v341 = vpack.c.b16 %v314, %v311
      %v342 = vpack.c.b16 %v315, %v312
      %v343 = vpack.c.b16 %v319, %v316
      %v344 = vpack.c.b16 %v320, %v317
      %v345 = vpack.c.b16 %v321, %v318
      %370 = vmatprep.subr.bf16.mxu0 %v323
      %371 = vmatpush1.bf16.msra.mxu0 %v322
      %372 = vmatprep.subr.bf16.mxu0 %v326
      %373 = vmatpush1.bf16.msra.mxu0 %v325
      %374 = vmatprep.subr.bf16.mxu0 %v329
      %375 = vmatpush1.bf16.msra.mxu0 %v328
      %376 = vmatprep.subr.bf16.mxu0 %v332
      %377 = vmatpush1.bf16.msra.mxu0 %v331
      %378 = vmatprep.subr.bf16.mxu0 %v335
      %379 = vmatpush1.bf16.msra.mxu0 %v334
      %380 = vmatprep.subr.bf16.mxu0 %v338
      %381 = vmatpush1.bf16.msra.mxu0 %v337
      %382 = vmatprep.subr.bf16.mxu0 %v341
      %383 = vmatpush1.bf16.msra.mxu0 %v340
      %384 = vmatprep.subr.bf16.mxu0 %v344
      %385 = vmatpush1.bf16.msra.mxu0 %v343
      %386 = vmatprep.subr.bf16.mxu0 0
      %387 = vmatpush1.bf16.msra.mxu0 0
      %388 = vmatprep.subr.bf16.mxu0 0
      %389 = vmatpush1.bf16.msra.mxu0 0
      %390 = vmatprep.subr.bf16.mxu0 0
      %391 = vmatpush1.bf16.msra.mxu0 0
      %392 = vmatprep.subr.bf16.mxu0 0
      %393 = vmatpush1.bf16.msra.mxu0 0
      %394 = vmatprep.subr.bf16.mxu0 0
      %395 = vmatpush1.bf16.msra.mxu0 0
      %396 = vmatprep.subr.bf16.mxu0 0
      %397 = vmatpush1.bf16.msra.mxu0 0
      %398 = vmatprep.subr.bf16.mxu0 0
      %399 = vmatpush1.bf16.msra.mxu0 0
      %400 = vmatprep.subr.bf16.mxu0 0
      %401 = vmatpush1.bf16.msra.mxu0 0
      %402 = vmatprep.mubr.bf16.mxu0 0
      %403 = vmatmul.mubr.bf16.gmra.mrb[0].mxu0 %v238
      %v404 = vpop.f32.mrb[0].mxu0
      %v405 = vadd.f32 %v218, %v404
      %v406 = vpop.f32.mrb[0].mxu0
      %v407 = vadd.f32 %v222, %v406
      %v408 = vpop.f32.mrb[0].mxu0
      %v409 = vadd.f32 %v218, %v408
      %v410 = vpop.f32.mrb[0].mxu0
      %v411 = vadd.f32 %v222, %v410
      %412 = vmatprep.mubr.bf16.mxu0 0
      %413 = vmatmul.mubr.bf16.gmra.mrb[0].mxu0 %v239
      %v414 = vpop.f32.mrb[0].mxu0
      %v415 = vadd.f32 %v218, %v414
      %v416 = vpop.f32.mrb[0].mxu0
      %v417 = vadd.f32 %v222, %v416
      %v418 = vpop.f32.mrb[0].mxu0
      %v419 = vadd.f32 %v218, %v418
      %v420 = vpop.f32.mrb[0].mxu0
      %v421 = vadd.f32 %v222, %v420
      %422 = vdwg.mxu0
      %423 = vmatprep.subr.bf16.mxu0 0
      %424 = vmatpush1.bf16.msra.mxu0 %v324
      %425 = vmatprep.subr.bf16.mxu0 0
      %426 = vmatpush1.bf16.msra.mxu0 %v327
      %427 = vmatprep.subr.bf16.mxu0 0
      %428 = vmatpush1.bf16.msra.mxu0 %v330
      %429 = vmatprep.subr.bf16.mxu0 0
      %430 = vmatpush1.bf16.msra.mxu0 %v333
      %431 = vmatprep.subr.bf16.mxu0 0
      %432 = vmatpush1.bf16.msra.mxu0 %v336
      %433 = vmatprep.subr.bf16.mxu0 0
      %434 = vmatpush1.bf16.msra.mxu0 %v339
      %435 = vmatprep.subr.bf16.mxu0 0
      %436 = vmatpush1.bf16.msra.mxu0 %v342
      %437 = vmatprep.subr.bf16.mxu0 0
      %438 = vmatpush1.bf16.msra.mxu0 %v345
      %439 = vmatprep.subr.bf16.mxu0 0
      %440 = vmatpush1.bf16.msra.mxu0 0
      %441 = vmatprep.subr.bf16.mxu0 0
      %442 = vmatpush1.bf16.msra.mxu0 0
      %443 = vmatprep.subr.bf16.mxu0 0
      %444 = vmatpush1.bf16.msra.mxu0 0
      %445 = vmatprep.subr.bf16.mxu0 0
      %446 = vmatpush1.bf16.msra.mxu0 0
      %447 = vmatprep.subr.bf16.mxu0 0
      %448 = vmatpush1.bf16.msra.mxu0 0
      %449 = vmatprep.subr.bf16.mxu0 0
      %450 = vmatpush1.bf16.msra.mxu0 0
      %451 = vmatprep.subr.bf16.mxu0 0
      %452 = vmatpush1.bf16.msra.mxu0 0
      %453 = vmatprep.subr.bf16.mxu0 0
      %454 = vmatpush1.bf16.msra.mxu0 0
      %455 = vmatprep.mubr.bf16.mxu0 0
      %456 = vmatmul.mubr.bf16.gmra.mrb[0].mxu0 %v238
      %v457 = vpop.f32.mrb[0].mxu0
      %v458 = vadd.f32 %v226, %v457
      %v459 = vpop.f32.mrb[0].mxu0
      %v460 = vpop.f32.mrb[0].mxu0
      %v461 = vadd.f32 %v226, %v460
      %v462 = vpop.f32.mrb[0].mxu0
      %463 = vmatprep.mubr.bf16.mxu0 0
      %464 = vmatmul.mubr.bf16.gmra.mrb[0].mxu0 %v239
      %v465 = vpop.f32.mrb[0].mxu0
      %v466 = vadd.f32 %v226, %v465
      %v467 = vpop.f32.mrb[0].mxu0
      %v468 = vpop.f32.mrb[0].mxu0
      %v469 = vadd.f32 %v226, %v468
      %v470 = vpop.f32.mrb[0].mxu0
      %471 = vdwg.mxu0
      %v472 = vlaneseq
      %v473 = vand.u32 %v472, 127
      %v474 = vadd.s32 %v473, 128
      %v475 = vadd.s32 %v473, 256
      %vm476 = vcmp.lt.s32.totalorder %v473, 128
      %vm477 = vcmp.lt.s32.totalorder %v474, 128
      %vm478 = vcmp.lt.s32.totalorder %v475, 128
      %v479 = vmax.f32 %v405, 0.0
      %v480 = vmax.f32 %v407, 0.0
      %v481 = vmax.f32 %v458, 0.0
      %v482 = vmax.f32 %v409, 0.0
      %v483 = vmax.f32 %v411, 0.0
      %v484 = vmax.f32 %v461, 0.0
      %v485 = vmax.f32 %v415, 0.0
      %v486 = vmax.f32 %v417, 0.0
      %v487 = vmax.f32 %v466, 0.0
      %v488 = vmax.f32 %v419, 0.0
      %v489 = vmax.f32 %v421, 0.0
      %v490 = vmax.f32 %v469, 0.0
      %v491 = vsel %vm476, %v479, %v405
      %v492 = vsel %vm477, %v480, %v407
      %v493 = vsel %vm478, %v481, %v458
      %v494 = vsel %vm476, %v482, %v409
      %v495 = vsel %vm477, %v483, %v411
      %v496 = vsel %vm478, %v484, %v461
      %v497 = vsel %vm476, %v485, %v415
      %v498 = vsel %vm477, %v486, %v417
      %v499 = vsel %vm478, %v487, %v466
      %v500 = vsel %vm476, %v488, %v419
      %v501 = vsel %vm477, %v489, %v421
      %v502 = vsel %vm478, %v490, %v469
      %v503 = vpack.c.bf16 %v494, %v491
      %v504 = vpack.c.bf16 %v495, %v492
      %v505 = vpack.c.bf16 %v496, %v493
      %v506 = vpack.c.bf16 %v500, %v497
      %v507 = vpack.c.bf16 %v501, %v498
      %v508 = vpack.c.bf16 %v502, %v499
      %v515 = vunpack.c.l.b16 %v503
      %v516 = vunpack.c.l.b16 %v504
      %v517 = vunpack.c.l.b16 %v505
      %v518 = vunpack.c.h.b16 %v503
      %v519 = vunpack.c.h.b16 %v504
      %v520 = vunpack.c.h.b16 %v505
      %v521 = vunpack.c.l.b16 %v506
      %v522 = vunpack.c.l.b16 %v507
      %v523 = vunpack.c.l.b16 %v508
      %v524 = vunpack.c.h.b16 %v506
      %v525 = vunpack.c.h.b16 %v507
      %v526 = vunpack.c.h.b16 %v508
      %v527 = vpack.c.b16 %v516, %v515
      %v528 = vpack.c.b16 %v517, %v517
      %v529 = vpack.c.b16 %v519, %v518
      %v530 = vpack.c.b16 %v520, %v520
      %v531 = vpack.c.b16 %v522, %v521
      %v532 = vpack.c.b16 %v523, %v523
      %v533 = vpack.c.b16 %v525, %v524
      %v534 = vpack.c.b16 %v526, %v526
      %543 = vst [vmem:[%s174] sm:$0xff] %v527
      %544 = vst [vmem:[%s174 + $0x8] sm:$0xf] %v528
      %545 = vst [vmem:[%s174 + $0xc] sm:$0xff] %v529
      %546 = vst [vmem:[%s174 + $0x14] sm:$0xf] %v530
      %547 = vst [vmem:[%s174 + $0x18] sm:$0xff] %v531
      %548 = vst [vmem:[%s174 + $0x20] sm:$0xf] %v532
      %549 = vst [vmem:[%s174 + $0x24] sm:$0xff] %v533
      %550 = vst [vmem:[%s174 + $0x2c] sm:$0xf] %v534
      %s551 = smul.u32 4, %s14
      %p552 = scmp.lt.s32.totalorder %s551, 7
      %s553 = scalar_select %p552, %s551, 7
      %s554 = smul.addr %s553, 3
      %s555 = smul.addr %s554, 4
      %s556 = scalar_lea.vmem %s3, %s555
      // Predicated region
      $region33: #{_lambda_.17} parent=31 // pred_check
        %p557 = pneg %p100
      $region34: #{_lambda_.17} parent=31 // pred_check_branch
        %559 = sbr.rel (%p557) target = $region36
      $region35: #{_lambda_.17} parent=31 // pred_region
        %s560 = smul.u32 4, %s14
      $region36: #{_lambda_.17} parent=31 // pred_fallthru
        _
    $region32: #{_lambda_.17} parent=5 // pred_fallthru
      _
    %p561 = scmp.le.s32.totalorder 2, %s9
    // Predicated region
    $region37: #{_lambda_.17} parent=5 // pred_check
      %p562 = pneg %p561
    $region38: #{_lambda_.17} parent=5 // pred_check_branch
      %564 = sbr.rel (%p562) target = $region40
    $region39: #{_lambda_.17} parent=5 // pred_region
      %s565 = ssub.s32 %s9, 2
      // Predicated region
      $region41: #{_lambda_.17} parent=39 // pred_check
        %p566 = pneg %p106
      $region42: #{_lambda_.17} parent=39 // pred_check_branch
        %568 = sbr.rel (%p566) target = $region44
      $region43: #{_lambda_.17} parent=39 // pred_region
        %s569 = smul.u32 4, %s15
        %p570 = scmp.lt.s32.totalorder %s569, 7
        %s571 = scalar_select %p570, %s569, 7
        %s572 = smul.addr %s571, 3
        %s573 = smul.addr %s572, 4
        %s574 = scalar_lea.vmem %s3, %s573
      $region44: #{_lambda_.17} parent=39 // pred_fallthru
        _
    $region40: #{_lambda_.17} parent=5 // pred_fallthru
      _
  $region6: #{_lambda_.17} parent=0 // loop_footer
    %s13 = sadd.s32 1, %s9
  $region7: #{_lambda_.17} parent=0 // loop_footer_branch
    %8 = sbr.rel target = $region3
  $region8: #{_lambda_.17} parent=0 // loop_exit
    _

// kernel: _lambda_.18
$region0: #{_lambda_.18}
  #allocation0 [shape = 'u32[]', space=smem, size = 0x4, offset = 0x4, fixed_abs, tag = 'smem constant byte address 0x4 - core index']
  #allocation1 [shape = 'u32[144,128]{1,0:T(1,128)}', space=vmem, size = 0x12000, scoped, tag = 'internal scratch']
  %s0 = inlined_call_operand.vmem [shape: bf16[64,3456], index: 0, kind: input, shape index: {}]
  %s1 = inlined_call_operand.vmem [shape: bf16[3456,128], index: 1, kind: input, shape index: {}]
  %s2 = inlined_call_operand.vmem [shape: f32[1,128], index: 2, kind: input, shape index: {}]
  %s3 = inlined_call_operand.vmem [shape: bf16[64,128], index: 3, kind: output, shape index: {}]
  %s4 = sld [smem:[#allocation0]]
  $region45: #{_lambda_.18} parent=0
    _
  %s6 = ssub.s32 1, %s4
  %s7 = scalar_select 0, %s6, %s4
  loop: start=0, step=1, limit=4
  $region2: #{_lambda_.18} parent=0 // loop_pre_header
    _
  $region3: #{_lambda_.18} parent=0 // loop_header
    %s9 = sphi 0, %s13
    %p10 = scmp.ge.s32.totalorder %s9, 4
    %s19 = sphi 0, %s21
    %s22 = sphi 0, %s19
    %s23 = sphi 0, %s22
    %s39 = sphi 0, %s23
    %s43 = sphi 0, %s43
    %s45 = sphi 0, %s43
    %s46 = sphi 0, %s45
    %s60 = sphi 0, %s46
    %s64 = sphi 0, %s64
    %s66 = sphi 0, %s64
    %s67 = sphi 0, %s66
    %s81 = sphi 0, %s67
    %s87 = sphi 0, %s89
    %s90 = sphi 0, %s87
    %s91 = sphi 0, %s90
    %s107 = sphi 0, %s91
  $region4: #{_lambda_.18} parent=0 // loop_header_branch
    %12 = sbr.rel (%p10) target = $region8
  $region5: #{_lambda_.18} parent=0 // loop_body
    %s14 = ssub.s32 %s9, 1
    %s15 = ssub.s32 %s9, 2
    %s16 = sadd.s32 %s9, 1
    %s17 = ssub.s32 %s9, %s16
    %p18 = scmp.eq.s32.totalorder %s17, 0
    %s20 = sadd.s32 %s19, 1
    %s21 = scalar_select %p18, %s19, %s20
    %p24 = pneg %p18
    %p25 = scmp.eq.s32.totalorder %s9, 1
    %p26 = por %p24, %p25
    %p27 = scmp.ne.s32.totalorder %s19, %s22
    %p28 = scmp.eq.s32.totalorder %s9, 0
    %p29 = por %p27, %p28
    %p30 = scmp.ne.s32.totalorder %s19, %s22
    %p31 = scmp.eq.s32.totalorder %s14, 1
    %p32 = por %p30, %p31
    %p33 = scmp.ne.s32.totalorder %s22, %s23
    %p34 = scmp.eq.s32.totalorder %s14, 0
    %p35 = por %p33, %p34
    %p36 = scmp.ne.s32.totalorder %s22, %s23
    %p37 = scmp.eq.s32.totalorder %s15, 1
    %p38 = por %p36, %p37
    %p40 = scmp.ne.s32.totalorder %s23, %s39
    %p41 = scmp.eq.s32.totalorder %s15, 0
    %p42 = por %p40, %p41
    %s44 = sadd.s32 %s43, 1
    %p47 = scmp.eq.s32.totalorder %s9, 1
    %p48 = scmp.ne.s32.totalorder %s43, %s45
    %p49 = scmp.eq.s32.totalorder %s9, 0
    %p50 = por %p48, %p49
    %p51 = scmp.ne.s32.totalorder %s43, %s45
    %p52 = scmp.eq.s32.totalorder %s14, 1
    %p53 = por %p51, %p52
    %p54 = scmp.ne.s32.totalorder %s45, %s46
    %p55 = scmp.eq.s32.totalorder %s14, 0
    %p56 = por %p54, %p55
    %p57 = scmp.ne.s32.totalorder %s45, %s46
    %p58 = scmp.eq.s32.totalorder %s15, 1
    %p59 = por %p57, %p58
    %p61 = scmp.ne.s32.totalorder %s46, %s60
    %p62 = scmp.eq.s32.totalorder %s15, 0
    %p63 = por %p61, %p62
    %s65 = sadd.s32 %s64, 1
    %p68 = scmp.eq.s32.totalorder %s9, 1
    %p69 = scmp.ne.s32.totalorder %s64, %s66
    %p70 = scmp.eq.s32.totalorder %s9, 0
    %p71 = por %p69, %p70
    %p72 = scmp.ne.s32.totalorder %s64, %s66
    %p73 = scmp.eq.s32.totalorder %s14, 1
    %p74 = por %p72, %p73
    %p75 = scmp.ne.s32.totalorder %s66, %s67
    %p76 = scmp.eq.s32.totalorder %s14, 0
    %p77 = por %p75, %p76
    %p78 = scmp.ne.s32.totalorder %s66, %s67
    %p79 = scmp.eq.s32.totalorder %s15, 1
    %p80 = por %p78, %p79
    %p82 = scmp.ne.s32.totalorder %s67, %s81
    %p83 = scmp.eq.s32.totalorder %s15, 0
    %p84 = por %p82, %p83
    %s85 = ssub.s32 %s9, %s16
    %p86 = scmp.eq.s32.totalorder %s85, 0
    %s88 = sadd.s32 %s87, 1
    %s89 = scalar_select %p86, %s87, %s88
    %p92 = pneg %p86
    %p93 = scmp.eq.s32.totalorder %s9, 1
    %p94 = por %p92, %p93
    %p95 = scmp.ne.s32.totalorder %s87, %s90
    %p96 = scmp.eq.s32.totalorder %s9, 0
    %p97 = por %p95, %p96
    %p98 = scmp.ne.s32.totalorder %s87, %s90
    %p99 = scmp.eq.s32.totalorder %s14, 1
    %p100 = por %p98, %p99
    %p101 = scmp.ne.s32.totalorder %s90, %s91
    %p102 = scmp.eq.s32.totalorder %s14, 0
    %p103 = por %p101, %p102
    %p104 = scmp.ne.s32.totalorder %s90, %s91
    %p105 = scmp.eq.s32.totalorder %s15, 1
    %p106 = por %p104, %p105
    %p108 = scmp.ne.s32.totalorder %s91, %s107
    %p109 = scmp.eq.s32.totalorder %s15, 0
    %p110 = por %p108, %p109
    %p111 = scmp.le.s32.totalorder 1, %s9
    %p112 = scmp.lt.s32.totalorder %s9, 3
    %p113 = pnand %p111, %p112
    %p114 = pneg %p113
    // Predicated region
    $region9: #{_lambda_.18} parent=5 // pred_check
      _
    $region10: #{_lambda_.18} parent=5 // pred_check_branch
      %116 = sbr.rel (%p113) target = $region12
    $region11: #{_lambda_.18} parent=5 // pred_region
      %s117 = ssub.s32 %s9, 1
      // Predicated region
      $region13: #{_lambda_.18} parent=11 // pred_check
        %p118 = pneg %p56
      $region14: #{_lambda_.18} parent=11 // pred_check_branch
        %120 = sbr.rel (%p118) target = $region16
      $region15: #{_lambda_.18} parent=11 // pred_region
        _
      $region16: #{_lambda_.18} parent=11 // pred_fallthru
        _
      // Predicated region
      $region17: #{_lambda_.18} parent=11 // pred_check
        %p121 = pneg %p77
      $region18: #{_lambda_.18} parent=11 // pred_check_branch
        %123 = sbr.rel (%p121) target = $region20
      $region19: #{_lambda_.18} parent=11 // pred_region
        _
      $region20: #{_lambda_.18} parent=11 // pred_fallthru
        _
    $region12: #{_lambda_.18} parent=5 // pred_fallthru
      _
    %p124 = scmp.lt.s32.totalorder %s9, 2
    // Predicated region
    $region21: #{_lambda_.18} parent=5 // pred_check
      %p125 = pneg %p124
    $region22: #{_lambda_.18} parent=5 // pred_check_branch
      %127 = sbr.rel (%p125) target = $region24
    $region23: #{_lambda_.18} parent=5 // pred_region
      // Predicated region
      $region25: #{_lambda_.18} parent=23 // pred_check
        %p128 = pneg %p29
      $region26: #{_lambda_.18} parent=23 // pred_check_branch
        %130 = sbr.rel (%p128) target = $region28
      $region27: #{_lambda_.18} parent=23 // pred_region
        %s131 = smul.u32 4, %s9
        %p132 = scmp.lt.s32.totalorder %s131, 7
        %s133 = scalar_select %p132, %s131, 7
        %s134 = smul.addr %s133, 27
        %s135 = smul.addr %s134, 4
        %s136 = scalar_lea.vmem %s0, %s135
        %s137 = smul.u32 4, %s9
      $region28: #{_lambda_.18} parent=23 // pred_fallthru
        _
    $region24: #{_lambda_.18} parent=5 // pred_fallthru
      _
    %p138 = scmp.le.s32.totalorder 1, %s9
    %p139 = scmp.lt.s32.totalorder %s9, 3
    %p140 = pnand %p138, %p139
    %p141 = pneg %p140
    // Predicated region
    $region29: #{_lambda_.18} parent=5 // pred_check
      _
    $region30: #{_lambda_.18} parent=5 // pred_check_branch
      %143 = sbr.rel (%p140) target = $region32
    $region31: #{_lambda_.18} parent=5 // pred_region
      %s144 = ssub.s32 %s9, 1
      %s145 = smul.u32 4, %s14
      %p146 = scmp.lt.s32.totalorder %s145, 7
      %s147 = scalar_select %p146, %s145, 7
      %s148 = smul.addr %s147, 27
      %s149 = smul.addr %s148, 4
      %s150 = scalar_lea.vmem %s0, %s149
      %p151 = pneg %p35
      %p152 = pneg %p32
      %p153 = pneg %p56
      %p154 = pneg %p53
      %p155 = pneg %p77
      %p156 = pneg %p74
      %p157 = pneg %p103
      %p158 = pneg %p100
      %s159 = smul.u32 4, %s14
      %p160 = scmp.lt.s32.totalorder %s159, 7
      %s161 = scalar_select %p160, %s159, 7
      %s162 = smul.addr %s161, 4
      %s163 = scalar_lea.vmem %s3, %s162
      %s164 = smul.u32 4, %s14
      %p165 = scmp.lt.s32.totalorder %s164, 7
      %s166 = scalar_select %p165, %s164, 7
      %s167 = smul.addr %s166, 27
      %s168 = smul.addr %s167, 4
      %s169 = scalar_lea.vmem %s0, %s168
      %s170 = smul.u32 4, %s14
      %s171 = smul.u32 4, %s14
      %p172 = scmp.lt.s32.totalorder %s171, 7
      %s173 = scalar_select %p172, %s171, 7
      %s174 = smul.addr %s173, 4
      %s175 = scalar_lea.vmem %s3, %s174
      %s176 = smul.u32 4, %s14
      %v178 = vld [vmem:[%s169] sm:$0xff]
      %v179 = vld [vmem:[%s169 + $0x8] sm:$0xff]
      %v180 = vld [vmem:[%s169 + $0x10] sm:$0xff]
      %v181 = vld [vmem:[%s169 + $0x18] sm:$0xff]
      %v182 = vld [vmem:[%s169 + $0x20] sm:$0xff]
      %v183 = vld [vmem:[%s169 + $0x28] sm:$0xff]
      %v184 = vld [vmem:[%s169 + $0x30] sm:$0xff]
      %v185 = vld [vmem:[%s169 + $0x38] sm:$0xff]
      %v186 = vld [vmem:[%s169 + $0x40] sm:$0xff]
      %v187 = vld [vmem:[%s169 + $0x48] sm:$0xff]
      %v188 = vld [vmem:[%s169 + $0x50] sm:$0xff]
      %v189 = vld [vmem:[%s169 + $0x58] sm:$0xff]
      %v190 = vld [vmem:[%s169 + $0x60] sm:$0xff]
      %v191 = vld [vmem:[%s169 + $0x68] sm:$0xf]
      %v192 = vld [vmem:[%s169 + $0x6c] sm:$0xff]
      %v193 = vld [vmem:[%s169 + $0x74] sm:$0xff]
      %v194 = vld [vmem:[%s169 + $0x7c] sm:$0xff]
      %v195 = vld [vmem:[%s169 + $0x84] sm:$0xff]
      %v196 = vld [vmem:[%s169 + $0x8c] sm:$0xff]
      %v197 = vld [vmem:[%s169 + $0x94] sm:$0xff]
      %v198 = vld [vmem:[%s169 + $0x9c] sm:$0xff]
      %v199 = vld [vmem:[%s169 + $0xa4] sm:$0xff]
      %v200 = vld [vmem:[%s169 + $0xac] sm:$0xff]
      %v201 = vld [vmem:[%s169 + $0xb4] sm:$0xff]
      %v202 = vld [vmem:[%s169 + $0xbc] sm:$0xff]
      %v203 = vld [vmem:[%s169 + $0xc4] sm:$0xff]
      %v204 = vld [vmem:[%s169 + $0xcc] sm:$0xff]
      %v205 = vld [vmem:[%s169 + $0xd4] sm:$0xf]
      %v206 = vld [vmem:[%s169 + $0xd8] sm:$0xff]
      %v207 = vld [vmem:[%s169 + $0xe0] sm:$0xff]
      %v208 = vld [vmem:[%s169 + $0xe8] sm:$0xff]
      %v209 = vld [vmem:[%s169 + $0xf0] sm:$0xff]
      %v210 = vld [vmem:[%s169 + $0xf8] sm:$0xff]
      %v211 = vld [vmem:[%s169 + $0x100] sm:$0xff]
      %v212 = vld [vmem:[%s169 + $0x108] sm:$0xff]
      %v213 = vld [vmem:[%s169 + $0x110] sm:$0xff]
      %v214 = vld [vmem:[%s169 + $0x118] sm:$0xff]
      %v215 = vld [vmem:[%s169 + $0x120] sm:$0xff]
      %v216 = vld [vmem:[%s169 + $0x128] sm:$0xff]
      %v217 = vld [vmem:[%s169 + $0x130] sm:$0xff]
      %v218 = vld [vmem:[%s169 + $0x138] sm:$0xff]
      %v219 = vld [vmem:[%s169 + $0x140] sm:$0xf]
      %v220 = vld [vmem:[%s169 + $0x144] sm:$0xff]
      %v221 = vld [vmem:[%s169 + $0x14c] sm:$0xff]
      %v222 = vld [vmem:[%s169 + $0x154] sm:$0xff]
      %v223 = vld [vmem:[%s169 + $0x15c] sm:$0xff]
      %v224 = vld [vmem:[%s169 + $0x164] sm:$0xff]
      %v225 = vld [vmem:[%s169 + $0x16c] sm:$0xff]
      %v226 = vld [vmem:[%s169 + $0x174] sm:$0xff]
      %v227 = vld [vmem:[%s169 + $0x17c] sm:$0xff]
      %v228 = vld [vmem:[%s169 + $0x184] sm:$0xff]
      %v229 = vld [vmem:[%s169 + $0x18c] sm:$0xff]
      %v230 = vld [vmem:[%s169 + $0x194] sm:$0xff]
      %v231 = vld [vmem:[%s169 + $0x19c] sm:$0xff]
      %v232 = vld [vmem:[%s169 + $0x1a4] sm:$0xff]
      %v233 = vld [vmem:[%s169 + $0x1ac] sm:$0xf]
      %v234 = vld [vmem:[%s1] sm:$0xf]
      %v235 = vld [vmem:[%s1 + $0x4] sm:$0xf]
      %v236 = vld [vmem:[%s1 + $0x8] sm:$0xf]
      %v237 = vld [vmem:[%s1 + $0xc] sm:$0xf]
      %v238 = vld [vmem:[%s1 + $0x10] sm:$0xf]
      %v239 = vld [vmem:[%s1 + $0x14] sm:$0xf]
      %v240 = vld [vmem:[%s1 + $0x18] sm:$0xf]
      %v241 = vld [vmem:[%s1 + $0x1c] sm:$0xf]
      %v242 = vld [vmem:[%s1 + $0x20] sm:$0xf]
      %v243 = vld [vmem:[%s1 + $0x24] sm:$0xf]
      %v244 = vld [vmem:[%s1 + $0x28] sm:$0xf]
      %v245 = vld [vmem:[%s1 + $0x2c] sm:$0xf]
      %v246 = vld [vmem:[%s1 + $0x30] sm:$0xf]
      %v247 = vld [vmem:[%s1 + $0x34] sm:$0xf]
      %v248 = vld [vmem:[%s1 + $0x38] sm:$0xf]
      %v249 = vld [vmem:[%s1 + $0x3c] sm:$0xf]
      %v250 = vld [vmem:[%s1 + $0x40] sm:$0xf]
      %v251 = vld [vmem:[%s1 + $0x44] sm:$0xf]
      %v252 = vld [vmem:[%s1 + $0x48] sm:$0xf]
      %v253 = vld [vmem:[%s1 + $0x4c] sm:$0xf]
      %v254 = vld [vmem:[%s1 + $0x50] sm:$0xf]
      %v255 = vld [vmem:[%s1 + $0x54] sm:$0xf]
      %v256 = vld [vmem:[%s1 + $0x58] sm:$0xf]
      %v257 = vld [vmem:[%s1 + $0x5c] sm:$0xf]
      %v258 = vld [vmem:[%s1 + $0x60] sm:$0xf]
      %v259 = vld [vmem:[%s1 + $0x64] sm:$0xf]
      %v260 = vld [vmem:[%s1 + $0x68] sm:$0xf]
      %v261 = vld [vmem:[%s1 + $0x6c] sm:$0xf]
      %v262 = vld [vmem:[%s1 + $0x70] sm:$0xf]
      %v263 = vld [vmem:[%s1 + $0x74] sm:$0xf]
      %v264 = vld [vmem:[%s1 + $0x78] sm:$0xf]
      %v265 = vld [vmem:[%s1 + $0x7c] sm:$0xf]
      %v266 = vld [vmem:[%s1 + $0x80] sm:$0xf]
      %v267 = vld [vmem:[%s1 + $0x84] sm:$0xf]
      %v268 = vld [vmem:[%s1 + $0x88] sm:$0xf]
      %v269 = vld [vmem:[%s1 + $0x8c] sm:$0xf]
      %v270 = vld [vmem:[%s1 + $0x90] sm:$0xf]
      %v271 = vld [vmem:[%s1 + $0x94] sm:$0xf]
      %v272 = vld [vmem:[%s1 + $0x98] sm:$0xf]
      %v273 = vld [vmem:[%s1 + $0x9c] sm:$0xf]
      %v274 = vld [vmem:[%s1 + $0xa0] sm:$0xf]
      %v275 = vld [vmem:[%s1 + $0xa4] sm:$0xf]
      %v276 = vld [vmem:[%s1 + $0xa8] sm:$0xf]
      %v277 = vld [vmem:[%s1 + $0xac] sm:$0xf]
      %v278 = vld [vmem:[%s1 + $0xb0] sm:$0xf]
      %v279 = vld [vmem:[%s1 + $0xb4] sm:$0xf]
      %v280 = vld [vmem:[%s1 + $0xb8] sm:$0xf]
      %v281 = vld [vmem:[%s1 + $0xbc] sm:$0xf]
      %v282 = vld [vmem:[%s1 + $0xc0] sm:$0xf]
      %v283 = vld [vmem:[%s1 + $0xc4] sm:$0xf]
      %v284 = vld [vmem:[%s1 + $0xc8] sm:$0xf]
      %v285 = vld [vmem:[%s1 + $0xcc] sm:$0xf]
      %v286 = vld [vmem:[%s1 + $0xd0] sm:$0xf]
      %v287 = vld [vmem:[%s1 + $0xd4] sm:$0xf]
      %v288 = vld [vmem:[%s1 + $0xd8] sm:$0xf]
      %v289 = vld [vmem:[%s1 + $0xdc] sm:$0xf]
      %v290 = vld [vmem:[%s1 + $0xe0] sm:$0xf]
      %v291 = vld [vmem:[%s1 + $0xe4] sm:$0xf]
      %v292 = vld [vmem:[%s1 + $0xe8] sm:$0xf]
      %v293 = vld [vmem:[%s1 + $0xec] sm:$0xf]
      %v294 = vld [vmem:[%s1 + $0xf0] sm:$0xf]
      %v295 = vld [vmem:[%s1 + $0xf4] sm:$0xf]
      %v296 = vld [vmem:[%s1 + $0xf8] sm:$0xf]
      %v297 = vld [vmem:[%s1 + $0xfc] sm:$0xf]
      %v298 = vld [vmem:[%s1 + $0x100] sm:$0xf]
      %v299 = vld [vmem:[%s1 + $0x104] sm:$0xf]
      %v300 = vld [vmem:[%s1 + $0x108] sm:$0xf]
      %v301 = vld [vmem:[%s1 + $0x10c] sm:$0xf]
      %v302 = vld [vmem:[%s1 + $0x110] sm:$0xf]
      %v303 = vld [vmem:[%s1 + $0x114] sm:$0xf]
      %v304 = vld [vmem:[%s1 + $0x118] sm:$0xf]
      %v305 = vld [vmem:[%s1 + $0x11c] sm:$0xf]
      %v306 = vld [vmem:[%s1 + $0x120] sm:$0xf]
      %v307 = vld [vmem:[%s1 + $0x124] sm:$0xf]
      %v308 = vld [vmem:[%s1 + $0x128] sm:$0xf]
      %v309 = vld [vmem:[%s1 + $0x12c] sm:$0xf]
      %v310 = vld [vmem:[%s1 + $0x130] sm:$0xf]
      %v311 = vld [vmem:[%s1 + $0x134] sm:$0xf]
      %v312 = vld [vmem:[%s1 + $0x138] sm:$0xf]
      %v313 = vld [vmem:[%s1 + $0x13c] sm:$0xf]
      %v314 = vld [vmem:[%s1 + $0x140] sm:$0xf]
      %v315 = vld [vmem:[%s1 + $0x144] sm:$0xf]
      %v316 = vld [vmem:[%s1 + $0x148] sm:$0xf]
      %v317 = vld [vmem:[%s1 + $0x14c] sm:$0xf]
      %v318 = vld [vmem:[%s1 + $0x150] sm:$0xf]
      %v319 = vld [vmem:[%s1 + $0x154] sm:$0xf]
      %v320 = vld [vmem:[%s1 + $0x158] sm:$0xf]
      %v321 = vld [vmem:[%s1 + $0x15c] sm:$0xf]
      %v322 = vld [vmem:[%s1 + $0x160] sm:$0xf]
      %v323 = vld [vmem:[%s1 + $0x164] sm:$0xf]
      %v324 = vld [vmem:[%s1 + $0x168] sm:$0xf]
      %v325 = vld [vmem:[%s1 + $0x16c] sm:$0xf]
      %v326 = vld [vmem:[%s1 + $0x170] sm:$0xf]
      %v327 = vld [vmem:[%s1 + $0x174] sm:$0xf]
      %v328 = vld [vmem:[%s1 + $0x178] sm:$0xf]
      %v329 = vld [vmem:[%s1 + $0x17c] sm:$0xf]
      %v330 = vld [vmem:[%s1 + $0x180] sm:$0xf]
      %v331 = vld [vmem:[%s1 + $0x184] sm:$0xf]
      %v332 = vld [vmem:[%s1 + $0x188] sm:$0xf]
      %v333 = vld [vmem:[%s1 + $0x18c] sm:$0xf]
      %v334 = vld [vmem:[%s1 + $0x190] sm:$0xf]
      %v335 = vld [vmem:[%s1 + $0x194] sm:$0xf]
      %v336 = vld [vmem:[%s1 + $0x198] sm:$0xf]
      %v337 = vld [vmem:[%s1 + $0x19c] sm:$0xf]
      %v338 = vld [vmem:[%s1 + $0x1a0] sm:$0xf]
      %v339 = vld [vmem:[%s1 + $0x1a4] sm:$0xf]
      %v340 = vld [vmem:[%s1 + $0x1a8] sm:$0xf]
      %v341 = vld [vmem:[%s1 + $0x1ac] sm:$0xf]
      %v342 = vld [vmem:[%s1 + $0x1b0] sm:$0xf]
      %v343 = vld [vmem:[%s1 + $0x1b4] sm:$0xf]
      %v344 = vld [vmem:[%s1 + $0x1b8] sm:$0xf]
      %v345 = vld [vmem:[%s1 + $0x1bc] sm:$0xf]
      %v346 = vld [vmem:[%s1 + $0x1c0] sm:$0xf]
      %v347 = vld [vmem:[%s1 + $0x1c4] sm:$0xf]
      %v348 = vld [vmem:[%s1 + $0x1c8] sm:$0xf]
      %v349 = vld [vmem:[%s1 + $0x1cc] sm:$0xf]
      %v350 = vld [vmem:[%s1 + $0x1d0] sm:$0xf]
      %v351 = vld [vmem:[%s1 + $0x1d4] sm:$0xf]
      %v352 = vld [vmem:[%s1 + $0x1d8] sm:$0xf]
      %v353 = vld [vmem:[%s1 + $0x1dc] sm:$0xf]
      %v354 = vld [vmem:[%s1 + $0x1e0] sm:$0xf]
      %v355 = vld [vmem:[%s1 + $0x1e4] sm:$0xf]
      %v356 = vld [vmem:[%s1 + $0x1e8] sm:$0xf]
      %v357 = vld [vmem:[%s1 + $0x1ec] sm:$0xf]
      %v358 = vld [vmem:[%s1 + $0x1f0] sm:$0xf]
      %v359 = vld [vmem:[%s1 + $0x1f4] sm:$0xf]
      %v360 = vld [vmem:[%s1 + $0x1f8] sm:$0xf]
      %v361 = vld [vmem:[%s1 + $0x1fc] sm:$0xf]
      %v362 = vld [vmem:[%s1 + $0x200] sm:$0xf]
      %v363 = vld [vmem:[%s1 + $0x204] sm:$0xf]
      %v364 = vld [vmem:[%s1 + $0x208] sm:$0xf]
      %v365 = vld [vmem:[%s1 + $0x20c] sm:$0xf]
      %v366 = vld [vmem:[%s1 + $0x210] sm:$0xf]
      %v367 = vld [vmem:[%s1 + $0x214] sm:$0xf]
      %v368 = vld [vmem:[%s1 + $0x218] sm:$0xf]
      %v369 = vld [vmem:[%s1 + $0x21c] sm:$0xf]
      %v370 = vld [vmem:[%s1 + $0x220] sm:$0xf]
      %v371 = vld [vmem:[%s1 + $0x224] sm:$0xf]
      %v372 = vld [vmem:[%s1 + $0x228] sm:$0xf]
      %v373 = vld [vmem:[%s1 + $0x22c] sm:$0xf]
      %v374 = vld [vmem:[%s1 + $0x230] sm:$0xf]
      %v375 = vld [vmem:[%s1 + $0x234] sm:$0xf]
      %v376 = vld [vmem:[%s1 + $0x238] sm:$0xf]
      %v377 = vld [vmem:[%s1 + $0x23c] sm:$0xf]
      %v378 = vld [vmem:[%s1 + $0x240] sm:$0xf]
      %v379 = vld [vmem:[%s1 + $0x244] sm:$0xf]
      %v380 = vld [vmem:[%s1 + $0x248] sm:$0xf]
      %v381 = vld [vmem:[%s1 + $0x24c] sm:$0xf]
      %v382 = vld [vmem:[%s1 + $0x250] sm:$0xf]
      %v383 = vld [vmem:[%s1 + $0x254] sm:$0xf]
      %v384 = vld [vmem:[%s1 + $0x258] sm:$0xf]
      %v385 = vld [vmem:[%s1 + $0x25c] sm:$0xf]
      %v386 = vld [vmem:[%s1 + $0x260] sm:$0xf]
      %v387 = vld [vmem:[%s1 + $0x264] sm:$0xf]
      %v388 = vld [vmem:[%s1 + $0x268] sm:$0xf]
      %v389 = vld [vmem:[%s1 + $0x26c] sm:$0xf]
      %v390 = vld [vmem:[%s1 + $0x270] sm:$0xf]
      %v391 = vld [vmem:[%s1 + $0x274] sm:$0xf]
      %v392 = vld [vmem:[%s1 + $0x278] sm:$0xf]
      %v393 = vld [vmem:[%s1 + $0x27c] sm:$0xf]
      %v394 = vld [vmem:[%s1 + $0x280] sm:$0xf]
      %v395 = vld [vmem:[%s1 + $0x284] sm:$0xf]
      %v396 = vld [vmem:[%s1 + $0x288] sm:$0xf]
      %v397 = vld [vmem:[%s1 + $0x28c] sm:$0xf]
      %v398 = vld [vmem:[%s1 + $0x290] sm:$0xf]
      %v399 = vld [vmem:[%s1 + $0x294] sm:$0xf]
      %v400 = vld [vmem:[%s1 + $0x298] sm:$0xf]
      %v401 = vld [vmem:[%s1 + $0x29c] sm:$0xf]
      %v402 = vld [vmem:[%s1 + $0x2a0] sm:$0xf]
      %v403 = vld [vmem:[%s1 + $0x2a4] sm:$0xf]
      %v404 = vld [vmem:[%s1 + $0x2a8] sm:$0xf]
      %v405 = vld [vmem:[%s1 + $0x2ac] sm:$0xf]
      %v406 = vld [vmem:[%s1 + $0x2b0] sm:$0xf]
      %v407 = vld [vmem:[%s1 + $0x2b4] sm:$0xf]
      %v408 = vld [vmem:[%s1 + $0x2b8] sm:$0xf]
      %v409 = vld [vmem:[%s1 + $0x2bc] sm:$0xf]
      %v410 = vld [vmem:[%s1 + $0x2c0] sm:$0xf]
      %v411 = vld [vmem:[%s1 + $0x2c4] sm:$0xf]
      %v412 = vld [vmem:[%s1 + $0x2c8] sm:$0xf]
      %v413 = vld [vmem:[%s1 + $0x2cc] sm:$0xf]
      %v414 = vld [vmem:[%s1 + $0x2d0] sm:$0xf]
      %v415 = vld [vmem:[%s1 + $0x2d4] sm:$0xf]
      %v416 = vld [vmem:[%s1 + $0x2d8] sm:$0xf]
      %v417 = vld [vmem:[%s1 + $0x2dc] sm:$0xf]
      %v418 = vld [vmem:[%s1 + $0x2e0] sm:$0xf]
      %v419 = vld [vmem:[%s1 + $0x2e4] sm:$0xf]
      %v420 = vld [vmem:[%s1 + $0x2e8] sm:$0xf]
      %v421 = vld [vmem:[%s1 + $0x2ec] sm:$0xf]
      %v422 = vld [vmem:[%s1 + $0x2f0] sm:$0xf]
      %v423 = vld [vmem:[%s1 + $0x2f4] sm:$0xf]
      %v424 = vld [vmem:[%s1 + $0x2f8] sm:$0xf]
      %v425 = vld [vmem:[%s1 + $0x2fc] sm:$0xf]
      %v426 = vld [vmem:[%s1 + $0x300] sm:$0xf]
      %v427 = vld [vmem:[%s1 + $0x304] sm:$0xf]
      %v428 = vld [vmem:[%s1 + $0x308] sm:$0xf]
      %v429 = vld [vmem:[%s1 + $0x30c] sm:$0xf]
      %v430 = vld [vmem:[%s1 + $0x310] sm:$0xf]
      %v431 = vld [vmem:[%s1 + $0x314] sm:$0xf]
      %v432 = vld [vmem:[%s1 + $0x318] sm:$0xf]
      %v433 = vld [vmem:[%s1 + $0x31c] sm:$0xf]
      %v434 = vld [vmem:[%s1 + $0x320] sm:$0xf]
      %v435 = vld [vmem:[%s1 + $0x324] sm:$0xf]
      %v436 = vld [vmem:[%s1 + $0x328] sm:$0xf]
      %v437 = vld [vmem:[%s1 + $0x32c] sm:$0xf]
      %v438 = vld [vmem:[%s1 + $0x330] sm:$0xf]
      %v439 = vld [vmem:[%s1 + $0x334] sm:$0xf]
      %v440 = vld [vmem:[%s1 + $0x338] sm:$0xf]
      %v441 = vld [vmem:[%s1 + $0x33c] sm:$0xf]
      %v442 = vld [vmem:[%s1 + $0x340] sm:$0xf]
      %v443 = vld [vmem:[%s1 + $0x344] sm:$0xf]
      %v444 = vld [vmem:[%s1 + $0x348] sm:$0xf]
      %v445 = vld [vmem:[%s1 + $0x34c] sm:$0xf]
      %v446 = vld [vmem:[%s1 + $0x350] sm:$0xf]
      %v447 = vld [vmem:[%s1 + $0x354] sm:$0xf]
      %v448 = vld [vmem:[%s1 + $0x358] sm:$0xf]
      %v449 = vld [vmem:[%s1 + $0x35c] sm:$0xf]
      %v450 = vld [vmem:[%s1 + $0x360] sm:$0xf]
      %v451 = vld [vmem:[%s1 + $0x364] sm:$0xf]
      %v452 = vld [vmem:[%s1 + $0x368] sm:$0xf]
      %v453 = vld [vmem:[%s1 + $0x36c] sm:$0xf]
      %v454 = vld [vmem:[%s1 + $0x370] sm:$0xf]
      %v455 = vld [vmem:[%s1 + $0x374] sm:$0xf]
      %v456 = vld [vmem:[%s1 + $0x378] sm:$0xf]
      %v457 = vld [vmem:[%s1 + $0x37c] sm:$0xf]
      %v458 = vld [vmem:[%s1 + $0x380] sm:$0xf]
      %v459 = vld [vmem:[%s1 + $0x384] sm:$0xf]
      %v460 = vld [vmem:[%s1 + $0x388] sm:$0xf]
      %v461 = vld [vmem:[%s1 + $0x38c] sm:$0xf]
      %v462 = vld [vmem:[%s1 + $0x390] sm:$0xf]
      %v463 = vld [vmem:[%s1 + $0x394] sm:$0xf]
      %v464 = vld [vmem:[%s1 + $0x398] sm:$0xf]
      %v465 = vld [vmem:[%s1 + $0x39c] sm:$0xf]
      %v466 = vld [vmem:[%s1 + $0x3a0] sm:$0xf]
      %v467 = vld [vmem:[%s1 + $0x3a4] sm:$0xf]
      %v468 = vld [vmem:[%s1 + $0x3a8] sm:$0xf]
      %v469 = vld [vmem:[%s1 + $0x3ac] sm:$0xf]
      %v470 = vld [vmem:[%s1 + $0x3b0] sm:$0xf]
      %v471 = vld [vmem:[%s1 + $0x3b4] sm:$0xf]
      %v472 = vld [vmem:[%s1 + $0x3b8] sm:$0xf]
      %v473 = vld [vmem:[%s1 + $0x3bc] sm:$0xf]
      %v474 = vld [vmem:[%s1 + $0x3c0] sm:$0xf]
      %v475 = vld [vmem:[%s1 + $0x3c4] sm:$0xf]
      %v476 = vld [vmem:[%s1 + $0x3c8] sm:$0xf]
      %v477 = vld [vmem:[%s1 + $0x3cc] sm:$0xf]
      %v478 = vld [vmem:[%s1 + $0x3d0] sm:$0xf]
      %v479 = vld [vmem:[%s1 + $0x3d4] sm:$0xf]
      %v480 = vld [vmem:[%s1 + $0x3d8] sm:$0xf]
      %v481 = vld [vmem:[%s1 + $0x3dc] sm:$0xf]
      %v482 = vld [vmem:[%s1 + $0x3e0] sm:$0xf]
      %v483 = vld [vmem:[%s1 + $0x3e4] sm:$0xf]
      %v484 = vld [vmem:[%s1 + $0x3e8] sm:$0xf]
      %v485 = vld [vmem:[%s1 + $0x3ec] sm:$0xf]
      %v486 = vld [vmem:[%s1 + $0x3f0] sm:$0xf]
      %v487 = vld [vmem:[%s1 + $0x3f4] sm:$0xf]
      %v488 = vld [vmem:[%s1 + $0x3f8] sm:$0xf]
      %v489 = vld [vmem:[%s1 + $0x3fc] sm:$0xf]
      %v490 = vld [vmem:[%s1 + $0x400] sm:$0xf]
      %v491 = vld [vmem:[%s1 + $0x404] sm:$0xf]
      %v492 = vld [vmem:[%s1 + $0x408] sm:$0xf]
      %v493 = vld [vmem:[%s1 + $0x40c] sm:$0xf]
      %v494 = vld [vmem:[%s1 + $0x410] sm:$0xf]
      %v495 = vld [vmem:[%s1 + $0x414] sm:$0xf]
      %v496 = vld [vmem:[%s1 + $0x418] sm:$0xf]
      %v497 = vld [vmem:[%s1 + $0x41c] sm:$0xf]
      %v498 = vld [vmem:[%s1 + $0x420] sm:$0xf]
      %v499 = vld [vmem:[%s1 + $0x424] sm:$0xf]
      %v500 = vld [vmem:[%s1 + $0x428] sm:$0xf]
      %v501 = vld [vmem:[%s1 + $0x42c] sm:$0xf]
      %v502 = vld [vmem:[%s1 + $0x430] sm:$0xf]
      %v503 = vld [vmem:[%s1 + $0x434] sm:$0xf]
      %v504 = vld [vmem:[%s1 + $0x438] sm:$0xf]
      %v505 = vld [vmem:[%s1 + $0x43c] sm:$0xf]
      %v506 = vld [vmem:[%s1 + $0x440] sm:$0xf]
      %v507 = vld [vmem:[%s1 + $0x444] sm:$0xf]
      %v508 = vld [vmem:[%s1 + $0x448] sm:$0xf]
      %v509 = vld [vmem:[%s1 + $0x44c] sm:$0xf]
      %v510 = vld [vmem:[%s1 + $0x450] sm:$0xf]
      %v511 = vld [vmem:[%s1 + $0x454] sm:$0xf]
      %v512 = vld [vmem:[%s1 + $0x458] sm:$0xf]
      %v513 = vld [vmem:[%s1 + $0x45c] sm:$0xf]
      %v514 = vld [vmem:[%s1 + $0x460] sm:$0xf]
      %v515 = vld [vmem:[%s1 + $0x464] sm:$0xf]
      %v516 = vld [vmem:[%s1 + $0x468] sm:$0xf]
      %v517 = vld [vmem:[%s1 + $0x46c] sm:$0xf]
      %v518 = vld [vmem:[%s1 + $0x470] sm:$0xf]
      %v519 = vld [vmem:[%s1 + $0x474] sm:$0xf]
      %v520 = vld [vmem:[%s1 + $0x478] sm:$0xf]
      %v521 = vld [vmem:[%s1 + $0x47c] sm:$0xf]
      %v522 = vld [vmem:[%s1 + $0x480] sm:$0xf]
      %v523 = vld [vmem:[%s1 + $0x484] sm:$0xf]
      %v524 = vld [vmem:[%s1 + $0x488] sm:$0xf]
      %v525 = vld [vmem:[%s1 + $0x48c] sm:$0xf]
      %v526 = vld [vmem:[%s1 + $0x490] sm:$0xf]
      %v527 = vld [vmem:[%s1 + $0x494] sm:$0xf]
      %v528 = vld [vmem:[%s1 + $0x498] sm:$0xf]
      %v529 = vld [vmem:[%s1 + $0x49c] sm:$0xf]
      %v530 = vld [vmem:[%s1 + $0x4a0] sm:$0xf]
      %v531 = vld [vmem:[%s1 + $0x4a4] sm:$0xf]
      %v532 = vld [vmem:[%s1 + $0x4a8] sm:$0xf]
      %v533 = vld [vmem:[%s1 + $0x4ac] sm:$0xf]
      %v534 = vld [vmem:[%s1 + $0x4b0] sm:$0xf]
      %v535 = vld [vmem:[%s1 + $0x4b4] sm:$0xf]
      %v536 = vld [vmem:[%s1 + $0x4b8] sm:$0xf]
      %v537 = vld [vmem:[%s1 + $0x4bc] sm:$0xf]
      %v538 = vld [vmem:[%s1 + $0x4c0] sm:$0xf]
      %v539 = vld [vmem:[%s1 + $0x4c4] sm:$0xf]
      %v540 = vld [vmem:[%s1 + $0x4c8] sm:$0xf]
      %v541 = vld [vmem:[%s1 + $0x4cc] sm:$0xf]
      %v542 = vld [vmem:[%s1 + $0x4d0] sm:$0xf]
      %v543 = vld [vmem:[%s1 + $0x4d4] sm:$0xf]
      %v544 = vld [vmem:[%s1 + $0x4d8] sm:$0xf]
      %v545 = vld [vmem:[%s1 + $0x4dc] sm:$0xf]
      %v546 = vld [vmem:[%s1 + $0x4e0] sm:$0xf]
      %v547 = vld [vmem:[%s1 + $0x4e4] sm:$0xf]
      %v548 = vld [vmem:[%s1 + $0x4e8] sm:$0xf]
      %v549 = vld [vmem:[%s1 + $0x4ec] sm:$0xf]
      %v550 = vld [vmem:[%s1 + $0x4f0] sm:$0xf]
      %v551 = vld [vmem:[%s1 + $0x4f4] sm:$0xf]
      %v552 = vld [vmem:[%s1 + $0x4f8] sm:$0xf]
      %v553 = vld [vmem:[%s1 + $0x4fc] sm:$0xf]
      %v554 = vld [vmem:[%s1 + $0x500] sm:$0xf]
      %v555 = vld [vmem:[%s1 + $0x504] sm:$0xf]
      %v556 = vld [vmem:[%s1 + $0x508] sm:$0xf]
      %v557 = vld [vmem:[%s1 + $0x50c] sm:$0xf]
      %v558 = vld [vmem:[%s1 + $0x510] sm:$0xf]
      %v559 = vld [vmem:[%s1 + $0x514] sm:$0xf]
      %v560 = vld [vmem:[%s1 + $0x518] sm:$0xf]
      %v561 = vld [vmem:[%s1 + $0x51c] sm:$0xf]
      %v562 = vld [vmem:[%s1 + $0x520] sm:$0xf]
      %v563 = vld [vmem:[%s1 + $0x524] sm:$0xf]
      %v564 = vld [vmem:[%s1 + $0x528] sm:$0xf]
      %v565 = vld [vmem:[%s1 + $0x52c] sm:$0xf]
      %v566 = vld [vmem:[%s1 + $0x530] sm:$0xf]
      %v567 = vld [vmem:[%s1 + $0x534] sm:$0xf]
      %v568 = vld [vmem:[%s1 + $0x538] sm:$0xf]
      %v569 = vld [vmem:[%s1 + $0x53c] sm:$0xf]
      %v570 = vld [vmem:[%s1 + $0x540] sm:$0xf]
      %v571 = vld [vmem:[%s1 + $0x544] sm:$0xf]
      %v572 = vld [vmem:[%s1 + $0x548] sm:$0xf]
      %v573 = vld [vmem:[%s1 + $0x54c] sm:$0xf]
      %v574 = vld [vmem:[%s1 + $0x550] sm:$0xf]
      %v575 = vld [vmem:[%s1 + $0x554] sm:$0xf]
      %v576 = vld [vmem:[%s1 + $0x558] sm:$0xf]
      %v577 = vld [vmem:[%s1 + $0x55c] sm:$0xf]
      %v578 = vld [vmem:[%s1 + $0x560] sm:$0xf]
      %v579 = vld [vmem:[%s1 + $0x564] sm:$0xf]
      %v580 = vld [vmem:[%s1 + $0x568] sm:$0xf]
      %v581 = vld [vmem:[%s1 + $0x56c] sm:$0xf]
      %v582 = vld [vmem:[%s1 + $0x570] sm:$0xf]
      %v583 = vld [vmem:[%s1 + $0x574] sm:$0xf]
      %v584 = vld [vmem:[%s1 + $0x578] sm:$0xf]
      %v585 = vld [vmem:[%s1 + $0x57c] sm:$0xf]
      %v586 = vld [vmem:[%s1 + $0x580] sm:$0xf]
      %v587 = vld [vmem:[%s1 + $0x584] sm:$0xf]
      %v588 = vld [vmem:[%s1 + $0x588] sm:$0xf]
      %v589 = vld [vmem:[%s1 + $0x58c] sm:$0xf]
      %v590 = vld [vmem:[%s1 + $0x590] sm:$0xf]
      %v591 = vld [vmem:[%s1 + $0x594] sm:$0xf]
      %v592 = vld [vmem:[%s1 + $0x598] sm:$0xf]
      %v593 = vld [vmem:[%s1 + $0x59c] sm:$0xf]
      %v594 = vld [vmem:[%s1 + $0x5a0] sm:$0xf]
      %v595 = vld [vmem:[%s1 + $0x5a4] sm:$0xf]
      %v596 = vld [vmem:[%s1 + $0x5a8] sm:$0xf]
      %v597 = vld [vmem:[%s1 + $0x5ac] sm:$0xf]
      %v598 = vld [vmem:[%s1 + $0x5b0] sm:$0xf]
      %v599 = vld [vmem:[%s1 + $0x5b4] sm:$0xf]
      %v600 = vld [vmem:[%s1 + $0x5b8] sm:$0xf]
      %v601 = vld [vmem:[%s1 + $0x5bc] sm:$0xf]
      %v602 = vld [vmem:[%s1 + $0x5c0] sm:$0xf]
      %v603 = vld [vmem:[%s1 + $0x5c4] sm:$0xf]
      %v604 = vld [vmem:[%s1 + $0x5c8] sm:$0xf]
      %v605 = vld [vmem:[%s1 + $0x5cc] sm:$0xf]
      %v606 = vld [vmem:[%s1 + $0x5d0] sm:$0xf]
      %v607 = vld [vmem:[%s1 + $0x5d4] sm:$0xf]
      %v608 = vld [vmem:[%s1 + $0x5d8] sm:$0xf]
      %v609 = vld [vmem:[%s1 + $0x5dc] sm:$0xf]
      %v610 = vld [vmem:[%s1 + $0x5e0] sm:$0xf]
      %v611 = vld [vmem:[%s1 + $0x5e4] sm:$0xf]
      %v612 = vld [vmem:[%s1 + $0x5e8] sm:$0xf]
      %v613 = vld [vmem:[%s1 + $0x5ec] sm:$0xf]
      %v614 = vld [vmem:[%s1 + $0x5f0] sm:$0xf]
      %v615 = vld [vmem:[%s1 + $0x5f4] sm:$0xf]
      %v616 = vld [vmem:[%s1 + $0x5f8] sm:$0xf]
      %v617 = vld [vmem:[%s1 + $0x5fc] sm:$0xf]
      %v618 = vld [vmem:[%s1 + $0x600] sm:$0xf]
      %v619 = vld [vmem:[%s1 + $0x604] sm:$0xf]
      %v620 = vld [vmem:[%s1 + $0x608] sm:$0xf]
      %v621 = vld [vmem:[%s1 + $0x60c] sm:$0xf]
      %v622 = vld [vmem:[%s1 + $0x610] sm:$0xf]
      %v623 = vld [vmem:[%s1 + $0x614] sm:$0xf]
      %v624 = vld [vmem:[%s1 + $0x618] sm:$0xf]
      %v625 = vld [vmem:[%s1 + $0x61c] sm:$0xf]
      %v626 = vld [vmem:[%s1 + $0x620] sm:$0xf]
      %v627 = vld [vmem:[%s1 + $0x624] sm:$0xf]
      %v628 = vld [vmem:[%s1 + $0x628] sm:$0xf]
      %v629 = vld [vmem:[%s1 + $0x62c] sm:$0xf]
      %v630 = vld [vmem:[%s1 + $0x630] sm:$0xf]
      %v631 = vld [vmem:[%s1 + $0x634] sm:$0xf]
      %v632 = vld [vmem:[%s1 + $0x638] sm:$0xf]
      %v633 = vld [vmem:[%s1 + $0x63c] sm:$0xf]
      %v634 = vld [vmem:[%s1 + $0x640] sm:$0xf]
      %v635 = vld [vmem:[%s1 + $0x644] sm:$0xf]
      %v636 = vld [vmem:[%s1 + $0x648] sm:$0xf]
      %v637 = vld [vmem:[%s1 + $0x64c] sm:$0xf]
      %v638 = vld [vmem:[%s1 + $0x650] sm:$0xf]
      %v639 = vld [vmem:[%s1 + $0x654] sm:$0xf]
      %v640 = vld [vmem:[%s1 + $0x658] sm:$0xf]
      %v641 = vld [vmem:[%s1 + $0x65c] sm:$0xf]
      %v642 = vld [vmem:[%s1 + $0x660] sm:$0xf]
      %v643 = vld [vmem:[%s1 + $0x664] sm:$0xf]
      %v644 = vld [vmem:[%s1 + $0x668] sm:$0xf]
      %v645 = vld [vmem:[%s1 + $0x66c] sm:$0xf]
      %v646 = vld [vmem:[%s1 + $0x670] sm:$0xf]
      %v647 = vld [vmem:[%s1 + $0x674] sm:$0xf]
      %v648 = vld [vmem:[%s1 + $0x678] sm:$0xf]
      %v649 = vld [vmem:[%s1 + $0x67c] sm:$0xf]
      %v650 = vld [vmem:[%s1 + $0x680] sm:$0xf]
      %v651 = vld [vmem:[%s1 + $0x684] sm:$0xf]
      %v652 = vld [vmem:[%s1 + $0x688] sm:$0xf]
      %v653 = vld [vmem:[%s1 + $0x68c] sm:$0xf]
      %v654 = vld [vmem:[%s1 + $0x690] sm:$0xf]
      %v655 = vld [vmem:[%s1 + $0x694] sm:$0xf]
      %v656 = vld [vmem:[%s1 + $0x698] sm:$0xf]
      %v657 = vld [vmem:[%s1 + $0x69c] sm:$0xf]
      %v658 = vld [vmem:[%s1 + $0x6a0] sm:$0xf]
      %v659 = vld [vmem:[%s1 + $0x6a4] sm:$0xf]
      %v660 = vld [vmem:[%s1 + $0x6a8] sm:$0xf]
      %v661 = vld [vmem:[%s1 + $0x6ac] sm:$0xf]
      %v662 = vld [vmem:[%s1 + $0x6b0] sm:$0xf]
      %v663 = vld [vmem:[%s1 + $0x6b4] sm:$0xf]
      %v664 = vld [vmem:[%s1 + $0x6b8] sm:$0xf]
      %v665 = vld [vmem:[%s1 + $0x6bc] sm:$0xf]
      %v666 = vld [vmem:[%s2] sm:$0x1]
      %v668 = vlaneseq
      %v669 = vshrl.u32 %v668, 7
      %v670 = vsub.s32 0, %v669
      %v671 = vrot.slane %v666, %v670
      %v729 = vunpack.c.l.b16 %v178
      %v730 = vunpack.c.h.b16 %v178
      %v731 = vunpack.c.l.b16 %v179
      %v732 = vunpack.c.h.b16 %v179
      %v733 = vunpack.c.l.b16 %v180
      %v734 = vunpack.c.h.b16 %v180
      %v735 = vunpack.c.l.b16 %v181
      %v736 = vunpack.c.h.b16 %v181
      %v737 = vunpack.c.l.b16 %v182
      %v738 = vunpack.c.h.b16 %v182
      %v739 = vunpack.c.l.b16 %v183
      %v740 = vunpack.c.h.b16 %v183
      %v741 = vunpack.c.l.b16 %v184
      %v742 = vunpack.c.h.b16 %v184
      %v743 = vunpack.c.l.b16 %v185
      %v744 = vunpack.c.h.b16 %v185
      %v745 = vunpack.c.l.b16 %v186
      %v746 = vunpack.c.h.b16 %v186
      %v747 = vunpack.c.l.b16 %v187
      %v748 = vunpack.c.h.b16 %v187
      %v749 = vunpack.c.l.b16 %v188
      %v750 = vunpack.c.h.b16 %v188
      %v751 = vunpack.c.l.b16 %v189
      %v752 = vunpack.c.h.b16 %v189
      %v753 = vunpack.c.l.b16 %v190
      %v754 = vunpack.c.h.b16 %v190
      %v755 = vunpack.c.l.b16 %v191
      %v756 = vunpack.c.l.b16 %v192
      %v757 = vunpack.c.h.b16 %v192
      %v758 = vunpack.c.l.b16 %v193
      %v759 = vunpack.c.h.b16 %v193
      %v760 = vunpack.c.l.b16 %v194
      %v761 = vunpack.c.h.b16 %v194
      %v762 = vunpack.c.l.b16 %v195
      %v763 = vunpack.c.h.b16 %v195
      %v764 = vunpack.c.l.b16 %v196
      %v765 = vunpack.c.h.b16 %v196
      %v766 = vunpack.c.l.b16 %v197
      %v767 = vunpack.c.h.b16 %v197
      %v768 = vunpack.c.l.b16 %v198
      %v769 = vunpack.c.h.b16 %v198
      %v770 = vunpack.c.l.b16 %v199
      %v771 = vunpack.c.h.b16 %v199
      %v772 = vunpack.c.l.b16 %v200
      %v773 = vunpack.c.h.b16 %v200
      %v774 = vunpack.c.l.b16 %v201
      %v775 = vunpack.c.h.b16 %v201
      %v776 = vunpack.c.l.b16 %v202
      %v777 = vunpack.c.h.b16 %v202
      %v778 = vunpack.c.l.b16 %v203
      %v779 = vunpack.c.h.b16 %v203
      %v780 = vunpack.c.l.b16 %v204
      %v781 = vunpack.c.h.b16 %v204
      %v782 = vunpack.c.l.b16 %v205
      %v783 = vunpack.c.l.b16 %v206
      %v784 = vunpack.c.h.b16 %v206
      %v785 = vunpack.c.l.b16 %v207
      %v786 = vunpack.c.h.b16 %v207
      %v787 = vunpack.c.l.b16 %v208
      %v788 = vunpack.c.h.b16 %v208
      %v789 = vunpack.c.l.b16 %v209
      %v790 = vunpack.c.h.b16 %v209
      %v791 = vunpack.c.l.b16 %v210
      %v792 = vunpack.c.h.b16 %v210
      %v793 = vunpack.c.l.b16 %v211
      %v794 = vunpack.c.h.b16 %v211
      %v795 = vunpack.c.l.b16 %v212
      %v796 = vunpack.c.h.b16 %v212
      %v797 = vunpack.c.l.b16 %v213
      %v798 = vunpack.c.h.b16 %v213
      %v799 = vunpack.c.l.b16 %v214
      %v800 = vunpack.c.h.b16 %v214
      %v801 = vunpack.c.l.b16 %v215
      %v802 = vunpack.c.h.b16 %v215
      %v803 = vunpack.c.l.b16 %v216
      %v804 = vunpack.c.h.b16 %v216
      %v805 = vunpack.c.l.b16 %v217
      %v806 = vunpack.c.h.b16 %v217
      %v807 = vunpack.c.l.b16 %v218
      %v808 = vunpack.c.h.b16 %v218
      %v809 = vunpack.c.l.b16 %v219
      %v810 = vunpack.c.l.b16 %v220
      %v811 = vunpack.c.h.b16 %v220
      %v812 = vunpack.c.l.b16 %v221
      %v813 = vunpack.c.h.b16 %v221
      %v814 = vunpack.c.l.b16 %v222
      %v815 = vunpack.c.h.b16 %v222
      %v816 = vunpack.c.l.b16 %v223
      %v817 = vunpack.c.h.b16 %v223
      %v818 = vunpack.c.l.b16 %v224
      %v819 = vunpack.c.h.b16 %v224
      %v820 = vunpack.c.l.b16 %v225
      %v821 = vunpack.c.h.b16 %v225
      %v822 = vunpack.c.l.b16 %v226
      %v823 = vunpack.c.h.b16 %v226
      %v824 = vunpack.c.l.b16 %v227
      %v825 = vunpack.c.h.b16 %v227
      %v826 = vunpack.c.l.b16 %v228
      %v827 = vunpack.c.h.b16 %v228
      %v828 = vunpack.c.l.b16 %v229
      %v829 = vunpack.c.h.b16 %v229
      %v830 = vunpack.c.l.b16 %v230
      %v831 = vunpack.c.h.b16 %v230
      %v832 = vunpack.c.l.b16 %v231
      %v833 = vunpack.c.h.b16 %v231
      %v834 = vunpack.c.l.b16 %v232
      %v835 = vunpack.c.h.b16 %v232
      %v836 = vunpack.c.l.b16 %v233
      %v837 = vpack.c.b16 %v756, %v729
      %v838 = vpack.c.b16 %v757, %v730
      %v839 = vpack.c.b16 %v758, %v731
      %v840 = vpack.c.b16 %v759, %v732
      %v841 = vpack.c.b16 %v760, %v733
      %v842 = vpack.c.b16 %v761, %v734
      %v843 = vpack.c.b16 %v762, %v735
      %v844 = vpack.c.b16 %v763, %v736
      %v845 = vpack.c.b16 %v764, %v737
      %v846 = vpack.c.b16 %v765, %v738
      %v847 = vpack.c.b16 %v766, %v739
      %v848 = vpack.c.b16 %v767, %v740
      %v849 = vpack.c.b16 %v768, %v741
      %v850 = vpack.c.b16 %v769, %v742
      %v851 = vpack.c.b16 %v770, %v743
      %v852 = vpack.c.b16 %v771, %v744
      %v853 = vpack.c.b16 %v772, %v745
      %v854 = vpack.c.b16 %v773, %v746
      %v855 = vpack.c.b16 %v774, %v747
      %v856 = vpack.c.b16 %v775, %v748
      %v857 = vpack.c.b16 %v776, %v749
      %v858 = vpack.c.b16 %v777, %v750
      %v859 = vpack.c.b16 %v778, %v751
      %v860 = vpack.c.b16 %v779, %v752
      %v861 = vpack.c.b16 %v780, %v753
      %v862 = vpack.c.b16 %v781, %v754
      %v863 = vpack.c.b16 %v782, %v755
      %v864 = vpack.c.b16 %v810, %v783
      %v865 = vpack.c.b16 %v811, %v784
      %v866 = vpack.c.b16 %v812, %v785
      %v867 = vpack.c.b16 %v813, %v786
      %v868 = vpack.c.b16 %v814, %v787
      %v869 = vpack.c.b16 %v815, %v788
      %v870 = vpack.c.b16 %v816, %v789
      %v871 = vpack.c.b16 %v817, %v790
      %v872 = vpack.c.b16 %v818, %v791
      %v873 = vpack.c.b16 %v819, %v792
      %v874 = vpack.c.b16 %v820, %v793
      %v875 = vpack.c.b16 %v821, %v794
      %v876 = vpack.c.b16 %v822, %v795
      %v877 = vpack.c.b16 %v823, %v796
      %v878 = vpack.c.b16 %v824, %v797
      %v879 = vpack.c.b16 %v825, %v798
      %v880 = vpack.c.b16 %v826, %v799
      %v881 = vpack.c.b16 %v827, %v800
      %v882 = vpack.c.b16 %v828, %v801
      %v883 = vpack.c.b16 %v829, %v802
      %v884 = vpack.c.b16 %v830, %v803
      %v885 = vpack.c.b16 %v831, %v804
      %v886 = vpack.c.b16 %v832, %v805
      %v887 = vpack.c.b16 %v833, %v806
      %v888 = vpack.c.b16 %v834, %v807
      %v889 = vpack.c.b16 %v835, %v808
      %v890 = vpack.c.b16 %v836, %v809
      %v1377 = vunpack.c.l.b16 %v234
      %v1378 = vunpack.c.l.b16 %v235
      %v1379 = vunpack.c.l.b16 %v236
      %v1380 = vunpack.c.l.b16 %v237
      %v1381 = vunpack.c.l.b16 %v238
      %v1382 = vunpack.c.l.b16 %v239
      %v1383 = vunpack.c.l.b16 %v240
      %v1384 = vunpack.c.l.b16 %v241
      %v1385 = vunpack.c.l.b16 %v242
      %v1386 = vunpack.c.l.b16 %v243
      %v1387 = vunpack.c.l.b16 %v244
      %v1388 = vunpack.c.l.b16 %v245
      %v1389 = vunpack.c.l.b16 %v246
      %v1390 = vunpack.c.l.b16 %v247
      %v1391 = vunpack.c.l.b16 %v248
      %v1392 = vunpack.c.l.b16 %v249
      %v1393 = vunpack.c.l.b16 %v250
      %v1394 = vunpack.c.l.b16 %v251
      %v1395 = vunpack.c.l.b16 %v252
      %v1396 = vunpack.c.l.b16 %v253
      %v1397 = vunpack.c.l.b16 %v254
      %v1398 = vunpack.c.l.b16 %v255
      %v1399 = vunpack.c.l.b16 %v256
      %v1400 = vunpack.c.l.b16 %v257
      %v1401 = vunpack.c.l.b16 %v258
      %v1402 = vunpack.c.l.b16 %v259
      %v1403 = vunpack.c.l.b16 %v260
      %v1404 = vunpack.c.l.b16 %v261
      %v1405 = vunpack.c.l.b16 %v262
      %v1406 = vunpack.c.l.b16 %v263
      %v1407 = vunpack.c.l.b16 %v264
      %v1408 = vunpack.c.l.b16 %v265
      %v1409 = vunpack.c.l.b16 %v266
      %v1410 = vunpack.c.l.b16 %v267
      %v1411 = vunpack.c.l.b16 %v268
      %v1412 = vunpack.c.l.b16 %v269
      %v1413 = vunpack.c.l.b16 %v270
      %v1414 = vunpack.c.l.b16 %v271
      %v1415 = vunpack.c.l.b16 %v272
      %v1416 = vunpack.c.l.b16 %v273
      %v1417 = vunpack.c.l.b16 %v274
      %v1418 = vunpack.c.l.b16 %v275
      %v1419 = vunpack.c.l.b16 %v276
      %v1420 = vunpack.c.l.b16 %v277
      %v1421 = vunpack.c.l.b16 %v278
      %v1422 = vunpack.c.l.b16 %v279
      %v1423 = vunpack.c.l.b16 %v280
      %v1424 = vunpack.c.l.b16 %v281
      %v1425 = vunpack.c.l.b16 %v282
      %v1426 = vunpack.c.l.b16 %v283
      %v1427 = vunpack.c.l.b16 %v284
      %v1428 = vunpack.c.l.b16 %v285
      %v1429 = vunpack.c.l.b16 %v286
      %v1430 = vunpack.c.l.b16 %v287
      %v1431 = vunpack.c.l.b16 %v288
      %v1432 = vunpack.c.l.b16 %v289
      %v1433 = vunpack.c.l.b16 %v290
      %v1434 = vunpack.c.l.b16 %v291
      %v1435 = vunpack.c.l.b16 %v292
      %v1436 = vunpack.c.l.b16 %v293
      %v1437 = vunpack.c.l.b16 %v294
      %v1438 = vunpack.c.l.b16 %v295
      %v1439 = vunpack.c.l.b16 %v296
      %v1440 = vunpack.c.l.b16 %v297
      %v1441 = vunpack.c.l.b16 %v298
      %v1442 = vunpack.c.l.b16 %v299
      %v1443 = vunpack.c.l.b16 %v300
      %v1444 = vunpack.c.l.b16 %v301
      %v1445 = vunpack.c.l.b16 %v302
      %v1446 = vunpack.c.l.b16 %v303
      %v1447 = vunpack.c.l.b16 %v304
      %v1448 = vunpack.c.l.b16 %v305
      %v1449 = vunpack.c.l.b16 %v306
      %v1450 = vunpack.c.l.b16 %v307
      %v1451 = vunpack.c.l.b16 %v308
      %v1452 = vunpack.c.l.b16 %v309
      %v1453 = vunpack.c.l.b16 %v310
      %v1454 = vunpack.c.l.b16 %v311
      %v1455 = vunpack.c.l.b16 %v312
      %v1456 = vunpack.c.l.b16 %v313
      %v1457 = vunpack.c.l.b16 %v314
      %v1458 = vunpack.c.l.b16 %v315
      %v1459 = vunpack.c.l.b16 %v316
      %v1460 = vunpack.c.l.b16 %v317
      %v1461 = vunpack.c.l.b16 %v318
      %v1462 = vunpack.c.l.b16 %v319
      %v1463 = vunpack.c.l.b16 %v320
      %v1464 = vunpack.c.l.b16 %v321
      %v1465 = vunpack.c.l.b16 %v322
      %v1466 = vunpack.c.l.b16 %v323
      %v1467 = vunpack.c.l.b16 %v324
      %v1468 = vunpack.c.l.b16 %v325
      %v1469 = vunpack.c.l.b16 %v326
      %v1470 = vunpack.c.l.b16 %v327
      %v1471 = vunpack.c.l.b16 %v328
      %v1472 = vunpack.c.l.b16 %v329
      %v1473 = vunpack.c.l.b16 %v330
      %v1474 = vunpack.c.l.b16 %v331
      %v1475 = vunpack.c.l.b16 %v332
      %v1476 = vunpack.c.l.b16 %v333
      %v1477 = vunpack.c.l.b16 %v334
      %v1478 = vunpack.c.l.b16 %v335
      %v1479 = vunpack.c.l.b16 %v336
      %v1480 = vunpack.c.l.b16 %v337
      %v1481 = vunpack.c.l.b16 %v338
      %v1482 = vunpack.c.l.b16 %v339
      %v1483 = vunpack.c.l.b16 %v340
      %v1484 = vunpack.c.l.b16 %v341
      %v1485 = vunpack.c.l.b16 %v342
      %v1486 = vunpack.c.l.b16 %v343
      %v1487 = vunpack.c.l.b16 %v344
      %v1488 = vunpack.c.l.b16 %v345
      %v1489 = vunpack.c.l.b16 %v346
      %v1490 = vunpack.c.l.b16 %v347
      %v1491 = vunpack.c.l.b16 %v348
      %v1492 = vunpack.c.l.b16 %v349
      %v1493 = vunpack.c.l.b16 %v350
      %v1494 = vunpack.c.l.b16 %v351
      %v1495 = vunpack.c.l.b16 %v352
      %v1496 = vunpack.c.l.b16 %v353
      %v1497 = vunpack.c.l.b16 %v354
      %v1498 = vunpack.c.l.b16 %v355
      %v1499 = vunpack.c.l.b16 %v356
      %v1500 = vunpack.c.l.b16 %v357
      %v1501 = vunpack.c.l.b16 %v358
      %v1502 = vunpack.c.l.b16 %v359
      %v1503 = vunpack.c.l.b16 %v360
      %v1504 = vunpack.c.l.b16 %v361
      %v1505 = vunpack.c.l.b16 %v362
      %v1506 = vunpack.c.l.b16 %v363
      %v1507 = vunpack.c.l.b16 %v364
      %v1508 = vunpack.c.l.b16 %v365
      %v1509 = vunpack.c.l.b16 %v366
      %v1510 = vunpack.c.l.b16 %v367
      %v1511 = vunpack.c.l.b16 %v368
      %v1512 = vunpack.c.l.b16 %v369
      %v1513 = vunpack.c.l.b16 %v370
      %v1514 = vunpack.c.l.b16 %v371
      %v1515 = vunpack.c.l.b16 %v372
      %v1516 = vunpack.c.l.b16 %v373
      %v1517 = vunpack.c.l.b16 %v374
      %v1518 = vunpack.c.l.b16 %v375
      %v1519 = vunpack.c.l.b16 %v376
      %v1520 = vunpack.c.l.b16 %v377
      %v1521 = vunpack.c.l.b16 %v378
      %v1522 = vunpack.c.l.b16 %v379
      %v1523 = vunpack.c.l.b16 %v380
      %v1524 = vunpack.c.l.b16 %v381
      %v1525 = vunpack.c.l.b16 %v382
      %v1526 = vunpack.c.l.b16 %v383
      %v1527 = vunpack.c.l.b16 %v384
      %v1528 = vunpack.c.l.b16 %v385
      %v1529 = vunpack.c.l.b16 %v386
      %v1530 = vunpack.c.l.b16 %v387
      %v1531 = vunpack.c.l.b16 %v388
      %v1532 = vunpack.c.l.b16 %v389
      %v1533 = vunpack.c.l.b16 %v390
      %v1534 = vunpack.c.l.b16 %v391
      %v1535 = vunpack.c.l.b16 %v392
      %v1536 = vunpack.c.l.b16 %v393
      %v1537 = vunpack.c.l.b16 %v394
      %v1538 = vunpack.c.l.b16 %v395
      %v1539 = vunpack.c.l.b16 %v396
      %v1540 = vunpack.c.l.b16 %v397
      %v1541 = vunpack.c.l.b16 %v398
      %v1542 = vunpack.c.l.b16 %v399
      %v1543 = vunpack.c.l.b16 %v400
      %v1544 = vunpack.c.l.b16 %v401
      %v1545 = vunpack.c.l.b16 %v402
      %v1546 = vunpack.c.l.b16 %v403
      %v1547 = vunpack.c.l.b16 %v404
      %v1548 = vunpack.c.l.b16 %v405
      %v1549 = vunpack.c.l.b16 %v406
      %v1550 = vunpack.c.l.b16 %v407
      %v1551 = vunpack.c.l.b16 %v408
      %v1552 = vunpack.c.l.b16 %v409
      %v1553 = vunpack.c.l.b16 %v410
      %v1554 = vunpack.c.l.b16 %v411
      %v1555 = vunpack.c.l.b16 %v412
      %v1556 = vunpack.c.l.b16 %v413
      %v1557 = vunpack.c.l.b16 %v414
      %v1558 = vunpack.c.l.b16 %v415
      %v1559 = vunpack.c.l.b16 %v416
      %v1560 = vunpack.c.l.b16 %v417
      %v1561 = vunpack.c.l.b16 %v418
      %v1562 = vunpack.c.l.b16 %v419
      %v1563 = vunpack.c.l.b16 %v420
      %v1564 = vunpack.c.l.b16 %v421
      %v1565 = vunpack.c.l.b16 %v422
      %v1566 = vunpack.c.l.b16 %v423
      %v1567 = vunpack.c.l.b16 %v424
      %v1568 = vunpack.c.l.b16 %v425
      %v1569 = vunpack.c.l.b16 %v426
      %v1570 = vunpack.c.l.b16 %v427
      %v1571 = vunpack.c.l.b16 %v428
      %v1572 = vunpack.c.l.b16 %v429
      %v1573 = vunpack.c.l.b16 %v430
      %v1574 = vunpack.c.l.b16 %v431
      %v1575 = vunpack.c.l.b16 %v432
      %v1576 = vunpack.c.l.b16 %v433
      %v1577 = vunpack.c.l.b16 %v434
      %v1578 = vunpack.c.l.b16 %v435
      %v1579 = vunpack.c.l.b16 %v436
      %v1580 = vunpack.c.l.b16 %v437
      %v1581 = vunpack.c.l.b16 %v438
      %v1582 = vunpack.c.l.b16 %v439
      %v1583 = vunpack.c.l.b16 %v440
      %v1584 = vunpack.c.l.b16 %v441
      %v1585 = vunpack.c.l.b16 %v442
      %v1586 = vunpack.c.l.b16 %v443
      %v1587 = vunpack.c.l.b16 %v444
      %v1588 = vunpack.c.l.b16 %v445
      %v1589 = vunpack.c.l.b16 %v446
      %v1590 = vunpack.c.l.b16 %v447
      %v1591 = vunpack.c.l.b16 %v448
      %v1592 = vunpack.c.l.b16 %v449
      %v1593 = vunpack.c.l.b16 %v450
      %v1594 = vunpack.c.l.b16 %v451
      %v1595 = vunpack.c.l.b16 %v452
      %v1596 = vunpack.c.l.b16 %v453
      %v1597 = vunpack.c.l.b16 %v454
      %v1598 = vunpack.c.l.b16 %v455
      %v1599 = vunpack.c.l.b16 %v456
      %v1600 = vunpack.c.l.b16 %v457
      %v1601 = vunpack.c.l.b16 %v458
      %v1602 = vunpack.c.l.b16 %v459
      %v1603 = vunpack.c.l.b16 %v460
      %v1604 = vunpack.c.l.b16 %v461
      %v1605 = vunpack.c.l.b16 %v462
      %v1606 = vunpack.c.l.b16 %v463
      %v1607 = vunpack.c.l.b16 %v464
      %v1608 = vunpack.c.l.b16 %v465
      %v1609 = vunpack.c.l.b16 %v466
      %v1610 = vunpack.c.l.b16 %v467
      %v1611 = vunpack.c.l.b16 %v468
      %v1612 = vunpack.c.l.b16 %v469
      %v1613 = vunpack.c.l.b16 %v470
      %v1614 = vunpack.c.l.b16 %v471
      %v1615 = vunpack.c.l.b16 %v472
      %v1616 = vunpack.c.l.b16 %v473
      %v1617 = vunpack.c.l.b16 %v474
      %v1618 = vunpack.c.l.b16 %v475
      %v1619 = vunpack.c.l.b16 %v476
      %v1620 = vunpack.c.l.b16 %v477
      %v1621 = vunpack.c.l.b16 %v478
      %v1622 = vunpack.c.l.b16 %v479
      %v1623 = vunpack.c.l.b16 %v480
      %v1624 = vunpack.c.l.b16 %v481
      %v1625 = vunpack.c.l.b16 %v482
      %v1626 = vunpack.c.l.b16 %v483
      %v1627 = vunpack.c.l.b16 %v484
      %v1628 = vunpack.c.l.b16 %v485
      %v1629 = vunpack.c.l.b16 %v486
      %v1630 = vunpack.c.l.b16 %v487
      %v1631 = vunpack.c.l.b16 %v488
      %v1632 = vunpack.c.l.b16 %v489
      %v1633 = vunpack.c.l.b16 %v490
      %v1634 = vunpack.c.l.b16 %v491
      %v1635 = vunpack.c.l.b16 %v492
      %v1636 = vunpack.c.l.b16 %v493
      %v1637 = vunpack.c.l.b16 %v494
      %v1638 = vunpack.c.l.b16 %v495
      %v1639 = vunpack.c.l.b16 %v496
      %v1640 = vunpack.c.l.b16 %v497
      %v1641 = vunpack.c.l.b16 %v498
      %v1642 = vunpack.c.l.b16 %v499
      %v1643 = vunpack.c.l.b16 %v500
      %v1644 = vunpack.c.l.b16 %v501
      %v1645 = vunpack.c.l.b16 %v502
      %v1646 = vunpack.c.l.b16 %v503
      %v1647 = vunpack.c.l.b16 %v504
      %v1648 = vunpack.c.l.b16 %v505
      %v1649 = vunpack.c.l.b16 %v506
      %v1650 = vunpack.c.l.b16 %v507
      %v1651 = vunpack.c.l.b16 %v508
      %v1652 = vunpack.c.l.b16 %v509
      %v1653 = vunpack.c.l.b16 %v510
      %v1654 = vunpack.c.l.b16 %v511
      %v1655 = vunpack.c.l.b16 %v512
      %v1656 = vunpack.c.l.b16 %v513
      %v1657 = vunpack.c.l.b16 %v514
      %v1658 = vunpack.c.l.b16 %v515
      %v1659 = vunpack.c.l.b16 %v516
      %v1660 = vunpack.c.l.b16 %v517
      %v1661 = vunpack.c.l.b16 %v518
      %v1662 = vunpack.c.l.b16 %v519
      %v1663 = vunpack.c.l.b16 %v520
      %v1664 = vunpack.c.l.b16 %v521
      %v1665 = vunpack.c.l.b16 %v522
      %v1666 = vunpack.c.l.b16 %v523
      %v1667 = vunpack.c.l.b16 %v524
      %v1668 = vunpack.c.l.b16 %v525
      %v1669 = vunpack.c.l.b16 %v526
      %v1670 = vunpack.c.l.b16 %v527
      %v1671 = vunpack.c.l.b16 %v528
      %v1672 = vunpack.c.l.b16 %v529
      %v1673 = vunpack.c.l.b16 %v530
      %v1674 = vunpack.c.l.b16 %v531
      %v1675 = vunpack.c.l.b16 %v532
      %v1676 = vunpack.c.l.b16 %v533
      %v1677 = vunpack.c.l.b16 %v534
      %v1678 = vunpack.c.l.b16 %v535
      %v1679 = vunpack.c.l.b16 %v536
      %v1680 = vunpack.c.l.b16 %v537
      %v1681 = vunpack.c.l.b16 %v538
      %v1682 = vunpack.c.l.b16 %v539
      %v1683 = vunpack.c.l.b16 %v540
      %v1684 = vunpack.c.l.b16 %v541
      %v1685 = vunpack.c.l.b16 %v542
      %v1686 = vunpack.c.l.b16 %v543
      %v1687 = vunpack.c.l.b16 %v544
      %v1688 = vunpack.c.l.b16 %v545
      %v1689 = vunpack.c.l.b16 %v546
      %v1690 = vunpack.c.l.b16 %v547
      %v1691 = vunpack.c.l.b16 %v548
      %v1692 = vunpack.c.l.b16 %v549
      %v1693 = vunpack.c.l.b16 %v550
      %v1694 = vunpack.c.l.b16 %v551
      %v1695 = vunpack.c.l.b16 %v552
      %v1696 = vunpack.c.l.b16 %v553
      %v1697 = vunpack.c.l.b16 %v554
      %v1698 = vunpack.c.l.b16 %v555
      %v1699 = vunpack.c.l.b16 %v556
      %v1700 = vunpack.c.l.b16 %v557
      %v1701 = vunpack.c.l.b16 %v558
      %v1702 = vunpack.c.l.b16 %v559
      %v1703 = vunpack.c.l.b16 %v560
      %v1704 = vunpack.c.l.b16 %v561
      %v1705 = vunpack.c.l.b16 %v562
      %v1706 = vunpack.c.l.b16 %v563
      %v1707 = vunpack.c.l.b16 %v564
      %v1708 = vunpack.c.l.b16 %v565
      %v1709 = vunpack.c.l.b16 %v566
      %v1710 = vunpack.c.l.b16 %v567
      %v1711 = vunpack.c.l.b16 %v568
      %v1712 = vunpack.c.l.b16 %v569
      %v1713 = vunpack.c.l.b16 %v570
      %v1714 = vunpack.c.l.b16 %v571
      %v1715 = vunpack.c.l.b16 %v572
      %v1716 = vunpack.c.l.b16 %v573
      %v1717 = vunpack.c.l.b16 %v574
      %v1718 = vunpack.c.l.b16 %v575
      %v1719 = vunpack.c.l.b16 %v576
      %v1720 = vunpack.c.l.b16 %v577
      %v1721 = vunpack.c.l.b16 %v578
      %v1722 = vunpack.c.l.b16 %v579
      %v1723 = vunpack.c.l.b16 %v580
      %v1724 = vunpack.c.l.b16 %v581
      %v1725 = vunpack.c.l.b16 %v582
      %v1726 = vunpack.c.l.b16 %v583
      %v1727 = vunpack.c.l.b16 %v584
      %v1728 = vunpack.c.l.b16 %v585
      %v1729 = vunpack.c.l.b16 %v586
      %v1730 = vunpack.c.l.b16 %v587
      %v1731 = vunpack.c.l.b16 %v588
      %v1732 = vunpack.c.l.b16 %v589
      %v1733 = vunpack.c.l.b16 %v590
      %v1734 = vunpack.c.l.b16 %v591
      %v1735 = vunpack.c.l.b16 %v592
      %v1736 = vunpack.c.l.b16 %v593
      %v1737 = vunpack.c.l.b16 %v594
      %v1738 = vunpack.c.l.b16 %v595
      %v1739 = vunpack.c.l.b16 %v596
      %v1740 = vunpack.c.l.b16 %v597
      %v1741 = vunpack.c.l.b16 %v598
      %v1742 = vunpack.c.l.b16 %v599
      %v1743 = vunpack.c.l.b16 %v600
      %v1744 = vunpack.c.l.b16 %v601
      %v1745 = vunpack.c.l.b16 %v602
      %v1746 = vunpack.c.l.b16 %v603
      %v1747 = vunpack.c.l.b16 %v604
      %v1748 = vunpack.c.l.b16 %v605
      %v1749 = vunpack.c.l.b16 %v606
      %v1750 = vunpack.c.l.b16 %v607
      %v1751 = vunpack.c.l.b16 %v608
      %v1752 = vunpack.c.l.b16 %v609
      %v1753 = vunpack.c.l.b16 %v610
      %v1754 = vunpack.c.l.b16 %v611
      %v1755 = vunpack.c.l.b16 %v612
      %v1756 = vunpack.c.l.b16 %v613
      %v1757 = vunpack.c.l.b16 %v614
      %v1758 = vunpack.c.l.b16 %v615
      %v1759 = vunpack.c.l.b16 %v616
      %v1760 = vunpack.c.l.b16 %v617
      %v1761 = vunpack.c.l.b16 %v618
      %v1762 = vunpack.c.l.b16 %v619
      %v1763 = vunpack.c.l.b16 %v620
      %v1764 = vunpack.c.l.b16 %v621
      %v1765 = vunpack.c.l.b16 %v622
      %v1766 = vunpack.c.l.b16 %v623
      %v1767 = vunpack.c.l.b16 %v624
      %v1768 = vunpack.c.l.b16 %v625
      %v1769 = vunpack.c.l.b16 %v626
      %v1770 = vunpack.c.l.b16 %v627
      %v1771 = vunpack.c.l.b16 %v628
      %v1772 = vunpack.c.l.b16 %v629
      %v1773 = vunpack.c.l.b16 %v630
      %v1774 = vunpack.c.l.b16 %v631
      %v1775 = vunpack.c.l.b16 %v632
      %v1776 = vunpack.c.l.b16 %v633
      %v1777 = vunpack.c.l.b16 %v634
      %v1778 = vunpack.c.l.b16 %v635
      %v1779 = vunpack.c.l.b16 %v636
      %v1780 = vunpack.c.l.b16 %v637
      %v1781 = vunpack.c.l.b16 %v638
      %v1782 = vunpack.c.l.b16 %v639
      %v1783 = vunpack.c.l.b16 %v640
      %v1784 = vunpack.c.l.b16 %v641
      %v1785 = vunpack.c.l.b16 %v642
      %v1786 = vunpack.c.l.b16 %v643
      %v1787 = vunpack.c.l.b16 %v644
      %v1788 = vunpack.c.l.b16 %v645
      %v1789 = vunpack.c.l.b16 %v646
      %v1790 = vunpack.c.l.b16 %v647
      %v1791 = vunpack.c.l.b16 %v648
      %v1792 = vunpack.c.l.b16 %v649
      %v1793 = vunpack.c.l.b16 %v650
      %v1794 = vunpack.c.l.b16 %v651
      %v1795 = vunpack.c.l.b16 %v652
      %v1796 = vunpack.c.l.b16 %v653
      %v1797 = vunpack.c.l.b16 %v654
      %v1798 = vunpack.c.l.b16 %v655
      %v1799 = vunpack.c.l.b16 %v656
      %v1800 = vunpack.c.l.b16 %v657
      %v1801 = vunpack.c.l.b16 %v658
      %v1802 = vunpack.c.l.b16 %v659
      %v1803 = vunpack.c.l.b16 %v660
      %v1804 = vunpack.c.l.b16 %v661
      %v1805 = vunpack.c.l.b16 %v662
      %v1806 = vunpack.c.l.b16 %v663
      %v1807 = vunpack.c.l.b16 %v664
      %v1808 = vunpack.c.l.b16 %v665
      %v1809 = vpack.c.b16 %v1378, %v1377
      %v1810 = vpack.c.b16 %v1380, %v1379
      %v1811 = vpack.c.b16 %v1382, %v1381
      %v1812 = vpack.c.b16 %v1384, %v1383
      %v1813 = vpack.c.b16 %v1386, %v1385
      %v1814 = vpack.c.b16 %v1388, %v1387
      %v1815 = vpack.c.b16 %v1390, %v1389
      %v1816 = vpack.c.b16 %v1392, %v1391
      %v1817 = vpack.c.b16 %v1394, %v1393
      %v1818 = vpack.c.b16 %v1396, %v1395
      %v1819 = vpack.c.b16 %v1398, %v1397
      %v1820 = vpack.c.b16 %v1400, %v1399
      %v1821 = vpack.c.b16 %v1402, %v1401
      %v1822 = vpack.c.b16 %v1404, %v1403
      %v1823 = vpack.c.b16 %v1406, %v1405
      %v1824 = vpack.c.b16 %v1408, %v1407
      %v1825 = vpack.c.b16 %v1410, %v1409
      %v1826 = vpack.c.b16 %v1412, %v1411
      %v1827 = vpack.c.b16 %v1414, %v1413
      %v1828 = vpack.c.b16 %v1416, %v1415
      %v1829 = vpack.c.b16 %v1418, %v1417
      %v1830 = vpack.c.b16 %v1420, %v1419
      %v1831 = vpack.c.b16 %v1422, %v1421
      %v1832 = vpack.c.b16 %v1424, %v1423
      %v1833 = vpack.c.b16 %v1426, %v1425
      %v1834 = vpack.c.b16 %v1428, %v1427
      %v1835 = vpack.c.b16 %v1430, %v1429
      %v1836 = vpack.c.b16 %v1432, %v1431
      %v1837 = vpack.c.b16 %v1434, %v1433
      %v1838 = vpack.c.b16 %v1436, %v1435
      %v1839 = vpack.c.b16 %v1438, %v1437
      %v1840 = vpack.c.b16 %v1440, %v1439
      %v1841 = vpack.c.b16 %v1442, %v1441
      %v1842 = vpack.c.b16 %v1444, %v1443
      %v1843 = vpack.c.b16 %v1446, %v1445
      %v1844 = vpack.c.b16 %v1448, %v1447
      %v1845 = vpack.c.b16 %v1450, %v1449
      %v1846 = vpack.c.b16 %v1452, %v1451
      %v1847 = vpack.c.b16 %v1454, %v1453
      %v1848 = vpack.c.b16 %v1456, %v1455
      %v1849 = vpack.c.b16 %v1458, %v1457
      %v1850 = vpack.c.b16 %v1460, %v1459
      %v1851 = vpack.c.b16 %v1462, %v1461
      %v1852 = vpack.c.b16 %v1464, %v1463
      %v1853 = vpack.c.b16 %v1466, %v1465
      %v1854 = vpack.c.b16 %v1468, %v1467
      %v1855 = vpack.c.b16 %v1470, %v1469
      %v1856 = vpack.c.b16 %v1472, %v1471
      %v1857 = vpack.c.b16 %v1474, %v1473
      %v1858 = vpack.c.b16 %v1476, %v1475
      %v1859 = vpack.c.b16 %v1478, %v1477
      %v1860 = vpack.c.b16 %v1480, %v1479
      %v1861 = vpack.c.b16 %v1482, %v1481
      %v1862 = vpack.c.b16 %v1484, %v1483
      %v1863 = vpack.c.b16 %v1486, %v1485
      %v1864 = vpack.c.b16 %v1488, %v1487
      %v1865 = vpack.c.b16 %v1490, %v1489
      %v1866 = vpack.c.b16 %v1492, %v1491
      %v1867 = vpack.c.b16 %v1494, %v1493
      %v1868 = vpack.c.b16 %v1496, %v1495
      %v1869 = vpack.c.b16 %v1498, %v1497
      %v1870 = vpack.c.b16 %v1500, %v1499
      %v1871 = vpack.c.b16 %v1502, %v1501
      %v1872 = vpack.c.b16 %v1504, %v1503
      %v1873 = vpack.c.b16 %v1506, %v1505
      %v1874 = vpack.c.b16 %v1508, %v1507
      %v1875 = vpack.c.b16 %v1510, %v1509
      %v1876 = vpack.c.b16 %v1512, %v1511
      %v1877 = vpack.c.b16 %v1514, %v1513
      %v1878 = vpack.c.b16 %v1516, %v1515
      %v1879 = vpack.c.b16 %v1518, %v1517
      %v1880 = vpack.c.b16 %v1520, %v1519
      %v1881 = vpack.c.b16 %v1522, %v1521
      %v1882 = vpack.c.b16 %v1524, %v1523
      %v1883 = vpack.c.b16 %v1526, %v1525
      %v1884 = vpack.c.b16 %v1528, %v1527
      %v1885 = vpack.c.b16 %v1530, %v1529
      %v1886 = vpack.c.b16 %v1532, %v1531
      %v1887 = vpack.c.b16 %v1534, %v1533
      %v1888 = vpack.c.b16 %v1536, %v1535
      %v1889 = vpack.c.b16 %v1538, %v1537
      %v1890 = vpack.c.b16 %v1540, %v1539
      %v1891 = vpack.c.b16 %v1542, %v1541
      %v1892 = vpack.c.b16 %v1544, %v1543
      %v1893 = vpack.c.b16 %v1546, %v1545
      %v1894 = vpack.c.b16 %v1548, %v1547
      %v1895 = vpack.c.b16 %v1550, %v1549
      %v1896 = vpack.c.b16 %v1552, %v1551
      %v1897 = vpack.c.b16 %v1554, %v1553
      %v1898 = vpack.c.b16 %v1556, %v1555
      %v1899 = vpack.c.b16 %v1558, %v1557
      %v1900 = vpack.c.b16 %v1560, %v1559
      %v1901 = vpack.c.b16 %v1562, %v1561
      %v1902 = vpack.c.b16 %v1564, %v1563
      %v1903 = vpack.c.b16 %v1566, %v1565
      %v1904 = vpack.c.b16 %v1568, %v1567
      %v1905 = vpack.c.b16 %v1570, %v1569
      %v1906 = vpack.c.b16 %v1572, %v1571
      %v1907 = vpack.c.b16 %v1574, %v1573
      %v1908 = vpack.c.b16 %v1576, %v1575
      %v1909 = vpack.c.b16 %v1578, %v1577
      %v1910 = vpack.c.b16 %v1580, %v1579
      %v1911 = vpack.c.b16 %v1582, %v1581
      %v1912 = vpack.c.b16 %v1584, %v1583
      %v1913 = vpack.c.b16 %v1586, %v1585
      %v1914 = vpack.c.b16 %v1588, %v1587
      %v1915 = vpack.c.b16 %v1590, %v1589
      %v1916 = vpack.c.b16 %v1592, %v1591
      %v1917 = vpack.c.b16 %v1594, %v1593
      %v1918 = vpack.c.b16 %v1596, %v1595
      %v1919 = vpack.c.b16 %v1598, %v1597
      %v1920 = vpack.c.b16 %v1600, %v1599
      %v1921 = vpack.c.b16 %v1602, %v1601
      %v1922 = vpack.c.b16 %v1604, %v1603
      %v1923 = vpack.c.b16 %v1606, %v1605
      %v1924 = vpack.c.b16 %v1608, %v1607
      %v1925 = vpack.c.b16 %v1610, %v1609
      %v1926 = vpack.c.b16 %v1612, %v1611
      %v1927 = vpack.c.b16 %v1614, %v1613
      %v1928 = vpack.c.b16 %v1616, %v1615
      %v1929 = vpack.c.b16 %v1618, %v1617
      %v1930 = vpack.c.b16 %v1620, %v1619
      %v1931 = vpack.c.b16 %v1622, %v1621
      %v1932 = vpack.c.b16 %v1624, %v1623
      %v1933 = vpack.c.b16 %v1626, %v1625
      %v1934 = vpack.c.b16 %v1628, %v1627
      %v1935 = vpack.c.b16 %v1630, %v1629
      %v1936 = vpack.c.b16 %v1632, %v1631
      %v1937 = vpack.c.b16 %v1634, %v1633
      %v1938 = vpack.c.b16 %v1636, %v1635
      %v1939 = vpack.c.b16 %v1638, %v1637
      %v1940 = vpack.c.b16 %v1640, %v1639
      %v1941 = vpack.c.b16 %v1642, %v1641
      %v1942 = vpack.c.b16 %v1644, %v1643
      %v1943 = vpack.c.b16 %v1646, %v1645
      %v1944 = vpack.c.b16 %v1648, %v1647
      %v1945 = vpack.c.b16 %v1650, %v1649
      %v1946 = vpack.c.b16 %v1652, %v1651
      %v1947 = vpack.c.b16 %v1654, %v1653
      %v1948 = vpack.c.b16 %v1656, %v1655
      %v1949 = vpack.c.b16 %v1658, %v1657
      %v1950 = vpack.c.b16 %v1660, %v1659
      %v1951 = vpack.c.b16 %v1662, %v1661
      %v1952 = vpack.c.b16 %v1664, %v1663
      %v1953 = vpack.c.b16 %v1666, %v1665
      %v1954 = vpack.c.b16 %v1668, %v1667
      %v1955 = vpack.c.b16 %v1670, %v1669
      %v1956 = vpack.c.b16 %v1672, %v1671
      %v1957 = vpack.c.b16 %v1674, %v1673
      %v1958 = vpack.c.b16 %v1676, %v1675
      %v1959 = vpack.c.b16 %v1678, %v1677
      %v1960 = vpack.c.b16 %v1680, %v1679
      %v1961 = vpack.c.b16 %v1682, %v1681
      %v1962 = vpack.c.b16 %v1684, %v1683
      %v1963 = vpack.c.b16 %v1686, %v1685
      %v1964 = vpack.c.b16 %v1688, %v1687
      %v1965 = vpack.c.b16 %v1690, %v1689
      %v1966 = vpack.c.b16 %v1692, %v1691
      %v1967 = vpack.c.b16 %v1694, %v1693
      %v1968 = vpack.c.b16 %v1696, %v1695
      %v1969 = vpack.c.b16 %v1698, %v1697
      %v1970 = vpack.c.b16 %v1700, %v1699
      %v1971 = vpack.c.b16 %v1702, %v1701
      %v1972 = vpack.c.b16 %v1704, %v1703
      %v1973 = vpack.c.b16 %v1706, %v1705
      %v1974 = vpack.c.b16 %v1708, %v1707
      %v1975 = vpack.c.b16 %v1710, %v1709
      %v1976 = vpack.c.b16 %v1712, %v1711
      %v1977 = vpack.c.b16 %v1714, %v1713
      %v1978 = vpack.c.b16 %v1716, %v1715
      %v1979 = vpack.c.b16 %v1718, %v1717
      %v1980 = vpack.c.b16 %v1720, %v1719
      %v1981 = vpack.c.b16 %v1722, %v1721
      %v1982 = vpack.c.b16 %v1724, %v1723
      %v1983 = vpack.c.b16 %v1726, %v1725
      %v1984 = vpack.c.b16 %v1728, %v1727
      %v1985 = vpack.c.b16 %v1730, %v1729
      %v1986 = vpack.c.b16 %v1732, %v1731
      %v1987 = vpack.c.b16 %v1734, %v1733
      %v1988 = vpack.c.b16 %v1736, %v1735
      %v1989 = vpack.c.b16 %v1738, %v1737
      %v1990 = vpack.c.b16 %v1740, %v1739
      %v1991 = vpack.c.b16 %v1742, %v1741
      %v1992 = vpack.c.b16 %v1744, %v1743
      %v1993 = vpack.c.b16 %v1746, %v1745
      %v1994 = vpack.c.b16 %v1748, %v1747
      %v1995 = vpack.c.b16 %v1750, %v1749
      %v1996 = vpack.c.b16 %v1752, %v1751
      %v1997 = vpack.c.b16 %v1754, %v1753
      %v1998 = vpack.c.b16 %v1756, %v1755
      %v1999 = vpack.c.b16 %v1758, %v1757
      %v2000 = vpack.c.b16 %v1760, %v1759
      %v2001 = vpack.c.b16 %v1762, %v1761
      %v2002 = vpack.c.b16 %v1764, %v1763
      %v2003 = vpack.c.b16 %v1766, %v1765
      %v2004 = vpack.c.b16 %v1768, %v1767
      %v2005 = vpack.c.b16 %v1770, %v1769
      %v2006 = vpack.c.b16 %v1772, %v1771
      %v2007 = vpack.c.b16 %v1774, %v1773
      %v2008 = vpack.c.b16 %v1776, %v1775
      %v2009 = vpack.c.b16 %v1778, %v1777
      %v2010 = vpack.c.b16 %v1780, %v1779
      %v2011 = vpack.c.b16 %v1782, %v1781
      %v2012 = vpack.c.b16 %v1784, %v1783
      %v2013 = vpack.c.b16 %v1786, %v1785
      %v2014 = vpack.c.b16 %v1788, %v1787
      %v2015 = vpack.c.b16 %v1790, %v1789
      %v2016 = vpack.c.b16 %v1792, %v1791
      %v2017 = vpack.c.b16 %v1794, %v1793
      %v2018 = vpack.c.b16 %v1796, %v1795
      %v2019 = vpack.c.b16 %v1798, %v1797
      %v2020 = vpack.c.b16 %v1800, %v1799
      %v2021 = vpack.c.b16 %v1802, %v1801
      %v2022 = vpack.c.b16 %v1804, %v1803
      %v2023 = vpack.c.b16 %v1806, %v1805
      %v2024 = vpack.c.b16 %v1808, %v1807
      %2241 = vmatprep.subr.bf16.mxu0 0
      %2242 = vmatpush1.bf16.msra.mxu0 %v1809
      %2243 = vmatprep.subr.bf16.mxu0 0
      %2244 = vmatpush1.bf16.msra.mxu0 %v1810
      %2245 = vmatprep.subr.bf16.mxu0 0
      %2246 = vmatpush1.bf16.msra.mxu0 %v1811
      %2247 = vmatprep.subr.bf16.mxu0 0
      %2248 = vmatpush1.bf16.msra.mxu0 %v1812
      %2249 = vmatprep.subr.bf16.mxu0 0
      %2250 = vmatpush1.bf16.msra.mxu0 %v1813
      %2251 = vmatprep.subr.bf16.mxu0 0
      %2252 = vmatpush1.bf16.msra.mxu0 %v1814
      %2253 = vmatprep.subr.bf16.mxu0 0
      %2254 = vmatpush1.bf16.msra.mxu0 %v1815
      %2255 = vmatprep.subr.bf16.mxu0 0
      %2256 = vmatpush1.bf16.msra.mxu0 %v1816
      %2257 = vmatprep.subr.bf16.mxu0 0
      %2258 = vmatpush1.bf16.msra.mxu0 %v1817
      %2259 = vmatprep.subr.bf16.mxu0 0
      %2260 = vmatpush1.bf16.msra.mxu0 %v1818
      %2261 = vmatprep.subr.bf16.mxu0 0
      %2262 = vmatpush1.bf16.msra.mxu0 %v1819
      %2263 = vmatprep.subr.bf16.mxu0 0
      %2264 = vmatpush1.bf16.msra.mxu0 %v1820
      %2265 = vmatprep.subr.bf16.mxu0 0
      %2266 = vmatpush1.bf16.msra.mxu0 %v1821
      %2267 = vmatprep.subr.bf16.mxu0 0
      %2268 = vmatpush1.bf16.msra.mxu0 %v1822
      %2269 = vmatprep.subr.bf16.mxu0 0
      %2270 = vmatpush1.bf16.msra.mxu0 %v1823
      %2271 = vmatprep.subr.bf16.mxu0 0
      %2272 = vmatpush1.bf16.msra.mxu0 %v1824
      %2273 = vmatprep.mubr.bf16.mxu0 %v838
      %2274 = vmatmul.mubr.bf16.gmra.mrb[0].mxu0 %v837
      %v2275 = vpop.f32.mrb[0].mxu0
      %v2276 = vadd.f32 %v671, %v2275
      %v2277 = vpop.f32.mrb[0].mxu0
      %v2278 = vpop.f32.mrb[0].mxu0
      %v2279 = vadd.f32 %v671, %v2278
      %v2280 = vpop.f32.mrb[0].mxu0
      %2281 = vmatprep.mubr.bf16.mxu0 %v865
      %2282 = vmatmul.mubr.bf16.gmra.mrb[0].mxu0 %v864
      %v2283 = vpop.f32.mrb[0].mxu0
      %v2284 = vadd.f32 %v671, %v2283
      %v2285 = vpop.f32.mrb[0].mxu0
      %v2286 = vpop.f32.mrb[0].mxu0
      %v2287 = vadd.f32 %v671, %v2286
      %v2288 = vpop.f32.mrb[0].mxu0
      %2289 = vdwg.mxu0
      %2290 = vmatprep.subr.bf16.mxu0 0
      %2291 = vmatpush1.bf16.msra.mxu0 %v1825
      %2292 = vmatprep.subr.bf16.mxu0 0
      %2293 = vmatpush1.bf16.msra.mxu0 %v1826
      %2294 = vmatprep.subr.bf16.mxu0 0
      %2295 = vmatpush1.bf16.msra.mxu0 %v1827
      %2296 = vmatprep.subr.bf16.mxu0 0
      %2297 = vmatpush1.bf16.msra.mxu0 %v1828
      %2298 = vmatprep.subr.bf16.mxu0 0
      %2299 = vmatpush1.bf16.msra.mxu0 %v1829
      %2300 = vmatprep.subr.bf16.mxu0 0
      %2301 = vmatpush1.bf16.msra.mxu0 %v1830
      %2302 = vmatprep.subr.bf16.mxu0 0
      %2303 = vmatpush1.bf16.msra.mxu0 %v1831
      %2304 = vmatprep.subr.bf16.mxu0 0
      %2305 = vmatpush1.bf16.msra.mxu0 %v1832
      %2306 = vmatprep.subr.bf16.mxu0 0
      %2307 = vmatpush1.bf16.msra.mxu0 %v1833
      %2308 = vmatprep.subr.bf16.mxu0 0
      %2309 = vmatpush1.bf16.msra.mxu0 %v1834
      %2310 = vmatprep.subr.bf16.mxu0 0
      %2311 = vmatpush1.bf16.msra.mxu0 %v1835
      %2312 = vmatprep.subr.bf16.mxu0 0
      %2313 = vmatpush1.bf16.msra.mxu0 %v1836
      %2314 = vmatprep.subr.bf16.mxu0 0
      %2315 = vmatpush1.bf16.msra.mxu0 %v1837
      %2316 = vmatprep.subr.bf16.mxu0 0
      %2317 = vmatpush1.bf16.msra.mxu0 %v1838
      %2318 = vmatprep.subr.bf16.mxu0 0
      %2319 = vmatpush1.bf16.msra.mxu0 %v1839
      %2320 = vmatprep.subr.bf16.mxu0 0
      %2321 = vmatpush1.bf16.msra.mxu0 %v1840
      %2322 = vmatprep.mubr.bf16.mxu0 %v840
      %2323 = vmatmul.mubr.bf16.gmra.mrb[0].mxu0 %v839
      %v2324 = vpop.f32.mrb[0].mxu0
      %v2325 = vadd.f32 %v2276, %v2324
      %v2326 = vpop.f32.mrb[0].mxu0
      %v2327 = vpop.f32.mrb[0].mxu0
      %v2328 = vadd.f32 %v2279, %v2327
      %v2329 = vpop.f32.mrb[0].mxu0
      %2330 = vmatprep.mubr.bf16.mxu0 %v867
      %2331 = vmatmul.mubr.bf16.gmra.mrb[0].mxu0 %v866
      %v2332 = vpop.f32.mrb[0].mxu0
      %v2333 = vadd.f32 %v2284, %v2332
      %v2334 = vpop.f32.mrb[0].mxu0
      %v2335 = vpop.f32.mrb[0].mxu0
      %v2336 = vadd.f32 %v2287, %v2335
      %v2337 = vpop.f32.mrb[0].mxu0
      %2338 = vdwg.mxu0
      %2339 = vmatprep.subr.bf16.mxu0 0
      %2340 = vmatpush1.bf16.msra.mxu0 %v1841
      %2341 = vmatprep.subr.bf16.mxu0 0
      %2342 = vmatpush1.bf16.msra.mxu0 %v1842
      %2343 = vmatprep.subr.bf16.mxu0 0
      %2344 = vmatpush1.bf16.msra.mxu0 %v1843
      %2345 = vmatprep.subr.bf16.mxu0 0
      %2346 = vmatpush1.bf16.msra.mxu0 %v1844
      %2347 = vmatprep.subr.bf16.mxu0 0
      %2348 = vmatpush1.bf16.msra.mxu0 %v1845
      %2349 = vmatprep.subr.bf16.mxu0 0
      %2350 = vmatpush1.bf16.msra.mxu0 %v1846
      %2351 = vmatprep.subr.bf16.mxu0 0
      %2352 = vmatpush1.bf16.msra.mxu0 %v1847
      %2353 = vmatprep.subr.bf16.mxu0 0
      %2354 = vmatpush1.bf16.msra.mxu0 %v1848
      %2355 = vmatprep.subr.bf16.mxu0 0
      %2356 = vmatpush1.bf16.msra.mxu0 %v1849
      %2357 = vmatprep.subr.bf16.mxu0 0
      %2358 = vmatpush1.bf16.msra.mxu0 %v1850
      %2359 = vmatprep.subr.bf16.mxu0 0
      %2360 = vmatpush1.bf16.msra.mxu0 %v1851
      %2361 = vmatprep.subr.bf16.mxu0 0
      %2362 = vmatpush1.bf16.msra.mxu0 %v1852
      %2363 = vmatprep.subr.bf16.mxu0 0
      %2364 = vmatpush1.bf16.msra.mxu0 %v1853
      %2365 = vmatprep.subr.bf16.mxu0 0
      %2366 = vmatpush1.bf16.msra.mxu0 %v1854
      %2367 = vmatprep.subr.bf16.mxu0 0
      %2368 = vmatpush1.bf16.msra.mxu0 %v1855
      %2369 = vmatprep.subr.bf16.mxu0 0
      %2370 = vmatpush1.bf16.msra.mxu0 %v1856
      %2371 = vmatprep.mubr.bf16.mxu0 %v842
      %2372 = vmatmul.mubr.bf16.gmra.mrb[0].mxu0 %v841
      %v2373 = vpop.f32.mrb[0].mxu0
      %v2374 = vadd.f32 %v2325, %v2373
      %v2375 = vpop.f32.mrb[0].mxu0
      %v2376 = vpop.f32.mrb[0].mxu0
      %v2377 = vadd.f32 %v2328, %v2376
      %v2378 = vpop.f32.mrb[0].mxu0
      %2379 = vmatprep.mubr.bf16.mxu0 %v869
      %2380 = vmatmul.mubr.bf16.gmra.mrb[0].mxu0 %v868
      %v2381 = vpop.f32.mrb[0].mxu0
      %v2382 = vadd.f32 %v2333, %v2381
      %v2383 = vpop.f32.mrb[0].mxu0
      %v2384 = vpop.f32.mrb[0].mxu0
      %v2385 = vadd.f32 %v2336, %v2384
      %v2386 = vpop.f32.mrb[0].mxu0
      %2387 = vdwg.mxu0
      %2388 = vmatprep.subr.bf16.mxu0 0
      %2389 = vmatpush1.bf16.msra.mxu0 %v1857
      %2390 = vmatprep.subr.bf16.mxu0 0
      %2391 = vmatpush1.bf16.msra.mxu0 %v1858
      %2392 = vmatprep.subr.bf16.mxu0 0
      %2393 = vmatpush1.bf16.msra.mxu0 %v1859
      %2394 = vmatprep.subr.bf16.mxu0 0
      %2395 = vmatpush1.bf16.msra.mxu0 %v1860
      %2396 = vmatprep.subr.bf16.mxu0 0
      %2397 = vmatpush1.bf16.msra.mxu0 %v1861
      %2398 = vmatprep.subr.bf16.mxu0 0
      %2399 = vmatpush1.bf16.msra.mxu0 %v1862
      %2400 = vmatprep.subr.bf16.mxu0 0
      %2401 = vmatpush1.bf16.msra.mxu0 %v1863
      %2402 = vmatprep.subr.bf16.mxu0 0
      %2403 = vmatpush1.bf16.msra.mxu0 %v1864
      %2404 = vmatprep.subr.bf16.mxu0 0
      %2405 = vmatpush1.bf16.msra.mxu0 %v1865
      %2406 = vmatprep.subr.bf16.mxu0 0
      %2407 = vmatpush1.bf16.msra.mxu0 %v1866
      %2408 = vmatprep.subr.bf16.mxu0 0
      %2409 = vmatpush1.bf16.msra.mxu0 %v1867
      %2410 = vmatprep.subr.bf16.mxu0 0
      %2411 = vmatpush1.bf16.msra.mxu0 %v1868
      %2412 = vmatprep.subr.bf16.mxu0 0
      %2413 = vmatpush1.bf16.msra.mxu0 %v1869
      %2414 = vmatprep.subr.bf16.mxu0 0
      %2415 = vmatpush1.bf16.msra.mxu0 %v1870
      %2416 = vmatprep.subr.bf16.mxu0 0
      %2417 = vmatpush1.bf16.msra.mxu0 %v1871
      %2418 = vmatprep.subr.bf16.mxu0 0
      %2419 = vmatpush1.bf16.msra.mxu0 %v1872
      %2420 = vmatprep.mubr.bf16.mxu0 %v844
      %2421 = vmatmul.mubr.bf16.gmra.mrb[0].mxu0 %v843
      %v2422 = vpop.f32.mrb[0].mxu0
      %v2423 = vadd.f32 %v2374, %v2422
      %v2424 = vpop.f32.mrb[0].mxu0
      %v2425 = vpop.f32.mrb[0].mxu0
      %v2426 = vadd.f32 %v2377, %v2425
      %v2427 = vpop.f32.mrb[0].mxu0
      %2428 = vmatprep.mubr.bf16.mxu0 %v871
      %2429 = vmatmul.mubr.bf16.gmra.mrb[0].mxu0 %v870
      %v2430 = vpop.f32.mrb[0].mxu0
      %v2431 = vadd.f32 %v2382, %v2430
      %v2432 = vpop.f32.mrb[0].mxu0
      %v2433 = vpop.f32.mrb[0].mxu0
      %v2434 = vadd.f32 %v2385, %v2433
      %v2435 = vpop.f32.mrb[0].mxu0
      %2436 = vdwg.mxu0
      %2437 = vmatprep.subr.bf16.mxu0 0
      %2438 = vmatpush1.bf16.msra.mxu0 %v1873
      %2439 = vmatprep.subr.bf16.mxu0 0
      %2440 = vmatpush1.bf16.msra.mxu0 %v1874
      %2441 = vmatprep.subr.bf16.mxu0 0
      %2442 = vmatpush1.bf16.msra.mxu0 %v1875
      %2443 = vmatprep.subr.bf16.mxu0 0
      %2444 = vmatpush1.bf16.msra.mxu0 %v1876
      %2445 = vmatprep.subr.bf16.mxu0 0
      %2446 = vmatpush1.bf16.msra.mxu0 %v1877
      %2447 = vmatprep.subr.bf16.mxu0 0
      %2448 = vmatpush1.bf16.msra.mxu0 %v1878
      %2449 = vmatprep.subr.bf16.mxu0 0
      %2450 = vmatpush1.bf16.msra.mxu0 %v1879
      %2451 = vmatprep.subr.bf16.mxu0 0
      %2452 = vmatpush1.bf16.msra.mxu0 %v1880
      %2453 = vmatprep.subr.bf16.mxu0 0
      %2454 = vmatpush1.bf16.msra.mxu0 %v1881
      %2455 = vmatprep.subr.bf16.mxu0 0
      %2456 = vmatpush1.bf16.msra.mxu0 %v1882
      %2457 = vmatprep.subr.bf16.mxu0 0
      %2458 = vmatpush1.bf16.msra.mxu0 %v1883
      %2459 = vmatprep.subr.bf16.mxu0 0
      %2460 = vmatpush1.bf16.msra.mxu0 %v1884
      %2461 = vmatprep.subr.bf16.mxu0 0
      %2462 = vmatpush1.bf16.msra.mxu0 %v1885
      %2463 = vmatprep.subr.bf16.mxu0 0
      %2464 = vmatpush1.bf16.msra.mxu0 %v1886
      %2465 = vmatprep.subr.bf16.mxu0 0
      %2466 = vmatpush1.bf16.msra.mxu0 %v1887
      %2467 = vmatprep.subr.bf16.mxu0 0
      %2468 = vmatpush1.bf16.msra.mxu0 %v1888
      %2469 = vmatprep.mubr.bf16.mxu0 %v846
      %2470 = vmatmul.mubr.bf16.gmra.mrb[0].mxu0 %v845
      %v2471 = vpop.f32.mrb[0].mxu0
      %v2472 = vadd.f32 %v2423, %v2471
      %v2473 = vpop.f32.mrb[0].mxu0
      %v2474 = vpop.f32.mrb[0].mxu0
      %v2475 = vadd.f32 %v2426, %v2474
      %v2476 = vpop.f32.mrb[0].mxu0
      %2477 = vmatprep.mubr.bf16.mxu0 %v873
      %2478 = vmatmul.mubr.bf16.gmra.mrb[0].mxu0 %v872
      %v2479 = vpop.f32.mrb[0].mxu0
      %v2480 = vadd.f32 %v2431, %v2479
      %v2481 = vpop.f32.mrb[0].mxu0
      %v2482 = vpop.f32.mrb[0].mxu0
      %v2483 = vadd.f32 %v2434, %v2482
      %v2484 = vpop.f32.mrb[0].mxu0
      %2485 = vdwg.mxu0
      %2486 = vmatprep.subr.bf16.mxu0 0
      %2487 = vmatpush1.bf16.msra.mxu0 %v1889
      %2488 = vmatprep.subr.bf16.mxu0 0
      %2489 = vmatpush1.bf16.msra.mxu0 %v1890
      %2490 = vmatprep.subr.bf16.mxu0 0
      %2491 = vmatpush1.bf16.msra.mxu0 %v1891
      %2492 = vmatprep.subr.bf16.mxu0 0
      %2493 = vmatpush1.bf16.msra.mxu0 %v1892
      %2494 = vmatprep.subr.bf16.mxu0 0
      %2495 = vmatpush1.bf16.msra.mxu0 %v1893
      %2496 = vmatprep.subr.bf16.mxu0 0
      %2497 = vmatpush1.bf16.msra.mxu0 %v1894
      %2498 = vmatprep.subr.bf16.mxu0 0
      %2499 = vmatpush1.bf16.msra.mxu0 %v1895
      %2500 = vmatprep.subr.bf16.mxu0 0
      %2501 = vmatpush1.bf16.msra.mxu0 %v1896
      %2502 = vmatprep.subr.bf16.mxu0 0
      %2503 = vmatpush1.bf16.msra.mxu0 %v1897
      %2504 = vmatprep.subr.bf16.mxu0 0
      %2505 = vmatpush1.bf16.msra.mxu0 %v1898
      %2506 = vmatprep.subr.bf16.mxu0 0
      %2507 = vmatpush1.bf16.msra.mxu0 %v1899
      %2508 = vmatprep.subr.bf16.mxu0 0
      %2509 = vmatpush1.bf16.msra.mxu0 %v1900
      %2510 = vmatprep.subr.bf16.mxu0 0
      %2511 = vmatpush1.bf16.msra.mxu0 %v1901
      %2512 = vmatprep.subr.bf16.mxu0 0
      %2513 = vmatpush1.bf16.msra.mxu0 %v1902
      %2514 = vmatprep.subr.bf16.mxu0 0
      %2515 = vmatpush1.bf16.msra.mxu0 %v1903
      %2516 = vmatprep.subr.bf16.mxu0 0
      %2517 = vmatpush1.bf16.msra.mxu0 %v1904
      %2518 = vmatprep.mubr.bf16.mxu0 %v848
      %2519 = vmatmul.mubr.bf16.gmra.mrb[0].mxu0 %v847
      %v2520 = vpop.f32.mrb[0].mxu0
      %v2521 = vadd.f32 %v2472, %v2520
      %v2522 = vpop.f32.mrb[0].mxu0
      %v2523 = vpop.f32.mrb[0].mxu0
      %v2524 = vadd.f32 %v2475, %v2523
      %v2525 = vpop.f32.mrb[0].mxu0
      %2526 = vmatprep.mubr.bf16.mxu0 %v875
      %2527 = vmatmul.mubr.bf16.gmra.mrb[0].mxu0 %v874
      %v2528 = vpop.f32.mrb[0].mxu0
      %v2529 = vadd.f32 %v2480, %v2528
      %v2530 = vpop.f32.mrb[0].mxu0
      %v2531 = vpop.f32.mrb[0].mxu0
      %v2532 = vadd.f32 %v2483, %v2531
      %v2533 = vpop.f32.mrb[0].mxu0
      %2534 = vdwg.mxu0
      %2535 = vmatprep.subr.bf16.mxu0 0
      %2536 = vmatpush1.bf16.msra.mxu0 %v1905
      %2537 = vmatprep.subr.bf16.mxu0 0
      %2538 = vmatpush1.bf16.msra.mxu0 %v1906
      %2539 = vmatprep.subr.bf16.mxu0 0
      %2540 = vmatpush1.bf16.msra.mxu0 %v1907
      %2541 = vmatprep.subr.bf16.mxu0 0
      %2542 = vmatpush1.bf16.msra.mxu0 %v1908
      %2543 = vmatprep.subr.bf16.mxu0 0
      %2544 = vmatpush1.bf16.msra.mxu0 %v1909
      %2545 = vmatprep.subr.bf16.mxu0 0
      %2546 = vmatpush1.bf16.msra.mxu0 %v1910
      %2547 = vmatprep.subr.bf16.mxu0 0
      %2548 = vmatpush1.bf16.msra.mxu0 %v1911
      %2549 = vmatprep.subr.bf16.mxu0 0
      %2550 = vmatpush1.bf16.msra.mxu0 %v1912
      %2551 = vmatprep.subr.bf16.mxu0 0
      %2552 = vmatpush1.bf16.msra.mxu0 %v1913
      %2553 = vmatprep.subr.bf16.mxu0 0
      %2554 = vmatpush1.bf16.msra.mxu0 %v1914
      %2555 = vmatprep.subr.bf16.mxu0 0
      %2556 = vmatpush1.bf16.msra.mxu0 %v1915
      %2557 = vmatprep.subr.bf16.mxu0 0
      %2558 = vmatpush1.bf16.msra.mxu0 %v1916
      %2559 = vmatprep.subr.bf16.mxu0 0
      %2560 = vmatpush1.bf16.msra.mxu0 %v1917
      %2561 = vmatprep.subr.bf16.mxu0 0
      %2562 = vmatpush1.bf16.msra.mxu0 %v1918
      %2563 = vmatprep.subr.bf16.mxu0 0
      %2564 = vmatpush1.bf16.msra.mxu0 %v1919
      %2565 = vmatprep.subr.bf16.mxu0 0
      %2566 = vmatpush1.bf16.msra.mxu0 %v1920
      %2567 = vmatprep.mubr.bf16.mxu0 %v850
      %2568 = vmatmul.mubr.bf16.gmra.mrb[0].mxu0 %v849
      %v2569 = vpop.f32.mrb[0].mxu0
      %v2570 = vadd.f32 %v2521, %v2569
      %v2571 = vpop.f32.mrb[0].mxu0
      %v2572 = vpop.f32.mrb[0].mxu0
      %v2573 = vadd.f32 %v2524, %v2572
      %v2574 = vpop.f32.mrb[0].mxu0
      %2575 = vmatprep.mubr.bf16.mxu0 %v877
      %2576 = vmatmul.mubr.bf16.gmra.mrb[0].mxu0 %v876
      %v2577 = vpop.f32.mrb[0].mxu0
      %v2578 = vadd.f32 %v2529, %v2577
      %v2579 = vpop.f32.mrb[0].mxu0
      %v2580 = vpop.f32.mrb[0].mxu0
      %v2581 = vadd.f32 %v2532, %v2580
      %v2582 = vpop.f32.mrb[0].mxu0
      %2583 = vdwg.mxu0
      %2584 = vmatprep.subr.bf16.mxu0 0
      %2585 = vmatpush1.bf16.msra.mxu0 %v1921
      %2586 = vmatprep.subr.bf16.mxu0 0
      %2587 = vmatpush1.bf16.msra.mxu0 %v1922
      %2588 = vmatprep.subr.bf16.mxu0 0
      %2589 = vmatpush1.bf16.msra.mxu0 %v1923
      %2590 = vmatprep.subr.bf16.mxu0 0
      %2591 = vmatpush1.bf16.msra.mxu0 %v1924
      %2592 = vmatprep.subr.bf16.mxu0 0
      %2593 = vmatpush1.bf16.msra.mxu0 %v1925
      %2594 = vmatprep.subr.bf16.mxu0 0
      %2595 = vmatpush1.bf16.msra.mxu0 %v1926
      %2596 = vmatprep.subr.bf16.mxu0 0
      %2597 = vmatpush1.bf16.msra.mxu0 %v1927
      %2598 = vmatprep.subr.bf16.mxu0 0
      %2599 = vmatpush1.bf16.msra.mxu0 %v1928
      %2600 = vmatprep.subr.bf16.mxu0 0
      %2601 = vmatpush1.bf16.msra.mxu0 %v1929
      %2602 = vmatprep.subr.bf16.mxu0 0
      %2603 = vmatpush1.bf16.msra.mxu0 %v1930
      %2604 = vmatprep.subr.bf16.mxu0 0
      %2605 = vmatpush1.bf16.msra.mxu0 %v1931
      %2606 = vmatprep.subr.bf16.mxu0 0
      %2607 = vmatpush1.bf16.msra.mxu0 %v1932
      %2608 = vmatprep.subr.bf16.mxu0 0
      %2609 = vmatpush1.bf16.msra.mxu0 %v1933
      %2610 = vmatprep.subr.bf16.mxu0 0
      %2611 = vmatpush1.bf16.msra.mxu0 %v1934
      %2612 = vmatprep.subr.bf16.mxu0 0
      %2613 = vmatpush1.bf16.msra.mxu0 %v1935
      %2614 = vmatprep.subr.bf16.mxu0 0
      %2615 = vmatpush1.bf16.msra.mxu0 %v1936
      %2616 = vmatprep.mubr.bf16.mxu0 %v852
      %2617 = vmatmul.mubr.bf16.gmra.mrb[0].mxu0 %v851
      %v2618 = vpop.f32.mrb[0].mxu0
      %v2619 = vadd.f32 %v2570, %v2618
      %v2620 = vpop.f32.mrb[0].mxu0
      %v2621 = vpop.f32.mrb[0].mxu0
      %v2622 = vadd.f32 %v2573, %v2621
      %v2623 = vpop.f32.mrb[0].mxu0
      %2624 = vmatprep.mubr.bf16.mxu0 %v879
      %2625 = vmatmul.mubr.bf16.gmra.mrb[0].mxu0 %v878
      %v2626 = vpop.f32.mrb[0].mxu0
      %v2627 = vadd.f32 %v2578, %v2626
      %v2628 = vpop.f32.mrb[0].mxu0
      %v2629 = vpop.f32.mrb[0].mxu0
      %v2630 = vadd.f32 %v2581, %v2629
      %v2631 = vpop.f32.mrb[0].mxu0
      %2632 = vdwg.mxu0
      %2633 = vmatprep.subr.bf16.mxu0 0
      %2634 = vmatpush1.bf16.msra.mxu0 %v1937
      %2635 = vmatprep.subr.bf16.mxu0 0
      %2636 = vmatpush1.bf16.msra.mxu0 %v1938
      %2637 = vmatprep.subr.bf16.mxu0 0
      %2638 = vmatpush1.bf16.msra.mxu0 %v1939
      %2639 = vmatprep.subr.bf16.mxu0 0
      %2640 = vmatpush1.bf16.msra.mxu0 %v1940
      %2641 = vmatprep.subr.bf16.mxu0 0
      %2642 = vmatpush1.bf16.msra.mxu0 %v1941
      %2643 = vmatprep.subr.bf16.mxu0 0
      %2644 = vmatpush1.bf16.msra.mxu0 %v1942
      %2645 = vmatprep.subr.bf16.mxu0 0
      %2646 = vmatpush1.bf16.msra.mxu0 %v1943
      %2647 = vmatprep.subr.bf16.mxu0 0
      %2648 = vmatpush1.bf16.msra.mxu0 %v1944
      %2649 = vmatprep.subr.bf16.mxu0 0
      %2650 = vmatpush1.bf16.msra.mxu0 %v1945
      %2651 = vmatprep.subr.bf16.mxu0 0
      %2652 = vmatpush1.bf16.msra.mxu0 %v1946
      %2653 = vmatprep.subr.bf16.mxu0 0
      %2654 = vmatpush1.bf16.msra.mxu0 %v1947
      %2655 = vmatprep.subr.bf16.mxu0 0
      %2656 = vmatpush1.bf16.msra.mxu0 %v1948
      %2657 = vmatprep.subr.bf16.mxu0 0
      %2658 = vmatpush1.bf16.msra.mxu0 %v1949
      %2659 = vmatprep.subr.bf16.mxu0 0
      %2660 = vmatpush1.bf16.msra.mxu0 %v1950
      %2661 = vmatprep.subr.bf16.mxu0 0
      %2662 = vmatpush1.bf16.msra.mxu0 %v1951
      %2663 = vmatprep.subr.bf16.mxu0 0
      %2664 = vmatpush1.bf16.msra.mxu0 %v1952
      %2665 = vmatprep.mubr.bf16.mxu0 %v854
      %2666 = vmatmul.mubr.bf16.gmra.mrb[0].mxu0 %v853
      %v2667 = vpop.f32.mrb[0].mxu0
      %v2668 = vadd.f32 %v2619, %v2667
      %v2669 = vpop.f32.mrb[0].mxu0
      %v2670 = vpop.f32.mrb[0].mxu0
      %v2671 = vadd.f32 %v2622, %v2670
      %v2672 = vpop.f32.mrb[0].mxu0
      %2673 = vmatprep.mubr.bf16.mxu0 %v881
      %2674 = vmatmul.mubr.bf16.gmra.mrb[0].mxu0 %v880
      %v2675 = vpop.f32.mrb[0].mxu0
      %v2676 = vadd.f32 %v2627, %v2675
      %v2677 = vpop.f32.mrb[0].mxu0
      %v2678 = vpop.f32.mrb[0].mxu0
      %v2679 = vadd.f32 %v2630, %v2678
      %v2680 = vpop.f32.mrb[0].mxu0
      %2681 = vdwg.mxu0
      %2682 = vmatprep.subr.bf16.mxu0 0
      %2683 = vmatpush1.bf16.msra.mxu0 %v1953
      %2684 = vmatprep.subr.bf16.mxu0 0
      %2685 = vmatpush1.bf16.msra.mxu0 %v1954
      %2686 = vmatprep.subr.bf16.mxu0 0
      %2687 = vmatpush1.bf16.msra.mxu0 %v1955
      %2688 = vmatprep.subr.bf16.mxu0 0
      %2689 = vmatpush1.bf16.msra.mxu0 %v1956
      %2690 = vmatprep.subr.bf16.mxu0 0
      %2691 = vmatpush1.bf16.msra.mxu0 %v1957
      %2692 = vmatprep.subr.bf16.mxu0 0
      %2693 = vmatpush1.bf16.msra.mxu0 %v1958
      %2694 = vmatprep.subr.bf16.mxu0 0
      %2695 = vmatpush1.bf16.msra.mxu0 %v1959
      %2696 = vmatprep.subr.bf16.mxu0 0
      %2697 = vmatpush1.bf16.msra.mxu0 %v1960
      %2698 = vmatprep.subr.bf16.mxu0 0
      %2699 = vmatpush1.bf16.msra.mxu0 %v1961
      %2700 = vmatprep.subr.bf16.mxu0 0
      %2701 = vmatpush1.bf16.msra.mxu0 %v1962
      %2702 = vmatprep.subr.bf16.mxu0 0
      %2703 = vmatpush1.bf16.msra.mxu0 %v1963
      %2704 = vmatprep.subr.bf16.mxu0 0
      %2705 = vmatpush1.bf16.msra.mxu0 %v1964
      %2706 = vmatprep.subr.bf16.mxu0 0
      %2707 = vmatpush1.bf16.msra.mxu0 %v1965
      %2708 = vmatprep.subr.bf16.mxu0 0
      %2709 = vmatpush1.bf16.msra.mxu0 %v1966
      %2710 = vmatprep.subr.bf16.mxu0 0
      %2711 = vmatpush1.bf16.msra.mxu0 %v1967
      %2712 = vmatprep.subr.bf16.mxu0 0
      %2713 = vmatpush1.bf16.msra.mxu0 %v1968
      %2714 = vmatprep.mubr.bf16.mxu0 %v856
      %2715 = vmatmul.mubr.bf16.gmra.mrb[0].mxu0 %v855
      %v2716 = vpop.f32.mrb[0].mxu0
      %v2717 = vadd.f32 %v2668, %v2716
      %v2718 = vpop.f32.mrb[0].mxu0
      %v2719 = vpop.f32.mrb[0].mxu0
      %v2720 = vadd.f32 %v2671, %v2719
      %v2721 = vpop.f32.mrb[0].mxu0
      %2722 = vmatprep.mubr.bf16.mxu0 %v883
      %2723 = vmatmul.mubr.bf16.gmra.mrb[0].mxu0 %v882
      %v2724 = vpop.f32.mrb[0].mxu0
      %v2725 = vadd.f32 %v2676, %v2724
      %v2726 = vpop.f32.mrb[0].mxu0
      %v2727 = vpop.f32.mrb[0].mxu0
      %v2728 = vadd.f32 %v2679, %v2727
      %v2729 = vpop.f32.mrb[0].mxu0
      %2730 = vdwg.mxu0
      %2731 = vmatprep.subr.bf16.mxu0 0
      %2732 = vmatpush1.bf16.msra.mxu0 %v1969
      %2733 = vmatprep.subr.bf16.mxu0 0
      %2734 = vmatpush1.bf16.msra.mxu0 %v1970
      %2735 = vmatprep.subr.bf16.mxu0 0
      %2736 = vmatpush1.bf16.msra.mxu0 %v1971
      %2737 = vmatprep.subr.bf16.mxu0 0
      %2738 = vmatpush1.bf16.msra.mxu0 %v1972
      %2739 = vmatprep.subr.bf16.mxu0 0
      %2740 = vmatpush1.bf16.msra.mxu0 %v1973
      %2741 = vmatprep.subr.bf16.mxu0 0
      %2742 = vmatpush1.bf16.msra.mxu0 %v1974
      %2743 = vmatprep.subr.bf16.mxu0 0
      %2744 = vmatpush1.bf16.msra.mxu0 %v1975
      %2745 = vmatprep.subr.bf16.mxu0 0
      %2746 = vmatpush1.bf16.msra.mxu0 %v1976
      %2747 = vmatprep.subr.bf16.mxu0 0
      %2748 = vmatpush1.bf16.msra.mxu0 %v1977
      %2749 = vmatprep.subr.bf16.mxu0 0
      %2750 = vmatpush1.bf16.msra.mxu0 %v1978
      %2751 = vmatprep.subr.bf16.mxu0 0
      %2752 = vmatpush1.bf16.msra.mxu0 %v1979
      %2753 = vmatprep.subr.bf16.mxu0 0
      %2754 = vmatpush1.bf16.msra.mxu0 %v1980
      %2755 = vmatprep.subr.bf16.mxu0 0
      %2756 = vmatpush1.bf16.msra.mxu0 %v1981
      %2757 = vmatprep.subr.bf16.mxu0 0
      %2758 = vmatpush1.bf16.msra.mxu0 %v1982
      %2759 = vmatprep.subr.bf16.mxu0 0
      %2760 = vmatpush1.bf16.msra.mxu0 %v1983
      %2761 = vmatprep.subr.bf16.mxu0 0
      %2762 = vmatpush1.bf16.msra.mxu0 %v1984
      %2763 = vmatprep.mubr.bf16.mxu0 %v858
      %2764 = vmatmul.mubr.bf16.gmra.mrb[0].mxu0 %v857
      %v2765 = vpop.f32.mrb[0].mxu0
      %v2766 = vadd.f32 %v2717, %v2765
      %v2767 = vpop.f32.mrb[0].mxu0
      %v2768 = vpop.f32.mrb[0].mxu0
      %v2769 = vadd.f32 %v2720, %v2768
      %v2770 = vpop.f32.mrb[0].mxu0
      %2771 = vmatprep.mubr.bf16.mxu0 %v885
      %2772 = vmatmul.mubr.bf16.gmra.mrb[0].mxu0 %v884
      %v2773 = vpop.f32.mrb[0].mxu0
      %v2774 = vadd.f32 %v2725, %v2773
      %v2775 = vpop.f32.mrb[0].mxu0
      %v2776 = vpop.f32.mrb[0].mxu0
      %v2777 = vadd.f32 %v2728, %v2776
      %v2778 = vpop.f32.mrb[0].mxu0
      %2779 = vdwg.mxu0
      %2780 = vmatprep.subr.bf16.mxu0 0
      %2781 = vmatpush1.bf16.msra.mxu0 %v1985
      %2782 = vmatprep.subr.bf16.mxu0 0
      %2783 = vmatpush1.bf16.msra.mxu0 %v1986
      %2784 = vmatprep.subr.bf16.mxu0 0
      %2785 = vmatpush1.bf16.msra.mxu0 %v1987
      %2786 = vmatprep.subr.bf16.mxu0 0
      %2787 = vmatpush1.bf16.msra.mxu0 %v1988
      %2788 = vmatprep.subr.bf16.mxu0 0
      %2789 = vmatpush1.bf16.msra.mxu0 %v1989
      %2790 = vmatprep.subr.bf16.mxu0 0
      %2791 = vmatpush1.bf16.msra.mxu0 %v1990
      %2792 = vmatprep.subr.bf16.mxu0 0
      %2793 = vmatpush1.bf16.msra.mxu0 %v1991
      %2794 = vmatprep.subr.bf16.mxu0 0
      %2795 = vmatpush1.bf16.msra.mxu0 %v1992
      %2796 = vmatprep.subr.bf16.mxu0 0
      %2797 = vmatpush1.bf16.msra.mxu0 %v1993
      %2798 = vmatprep.subr.bf16.mxu0 0
      %2799 = vmatpush1.bf16.msra.mxu0 %v1994
      %2800 = vmatprep.subr.bf16.mxu0 0
      %2801 = vmatpush1.bf16.msra.mxu0 %v1995
      %2802 = vmatprep.subr.bf16.mxu0 0
      %2803 = vmatpush1.bf16.msra.mxu0 %v1996
      %2804 = vmatprep.subr.bf16.mxu0 0
      %2805 = vmatpush1.bf16.msra.mxu0 %v1997
      %2806 = vmatprep.subr.bf16.mxu0 0
      %2807 = vmatpush1.bf16.msra.mxu0 %v1998
      %2808 = vmatprep.subr.bf16.mxu0 0
      %2809 = vmatpush1.bf16.msra.mxu0 %v1999
      %2810 = vmatprep.subr.bf16.mxu0 0
      %2811 = vmatpush1.bf16.msra.mxu0 %v2000
      %2812 = vmatprep.mubr.bf16.mxu0 %v860
      %2813 = vmatmul.mubr.bf16.gmra.mrb[0].mxu0 %v859
      %v2814 = vpop.f32.mrb[0].mxu0
      %v2815 = vadd.f32 %v2766, %v2814
      %v2816 = vpop.f32.mrb[0].mxu0
      %v2817 = vpop.f32.mrb[0].mxu0
      %v2818 = vadd.f32 %v2769, %v2817
      %v2819 = vpop.f32.mrb[0].mxu0
      %2820 = vmatprep.mubr.bf16.mxu0 %v887
      %2821 = vmatmul.mubr.bf16.gmra.mrb[0].mxu0 %v886
      %v2822 = vpop.f32.mrb[0].mxu0
      %v2823 = vadd.f32 %v2774, %v2822
      %v2824 = vpop.f32.mrb[0].mxu0
      %v2825 = vpop.f32.mrb[0].mxu0
      %v2826 = vadd.f32 %v2777, %v2825
      %v2827 = vpop.f32.mrb[0].mxu0
      %2828 = vdwg.mxu0
      %2829 = vmatprep.subr.bf16.mxu0 0
      %2830 = vmatpush1.bf16.msra.mxu0 %v2001
      %2831 = vmatprep.subr.bf16.mxu0 0
      %2832 = vmatpush1.bf16.msra.mxu0 %v2002
      %2833 = vmatprep.subr.bf16.mxu0 0
      %2834 = vmatpush1.bf16.msra.mxu0 %v2003
      %2835 = vmatprep.subr.bf16.mxu0 0
      %2836 = vmatpush1.bf16.msra.mxu0 %v2004
      %2837 = vmatprep.subr.bf16.mxu0 0
      %2838 = vmatpush1.bf16.msra.mxu0 %v2005
      %2839 = vmatprep.subr.bf16.mxu0 0
      %2840 = vmatpush1.bf16.msra.mxu0 %v2006
      %2841 = vmatprep.subr.bf16.mxu0 0
      %2842 = vmatpush1.bf16.msra.mxu0 %v2007
      %2843 = vmatprep.subr.bf16.mxu0 0
      %2844 = vmatpush1.bf16.msra.mxu0 %v2008
      %2845 = vmatprep.subr.bf16.mxu0 0
      %2846 = vmatpush1.bf16.msra.mxu0 %v2009
      %2847 = vmatprep.subr.bf16.mxu0 0
      %2848 = vmatpush1.bf16.msra.mxu0 %v2010
      %2849 = vmatprep.subr.bf16.mxu0 0
      %2850 = vmatpush1.bf16.msra.mxu0 %v2011
      %2851 = vmatprep.subr.bf16.mxu0 0
      %2852 = vmatpush1.bf16.msra.mxu0 %v2012
      %2853 = vmatprep.subr.bf16.mxu0 0
      %2854 = vmatpush1.bf16.msra.mxu0 %v2013
      %2855 = vmatprep.subr.bf16.mxu0 0
      %2856 = vmatpush1.bf16.msra.mxu0 %v2014
      %2857 = vmatprep.subr.bf16.mxu0 0
      %2858 = vmatpush1.bf16.msra.mxu0 %v2015
      %2859 = vmatprep.subr.bf16.mxu0 0
      %2860 = vmatpush1.bf16.msra.mxu0 %v2016
      %2861 = vmatprep.mubr.bf16.mxu0 %v862
      %2862 = vmatmul.mubr.bf16.gmra.mrb[0].mxu0 %v861
      %v2863 = vpop.f32.mrb[0].mxu0
      %v2864 = vadd.f32 %v2815, %v2863
      %v2865 = vpop.f32.mrb[0].mxu0
      %v2866 = vpop.f32.mrb[0].mxu0
      %v2867 = vadd.f32 %v2818, %v2866
      %v2868 = vpop.f32.mrb[0].mxu0
      %2869 = vmatprep.mubr.bf16.mxu0 %v889
      %2870 = vmatmul.mubr.bf16.gmra.mrb[0].mxu0 %v888
      %v2871 = vpop.f32.mrb[0].mxu0
      %v2872 = vadd.f32 %v2823, %v2871
      %v2873 = vpop.f32.mrb[0].mxu0
      %v2874 = vpop.f32.mrb[0].mxu0
      %v2875 = vadd.f32 %v2826, %v2874
      %v2876 = vpop.f32.mrb[0].mxu0
      %2877 = vdwg.mxu0
      %2878 = vmatprep.subr.bf16.mxu0 0
      %2879 = vmatpush1.bf16.msra.mxu0 %v2017
      %2880 = vmatprep.subr.bf16.mxu0 0
      %2881 = vmatpush1.bf16.msra.mxu0 %v2018
      %2882 = vmatprep.subr.bf16.mxu0 0
      %2883 = vmatpush1.bf16.msra.mxu0 %v2019
      %2884 = vmatprep.subr.bf16.mxu0 0
      %2885 = vmatpush1.bf16.msra.mxu0 %v2020
      %2886 = vmatprep.subr.bf16.mxu0 0
      %2887 = vmatpush1.bf16.msra.mxu0 %v2021
      %2888 = vmatprep.subr.bf16.mxu0 0
      %2889 = vmatpush1.bf16.msra.mxu0 %v2022
      %2890 = vmatprep.subr.bf16.mxu0 0
      %2891 = vmatpush1.bf16.msra.mxu0 %v2023
      %2892 = vmatprep.subr.bf16.mxu0 0
      %2893 = vmatpush1.bf16.msra.mxu0 %v2024
      %2894 = vmatprep.subr.bf16.mxu0 0
      %2895 = vmatpush1.bf16.msra.mxu0 0
      %2896 = vmatprep.subr.bf16.mxu0 0
      %2897 = vmatpush1.bf16.msra.mxu0 0
      %2898 = vmatprep.subr.bf16.mxu0 0
      %2899 = vmatpush1.bf16.msra.mxu0 0
      %2900 = vmatprep.subr.bf16.mxu0 0
      %2901 = vmatpush1.bf16.msra.mxu0 0
      %2902 = vmatprep.subr.bf16.mxu0 0
      %2903 = vmatpush1.bf16.msra.mxu0 0
      %2904 = vmatprep.subr.bf16.mxu0 0
      %2905 = vmatpush1.bf16.msra.mxu0 0
      %2906 = vmatprep.subr.bf16.mxu0 0
      %2907 = vmatpush1.bf16.msra.mxu0 0
      %2908 = vmatprep.subr.bf16.mxu0 0
      %2909 = vmatpush1.bf16.msra.mxu0 0
      %2910 = vmatprep.mubr.bf16.mxu0 0
      %2911 = vmatmul.mubr.bf16.gmra.mrb[0].mxu0 %v863
      %v2912 = vpop.f32.mrb[0].mxu0
      %v2913 = vadd.f32 %v2864, %v2912
      %v2914 = vpop.f32.mrb[0].mxu0
      %v2915 = vpop.f32.mrb[0].mxu0
      %v2916 = vadd.f32 %v2867, %v2915
      %v2917 = vpop.f32.mrb[0].mxu0
      %2918 = vmatprep.mubr.bf16.mxu0 0
      %2919 = vmatmul.mubr.bf16.gmra.mrb[0].mxu0 %v890
      %v2920 = vpop.f32.mrb[0].mxu0
      %v2921 = vadd.f32 %v2872, %v2920
      %v2922 = vpop.f32.mrb[0].mxu0
      %v2923 = vpop.f32.mrb[0].mxu0
      %v2924 = vadd.f32 %v2875, %v2923
      %v2925 = vpop.f32.mrb[0].mxu0
      %2926 = vdwg.mxu0
      %v2927 = vmax.f32 %v2913, 0.0
      %v2928 = vmax.f32 %v2916, 0.0
      %v2929 = vmax.f32 %v2921, 0.0
      %v2930 = vmax.f32 %v2924, 0.0
      %v2931 = vpack.c.bf16 %v2928, %v2927
      %v2932 = vpack.c.bf16 %v2930, %v2929
      %v2935 = vunpack.c.l.b16 %v2931
      %v2936 = vunpack.c.h.b16 %v2931
      %v2937 = vunpack.c.l.b16 %v2932
      %v2938 = vunpack.c.h.b16 %v2932
      %v2939 = vpack.c.b16 %v2935, %v2935
      %v2940 = vpack.c.b16 %v2936, %v2936
      %v2941 = vpack.c.b16 %v2937, %v2937
      %v2942 = vpack.c.b16 %v2938, %v2938
      %2947 = vst [vmem:[%s175] sm:$0xf] %v2939
      %2948 = vst [vmem:[%s175 + $0x4] sm:$0xf] %v2940
      %2949 = vst [vmem:[%s175 + $0x8] sm:$0xf] %v2941
      %2950 = vst [vmem:[%s175 + $0xc] sm:$0xf] %v2942
      %s2951 = smul.u32 4, %s14
      %p2952 = scmp.lt.s32.totalorder %s2951, 7
      %s2953 = scalar_select %p2952, %s2951, 7
      %s2954 = smul.addr %s2953, 4
      %s2955 = scalar_lea.vmem %s3, %s2954
      // Predicated region
      $region33: #{_lambda_.18} parent=31 // pred_check
        %p2956 = pneg %p100
      $region34: #{_lambda_.18} parent=31 // pred_check_branch
        %2958 = sbr.rel (%p2956) target = $region36
      $region35: #{_lambda_.18} parent=31 // pred_region
        %s2959 = smul.u32 4, %s14
      $region36: #{_lambda_.18} parent=31 // pred_fallthru
        _
    $region32: #{_lambda_.18} parent=5 // pred_fallthru
      _
    %p2960 = scmp.le.s32.totalorder 2, %s9
    // Predicated region
    $region37: #{_lambda_.18} parent=5 // pred_check
      %p2961 = pneg %p2960
    $region38: #{_lambda_.18} parent=5 // pred_check_branch
      %2963 = sbr.rel (%p2961) target = $region40
    $region39: #{_lambda_.18} parent=5 // pred_region
      %s2964 = ssub.s32 %s9, 2
      // Predicated region
      $region41: #{_lambda_.18} parent=39 // pred_check
        %p2965 = pneg %p106
      $region42: #{_lambda_.18} parent=39 // pred_check_branch
        %2967 = sbr.rel (%p2965) target = $region44
      $region43: #{_lambda_.18} parent=39 // pred_region
        %s2968 = smul.u32 4, %s15
        %p2969 = scmp.lt.s32.totalorder %s2968, 7
        %s2970 = scalar_select %p2969, %s2968, 7
        %s2971 = smul.addr %s2970, 4
        %s2972 = scalar_lea.vmem %s3, %s2971
      $region44: #{_lambda_.18} parent=39 // pred_fallthru
        _
    $region40: #{_lambda_.18} parent=5 // pred_fallthru
      _
  $region6: #{_lambda_.18} parent=0 // loop_footer
    %s13 = sadd.s32 1, %s9
  $region7: #{_lambda_.18} parent=0 // loop_footer_branch
    %8 = sbr.rel target = $region3
  $region8: #{_lambda_.18} parent=0 // loop_exit
    _

// kernel: _lambda_.19
$region0: #{_lambda_.19}
  #allocation0 [shape = 'u32[]', space=smem, size = 0x4, offset = 0x4, fixed_abs, tag = 'smem constant byte address 0x4 - core index']
  #allocation1 [shape = 'u32[144,128]{1,0:T(1,128)}', space=vmem, size = 0x12000, scoped, tag = 'internal scratch']
  %s0 = inlined_call_operand.vmem [shape: bf16[64,128], index: 0, kind: input, shape index: {}]
  %s1 = inlined_call_operand.vmem [shape: bf16[128,256], index: 1, kind: input, shape index: {}]
  %s2 = inlined_call_operand.vmem [shape: f32[1,256], index: 2, kind: input, shape index: {}]
  %s3 = inlined_call_operand.vmem [shape: bf16[64,256], index: 3, kind: input, shape index: {}]
  %s4 = inlined_call_operand.vmem [shape: f32[64,256], index: 4, kind: output, shape index: {}]
  %s5 = sld [smem:[#allocation0]]
  $region49: #{_lambda_.19} parent=0
    _
  %s7 = ssub.s32 1, %s5
  %s8 = scalar_select 0, %s7, %s5
  loop: start=0, step=1, limit=4
  $region2: #{_lambda_.19} parent=0 // loop_pre_header
    _
  $region3: #{_lambda_.19} parent=0 // loop_header
    %s10 = sphi 0, %s14
    %p11 = scmp.ge.s32.totalorder %s10, 4
    %s20 = sphi 0, %s22
    %s23 = sphi 0, %s20
    %s24 = sphi 0, %s23
    %s40 = sphi 0, %s24
    %s44 = sphi 0, %s44
    %s46 = sphi 0, %s44
    %s47 = sphi 0, %s46
    %s61 = sphi 0, %s47
    %s65 = sphi 0, %s65
    %s67 = sphi 0, %s65
    %s68 = sphi 0, %s67
    %s82 = sphi 0, %s68
    %s88 = sphi 0, %s90
    %s91 = sphi 0, %s88
    %s92 = sphi 0, %s91
    %s108 = sphi 0, %s92
    %s114 = sphi 0, %s116
    %s117 = sphi 0, %s114
    %s118 = sphi 0, %s117
    %s134 = sphi 0, %s118
  $region4: #{_lambda_.19} parent=0 // loop_header_branch
    %13 = sbr.rel (%p11) target = $region8
  $region5: #{_lambda_.19} parent=0 // loop_body
    %s15 = ssub.s32 %s10, 1
    %s16 = ssub.s32 %s10, 2
    %s17 = sadd.s32 %s10, 1
    %s18 = ssub.s32 %s10, %s17
    %p19 = scmp.eq.s32.totalorder %s18, 0
    %s21 = sadd.s32 %s20, 1
    %s22 = scalar_select %p19, %s20, %s21
    %p25 = pneg %p19
    %p26 = scmp.eq.s32.totalorder %s10, 1
    %p27 = por %p25, %p26
    %p28 = scmp.ne.s32.totalorder %s20, %s23
    %p29 = scmp.eq.s32.totalorder %s10, 0
    %p30 = por %p28, %p29
    %p31 = scmp.ne.s32.totalorder %s20, %s23
    %p32 = scmp.eq.s32.totalorder %s15, 1
    %p33 = por %p31, %p32
    %p34 = scmp.ne.s32.totalorder %s23, %s24
    %p35 = scmp.eq.s32.totalorder %s15, 0
    %p36 = por %p34, %p35
    %p37 = scmp.ne.s32.totalorder %s23, %s24
    %p38 = scmp.eq.s32.totalorder %s16, 1
    %p39 = por %p37, %p38
    %p41 = scmp.ne.s32.totalorder %s24, %s40
    %p42 = scmp.eq.s32.totalorder %s16, 0
    %p43 = por %p41, %p42
    %s45 = sadd.s32 %s44, 1
    %p48 = scmp.eq.s32.totalorder %s10, 1
    %p49 = scmp.ne.s32.totalorder %s44, %s46
    %p50 = scmp.eq.s32.totalorder %s10, 0
    %p51 = por %p49, %p50
    %p52 = scmp.ne.s32.totalorder %s44, %s46
    %p53 = scmp.eq.s32.totalorder %s15, 1
    %p54 = por %p52, %p53
    %p55 = scmp.ne.s32.totalorder %s46, %s47
    %p56 = scmp.eq.s32.totalorder %s15, 0
    %p57 = por %p55, %p56
    %p58 = scmp.ne.s32.totalorder %s46, %s47
    %p59 = scmp.eq.s32.totalorder %s16, 1
    %p60 = por %p58, %p59
    %p62 = scmp.ne.s32.totalorder %s47, %s61
    %p63 = scmp.eq.s32.totalorder %s16, 0
    %p64 = por %p62, %p63
    %s66 = sadd.s32 %s65, 1
    %p69 = scmp.eq.s32.totalorder %s10, 1
    %p70 = scmp.ne.s32.totalorder %s65, %s67
    %p71 = scmp.eq.s32.totalorder %s10, 0
    %p72 = por %p70, %p71
    %p73 = scmp.ne.s32.totalorder %s65, %s67
    %p74 = scmp.eq.s32.totalorder %s15, 1
    %p75 = por %p73, %p74
    %p76 = scmp.ne.s32.totalorder %s67, %s68
    %p77 = scmp.eq.s32.totalorder %s15, 0
    %p78 = por %p76, %p77
    %p79 = scmp.ne.s32.totalorder %s67, %s68
    %p80 = scmp.eq.s32.totalorder %s16, 1
    %p81 = por %p79, %p80
    %p83 = scmp.ne.s32.totalorder %s68, %s82
    %p84 = scmp.eq.s32.totalorder %s16, 0
    %p85 = por %p83, %p84
    %s86 = ssub.s32 %s10, %s17
    %p87 = scmp.eq.s32.totalorder %s86, 0
    %s89 = sadd.s32 %s88, 1
    %s90 = scalar_select %p87, %s88, %s89
    %p93 = pneg %p87
    %p94 = scmp.eq.s32.totalorder %s10, 1
    %p95 = por %p93, %p94
    %p96 = scmp.ne.s32.totalorder %s88, %s91
    %p97 = scmp.eq.s32.totalorder %s10, 0
    %p98 = por %p96, %p97
    %p99 = scmp.ne.s32.totalorder %s88, %s91
    %p100 = scmp.eq.s32.totalorder %s15, 1
    %p101 = por %p99, %p100
    %p102 = scmp.ne.s32.totalorder %s91, %s92
    %p103 = scmp.eq.s32.totalorder %s15, 0
    %p104 = por %p102, %p103
    %p105 = scmp.ne.s32.totalorder %s91, %s92
    %p106 = scmp.eq.s32.totalorder %s16, 1
    %p107 = por %p105, %p106
    %p109 = scmp.ne.s32.totalorder %s92, %s108
    %p110 = scmp.eq.s32.totalorder %s16, 0
    %p111 = por %p109, %p110
    %s112 = ssub.s32 %s10, %s17
    %p113 = scmp.eq.s32.totalorder %s112, 0
    %s115 = sadd.s32 %s114, 1
    %s116 = scalar_select %p113, %s114, %s115
    %p119 = pneg %p113
    %p120 = scmp.eq.s32.totalorder %s10, 1
    %p121 = por %p119, %p120
    %p122 = scmp.ne.s32.totalorder %s114, %s117
    %p123 = scmp.eq.s32.totalorder %s10, 0
    %p124 = por %p122, %p123
    %p125 = scmp.ne.s32.totalorder %s114, %s117
    %p126 = scmp.eq.s32.totalorder %s15, 1
    %p127 = por %p125, %p126
    %p128 = scmp.ne.s32.totalorder %s117, %s118
    %p129 = scmp.eq.s32.totalorder %s15, 0
    %p130 = por %p128, %p129
    %p131 = scmp.ne.s32.totalorder %s117, %s118
    %p132 = scmp.eq.s32.totalorder %s16, 1
    %p133 = por %p131, %p132
    %p135 = scmp.ne.s32.totalorder %s118, %s134
    %p136 = scmp.eq.s32.totalorder %s16, 0
    %p137 = por %p135, %p136
    %p138 = scmp.le.s32.totalorder 1, %s10
    %p139 = scmp.lt.s32.totalorder %s10, 3
    %p140 = pnand %p138, %p139
    %p141 = pneg %p140
    // Predicated region
    $region9: #{_lambda_.19} parent=5 // pred_check
      _
    $region10: #{_lambda_.19} parent=5 // pred_check_branch
      %143 = sbr.rel (%p140) target = $region12
    $region11: #{_lambda_.19} parent=5 // pred_region
      %s144 = ssub.s32 %s10, 1
      // Predicated region
      $region13: #{_lambda_.19} parent=11 // pred_check
        %p145 = pneg %p57
      $region14: #{_lambda_.19} parent=11 // pred_check_branch
        %147 = sbr.rel (%p145) target = $region16
      $region15: #{_lambda_.19} parent=11 // pred_region
        _
      $region16: #{_lambda_.19} parent=11 // pred_fallthru
        _
      // Predicated region
      $region17: #{_lambda_.19} parent=11 // pred_check
        %p148 = pneg %p78
      $region18: #{_lambda_.19} parent=11 // pred_check_branch
        %150 = sbr.rel (%p148) target = $region20
      $region19: #{_lambda_.19} parent=11 // pred_region
        _
      $region20: #{_lambda_.19} parent=11 // pred_fallthru
        _
    $region12: #{_lambda_.19} parent=5 // pred_fallthru
      _
    %p151 = scmp.lt.s32.totalorder %s10, 2
    // Predicated region
    $region21: #{_lambda_.19} parent=5 // pred_check
      %p152 = pneg %p151
    $region22: #{_lambda_.19} parent=5 // pred_check_branch
      %154 = sbr.rel (%p152) target = $region24
    $region23: #{_lambda_.19} parent=5 // pred_region
      // Predicated region
      $region25: #{_lambda_.19} parent=23 // pred_check
        %p155 = pneg %p30
      $region26: #{_lambda_.19} parent=23 // pred_check_branch
        %157 = sbr.rel (%p155) target = $region28
      $region27: #{_lambda_.19} parent=23 // pred_region
        %s158 = smul.u32 4, %s10
        %p159 = scmp.lt.s32.totalorder %s158, 7
        %s160 = scalar_select %p159, %s158, 7
        %s161 = smul.addr %s160, 4
        %s162 = scalar_lea.vmem %s0, %s161
        %s163 = smul.u32 4, %s10
      $region28: #{_lambda_.19} parent=23 // pred_fallthru
        _
      // Predicated region
      $region29: #{_lambda_.19} parent=23 // pred_check
        %p164 = pneg %p98
      $region30: #{_lambda_.19} parent=23 // pred_check_branch
        %166 = sbr.rel (%p164) target = $region32
      $region31: #{_lambda_.19} parent=23 // pred_region
        %s167 = smul.u32 4, %s10
        %p168 = scmp.lt.s32.totalorder %s167, 7
        %s169 = scalar_select %p168, %s167, 7
        %s170 = smul.addr %s169, 2
        %s171 = smul.addr %s170, 4
        %s172 = scalar_lea.vmem %s3, %s171
        %s173 = smul.u32 4, %s10
      $region32: #{_lambda_.19} parent=23 // pred_fallthru
        _
    $region24: #{_lambda_.19} parent=5 // pred_fallthru
      _
    %p174 = scmp.le.s32.totalorder 1, %s10
    %p175 = scmp.lt.s32.totalorder %s10, 3
    %p176 = pnand %p174, %p175
    %p177 = pneg %p176
    // Predicated region
    $region33: #{_lambda_.19} parent=5 // pred_check
      _
    $region34: #{_lambda_.19} parent=5 // pred_check_branch
      %179 = sbr.rel (%p176) target = $region36
    $region35: #{_lambda_.19} parent=5 // pred_region
      %s180 = ssub.s32 %s10, 1
      %s181 = smul.u32 4, %s15
      %p182 = scmp.lt.s32.totalorder %s181, 7
      %s183 = scalar_select %p182, %s181, 7
      %s184 = smul.addr %s183, 4
      %s185 = scalar_lea.vmem %s0, %s184
      %p186 = pneg %p36
      %p187 = pneg %p33
      %p188 = pneg %p57
      %p189 = pneg %p54
      %p190 = pneg %p78
      %p191 = pneg %p75
      %s192 = smul.u32 4, %s15
      %p193 = scmp.lt.s32.totalorder %s192, 7
      %s194 = scalar_select %p193, %s192, 7
      %s195 = smul.addr %s194, 2
      %s196 = smul.addr %s195, 4
      %s197 = scalar_lea.vmem %s3, %s196
      %p198 = pneg %p104
      %p199 = pneg %p101
      %p200 = pneg %p130
      %p201 = pneg %p127
      %s202 = smul.u32 4, %s15
      %p203 = scmp.lt.s32.totalorder %s202, 7
      %s204 = scalar_select %p203, %s202, 7
      %s205 = smul.addr %s204, 2
      %s206 = smul.addr %s205, 8
      %s207 = scalar_lea.vmem %s4, %s206
      %s208 = smul.u32 4, %s15
      %p209 = scmp.lt.s32.totalorder %s208, 7
      %s210 = scalar_select %p209, %s208, 7
      %s211 = smul.addr %s210, 4
      %s212 = scalar_lea.vmem %s0, %s211
      %s213 = smul.u32 4, %s15
      %s214 = smul.u32 4, %s15
      %p215 = scmp.lt.s32.totalorder %s214, 7
      %s216 = scalar_select %p215, %s214, 7
      %s217 = smul.addr %s216, 2
      %s218 = smul.addr %s217, 4
      %s219 = scalar_lea.vmem %s3, %s218
      %s220 = smul.u32 4, %s15
      %s221 = smul.u32 4, %s15
      %p222 = scmp.lt.s32.totalorder %s221, 7
      %s223 = scalar_select %p222, %s221, 7
      %s224 = smul.addr %s223, 2
      %s225 = smul.addr %s224, 8
      %s226 = scalar_lea.vmem %s4, %s225
      %s227 = smul.u32 4, %s15
      %v229 = vld [vmem:[%s212] sm:$0xf]
      %v230 = vld [vmem:[%s212 + $0x4] sm:$0xf]
      %v231 = vld [vmem:[%s212 + $0x8] sm:$0xf]
      %v232 = vld [vmem:[%s212 + $0xc] sm:$0xf]
      %v233 = vld [vmem:[%s1] sm:$0xff]
      %v234 = vld [vmem:[%s1 + $0x8] sm:$0xff]
      %v235 = vld [vmem:[%s1 + $0x10] sm:$0xff]
      %v236 = vld [vmem:[%s1 + $0x18] sm:$0xff]
      %v237 = vld [vmem:[%s1 + $0x20] sm:$0xff]
      %v238 = vld [vmem:[%s1 + $0x28] sm:$0xff]
      %v239 = vld [vmem:[%s1 + $0x30] sm:$0xff]
      %v240 = vld [vmem:[%s1 + $0x38] sm:$0xff]
      %v241 = vld [vmem:[%s1 + $0x40] sm:$0xff]
      %v242 = vld [vmem:[%s1 + $0x48] sm:$0xff]
      %v243 = vld [vmem:[%s1 + $0x50] sm:$0xff]
      %v244 = vld [vmem:[%s1 + $0x58] sm:$0xff]
      %v245 = vld [vmem:[%s1 + $0x60] sm:$0xff]
      %v246 = vld [vmem:[%s1 + $0x68] sm:$0xff]
      %v247 = vld [vmem:[%s1 + $0x70] sm:$0xff]
      %v248 = vld [vmem:[%s1 + $0x78] sm:$0xff]
      %v249 = vld [vmem:[%s2] sm:$0x3]
      %v251 = vlaneseq
      %v252 = vshrl.u32 %v251, 7
      %v253 = vsub.s32 0, %v252
      %v254 = vrot.slane %v249, %v253
      %v255 = vlaneseq
      %v256 = vshrl.u32 %v255, 7
      %v257 = vsub.s32 1, %v256
      %v258 = vrot.slane %v249, %v257
      %v265 = vunpack.c.l.b16 %v229
      %v266 = vunpack.c.l.b16 %v230
      %v267 = vunpack.c.l.b16 %v231
      %v268 = vunpack.c.l.b16 %v232
      %v269 = vpack.c.b16 %v266, %v265
      %v270 = vpack.c.b16 %v268, %v267
      %v289 = vunpack.c.l.b16 %v233
      %v290 = vunpack.c.h.b16 %v233
      %v291 = vunpack.c.l.b16 %v234
      %v292 = vunpack.c.h.b16 %v234
      %v293 = vunpack.c.l.b16 %v235
      %v294 = vunpack.c.h.b16 %v235
      %v295 = vunpack.c.l.b16 %v236
      %v296 = vunpack.c.h.b16 %v236
      %v297 = vunpack.c.l.b16 %v237
      %v298 = vunpack.c.h.b16 %v237
      %v299 = vunpack.c.l.b16 %v238
      %v300 = vunpack.c.h.b16 %v238
      %v301 = vunpack.c.l.b16 %v239
      %v302 = vunpack.c.h.b16 %v239
      %v303 = vunpack.c.l.b16 %v240
      %v304 = vunpack.c.h.b16 %v240
      %v305 = vunpack.c.l.b16 %v241
      %v306 = vunpack.c.h.b16 %v241
      %v307 = vunpack.c.l.b16 %v242
      %v308 = vunpack.c.h.b16 %v242
      %v309 = vunpack.c.l.b16 %v243
      %v310 = vunpack.c.h.b16 %v243
      %v311 = vunpack.c.l.b16 %v244
      %v312 = vunpack.c.h.b16 %v244
      %v313 = vunpack.c.l.b16 %v245
      %v314 = vunpack.c.h.b16 %v245
      %v315 = vunpack.c.l.b16 %v246
      %v316 = vunpack.c.h.b16 %v246
      %v317 = vunpack.c.l.b16 %v247
      %v318 = vunpack.c.h.b16 %v247
      %v319 = vunpack.c.l.b16 %v248
      %v320 = vunpack.c.h.b16 %v248
      %v321 = vpack.c.b16 %v291, %v289
      %v322 = vpack.c.b16 %v292, %v290
      %v323 = vpack.c.b16 %v295, %v293
      %v324 = vpack.c.b16 %v296, %v294
      %v325 = vpack.c.b16 %v299, %v297
      %v326 = vpack.c.b16 %v300, %v298
      %v327 = vpack.c.b16 %v303, %v301
      %v328 = vpack.c.b16 %v304, %v302
      %v329 = vpack.c.b16 %v307, %v305
      %v330 = vpack.c.b16 %v308, %v306
      %v331 = vpack.c.b16 %v311, %v309
      %v332 = vpack.c.b16 %v312, %v310
      %v333 = vpack.c.b16 %v315, %v313
      %v334 = vpack.c.b16 %v316, %v314
      %v335 = vpack.c.b16 %v319, %v317
      %v336 = vpack.c.b16 %v320, %v318
      %353 = vmatprep.subr.bf16.mxu0 %v322
      %354 = vmatpush1.bf16.msra.mxu0 %v321
      %355 = vmatprep.subr.bf16.mxu0 %v324
      %356 = vmatpush1.bf16.msra.mxu0 %v323
      %357 = vmatprep.subr.bf16.mxu0 %v326
      %358 = vmatpush1.bf16.msra.mxu0 %v325
      %359 = vmatprep.subr.bf16.mxu0 %v328
      %360 = vmatpush1.bf16.msra.mxu0 %v327
      %361 = vmatprep.subr.bf16.mxu0 %v330
      %362 = vmatpush1.bf16.msra.mxu0 %v329
      %363 = vmatprep.subr.bf16.mxu0 %v332
      %364 = vmatpush1.bf16.msra.mxu0 %v331
      %365 = vmatprep.subr.bf16.mxu0 %v334
      %366 = vmatpush1.bf16.msra.mxu0 %v333
      %367 = vmatprep.subr.bf16.mxu0 %v336
      %368 = vmatpush1.bf16.msra.mxu0 %v335
      %369 = vmatprep.subr.bf16.mxu0 0
      %370 = vmatpush1.bf16.msra.mxu0 0
      %371 = vmatprep.subr.bf16.mxu0 0
      %372 = vmatpush1.bf16.msra.mxu0 0
      %373 = vmatprep.subr.bf16.mxu0 0
      %374 = vmatpush1.bf16.msra.mxu0 0
      %375 = vmatprep.subr.bf16.mxu0 0
      %376 = vmatpush1.bf16.msra.mxu0 0
      %377 = vmatprep.subr.bf16.mxu0 0
      %378 = vmatpush1.bf16.msra.mxu0 0
      %379 = vmatprep.subr.bf16.mxu0 0
      %380 = vmatpush1.bf16.msra.mxu0 0
      %381 = vmatprep.subr.bf16.mxu0 0
      %382 = vmatpush1.bf16.msra.mxu0 0
      %383 = vmatprep.subr.bf16.mxu0 0
      %384 = vmatpush1.bf16.msra.mxu0 0
      %385 = vmatprep.mubr.bf16.mxu0 0
      %386 = vmatmul.mubr.bf16.gmra.mrb[0].mxu0 %v269
      %v387 = vpop.f32.mrb[0].mxu0
      %v388 = vadd.f32 %v254, %v387
      %v389 = vpop.f32.mrb[0].mxu0
      %v390 = vadd.f32 %v258, %v389
      %v391 = vpop.f32.mrb[0].mxu0
      %v392 = vadd.f32 %v254, %v391
      %v393 = vpop.f32.mrb[0].mxu0
      %v394 = vadd.f32 %v258, %v393
      %395 = vmatprep.mubr.bf16.mxu0 0
      %396 = vmatmul.mubr.bf16.gmra.mrb[0].mxu0 %v270
      %v397 = vpop.f32.mrb[0].mxu0
      %v398 = vadd.f32 %v254, %v397
      %v399 = vpop.f32.mrb[0].mxu0
      %v400 = vadd.f32 %v258, %v399
      %v401 = vpop.f32.mrb[0].mxu0
      %v402 = vadd.f32 %v254, %v401
      %v403 = vpop.f32.mrb[0].mxu0
      %v404 = vadd.f32 %v258, %v403
      %405 = vdwg.mxu0
      %v406 = vld [vmem:[%s219] sm:$0xff]
      %v407 = vld [vmem:[%s219 + $0x8] sm:$0xff]
      %v408 = vld [vmem:[%s219 + $0x10] sm:$0xff]
      %v409 = vld [vmem:[%s219 + $0x18] sm:$0xff]
      %v410 = vunpack.c.l.bf16 %v406
      %v411 = vunpack.c.h.bf16 %v406
      %v412 = vunpack.c.l.bf16 %v407
      %v413 = vunpack.c.h.bf16 %v407
      %v414 = vunpack.c.l.bf16 %v408
      %v415 = vunpack.c.h.bf16 %v408
      %v416 = vunpack.c.l.bf16 %v409
      %v417 = vunpack.c.h.bf16 %v409
      %v418 = vadd.f32 %v388, %v410
      %v419 = vadd.f32 %v390, %v411
      %v420 = vadd.f32 %v392, %v412
      %v421 = vadd.f32 %v394, %v413
      %v422 = vadd.f32 %v398, %v414
      %v423 = vadd.f32 %v400, %v415
      %v424 = vadd.f32 %v402, %v416
      %v425 = vadd.f32 %v404, %v417
      %v426 = vmax.f32 %v418, 0.0
      %v427 = vmax.f32 %v419, 0.0
      %v428 = vmax.f32 %v420, 0.0
      %v429 = vmax.f32 %v421, 0.0
      %v430 = vmax.f32 %v422, 0.0
      %v431 = vmax.f32 %v423, 0.0
      %v432 = vmax.f32 %v424, 0.0
      %v433 = vmax.f32 %v425, 0.0
      %434 = vst [vmem:[%s226] sm:$0xff] %v426
      %435 = vst [vmem:[%s226 + $0x8] sm:$0xff] %v427
      %436 = vst [vmem:[%s226 + $0x10] sm:$0xff] %v428
      %437 = vst [vmem:[%s226 + $0x18] sm:$0xff] %v429
      %438 = vst [vmem:[%s226 + $0x20] sm:$0xff] %v430
      %439 = vst [vmem:[%s226 + $0x28] sm:$0xff] %v431
      %440 = vst [vmem:[%s226 + $0x30] sm:$0xff] %v432
      %441 = vst [vmem:[%s226 + $0x38] sm:$0xff] %v433
      %s442 = smul.u32 4, %s15
      %p443 = scmp.lt.s32.totalorder %s442, 7
      %s444 = scalar_select %p443, %s442, 7
      %s445 = smul.addr %s444, 2
      %s446 = smul.addr %s445, 8
      %s447 = scalar_lea.vmem %s4, %s446
      // Predicated region
      $region37: #{_lambda_.19} parent=35 // pred_check
        %p448 = pneg %p127
      $region38: #{_lambda_.19} parent=35 // pred_check_branch
        %450 = sbr.rel (%p448) target = $region40
      $region39: #{_lambda_.19} parent=35 // pred_region
        %s451 = smul.u32 4, %s15
      $region40: #{_lambda_.19} parent=35 // pred_fallthru
        _
    $region36: #{_lambda_.19} parent=5 // pred_fallthru
      _
    %p452 = scmp.le.s32.totalorder 2, %s10
    // Predicated region
    $region41: #{_lambda_.19} parent=5 // pred_check
      %p453 = pneg %p452
    $region42: #{_lambda_.19} parent=5 // pred_check_branch
      %455 = sbr.rel (%p453) target = $region44
    $region43: #{_lambda_.19} parent=5 // pred_region
      %s456 = ssub.s32 %s10, 2
      // Predicated region
      $region45: #{_lambda_.19} parent=43 // pred_check
        %p457 = pneg %p133
      $region46: #{_lambda_.19} parent=43 // pred_check_branch
        %459 = sbr.rel (%p457) target = $region48
      $region47: #{_lambda_.19} parent=43 // pred_region
        %s460 = smul.u32 4, %s16
        %p461 = scmp.lt.s32.totalorder %s460, 7
        %s462 = scalar_select %p461, %s460, 7
        %s463 = smul.addr %s462, 2
        %s464 = smul.addr %s463, 8
        %s465 = scalar_lea.vmem %s4, %s464
      $region48: #{_lambda_.19} parent=43 // pred_fallthru
        _
    $region44: #{_lambda_.19} parent=5 // pred_fallthru
      _
  $region6: #{_lambda_.19} parent=0 // loop_footer
    %s14 = sadd.s32 1, %s10
  $region7: #{_lambda_.19} parent=0 // loop_footer_branch
    %9 = sbr.rel target = $region3
  $region8: #{_lambda_.19} parent=0 // loop_exit
    _

</llo_original>
